<compile_context>
chip_gen: v7x
topology: tpu7x:2x2x1
jax: 0.10.0
libtpu: 0.0.40
codegen_flags: <defaults>
</compile_context>

<pallas_src>
import functools

import numpy as np
import jax
import jax.numpy as jnp
from jax import lax
from jax.experimental import pallas as pl
from jax.experimental.pallas import tpu as pltpu


def lstm_ae_kernel(x_ref,                         # (F, S*TB)  batch-in-lanes
                   ewih_ref, ewhh_ref, eb_ref,    # (4E,F), (4E,E), (4E,1)
                   dwih_ref, dwhh_ref, db_ref,    # (4H,E), (4H,H), (4H,1)
                   fcw_ref, fcb_ref,              # (F,H), (F,1)
                   enc_out_ref,                   # (E, TB)
                   dec_out_ref,                   # (F, S*TB)
                   h_all_ref,                     # VMEM scratch (H, S*TB) f32
                   *, seq_len, batch_tile):
    S, TB = seq_len, batch_tile
    E = ewhh_ref.shape[1]
    H = dwhh_ref.shape[1]
    mm_dtype = fcw_ref.dtype          # dtype of the big (non-recurrent) matmuls

    # Recurrent weights stay fp32 (tiny K; avoids compounding bf16 rounding).
    ewhh = ewhh_ref[...]
    dwhh = dwhh_ref[...]

    # ---------------- Encoder ----------------
    # Hoisted input projection: all timesteps in one MXU matmul.
    gx = (jnp.dot(ewih_ref[...], x_ref[...],
                  preferred_element_type=jnp.float32)
          + eb_ref[...])                          # (4E, S*TB) fp32

    h = jnp.zeros((E, TB), jnp.float32)
    c = jnp.zeros((E, TB), jnp.float32)
    # Gate rows permuted in the wrapper to [i | f | o | g].
    for t in range(S):                            # static -> fully unrolled
        gates = gx[:, t * TB:(t + 1) * TB] + jnp.dot(
            ewhh, h, preferred_element_type=jnp.float32)      # (4E, TB)
        sig = jax.nn.sigmoid(gates[:3 * E, :])    # one wide EUP push (i,f,o)
        g = jnp.tanh(gates[3 * E:, :])            # one wide EUP push (g)
        c = sig[E:2 * E, :] * c + sig[:E, :] * g
        h = sig[2 * E:3 * E, :] * jnp.tanh(c)

    enc_out_ref[...] = h.astype(enc_out_ref.dtype)   # (E, TB) lane-dense

    # ---------------- Decoder ----------------
    # Decoder input is the constant encoded vector -> projection loop-invariant.
    dec_in = (jnp.dot(dwih_ref[...], h.astype(mm_dtype),
                      preferred_element_type=jnp.float32)
              + db_ref[...])                      # (4H, TB) fp32

    hd = jnp.zeros((H, TB), jnp.float32)
    cd = jnp.zeros((H, TB), jnp.float32)
    for t in range(S):                            # static -> fully unrolled
        gates = dec_in + jnp.dot(dwhh, hd, preferred_element_type=jnp.float32)
        sig = jax.nn.sigmoid(gates[:3 * H, :])
        g = jnp.tanh(gates[3 * H:, :])
        cd = sig[H:2 * H, :] * cd + sig[:H, :] * g
        hd = sig[2 * H:3 * H, :] * jnp.tanh(cd)
        h_all_ref[:, t * TB:(t + 1) * TB] = hd    # static, lane-aligned store

    # FC over all timesteps at once + one lane-dense store of the whole block.
    y = (jnp.dot(fcw_ref[...], h_all_ref[...].astype(mm_dtype),
                 preferred_element_type=jnp.float32)
         + fcb_ref[...])                          # (F, S*TB)
    dec_out_ref[...] = y.astype(dec_out_ref.dtype)


def _reorder_gates(w, h):
    """Permute the leading axis from torch gate order [i,f,g,o] to [i,f,o,g]."""
    return jnp.concatenate(
        [w[0 * h:1 * h], w[1 * h:2 * h], w[3 * h:4 * h], w[2 * h:3 * h]], axis=0)


def lstm_ae_forward(x, params, *, matmul_dtype=None, batch_tile=128):
    """x: (B, S, F) float32. Returns (encoded (B,E), decoded (B,S,F)).

    matmul_dtype: dtype of the big non-recurrent matmuls (input projections,
      FC).  None -> bf16 on v6e/v7x-class chips, fp32 on v5e.  The recurrence
      (Whh matmuls, carried h/c state, gate math) is always fp32.
    batch_tile: batch-lanes per grid step; must be a multiple of 128.
    """
    B, S, F = x.shape
    E = params["enc_whh"].shape[1]       # encoder hidden = embedding_dim
    H = params["dec_whh"].shape[1]       # decoder hidden = 2 * embedding_dim

    if matmul_dtype is None:
        kind = jax.devices()[0].device_kind.lower()
        matmul_dtype = jnp.float32 if "v5" in kind else jnp.bfloat16

    TB = int(batch_tile)
    if TB % 128 != 0:
        raise ValueError("batch_tile must be a multiple of 128 (lane-dense tiles)")
    B_pad = ((B + TB - 1) // TB) * TB
    ntiles = B_pad // TB

    # x: (B,S,F) -> (F, ntiles*S*TB); lanes ordered (tile, t, batch-in-tile).
    # All layout plumbing lives here (HBM-side XLA), never inside the kernel.
    x_p = jnp.pad(x, ((0, B_pad - B), (0, 0), (0, 0)))
    x_r = (x_p.reshape(ntiles, TB, S, F)
           .transpose(3, 0, 2, 1)
           .reshape(F, ntiles * S * TB)
           .astype(matmul_dtype))

    # Weights kept in torch (out, in) layout (batch-in-lanes needs W @ x^T);
    # gate rows permuted to [i,f,o,g].  Only big-projection operands get
    # matmul_dtype; recurrent weights and biases stay fp32.
    ewih = _reorder_gates(params["enc_wih"], E).astype(matmul_dtype)       # (4E, F)
    ewhh = _reorder_gates(params["enc_whh"], E)                            # (4E, E) f32
    eb = _reorder_gates(params["enc_bih"] + params["enc_bhh"], E)[:, None]  # (4E, 1)
    dwih = _reorder_gates(params["dec_wih"], H).astype(matmul_dtype)       # (4H, E)
    dwhh = _reorder_gates(params["dec_whh"], H)                            # (4H, H) f32
    db = _reorder_gates(params["dec_bih"] + params["dec_bhh"], H)[:, None]  # (4H, 1)
    fcw = params["fc_w"].astype(matmul_dtype)                              # (F, H)
    fcb = params["fc_b"][:, None]                                          # (F, 1)

    def full_spec(arr):
        return pl.BlockSpec(arr.shape, lambda b, _nd=arr.ndim: (0,) * _nd)

    # Explicit VMEM budget (scoped default is hit long before physical VMEM).
    vmem_bytes = 4 * (
        4 * F * S * TB                 # x tile + dec_out tile, double-buffered
        + 2 * E * TB                   # enc_out tile, double-buffered
        + H * S * TB                   # h_all scratch
        + 4 * E * S * TB               # gx intermediate
        + 2 * (4 * E * (F + E) + 4 * H * (E + H) + H * F + 4 * E + 4 * H + F)
    ) + (4 << 20)
    vmem_limit = int(min(max(vmem_bytes, 32 << 20), 64 << 20))

    kernel = functools.partial(lstm_ae_kernel, seq_len=S, batch_tile=TB)

    enc_bt, dec_bt = pl.pallas_call(
        kernel,
        out_shape=(jax.ShapeDtypeStruct((E, B_pad), jnp.float32),
                   jax.ShapeDtypeStruct((F, ntiles * S * TB), jnp.float32)),
        grid=(ntiles,),
        in_specs=[
            pl.BlockSpec((F, S * TB), lambda b: (0, b)),   # x tile over batch
            full_spec(ewih), full_spec(ewhh), full_spec(eb),
            full_spec(dwih), full_spec(dwhh), full_spec(db),
            full_spec(fcw), full_spec(fcb),
        ],
        out_specs=(pl.BlockSpec((E, TB), lambda b: (0, b)),
                   pl.BlockSpec((F, S * TB), lambda b: (0, b))),
        scratch_shapes=[pltpu.VMEM((H, S * TB), jnp.float32)],
        compiler_params=pltpu.CompilerParams(
            dimension_semantics=("parallel",),     # batch tiles -> v7x 2 TCs
            vmem_limit_bytes=vmem_limit),
    )(x_r, ewih, ewhh, eb, dwih, dwhh, db, fcw, fcb)

    encoded = enc_bt.T[:B]                                          # (B, E)
    decoded = (dec_bt.reshape(F, ntiles, S, TB)
               .transpose(1, 3, 2, 0)
               .reshape(B_pad, S, F))[:B]                           # (B, S, F)
    return encoded, decoded


# ---------------- pure-JAX reference (for correctness check) ----------------
def _lstm_ref(x, wih, whh, bih, bhh):
    """x: (B, S, F). Returns all hidden states (B, S, Hh). Torch gate order."""
    Hh = whh.shape[1]
    B = x.shape[0]

    def step(carry, xt):
        h, c = carry
        gates = xt @ wih.T + h @ whh.T + bih + bhh
        i = jax.nn.sigmoid(gates[:, 0 * Hh:1 * Hh])
        f = jax.nn.sigmoid(gates[:, 1 * Hh:2 * Hh])
        g = jnp.tanh(gates[:, 2 * Hh:3 * Hh])
        o = jax.nn.sigmoid(gates[:, 3 * Hh:4 * Hh])
        c = f * c + i * g
        h = o * jnp.tanh(c)
        return (h, c), h

    h0 = jnp.zeros((B, Hh), jnp.float32)
    (_, _), hs = lax.scan(step, (h0, h0), jnp.transpose(x, (1, 0, 2)))
    return jnp.transpose(hs, (1, 0, 2))


def lstm_ae_ref(x, p):
    enc_hs = _lstm_ref(x, p["enc_wih"], p["enc_whh"], p["enc_bih"], p["enc_bhh"])
    encoded = enc_hs[:, -1, :]
    S = x.shape[1]
    dec_in = jnp.repeat(encoded[:, None, :], S, axis=1)
    dec_hs = _lstm_ref(dec_in, p["dec_wih"], p["dec_whh"], p["dec_bih"], p["dec_bhh"])
    decoded = dec_hs @ p["fc_w"].T + p["fc_b"]
    return encoded, decoded


def init_params(key, no_features, embedding_dim):
    E = embedding_dim
    H = 2 * embedding_dim
    F = no_features
    ks = jax.random.split(key, 10)
    u = lambda k, shape, h: jax.random.uniform(
        k, shape, jnp.float32, -1.0 / np.sqrt(h), 1.0 / np.sqrt(h))
    return {
        "enc_wih": u(ks[0], (4 * E, F), E),
        "enc_whh": u(ks[1], (4 * E, E), E),
        "enc_bih": u(ks[2], (4 * E,), E),
        "enc_bhh": u(ks[3], (4 * E,), E),
        "dec_wih": u(ks[4], (4 * H, E), H),
        "dec_whh": u(ks[5], (4 * H, H), H),
        "dec_bih": u(ks[6], (4 * H,), H),
        "dec_bhh": u(ks[7], (4 * H,), H),
        "fc_w": u(ks[8], (F, H), H),
        "fc_b": u(ks[9], (F,), H),
    }


if __name__ == "__main__":
    B, S, F, E = 2, 8, 16, 32     # batch, seq_len, no_features, embedding_dim
    key = jax.random.PRNGKey(0)
    kx, kp = jax.random.split(key)
    x = jax.random.normal(kx, (B, S, F), jnp.float32)
    params = init_params(kp, no_features=F, embedding_dim=E)

    # fp32 path (bit-accurate vs. the reference)
    fwd_f32 = jax.jit(functools.partial(lstm_ae_forward, matmul_dtype=jnp.float32))
    encoded, decoded = fwd_f32(x, params)
    jax.block_until_ready((encoded, decoded))

    enc_ref, dec_ref = lstm_ae_ref(x, params)
    np.testing.assert_allclose(np.asarray(encoded), np.asarray(enc_ref),
                               rtol=1e-4, atol=1e-4)
    np.testing.assert_allclose(np.asarray(decoded), np.asarray(dec_ref),
                               rtol=1e-4, atol=1e-4)
    assert encoded.shape == (B, E) and decoded.shape == (B, S, F)

    # bf16 big-matmul path (v6e/v7x MXU peak); recurrence stays fp32 so the
    # error does not compound over S -> tight tolerance.
    fwd_bf16 = jax.jit(functools.partial(lstm_ae_forward, matmul_dtype=jnp.bfloat16))
    enc_bf, dec_bf = fwd_bf16(x, params)
    jax.block_until_ready((enc_bf, dec_bf))
    np.testing.assert_allclose(np.asarray(enc_bf), np.asarray(enc_ref),
                               rtol=5e-2, atol=5e-2)
    np.testing.assert_allclose(np.asarray(dec_bf), np.asarray(dec_ref),
                               rtol=5e-2, atol=5e-2)

    print("KERNEL_OK")
</pallas_src>

<mosaic_0001>
module attributes {stable_mosaic.version = 11 : i64} {
  func.func @lstm_ae_kernel(%arg0: i32, %arg1: memref<16x1024xf32, #tpu.memory_space<vmem>>, %arg2: memref<128x16xf32, #tpu.memory_space<vmem>>, %arg3: memref<128x32xf32, #tpu.memory_space<vmem>>, %arg4: memref<128x1xf32, #tpu.memory_space<vmem>>, %arg5: memref<256x32xf32, #tpu.memory_space<vmem>>, %arg6: memref<256x64xf32, #tpu.memory_space<vmem>>, %arg7: memref<256x1xf32, #tpu.memory_space<vmem>>, %arg8: memref<16x64xf32, #tpu.memory_space<vmem>>, %arg9: memref<16x1xf32, #tpu.memory_space<vmem>>, %arg10: memref<32x128xf32, #tpu.memory_space<vmem>>, %arg11: memref<16x1024xf32, #tpu.memory_space<vmem>>, %arg12: memref<64x1024xf32, #tpu.memory_space<vmem>>) attributes {dimension_semantics = [#tpu.dimension_semantics<parallel>], iteration_bounds = array<i64: 1>, scalar_prefetch = 0 : i64, scratch_operands = 1 : i64, tpu.core_type = #tpu.core_type<tc>, window_params = [{transform_indices = @transform_0, window_bounds = array<i64: 16, 1024>}, {pipeline_mode = #tpu.pipeline_mode<synchronous>, transform_indices = @transform_1, window_bounds = array<i64: 128, 16>}, {pipeline_mode = #tpu.pipeline_mode<synchronous>, transform_indices = @transform_2, window_bounds = array<i64: 128, 32>}, {pipeline_mode = #tpu.pipeline_mode<synchronous>, transform_indices = @transform_3, window_bounds = array<i64: 128, 1>}, {pipeline_mode = #tpu.pipeline_mode<synchronous>, transform_indices = @transform_4, window_bounds = array<i64: 256, 32>}, {pipeline_mode = #tpu.pipeline_mode<synchronous>, transform_indices = @transform_5, window_bounds = array<i64: 256, 64>}, {pipeline_mode = #tpu.pipeline_mode<synchronous>, transform_indices = @transform_6, window_bounds = array<i64: 256, 1>}, {pipeline_mode = #tpu.pipeline_mode<synchronous>, transform_indices = @transform_7, window_bounds = array<i64: 16, 64>}, {pipeline_mode = #tpu.pipeline_mode<synchronous>, transform_indices = @transform_8, window_bounds = array<i64: 16, 1>}, {transform_indices = @transform_9, window_bounds = array<i64: 32, 128>}, {transform_indices = @transform_10, window_bounds = array<i64: 16, 1024>}]} {
    %c0 = arith.constant 0 : index
    %c0_0 = arith.constant 0 : index
    %0 = vector.load %arg3[%c0, %c0_0] : memref<128x32xf32, #tpu.memory_space<vmem>>, vector<128x32xf32>
    %c0_1 = arith.constant 0 : index
    %c0_2 = arith.constant 0 : index
    %1 = vector.load %arg6[%c0_1, %c0_2] : memref<256x64xf32, #tpu.memory_space<vmem>>, vector<256x64xf32>
    %c0_3 = arith.constant 0 : index
    %c0_4 = arith.constant 0 : index
    %2 = vector.load %arg2[%c0_3, %c0_4] : memref<128x16xf32, #tpu.memory_space<vmem>>, vector<128x16xf32>
    %c0_5 = arith.constant 0 : index
    %c0_6 = arith.constant 0 : index
    %3 = vector.load %arg1[%c0_5, %c0_6] : memref<16x1024xf32, #tpu.memory_space<vmem>>, vector<16x1024xf32>
    %cst = arith.constant dense<0.000000e+00> : vector<128x1024xf32>
    %4 = tpu.matmul %2, %3, %cst {dimension_numbers = #tpu.dot_dimension_numbers<[1], [0], [0], [1], [0, 0, 1, 1], [], []>} : vector<128x16xf32>, vector<16x1024xf32>, vector<128x1024xf32> -> vector<128x1024xf32>
    %c0_7 = arith.constant 0 : index
    %c0_8 = arith.constant 0 : index
    %5 = vector.load %arg4[%c0_7, %c0_8] : memref<128x1xf32, #tpu.memory_space<vmem>>, vector<128x1xf32>
    %6 = vector.broadcast %5 : vector<128x1xf32> to vector<128x1024xf32>
    %7 = arith.addf %4, %6 : vector<128x1024xf32>
    %cst_9 = arith.constant 0.000000e+00 : f32
    %8 = vector.broadcast %cst_9 : f32 to vector<32x128xf32>
    %cst_10 = arith.constant 0.000000e+00 : f32
    %9 = vector.broadcast %cst_10 : f32 to vector<32x128xf32>
    %10 = vector.extract_strided_slice %7 {offsets = [0, 0], sizes = [128, 128], strides = [1, 1]} : vector<128x1024xf32> to vector<128x128xf32>
    %cst_11 = arith.constant dense<0.000000e+00> : vector<128x128xf32>
    %11 = tpu.matmul %0, %8, %cst_11 {dimension_numbers = #tpu.dot_dimension_numbers<[1], [0], [0], [1], [0, 0, 1, 1], [], []>} : vector<128x32xf32>, vector<32x128xf32>, vector<128x128xf32> -> vector<128x128xf32>
    %12 = arith.addf %10, %11 : vector<128x128xf32>
    %13 = vector.extract_strided_slice %12 {offsets = [0, 0], sizes = [96, 128], strides = [1, 1]} : vector<128x128xf32> to vector<96x128xf32>
    %14 = arith.negf %13 : vector<96x128xf32>
    %15 = math.exp %14 : vector<96x128xf32>
    %cst_12 = arith.constant 1.000000e+00 : f32
    %16 = vector.broadcast %cst_12 : f32 to vector<96x128xf32>
    %17 = arith.addf %16, %15 : vector<96x128xf32>
    %18 = arith.divf %16, %17 : vector<96x128xf32>
    %19 = vector.extract_strided_slice %12 {offsets = [96, 0], sizes = [32, 128], strides = [1, 1]} : vector<128x128xf32> to vector<32x128xf32>
    %20 = math.tanh %19 : vector<32x128xf32>
    %21 = vector.extract_strided_slice %18 {offsets = [32, 0], sizes = [32, 128], strides = [1, 1]} : vector<96x128xf32> to vector<32x128xf32>
    %22 = arith.mulf %21, %9 : vector<32x128xf32>
    %23 = vector.extract_strided_slice %18 {offsets = [0, 0], sizes = [32, 128], strides = [1, 1]} : vector<96x128xf32> to vector<32x128xf32>
    %24 = arith.mulf %23, %20 : vector<32x128xf32>
    %25 = arith.addf %22, %24 : vector<32x128xf32>
    %26 = vector.extract_strided_slice %18 {offsets = [64, 0], sizes = [32, 128], strides = [1, 1]} : vector<96x128xf32> to vector<32x128xf32>
    %27 = math.tanh %25 : vector<32x128xf32>
    %28 = arith.mulf %26, %27 : vector<32x128xf32>
    %29 = vector.extract_strided_slice %7 {offsets = [0, 128], sizes = [128, 128], strides = [1, 1]} : vector<128x1024xf32> to vector<128x128xf32>
    %cst_13 = arith.constant dense<0.000000e+00> : vector<128x128xf32>
    %30 = tpu.matmul %0, %28, %cst_13 {dimension_numbers = #tpu.dot_dimension_numbers<[1], [0], [0], [1], [0, 0, 1, 1], [], []>} : vector<128x32xf32>, vector<32x128xf32>, vector<128x128xf32> -> vector<128x128xf32>
    %31 = arith.addf %29, %30 : vector<128x128xf32>
    %32 = vector.extract_strided_slice %31 {offsets = [0, 0], sizes = [96, 128], strides = [1, 1]} : vector<128x128xf32> to vector<96x128xf32>
    %33 = arith.negf %32 : vector<96x128xf32>
    %34 = math.exp %33 : vector<96x128xf32>
    %cst_14 = arith.constant 1.000000e+00 : f32
    %35 = vector.broadcast %cst_14 : f32 to vector<96x128xf32>
    %36 = arith.addf %35, %34 : vector<96x128xf32>
    %37 = arith.divf %35, %36 : vector<96x128xf32>
    %38 = vector.extract_strided_slice %31 {offsets = [96, 0], sizes = [32, 128], strides = [1, 1]} : vector<128x128xf32> to vector<32x128xf32>
    %39 = math.tanh %38 : vector<32x128xf32>
    %40 = vector.extract_strided_slice %37 {offsets = [32, 0], sizes = [32, 128], strides = [1, 1]} : vector<96x128xf32> to vector<32x128xf32>
    %41 = arith.mulf %40, %25 : vector<32x128xf32>
    %42 = vector.extract_strided_slice %37 {offsets = [0, 0], sizes = [32, 128], strides = [1, 1]} : vector<96x128xf32> to vector<32x128xf32>
    %43 = arith.mulf %42, %39 : vector<32x128xf32>
    %44 = arith.addf %41, %43 : vector<32x128xf32>
    %45 = vector.extract_strided_slice %37 {offsets = [64, 0], sizes = [32, 128], strides = [1, 1]} : vector<96x128xf32> to vector<32x128xf32>
    %46 = math.tanh %44 : vector<32x128xf32>
    %47 = arith.mulf %45, %46 : vector<32x128xf32>
    %48 = vector.extract_strided_slice %7 {offsets = [0, 256], sizes = [128, 128], strides = [1, 1]} : vector<128x1024xf32> to vector<128x128xf32>
    %cst_15 = arith.constant dense<0.000000e+00> : vector<128x128xf32>
    %49 = tpu.matmul %0, %47, %cst_15 {dimension_numbers = #tpu.dot_dimension_numbers<[1], [0], [0], [1], [0, 0, 1, 1], [], []>} : vector<128x32xf32>, vector<32x128xf32>, vector<128x128xf32> -> vector<128x128xf32>
    %50 = arith.addf %48, %49 : vector<128x128xf32>
    %51 = vector.extract_strided_slice %50 {offsets = [0, 0], sizes = [96, 128], strides = [1, 1]} : vector<128x128xf32> to vector<96x128xf32>
    %52 = arith.negf %51 : vector<96x128xf32>
    %53 = math.exp %52 : vector<96x128xf32>
    %cst_16 = arith.constant 1.000000e+00 : f32
    %54 = vector.broadcast %cst_16 : f32 to vector<96x128xf32>
    %55 = arith.addf %54, %53 : vector<96x128xf32>
    %56 = arith.divf %54, %55 : vector<96x128xf32>
    %57 = vector.extract_strided_slice %50 {offsets = [96, 0], sizes = [32, 128], strides = [1, 1]} : vector<128x128xf32> to vector<32x128xf32>
    %58 = math.tanh %57 : vector<32x128xf32>
    %59 = vector.extract_strided_slice %56 {offsets = [32, 0], sizes = [32, 128], strides = [1, 1]} : vector<96x128xf32> to vector<32x128xf32>
    %60 = arith.mulf %59, %44 : vector<32x128xf32>
    %61 = vector.extract_strided_slice %56 {offsets = [0, 0], sizes = [32, 128], strides = [1, 1]} : vector<96x128xf32> to vector<32x128xf32>
    %62 = arith.mulf %61, %58 : vector<32x128xf32>
    %63 = arith.addf %60, %62 : vector<32x128xf32>
    %64 = vector.extract_strided_slice %56 {offsets = [64, 0], sizes = [32, 128], strides = [1, 1]} : vector<96x128xf32> to vector<32x128xf32>
    %65 = math.tanh %63 : vector<32x128xf32>
    %66 = arith.mulf %64, %65 : vector<32x128xf32>
    %67 = vector.extract_strided_slice %7 {offsets = [0, 384], sizes = [128, 128], strides = [1, 1]} : vector<128x1024xf32> to vector<128x128xf32>
    %cst_17 = arith.constant dense<0.000000e+00> : vector<128x128xf32>
    %68 = tpu.matmul %0, %66, %cst_17 {dimension_numbers = #tpu.dot_dimension_numbers<[1], [0], [0], [1], [0, 0, 1, 1], [], []>} : vector<128x32xf32>, vector<32x128xf32>, vector<128x128xf32> -> vector<128x128xf32>
    %69 = arith.addf %67, %68 : vector<128x128xf32>
    %70 = vector.extract_strided_slice %69 {offsets = [0, 0], sizes = [96, 128], strides = [1, 1]} : vector<128x128xf32> to vector<96x128xf32>
    %71 = arith.negf %70 : vector<96x128xf32>
    %72 = math.exp %71 : vector<96x128xf32>
    %cst_18 = arith.constant 1.000000e+00 : f32
    %73 = vector.broadcast %cst_18 : f32 to vector<96x128xf32>
    %74 = arith.addf %73, %72 : vector<96x128xf32>
    %75 = arith.divf %73, %74 : vector<96x128xf32>
    %76 = vector.extract_strided_slice %69 {offsets = [96, 0], sizes = [32, 128], strides = [1, 1]} : vector<128x128xf32> to vector<32x128xf32>
    %77 = math.tanh %76 : vector<32x128xf32>
    %78 = vector.extract_strided_slice %75 {offsets = [32, 0], sizes = [32, 128], strides = [1, 1]} : vector<96x128xf32> to vector<32x128xf32>
    %79 = arith.mulf %78, %63 : vector<32x128xf32>
    %80 = vector.extract_strided_slice %75 {offsets = [0, 0], sizes = [32, 128], strides = [1, 1]} : vector<96x128xf32> to vector<32x128xf32>
    %81 = arith.mulf %80, %77 : vector<32x128xf32>
    %82 = arith.addf %79, %81 : vector<32x128xf32>
    %83 = vector.extract_strided_slice %75 {offsets = [64, 0], sizes = [32, 128], strides = [1, 1]} : vector<96x128xf32> to vector<32x128xf32>
    %84 = math.tanh %82 : vector<32x128xf32>
    %85 = arith.mulf %83, %84 : vector<32x128xf32>
    %86 = vector.extract_strided_slice %7 {offsets = [0, 512], sizes = [128, 128], strides = [1, 1]} : vector<128x1024xf32> to vector<128x128xf32>
    %cst_19 = arith.constant dense<0.000000e+00> : vector<128x128xf32>
    %87 = tpu.matmul %0, %85, %cst_19 {dimension_numbers = #tpu.dot_dimension_numbers<[1], [0], [0], [1], [0, 0, 1, 1], [], []>} : vector<128x32xf32>, vector<32x128xf32>, vector<128x128xf32> -> vector<128x128xf32>
    %88 = arith.addf %86, %87 : vector<128x128xf32>
    %89 = vector.extract_strided_slice %88 {offsets = [0, 0], sizes = [96, 128], strides = [1, 1]} : vector<128x128xf32> to vector<96x128xf32>
    %90 = arith.negf %89 : vector<96x128xf32>
    %91 = math.exp %90 : vector<96x128xf32>
    %cst_20 = arith.constant 1.000000e+00 : f32
    %92 = vector.broadcast %cst_20 : f32 to vector<96x128xf32>
    %93 = arith.addf %92, %91 : vector<96x128xf32>
    %94 = arith.divf %92, %93 : vector<96x128xf32>
    %95 = vector.extract_strided_slice %88 {offsets = [96, 0], sizes = [32, 128], strides = [1, 1]} : vector<128x128xf32> to vector<32x128xf32>
    %96 = math.tanh %95 : vector<32x128xf32>
    %97 = vector.extract_strided_slice %94 {offsets = [32, 0], sizes = [32, 128], strides = [1, 1]} : vector<96x128xf32> to vector<32x128xf32>
    %98 = arith.mulf %97, %82 : vector<32x128xf32>
    %99 = vector.extract_strided_slice %94 {offsets = [0, 0], sizes = [32, 128], strides = [1, 1]} : vector<96x128xf32> to vector<32x128xf32>
    %100 = arith.mulf %99, %96 : vector<32x128xf32>
    %101 = arith.addf %98, %100 : vector<32x128xf32>
    %102 = vector.extract_strided_slice %94 {offsets = [64, 0], sizes = [32, 128], strides = [1, 1]} : vector<96x128xf32> to vector<32x128xf32>
    %103 = math.tanh %101 : vector<32x128xf32>
    %104 = arith.mulf %102, %103 : vector<32x128xf32>
    %105 = vector.extract_strided_slice %7 {offsets = [0, 640], sizes = [128, 128], strides = [1, 1]} : vector<128x1024xf32> to vector<128x128xf32>
    %cst_21 = arith.constant dense<0.000000e+00> : vector<128x128xf32>
    %106 = tpu.matmul %0, %104, %cst_21 {dimension_numbers = #tpu.dot_dimension_numbers<[1], [0], [0], [1], [0, 0, 1, 1], [], []>} : vector<128x32xf32>, vector<32x128xf32>, vector<128x128xf32> -> vector<128x128xf32>
    %107 = arith.addf %105, %106 : vector<128x128xf32>
    %108 = vector.extract_strided_slice %107 {offsets = [0, 0], sizes = [96, 128], strides = [1, 1]} : vector<128x128xf32> to vector<96x128xf32>
    %109 = arith.negf %108 : vector<96x128xf32>
    %110 = math.exp %109 : vector<96x128xf32>
    %cst_22 = arith.constant 1.000000e+00 : f32
    %111 = vector.broadcast %cst_22 : f32 to vector<96x128xf32>
    %112 = arith.addf %111, %110 : vector<96x128xf32>
    %113 = arith.divf %111, %112 : vector<96x128xf32>
    %114 = vector.extract_strided_slice %107 {offsets = [96, 0], sizes = [32, 128], strides = [1, 1]} : vector<128x128xf32> to vector<32x128xf32>
    %115 = math.tanh %114 : vector<32x128xf32>
    %116 = vector.extract_strided_slice %113 {offsets = [32, 0], sizes = [32, 128], strides = [1, 1]} : vector<96x128xf32> to vector<32x128xf32>
    %117 = arith.mulf %116, %101 : vector<32x128xf32>
    %118 = vector.extract_strided_slice %113 {offsets = [0, 0], sizes = [32, 128], strides = [1, 1]} : vector<96x128xf32> to vector<32x128xf32>
    %119 = arith.mulf %118, %115 : vector<32x128xf32>
    %120 = arith.addf %117, %119 : vector<32x128xf32>
    %121 = vector.extract_strided_slice %113 {offsets = [64, 0], sizes = [32, 128], strides = [1, 1]} : vector<96x128xf32> to vector<32x128xf32>
    %122 = math.tanh %120 : vector<32x128xf32>
    %123 = arith.mulf %121, %122 : vector<32x128xf32>
    %124 = vector.extract_strided_slice %7 {offsets = [0, 768], sizes = [128, 128], strides = [1, 1]} : vector<128x1024xf32> to vector<128x128xf32>
    %cst_23 = arith.constant dense<0.000000e+00> : vector<128x128xf32>
    %125 = tpu.matmul %0, %123, %cst_23 {dimension_numbers = #tpu.dot_dimension_numbers<[1], [0], [0], [1], [0, 0, 1, 1], [], []>} : vector<128x32xf32>, vector<32x128xf32>, vector<128x128xf32> -> vector<128x128xf32>
    %126 = arith.addf %124, %125 : vector<128x128xf32>
    %127 = vector.extract_strided_slice %126 {offsets = [0, 0], sizes = [96, 128], strides = [1, 1]} : vector<128x128xf32> to vector<96x128xf32>
    %128 = arith.negf %127 : vector<96x128xf32>
    %129 = math.exp %128 : vector<96x128xf32>
    %cst_24 = arith.constant 1.000000e+00 : f32
    %130 = vector.broadcast %cst_24 : f32 to vector<96x128xf32>
    %131 = arith.addf %130, %129 : vector<96x128xf32>
    %132 = arith.divf %130, %131 : vector<96x128xf32>
    %133 = vector.extract_strided_slice %126 {offsets = [96, 0], sizes = [32, 128], strides = [1, 1]} : vector<128x128xf32> to vector<32x128xf32>
    %134 = math.tanh %133 : vector<32x128xf32>
    %135 = vector.extract_strided_slice %132 {offsets = [32, 0], sizes = [32, 128], strides = [1, 1]} : vector<96x128xf32> to vector<32x128xf32>
    %136 = arith.mulf %135, %120 : vector<32x128xf32>
    %137 = vector.extract_strided_slice %132 {offsets = [0, 0], sizes = [32, 128], strides = [1, 1]} : vector<96x128xf32> to vector<32x128xf32>
    %138 = arith.mulf %137, %134 : vector<32x128xf32>
    %139 = arith.addf %136, %138 : vector<32x128xf32>
    %140 = vector.extract_strided_slice %132 {offsets = [64, 0], sizes = [32, 128], strides = [1, 1]} : vector<96x128xf32> to vector<32x128xf32>
    %141 = math.tanh %139 : vector<32x128xf32>
    %142 = arith.mulf %140, %141 : vector<32x128xf32>
    %143 = vector.extract_strided_slice %7 {offsets = [0, 896], sizes = [128, 128], strides = [1, 1]} : vector<128x1024xf32> to vector<128x128xf32>
    %cst_25 = arith.constant dense<0.000000e+00> : vector<128x128xf32>
    %144 = tpu.matmul %0, %142, %cst_25 {dimension_numbers = #tpu.dot_dimension_numbers<[1], [0], [0], [1], [0, 0, 1, 1], [], []>} : vector<128x32xf32>, vector<32x128xf32>, vector<128x128xf32> -> vector<128x128xf32>
    %145 = arith.addf %143, %144 : vector<128x128xf32>
    %146 = vector.extract_strided_slice %145 {offsets = [0, 0], sizes = [96, 128], strides = [1, 1]} : vector<128x128xf32> to vector<96x128xf32>
    %147 = arith.negf %146 : vector<96x128xf32>
    %148 = math.exp %147 : vector<96x128xf32>
    %cst_26 = arith.constant 1.000000e+00 : f32
    %149 = vector.broadcast %cst_26 : f32 to vector<96x128xf32>
    %150 = arith.addf %149, %148 : vector<96x128xf32>
    %151 = arith.divf %149, %150 : vector<96x128xf32>
    %152 = vector.extract_strided_slice %145 {offsets = [96, 0], sizes = [32, 128], strides = [1, 1]} : vector<128x128xf32> to vector<32x128xf32>
    %153 = math.tanh %152 : vector<32x128xf32>
    %154 = vector.extract_strided_slice %151 {offsets = [32, 0], sizes = [32, 128], strides = [1, 1]} : vector<96x128xf32> to vector<32x128xf32>
    %155 = arith.mulf %154, %139 : vector<32x128xf32>
    %156 = vector.extract_strided_slice %151 {offsets = [0, 0], sizes = [32, 128], strides = [1, 1]} : vector<96x128xf32> to vector<32x128xf32>
    %157 = arith.mulf %156, %153 : vector<32x128xf32>
    %158 = arith.addf %155, %157 : vector<32x128xf32>
    %159 = vector.extract_strided_slice %151 {offsets = [64, 0], sizes = [32, 128], strides = [1, 1]} : vector<96x128xf32> to vector<32x128xf32>
    %160 = math.tanh %158 : vector<32x128xf32>
    %161 = arith.mulf %159, %160 : vector<32x128xf32>
    %c0_27 = arith.constant 0 : index
    %c0_28 = arith.constant 0 : index
    %162 = vector.load %arg10[%c0_27, %c0_28] : memref<32x128xf32, #tpu.memory_space<vmem>>, vector<32x128xf32>
    tpu.vector_store %arg10[%c0_27, %c0_28], %161 {strides = array<i32>} : memref<32x128xf32, #tpu.memory_space<vmem>>, vector<32x128xf32>,
    %c0_29 = arith.constant 0 : index
    %c0_30 = arith.constant 0 : index
    %163 = vector.load %arg5[%c0_29, %c0_30] : memref<256x32xf32, #tpu.memory_space<vmem>>, vector<256x32xf32>
    %cst_31 = arith.constant dense<0.000000e+00> : vector<256x128xf32>
    %164 = tpu.matmul %163, %161, %cst_31 {dimension_numbers = #tpu.dot_dimension_numbers<[1], [0], [0], [1], [0, 0, 1, 1], [], []>} : vector<256x32xf32>, vector<32x128xf32>, vector<256x128xf32> -> vector<256x128xf32>
    %c0_32 = arith.constant 0 : index
    %c0_33 = arith.constant 0 : index
    %165 = vector.load %arg7[%c0_32, %c0_33] : memref<256x1xf32, #tpu.memory_space<vmem>>, vector<256x1xf32>
    %166 = vector.broadcast %165 : vector<256x1xf32> to vector<256x128xf32>
    %167 = arith.addf %164, %166 : vector<256x128xf32>
    %cst_34 = arith.constant 0.000000e+00 : f32
    %168 = vector.broadcast %cst_34 : f32 to vector<64x128xf32>
    %cst_35 = arith.constant 0.000000e+00 : f32
    %169 = vector.broadcast %cst_35 : f32 to vector<64x128xf32>
    %cst_36 = arith.constant dense<0.000000e+00> : vector<256x128xf32>
    %170 = tpu.matmul %1, %168, %cst_36 {dimension_numbers = #tpu.dot_dimension_numbers<[1], [0], [0], [1], [0, 0, 1, 1], [], []>} : vector<256x64xf32>, vector<64x128xf32>, vector<256x128xf32> -> vector<256x128xf32>
    %171 = arith.addf %167, %170 : vector<256x128xf32>
    %172 = vector.extract_strided_slice %171 {offsets = [0, 0], sizes = [192, 128], strides = [1, 1]} : vector<256x128xf32> to vector<192x128xf32>
    %173 = arith.negf %172 : vector<192x128xf32>
    %174 = math.exp %173 : vector<192x128xf32>
    %cst_37 = arith.constant 1.000000e+00 : f32
    %175 = vector.broadcast %cst_37 : f32 to vector<192x128xf32>
    %176 = arith.addf %175, %174 : vector<192x128xf32>
    %177 = arith.divf %175, %176 : vector<192x128xf32>
    %178 = vector.extract_strided_slice %171 {offsets = [192, 0], sizes = [64, 128], strides = [1, 1]} : vector<256x128xf32> to vector<64x128xf32>
    %179 = math.tanh %178 : vector<64x128xf32>
    %180 = vector.extract_strided_slice %177 {offsets = [64, 0], sizes = [64, 128], strides = [1, 1]} : vector<192x128xf32> to vector<64x128xf32>
    %181 = arith.mulf %180, %169 : vector<64x128xf32>
    %182 = vector.extract_strided_slice %177 {offsets = [0, 0], sizes = [64, 128], strides = [1, 1]} : vector<192x128xf32> to vector<64x128xf32>
    %183 = arith.mulf %182, %179 : vector<64x128xf32>
    %184 = arith.addf %181, %183 : vector<64x128xf32>
    %185 = vector.extract_strided_slice %177 {offsets = [128, 0], sizes = [64, 128], strides = [1, 1]} : vector<192x128xf32> to vector<64x128xf32>
    %186 = math.tanh %184 : vector<64x128xf32>
    %187 = arith.mulf %185, %186 : vector<64x128xf32>
    %c0_38 = arith.constant 0 : index
    %c0_39 = arith.constant 0 : index
    %188 = vector.load %arg12[%c0_38, %c0_39] : memref<64x1024xf32, #tpu.memory_space<vmem>>, vector<64x128xf32>
    tpu.vector_store %arg12[%c0_38, %c0_39], %187 {strides = array<i32>} : memref<64x1024xf32, #tpu.memory_space<vmem>>, vector<64x128xf32>,
    %cst_40 = arith.constant dense<0.000000e+00> : vector<256x128xf32>
    %189 = tpu.matmul %1, %187, %cst_40 {dimension_numbers = #tpu.dot_dimension_numbers<[1], [0], [0], [1], [0, 0, 1, 1], [], []>} : vector<256x64xf32>, vector<64x128xf32>, vector<256x128xf32> -> vector<256x128xf32>
    %190 = arith.addf %167, %189 : vector<256x128xf32>
    %191 = vector.extract_strided_slice %190 {offsets = [0, 0], sizes = [192, 128], strides = [1, 1]} : vector<256x128xf32> to vector<192x128xf32>
    %192 = arith.negf %191 : vector<192x128xf32>
    %193 = math.exp %192 : vector<192x128xf32>
    %cst_41 = arith.constant 1.000000e+00 : f32
    %194 = vector.broadcast %cst_41 : f32 to vector<192x128xf32>
    %195 = arith.addf %194, %193 : vector<192x128xf32>
    %196 = arith.divf %194, %195 : vector<192x128xf32>
    %197 = vector.extract_strided_slice %190 {offsets = [192, 0], sizes = [64, 128], strides = [1, 1]} : vector<256x128xf32> to vector<64x128xf32>
    %198 = math.tanh %197 : vector<64x128xf32>
    %199 = vector.extract_strided_slice %196 {offsets = [64, 0], sizes = [64, 128], strides = [1, 1]} : vector<192x128xf32> to vector<64x128xf32>
    %200 = arith.mulf %199, %184 : vector<64x128xf32>
    %201 = vector.extract_strided_slice %196 {offsets = [0, 0], sizes = [64, 128], strides = [1, 1]} : vector<192x128xf32> to vector<64x128xf32>
    %202 = arith.mulf %201, %198 : vector<64x128xf32>
    %203 = arith.addf %200, %202 : vector<64x128xf32>
    %204 = vector.extract_strided_slice %196 {offsets = [128, 0], sizes = [64, 128], strides = [1, 1]} : vector<192x128xf32> to vector<64x128xf32>
    %205 = math.tanh %203 : vector<64x128xf32>
    %206 = arith.mulf %204, %205 : vector<64x128xf32>
    %c0_42 = arith.constant 0 : index
    %c128 = arith.constant 128 : index
    %207 = vector.load %arg12[%c0_42, %c128] : memref<64x1024xf32, #tpu.memory_space<vmem>>, vector<64x128xf32>
    tpu.vector_store %arg12[%c0_42, %c128], %206 {strides = array<i32>} : memref<64x1024xf32, #tpu.memory_space<vmem>>, vector<64x128xf32>,
    %cst_43 = arith.constant dense<0.000000e+00> : vector<256x128xf32>
    %208 = tpu.matmul %1, %206, %cst_43 {dimension_numbers = #tpu.dot_dimension_numbers<[1], [0], [0], [1], [0, 0, 1, 1], [], []>} : vector<256x64xf32>, vector<64x128xf32>, vector<256x128xf32> -> vector<256x128xf32>
    %209 = arith.addf %167, %208 : vector<256x128xf32>
    %210 = vector.extract_strided_slice %209 {offsets = [0, 0], sizes = [192, 128], strides = [1, 1]} : vector<256x128xf32> to vector<192x128xf32>
    %211 = arith.negf %210 : vector<192x128xf32>
    %212 = math.exp %211 : vector<192x128xf32>
    %cst_44 = arith.constant 1.000000e+00 : f32
    %213 = vector.broadcast %cst_44 : f32 to vector<192x128xf32>
    %214 = arith.addf %213, %212 : vector<192x128xf32>
    %215 = arith.divf %213, %214 : vector<192x128xf32>
    %216 = vector.extract_strided_slice %209 {offsets = [192, 0], sizes = [64, 128], strides = [1, 1]} : vector<256x128xf32> to vector<64x128xf32>
    %217 = math.tanh %216 : vector<64x128xf32>
    %218 = vector.extract_strided_slice %215 {offsets = [64, 0], sizes = [64, 128], strides = [1, 1]} : vector<192x128xf32> to vector<64x128xf32>
    %219 = arith.mulf %218, %203 : vector<64x128xf32>
    %220 = vector.extract_strided_slice %215 {offsets = [0, 0], sizes = [64, 128], strides = [1, 1]} : vector<192x128xf32> to vector<64x128xf32>
    %221 = arith.mulf %220, %217 : vector<64x128xf32>
    %222 = arith.addf %219, %221 : vector<64x128xf32>
    %223 = vector.extract_strided_slice %215 {offsets = [128, 0], sizes = [64, 128], strides = [1, 1]} : vector<192x128xf32> to vector<64x128xf32>
    %224 = math.tanh %222 : vector<64x128xf32>
    %225 = arith.mulf %223, %224 : vector<64x128xf32>
    %c0_45 = arith.constant 0 : index
    %c256 = arith.constant 256 : index
    %226 = vector.load %arg12[%c0_45, %c256] : memref<64x1024xf32, #tpu.memory_space<vmem>>, vector<64x128xf32>
    tpu.vector_store %arg12[%c0_45, %c256], %225 {strides = array<i32>} : memref<64x1024xf32, #tpu.memory_space<vmem>>, vector<64x128xf32>,
    %cst_46 = arith.constant dense<0.000000e+00> : vector<256x128xf32>
    %227 = tpu.matmul %1, %225, %cst_46 {dimension_numbers = #tpu.dot_dimension_numbers<[1], [0], [0], [1], [0, 0, 1, 1], [], []>} : vector<256x64xf32>, vector<64x128xf32>, vector<256x128xf32> -> vector<256x128xf32>
    %228 = arith.addf %167, %227 : vector<256x128xf32>
    %229 = vector.extract_strided_slice %228 {offsets = [0, 0], sizes = [192, 128], strides = [1, 1]} : vector<256x128xf32> to vector<192x128xf32>
    %230 = arith.negf %229 : vector<192x128xf32>
    %231 = math.exp %230 : vector<192x128xf32>
    %cst_47 = arith.constant 1.000000e+00 : f32
    %232 = vector.broadcast %cst_47 : f32 to vector<192x128xf32>
    %233 = arith.addf %232, %231 : vector<192x128xf32>
    %234 = arith.divf %232, %233 : vector<192x128xf32>
    %235 = vector.extract_strided_slice %228 {offsets = [192, 0], sizes = [64, 128], strides = [1, 1]} : vector<256x128xf32> to vector<64x128xf32>
    %236 = math.tanh %235 : vector<64x128xf32>
    %237 = vector.extract_strided_slice %234 {offsets = [64, 0], sizes = [64, 128], strides = [1, 1]} : vector<192x128xf32> to vector<64x128xf32>
    %238 = arith.mulf %237, %222 : vector<64x128xf32>
    %239 = vector.extract_strided_slice %234 {offsets = [0, 0], sizes = [64, 128], strides = [1, 1]} : vector<192x128xf32> to vector<64x128xf32>
    %240 = arith.mulf %239, %236 : vector<64x128xf32>
    %241 = arith.addf %238, %240 : vector<64x128xf32>
    %242 = vector.extract_strided_slice %234 {offsets = [128, 0], sizes = [64, 128], strides = [1, 1]} : vector<192x128xf32> to vector<64x128xf32>
    %243 = math.tanh %241 : vector<64x128xf32>
    %244 = arith.mulf %242, %243 : vector<64x128xf32>
    %c0_48 = arith.constant 0 : index
    %c384 = arith.constant 384 : index
    %245 = vector.load %arg12[%c0_48, %c384] : memref<64x1024xf32, #tpu.memory_space<vmem>>, vector<64x128xf32>
    tpu.vector_store %arg12[%c0_48, %c384], %244 {strides = array<i32>} : memref<64x1024xf32, #tpu.memory_space<vmem>>, vector<64x128xf32>,
    %cst_49 = arith.constant dense<0.000000e+00> : vector<256x128xf32>
    %246 = tpu.matmul %1, %244, %cst_49 {dimension_numbers = #tpu.dot_dimension_numbers<[1], [0], [0], [1], [0, 0, 1, 1], [], []>} : vector<256x64xf32>, vector<64x128xf32>, vector<256x128xf32> -> vector<256x128xf32>
    %247 = arith.addf %167, %246 : vector<256x128xf32>
    %248 = vector.extract_strided_slice %247 {offsets = [0, 0], sizes = [192, 128], strides = [1, 1]} : vector<256x128xf32> to vector<192x128xf32>
    %249 = arith.negf %248 : vector<192x128xf32>
    %250 = math.exp %249 : vector<192x128xf32>
    %cst_50 = arith.constant 1.000000e+00 : f32
    %251 = vector.broadcast %cst_50 : f32 to vector<192x128xf32>
    %252 = arith.addf %251, %250 : vector<192x128xf32>
    %253 = arith.divf %251, %252 : vector<192x128xf32>
    %254 = vector.extract_strided_slice %247 {offsets = [192, 0], sizes = [64, 128], strides = [1, 1]} : vector<256x128xf32> to vector<64x128xf32>
    %255 = math.tanh %254 : vector<64x128xf32>
    %256 = vector.extract_strided_slice %253 {offsets = [64, 0], sizes = [64, 128], strides = [1, 1]} : vector<192x128xf32> to vector<64x128xf32>
    %257 = arith.mulf %256, %241 : vector<64x128xf32>
    %258 = vector.extract_strided_slice %253 {offsets = [0, 0], sizes = [64, 128], strides = [1, 1]} : vector<192x128xf32> to vector<64x128xf32>
    %259 = arith.mulf %258, %255 : vector<64x128xf32>
    %260 = arith.addf %257, %259 : vector<64x128xf32>
    %261 = vector.extract_strided_slice %253 {offsets = [128, 0], sizes = [64, 128], strides = [1, 1]} : vector<192x128xf32> to vector<64x128xf32>
    %262 = math.tanh %260 : vector<64x128xf32>
    %263 = arith.mulf %261, %262 : vector<64x128xf32>
    %c0_51 = arith.constant 0 : index
    %c512 = arith.constant 512 : index
    %264 = vector.load %arg12[%c0_51, %c512] : memref<64x1024xf32, #tpu.memory_space<vmem>>, vector<64x128xf32>
    tpu.vector_store %arg12[%c0_51, %c512], %263 {strides = array<i32>} : memref<64x1024xf32, #tpu.memory_space<vmem>>, vector<64x128xf32>,
    %cst_52 = arith.constant dense<0.000000e+00> : vector<256x128xf32>
    %265 = tpu.matmul %1, %263, %cst_52 {dimension_numbers = #tpu.dot_dimension_numbers<[1], [0], [0], [1], [0, 0, 1, 1], [], []>} : vector<256x64xf32>, vector<64x128xf32>, vector<256x128xf32> -> vector<256x128xf32>
    %266 = arith.addf %167, %265 : vector<256x128xf32>
    %267 = vector.extract_strided_slice %266 {offsets = [0, 0], sizes = [192, 128], strides = [1, 1]} : vector<256x128xf32> to vector<192x128xf32>
    %268 = arith.negf %267 : vector<192x128xf32>
    %269 = math.exp %268 : vector<192x128xf32>
    %cst_53 = arith.constant 1.000000e+00 : f32
    %270 = vector.broadcast %cst_53 : f32 to vector<192x128xf32>
    %271 = arith.addf %270, %269 : vector<192x128xf32>
    %272 = arith.divf %270, %271 : vector<192x128xf32>
    %273 = vector.extract_strided_slice %266 {offsets = [192, 0], sizes = [64, 128], strides = [1, 1]} : vector<256x128xf32> to vector<64x128xf32>
    %274 = math.tanh %273 : vector<64x128xf32>
    %275 = vector.extract_strided_slice %272 {offsets = [64, 0], sizes = [64, 128], strides = [1, 1]} : vector<192x128xf32> to vector<64x128xf32>
    %276 = arith.mulf %275, %260 : vector<64x128xf32>
    %277 = vector.extract_strided_slice %272 {offsets = [0, 0], sizes = [64, 128], strides = [1, 1]} : vector<192x128xf32> to vector<64x128xf32>
    %278 = arith.mulf %277, %274 : vector<64x128xf32>
    %279 = arith.addf %276, %278 : vector<64x128xf32>
    %280 = vector.extract_strided_slice %272 {offsets = [128, 0], sizes = [64, 128], strides = [1, 1]} : vector<192x128xf32> to vector<64x128xf32>
    %281 = math.tanh %279 : vector<64x128xf32>
    %282 = arith.mulf %280, %281 : vector<64x128xf32>
    %c0_54 = arith.constant 0 : index
    %c640 = arith.constant 640 : index
    %283 = vector.load %arg12[%c0_54, %c640] : memref<64x1024xf32, #tpu.memory_space<vmem>>, vector<64x128xf32>
    tpu.vector_store %arg12[%c0_54, %c640], %282 {strides = array<i32>} : memref<64x1024xf32, #tpu.memory_space<vmem>>, vector<64x128xf32>,
    %cst_55 = arith.constant dense<0.000000e+00> : vector<256x128xf32>
    %284 = tpu.matmul %1, %282, %cst_55 {dimension_numbers = #tpu.dot_dimension_numbers<[1], [0], [0], [1], [0, 0, 1, 1], [], []>} : vector<256x64xf32>, vector<64x128xf32>, vector<256x128xf32> -> vector<256x128xf32>
    %285 = arith.addf %167, %284 : vector<256x128xf32>
    %286 = vector.extract_strided_slice %285 {offsets = [0, 0], sizes = [192, 128], strides = [1, 1]} : vector<256x128xf32> to vector<192x128xf32>
    %287 = arith.negf %286 : vector<192x128xf32>
    %288 = math.exp %287 : vector<192x128xf32>
    %cst_56 = arith.constant 1.000000e+00 : f32
    %289 = vector.broadcast %cst_56 : f32 to vector<192x128xf32>
    %290 = arith.addf %289, %288 : vector<192x128xf32>
    %291 = arith.divf %289, %290 : vector<192x128xf32>
    %292 = vector.extract_strided_slice %285 {offsets = [192, 0], sizes = [64, 128], strides = [1, 1]} : vector<256x128xf32> to vector<64x128xf32>
    %293 = math.tanh %292 : vector<64x128xf32>
    %294 = vector.extract_strided_slice %291 {offsets = [64, 0], sizes = [64, 128], strides = [1, 1]} : vector<192x128xf32> to vector<64x128xf32>
    %295 = arith.mulf %294, %279 : vector<64x128xf32>
    %296 = vector.extract_strided_slice %291 {offsets = [0, 0], sizes = [64, 128], strides = [1, 1]} : vector<192x128xf32> to vector<64x128xf32>
    %297 = arith.mulf %296, %293 : vector<64x128xf32>
    %298 = arith.addf %295, %297 : vector<64x128xf32>
    %299 = vector.extract_strided_slice %291 {offsets = [128, 0], sizes = [64, 128], strides = [1, 1]} : vector<192x128xf32> to vector<64x128xf32>
    %300 = math.tanh %298 : vector<64x128xf32>
    %301 = arith.mulf %299, %300 : vector<64x128xf32>
    %c0_57 = arith.constant 0 : index
    %c768 = arith.constant 768 : index
    %302 = vector.load %arg12[%c0_57, %c768] : memref<64x1024xf32, #tpu.memory_space<vmem>>, vector<64x128xf32>
    tpu.vector_store %arg12[%c0_57, %c768], %301 {strides = array<i32>} : memref<64x1024xf32, #tpu.memory_space<vmem>>, vector<64x128xf32>,
    %cst_58 = arith.constant dense<0.000000e+00> : vector<256x128xf32>
    %303 = tpu.matmul %1, %301, %cst_58 {dimension_numbers = #tpu.dot_dimension_numbers<[1], [0], [0], [1], [0, 0, 1, 1], [], []>} : vector<256x64xf32>, vector<64x128xf32>, vector<256x128xf32> -> vector<256x128xf32>
    %304 = arith.addf %167, %303 : vector<256x128xf32>
    %305 = vector.extract_strided_slice %304 {offsets = [0, 0], sizes = [192, 128], strides = [1, 1]} : vector<256x128xf32> to vector<192x128xf32>
    %306 = arith.negf %305 : vector<192x128xf32>
    %307 = math.exp %306 : vector<192x128xf32>
    %cst_59 = arith.constant 1.000000e+00 : f32
    %308 = vector.broadcast %cst_59 : f32 to vector<192x128xf32>
    %309 = arith.addf %308, %307 : vector<192x128xf32>
    %310 = arith.divf %308, %309 : vector<192x128xf32>
    %311 = vector.extract_strided_slice %304 {offsets = [192, 0], sizes = [64, 128], strides = [1, 1]} : vector<256x128xf32> to vector<64x128xf32>
    %312 = math.tanh %311 : vector<64x128xf32>
    %313 = vector.extract_strided_slice %310 {offsets = [64, 0], sizes = [64, 128], strides = [1, 1]} : vector<192x128xf32> to vector<64x128xf32>
    %314 = arith.mulf %313, %298 : vector<64x128xf32>
    %315 = vector.extract_strided_slice %310 {offsets = [0, 0], sizes = [64, 128], strides = [1, 1]} : vector<192x128xf32> to vector<64x128xf32>
    %316 = arith.mulf %315, %312 : vector<64x128xf32>
    %317 = arith.addf %314, %316 : vector<64x128xf32>
    %318 = vector.extract_strided_slice %310 {offsets = [128, 0], sizes = [64, 128], strides = [1, 1]} : vector<192x128xf32> to vector<64x128xf32>
    %319 = math.tanh %317 : vector<64x128xf32>
    %320 = arith.mulf %318, %319 : vector<64x128xf32>
    %c0_60 = arith.constant 0 : index
    %c896 = arith.constant 896 : index
    %321 = vector.load %arg12[%c0_60, %c896] : memref<64x1024xf32, #tpu.memory_space<vmem>>, vector<64x128xf32>
    tpu.vector_store %arg12[%c0_60, %c896], %320 {strides = array<i32>} : memref<64x1024xf32, #tpu.memory_space<vmem>>, vector<64x128xf32>,
    %c0_61 = arith.constant 0 : index
    %c0_62 = arith.constant 0 : index
    %322 = vector.load %arg8[%c0_61, %c0_62] : memref<16x64xf32, #tpu.memory_space<vmem>>, vector<16x64xf32>
    %c0_63 = arith.constant 0 : index
    %c0_64 = arith.constant 0 : index
    %323 = vector.load %arg12[%c0_63, %c0_64] : memref<64x1024xf32, #tpu.memory_space<vmem>>, vector<64x1024xf32>
    %cst_65 = arith.constant dense<0.000000e+00> : vector<16x1024xf32>
    %324 = tpu.matmul %322, %323, %cst_65 {dimension_numbers = #tpu.dot_dimension_numbers<[1], [0], [0], [1], [0, 0, 1, 1], [], []>} : vector<16x64xf32>, vector<64x1024xf32>, vector<16x1024xf32> -> vector<16x1024xf32>
    %c0_66 = arith.constant 0 : index
    %c0_67 = arith.constant 0 : index
    %325 = vector.load %arg9[%c0_66, %c0_67] : memref<16x1xf32, #tpu.memory_space<vmem>>, vector<16x1xf32>
    %326 = vector.broadcast %325 : vector<16x1xf32> to vector<16x1024xf32>
    %327 = arith.addf %324, %326 : vector<16x1024xf32>
    %c0_68 = arith.constant 0 : index
    %c0_69 = arith.constant 0 : index
    %328 = vector.load %arg11[%c0_68, %c0_69] : memref<16x1024xf32, #tpu.memory_space<vmem>>, vector<16x1024xf32>
    tpu.vector_store %arg11[%c0_68, %c0_69], %327 {strides = array<i32>} : memref<16x1024xf32, #tpu.memory_space<vmem>>, vector<16x1024xf32>,
    return
  }
  func.func @transform_0(%arg0: i32) -> (i32, i32) {
    %c0_i32 = arith.constant 0 : i32
    %c0_i32_0 = arith.constant 0 : i32
    return %c0_i32, %arg0 : i32, i32
  }
  func.func @transform_1(%arg0: i32) -> (i32, i32) {
    %c0_i32 = arith.constant 0 : i32
    %c0_i32_0 = arith.constant 0 : i32
    %c0_i32_1 = arith.constant 0 : i32
    return %c0_i32, %c0_i32_0 : i32, i32
  }
  func.func @transform_2(%arg0: i32) -> (i32, i32) {
    %c0_i32 = arith.constant 0 : i32
    %c0_i32_0 = arith.constant 0 : i32
    %c0_i32_1 = arith.constant 0 : i32
    return %c0_i32, %c0_i32_0 : i32, i32
  }
  func.func @transform_3(%arg0: i32) -> (i32, i32) {
    %c0_i32 = arith.constant 0 : i32
    %c0_i32_0 = arith.constant 0 : i32
    %c0_i32_1 = arith.constant 0 : i32
    return %c0_i32, %c0_i32_0 : i32, i32
  }
  func.func @transform_4(%arg0: i32) -> (i32, i32) {
    %c0_i32 = arith.constant 0 : i32
    %c0_i32_0 = arith.constant 0 : i32
    %c0_i32_1 = arith.constant 0 : i32
    return %c0_i32, %c0_i32_0 : i32, i32
  }
  func.func @transform_5(%arg0: i32) -> (i32, i32) {
    %c0_i32 = arith.constant 0 : i32
    %c0_i32_0 = arith.constant 0 : i32
    %c0_i32_1 = arith.constant 0 : i32
    return %c0_i32, %c0_i32_0 : i32, i32
  }
  func.func @transform_6(%arg0: i32) -> (i32, i32) {
    %c0_i32 = arith.constant 0 : i32
    %c0_i32_0 = arith.constant 0 : i32
    %c0_i32_1 = arith.constant 0 : i32
    return %c0_i32, %c0_i32_0 : i32, i32
  }
  func.func @transform_7(%arg0: i32) -> (i32, i32) {
    %c0_i32 = arith.constant 0 : i32
    %c0_i32_0 = arith.constant 0 : i32
    %c0_i32_1 = arith.constant 0 : i32
    return %c0_i32, %c0_i32_0 : i32, i32
  }
  func.func @transform_8(%arg0: i32) -> (i32, i32) {
    %c0_i32 = arith.constant 0 : i32
    %c0_i32_0 = arith.constant 0 : i32
    %c0_i32_1 = arith.constant 0 : i32
    return %c0_i32, %c0_i32_0 : i32, i32
  }
  func.func @transform_9(%arg0: i32) -> (i32, i32) {
    %c0_i32 = arith.constant 0 : i32
    %c0_i32_0 = arith.constant 0 : i32
    return %c0_i32, %arg0 : i32, i32
  }
  func.func @transform_10(%arg0: i32) -> (i32, i32) {
    %c0_i32 = arith.constant 0 : i32
    %c0_i32_0 = arith.constant 0 : i32
    return %c0_i32, %arg0 : i32, i32
  }
}

</mosaic_0001>

<llo_original>
// kernel: lstm_ae_forward.1
$region0: #{lstm_ae_forward.1}
  #allocation0 [shape = 'u32[]', space=smem, size = 0x4, offset = 0x4, fixed_abs, tag = 'smem constant byte address 0x4 - core index']
  #allocation1 [shape = 'u32[144,128]{1,0:T(1,128)}', space=vmem, size = 0x12000, scoped, tag = 'internal scratch']
  #allocation2 [shape = 'f32[64,1024]{1,0:T(8,128)}', space=vmem, size = 0x40000, scoped, tag = 'scratch operand']
  %s0 = inlined_call_operand.vmem [shape: f32[16,1024], index: 0, kind: input, shape index: {}]
  %s1 = inlined_call_operand.vmem [shape: f32[128,16], index: 1, kind: input, shape index: {}]
  %s2 = inlined_call_operand.vmem [shape: f32[128,32], index: 2, kind: input, shape index: {}]
  %s3 = inlined_call_operand.vmem [shape: f32[128,1], index: 3, kind: input, shape index: {}]
  %s4 = inlined_call_operand.vmem [shape: f32[256,32], index: 4, kind: input, shape index: {}]
  %s5 = inlined_call_operand.vmem [shape: f32[256,64], index: 5, kind: input, shape index: {}]
  %s6 = inlined_call_operand.vmem [shape: f32[256,1], index: 6, kind: input, shape index: {}]
  %s7 = inlined_call_operand.vmem [shape: f32[16,64], index: 7, kind: input, shape index: {}]
  %s8 = inlined_call_operand.vmem [shape: f32[16,1], index: 8, kind: input, shape index: {}]
  %s9 = inlined_call_operand.vmem [shape: f32[32,128], index: 9, kind: output, shape index: {0}]
  %s10 = inlined_call_operand.vmem [shape: f32[16,1024], index: 10, kind: output, shape index: {1}]
  %11 = xla_tuple %s9, %s10
  %s12 = sld [smem:[#allocation0]]
  $region54: #{lstm_ae_forward.1} parent=0
    _
  %s14 = ssub.s32 1, %s12
  %s15 = scalar_select 0, %s14, %s12
  // Predicated region
  $region2: #{lstm_ae_forward.1} parent=0 // pred_check
    _
  $region3: #{lstm_ae_forward.1} parent=0 // pred_check_branch
    %17 = sbr.rel (0) target = $region5
  $region4: #{lstm_ae_forward.1} parent=0 // pred_region
    _
  $region5: #{lstm_ae_forward.1} parent=0 // pred_fallthru
    _
  // Predicated region
  $region6: #{lstm_ae_forward.1} parent=0 // pred_check
    _
  $region7: #{lstm_ae_forward.1} parent=0 // pred_check_branch
    %19 = sbr.rel (0) target = $region9
  $region8: #{lstm_ae_forward.1} parent=0 // pred_region
    _
  $region9: #{lstm_ae_forward.1} parent=0 // pred_fallthru
    _
  // Predicated region
  $region10: #{lstm_ae_forward.1} parent=0 // pred_check
    _
  $region11: #{lstm_ae_forward.1} parent=0 // pred_check_branch
    %21 = sbr.rel (0) target = $region13
  $region12: #{lstm_ae_forward.1} parent=0 // pred_region
    _
  $region13: #{lstm_ae_forward.1} parent=0 // pred_fallthru
    _
  // Predicated region
  $region14: #{lstm_ae_forward.1} parent=0 // pred_check
    _
  $region15: #{lstm_ae_forward.1} parent=0 // pred_check_branch
    %23 = sbr.rel (0) target = $region17
  $region16: #{lstm_ae_forward.1} parent=0 // pred_region
    _
  $region17: #{lstm_ae_forward.1} parent=0 // pred_fallthru
    _
  // Predicated region
  $region18: #{lstm_ae_forward.1} parent=0 // pred_check
    _
  $region19: #{lstm_ae_forward.1} parent=0 // pred_check_branch
    %25 = sbr.rel (0) target = $region21
  $region20: #{lstm_ae_forward.1} parent=0 // pred_region
    _
  $region21: #{lstm_ae_forward.1} parent=0 // pred_fallthru
    _
  // Predicated region
  $region22: #{lstm_ae_forward.1} parent=0 // pred_check
    _
  $region23: #{lstm_ae_forward.1} parent=0 // pred_check_branch
    %27 = sbr.rel (0) target = $region25
  $region24: #{lstm_ae_forward.1} parent=0 // pred_region
    _
  $region25: #{lstm_ae_forward.1} parent=0 // pred_fallthru
    _
  // Predicated region
  $region26: #{lstm_ae_forward.1} parent=0 // pred_check
    _
  $region27: #{lstm_ae_forward.1} parent=0 // pred_check_branch
    %29 = sbr.rel (0) target = $region29
  $region28: #{lstm_ae_forward.1} parent=0 // pred_region
    _
  $region29: #{lstm_ae_forward.1} parent=0 // pred_fallthru
    _
  // Predicated region
  $region30: #{lstm_ae_forward.1} parent=0 // pred_check
    _
  $region31: #{lstm_ae_forward.1} parent=0 // pred_check_branch
    %31 = sbr.rel (0) target = $region33
  $region32: #{lstm_ae_forward.1} parent=0 // pred_region
    _
  $region33: #{lstm_ae_forward.1} parent=0 // pred_fallthru
    _
  // Predicated region
  $region34: #{lstm_ae_forward.1} parent=0 // pred_check
    _
  $region35: #{lstm_ae_forward.1} parent=0 // pred_check_branch
    %33 = sbr.rel (0) target = $region37
  $region36: #{lstm_ae_forward.1} parent=0 // pred_region
    _
  $region37: #{lstm_ae_forward.1} parent=0 // pred_fallthru
    _
  %v34 = vld [vmem:[%s2] sm:$0xff]
  %v35 = vld [vmem:[%s2 + $0x8] sm:$0xff]
  %v36 = vld [vmem:[%s2 + $0x10] sm:$0xff]
  %v37 = vld [vmem:[%s2 + $0x18] sm:$0xff]
  %v38 = vld [vmem:[%s2 + $0x20] sm:$0xff]
  %v39 = vld [vmem:[%s2 + $0x28] sm:$0xff]
  %v40 = vld [vmem:[%s2 + $0x30] sm:$0xff]
  %v41 = vld [vmem:[%s2 + $0x38] sm:$0xff]
  %v42 = vld [vmem:[%s2 + $0x40] sm:$0xff]
  %v43 = vld [vmem:[%s2 + $0x48] sm:$0xff]
  %v44 = vld [vmem:[%s2 + $0x50] sm:$0xff]
  %v45 = vld [vmem:[%s2 + $0x58] sm:$0xff]
  %v46 = vld [vmem:[%s2 + $0x60] sm:$0xff]
  %v47 = vld [vmem:[%s2 + $0x68] sm:$0xff]
  %v48 = vld [vmem:[%s2 + $0x70] sm:$0xff]
  %v49 = vld [vmem:[%s2 + $0x78] sm:$0xff]
  %v50 = vld [vmem:[%s5] sm:$0xff]
  %v51 = vld [vmem:[%s5 + $0x8] sm:$0xff]
  %v52 = vld [vmem:[%s5 + $0x10] sm:$0xff]
  %v53 = vld [vmem:[%s5 + $0x18] sm:$0xff]
  %v54 = vld [vmem:[%s5 + $0x20] sm:$0xff]
  %v55 = vld [vmem:[%s5 + $0x28] sm:$0xff]
  %v56 = vld [vmem:[%s5 + $0x30] sm:$0xff]
  %v57 = vld [vmem:[%s5 + $0x38] sm:$0xff]
  %v58 = vld [vmem:[%s5 + $0x40] sm:$0xff]
  %v59 = vld [vmem:[%s5 + $0x48] sm:$0xff]
  %v60 = vld [vmem:[%s5 + $0x50] sm:$0xff]
  %v61 = vld [vmem:[%s5 + $0x58] sm:$0xff]
  %v62 = vld [vmem:[%s5 + $0x60] sm:$0xff]
  %v63 = vld [vmem:[%s5 + $0x68] sm:$0xff]
  %v64 = vld [vmem:[%s5 + $0x70] sm:$0xff]
  %v65 = vld [vmem:[%s5 + $0x78] sm:$0xff]
  %v66 = vld [vmem:[%s5 + $0x80] sm:$0xff]
  %v67 = vld [vmem:[%s5 + $0x88] sm:$0xff]
  %v68 = vld [vmem:[%s5 + $0x90] sm:$0xff]
  %v69 = vld [vmem:[%s5 + $0x98] sm:$0xff]
  %v70 = vld [vmem:[%s5 + $0xa0] sm:$0xff]
  %v71 = vld [vmem:[%s5 + $0xa8] sm:$0xff]
  %v72 = vld [vmem:[%s5 + $0xb0] sm:$0xff]
  %v73 = vld [vmem:[%s5 + $0xb8] sm:$0xff]
  %v74 = vld [vmem:[%s5 + $0xc0] sm:$0xff]
  %v75 = vld [vmem:[%s5 + $0xc8] sm:$0xff]
  %v76 = vld [vmem:[%s5 + $0xd0] sm:$0xff]
  %v77 = vld [vmem:[%s5 + $0xd8] sm:$0xff]
  %v78 = vld [vmem:[%s5 + $0xe0] sm:$0xff]
  %v79 = vld [vmem:[%s5 + $0xe8] sm:$0xff]
  %v80 = vld [vmem:[%s5 + $0xf0] sm:$0xff]
  %v81 = vld [vmem:[%s5 + $0xf8] sm:$0xff]
  %v82 = vld [vmem:[%s1] sm:$0xff]
  %v83 = vld [vmem:[%s1 + $0x8] sm:$0xff]
  %v84 = vld [vmem:[%s1 + $0x10] sm:$0xff]
  %v85 = vld [vmem:[%s1 + $0x18] sm:$0xff]
  %v86 = vld [vmem:[%s1 + $0x20] sm:$0xff]
  %v87 = vld [vmem:[%s1 + $0x28] sm:$0xff]
  %v88 = vld [vmem:[%s1 + $0x30] sm:$0xff]
  %v89 = vld [vmem:[%s1 + $0x38] sm:$0xff]
  %v90 = vld [vmem:[%s1 + $0x40] sm:$0xff]
  %v91 = vld [vmem:[%s1 + $0x48] sm:$0xff]
  %v92 = vld [vmem:[%s1 + $0x50] sm:$0xff]
  %v93 = vld [vmem:[%s1 + $0x58] sm:$0xff]
  %v94 = vld [vmem:[%s1 + $0x60] sm:$0xff]
  %v95 = vld [vmem:[%s1 + $0x68] sm:$0xff]
  %v96 = vld [vmem:[%s1 + $0x70] sm:$0xff]
  %v97 = vld [vmem:[%s1 + $0x78] sm:$0xff]
  %v98 = vld [vmem:[%s0] sm:$0xff]
  %v99 = vld [vmem:[%s0 + $0x8] sm:$0xff]
  %v100 = vld [vmem:[%s0 + $0x10] sm:$0xff]
  %v101 = vld [vmem:[%s0 + $0x18] sm:$0xff]
  %v102 = vld [vmem:[%s0 + $0x20] sm:$0xff]
  %v103 = vld [vmem:[%s0 + $0x28] sm:$0xff]
  %v104 = vld [vmem:[%s0 + $0x30] sm:$0xff]
  %v105 = vld [vmem:[%s0 + $0x38] sm:$0xff]
  %v106 = vld [vmem:[%s0 + $0x40] sm:$0xff]
  %v107 = vld [vmem:[%s0 + $0x48] sm:$0xff]
  %v108 = vld [vmem:[%s0 + $0x50] sm:$0xff]
  %v109 = vld [vmem:[%s0 + $0x58] sm:$0xff]
  %v110 = vld [vmem:[%s0 + $0x60] sm:$0xff]
  %v111 = vld [vmem:[%s0 + $0x68] sm:$0xff]
  %v112 = vld [vmem:[%s0 + $0x70] sm:$0xff]
  %v113 = vld [vmem:[%s0 + $0x78] sm:$0xff]
  %v114 = vld [vmem:[%s3] sm:$0xff]
  %v115 = vld [vmem:[%s3 + $0x8] sm:$0xff]
  %v116 = vld [vmem:[%s3 + $0x10] sm:$0xff]
  %v117 = vld [vmem:[%s3 + $0x18] sm:$0xff]
  %v118 = vld [vmem:[%s3 + $0x20] sm:$0xff]
  %v119 = vld [vmem:[%s3 + $0x28] sm:$0xff]
  %v120 = vld [vmem:[%s3 + $0x30] sm:$0xff]
  %v121 = vld [vmem:[%s3 + $0x38] sm:$0xff]
  %v122 = vld [vmem:[%s3 + $0x40] sm:$0xff]
  %v123 = vld [vmem:[%s3 + $0x48] sm:$0xff]
  %v124 = vld [vmem:[%s3 + $0x50] sm:$0xff]
  %v125 = vld [vmem:[%s3 + $0x58] sm:$0xff]
  %v126 = vld [vmem:[%s3 + $0x60] sm:$0xff]
  %v127 = vld [vmem:[%s3 + $0x68] sm:$0xff]
  %v128 = vld [vmem:[%s3 + $0x70] sm:$0xff]
  %v129 = vld [vmem:[%s3 + $0x78] sm:$0xff]
  %131 = vset.pattern.permute.xlu0 0
  %132 = vperm.xlu0 %131, %v114
  %v133 = vpop.permute.xlu0 %132
  %136 = vset.pattern.permute.xlu0 0
  %137 = vperm.xlu0 %136, %v115
  %v138 = vpop.permute.xlu0 %137
  %141 = vset.pattern.permute.xlu0 0
  %142 = vperm.xlu0 %141, %v116
  %v143 = vpop.permute.xlu0 %142
  %146 = vset.pattern.permute.xlu0 0
  %147 = vperm.xlu0 %146, %v117
  %v148 = vpop.permute.xlu0 %147
  %151 = vset.pattern.permute.xlu0 0
  %152 = vperm.xlu0 %151, %v118
  %v153 = vpop.permute.xlu0 %152
  %156 = vset.pattern.permute.xlu0 0
  %157 = vperm.xlu0 %156, %v119
  %v158 = vpop.permute.xlu0 %157
  %161 = vset.pattern.permute.xlu0 0
  %162 = vperm.xlu0 %161, %v120
  %v163 = vpop.permute.xlu0 %162
  %166 = vset.pattern.permute.xlu0 0
  %167 = vperm.xlu0 %166, %v121
  %v168 = vpop.permute.xlu0 %167
  %171 = vset.pattern.permute.xlu0 0
  %172 = vperm.xlu0 %171, %v122
  %v173 = vpop.permute.xlu0 %172
  %176 = vset.pattern.permute.xlu0 0
  %177 = vperm.xlu0 %176, %v123
  %v178 = vpop.permute.xlu0 %177
  %181 = vset.pattern.permute.xlu0 0
  %182 = vperm.xlu0 %181, %v124
  %v183 = vpop.permute.xlu0 %182
  %186 = vset.pattern.permute.xlu0 0
  %187 = vperm.xlu0 %186, %v125
  %v188 = vpop.permute.xlu0 %187
  %191 = vset.pattern.permute.xlu0 0
  %192 = vperm.xlu0 %191, %v126
  %v193 = vpop.permute.xlu0 %192
  %196 = vset.pattern.permute.xlu0 0
  %197 = vperm.xlu0 %196, %v127
  %v198 = vpop.permute.xlu0 %197
  %201 = vset.pattern.permute.xlu0 0
  %202 = vperm.xlu0 %201, %v128
  %v203 = vpop.permute.xlu0 %202
  %206 = vset.pattern.permute.xlu0 0
  %207 = vperm.xlu0 %206, %v129
  %v208 = vpop.permute.xlu0 %207
  %vm210 = vcmask 130048
  %v212 = vsel %vm210, %v82, 0
  %v215 = vsel %vm210, %v83, 0
  %v218 = vsel %vm210, %v84, 0
  %v221 = vsel %vm210, %v85, 0
  %v224 = vsel %vm210, %v86, 0
  %v227 = vsel %vm210, %v87, 0
  %v230 = vsel %vm210, %v88, 0
  %v233 = vsel %vm210, %v89, 0
  %v236 = vsel %vm210, %v90, 0
  %v239 = vsel %vm210, %v91, 0
  %v242 = vsel %vm210, %v92, 0
  %v245 = vsel %vm210, %v93, 0
  %v248 = vsel %vm210, %v94, 0
  %v251 = vsel %vm210, %v95, 0
  %v254 = vsel %vm210, %v96, 0
  %v257 = vsel %vm210, %v97, 0
  %259 = vmatprep.subr.mxu0 %v99
  %260 = vmatpush1.msra.mxu0 %v98
  %261 = vmatprep.subr.mxu0 %v107
  %262 = vmatpush1.msra.mxu0 %v106
  %263 = vmatprep.subr.mxu0 0.0
  %264 = vmatpush1.msra.mxu0 0.0
  %265 = vmatprep.subr.mxu0 0.0
  %266 = vmatpush1.msra.mxu0 0.0
  %267 = vmatprep.subr.mxu0 0.0
  %268 = vmatpush1.msra.mxu0 0.0
  %269 = vmatprep.subr.mxu0 0.0
  %270 = vmatpush1.msra.mxu0 0.0
  %271 = vmatprep.subr.mxu0 0.0
  %272 = vmatpush1.msra.mxu0 0.0
  %273 = vmatprep.subr.mxu0 0.0
  %274 = vmatpush1.msra.mxu0 0.0
  %275 = vmatprep.subr.mxu0 0.0
  %276 = vmatpush1.msra.mxu0 0.0
  %277 = vmatprep.subr.mxu0 0.0
  %278 = vmatpush1.msra.mxu0 0.0
  %279 = vmatprep.subr.mxu0 0.0
  %280 = vmatpush1.msra.mxu0 0.0
  %281 = vmatprep.subr.mxu0 0.0
  %282 = vmatpush1.msra.mxu0 0.0
  %283 = vmatprep.subr.mxu0 0.0
  %284 = vmatpush1.msra.mxu0 0.0
  %285 = vmatprep.subr.mxu0 0.0
  %286 = vmatpush1.msra.mxu0 0.0
  %287 = vmatprep.subr.mxu0 0.0
  %288 = vmatpush1.msra.mxu0 0.0
  %289 = vmatprep.subr.mxu0 0.0
  %290 = vmatpush1.msra.mxu0 0.0
  %291 = vmatprep.subr.mxu0 0.0
  %292 = vmatpush1.msra.mxu0 0.0
  %293 = vmatprep.subr.mxu0 0.0
  %294 = vmatpush1.msra.mxu0 0.0
  %295 = vmatprep.subr.mxu0 0.0
  %296 = vmatpush1.msra.mxu0 0.0
  %297 = vmatprep.subr.mxu0 0.0
  %298 = vmatpush1.msra.mxu0 0.0
  %299 = vmatprep.subr.mxu0 0.0
  %300 = vmatpush1.msra.mxu0 0.0
  %301 = vmatprep.subr.mxu0 0.0
  %302 = vmatpush1.msra.mxu0 0.0
  %303 = vmatprep.subr.mxu0 0.0
  %304 = vmatpush1.msra.mxu0 0.0
  %305 = vmatprep.subr.mxu0 0.0
  %306 = vmatpush1.msra.mxu0 0.0
  %307 = vmatprep.subr.mxu0 0.0
  %308 = vmatpush1.msra.mxu0 0.0
  %309 = vmatprep.subr.mxu0 0.0
  %310 = vmatpush1.msra.mxu0 0.0
  %311 = vmatprep.subr.mxu0 0.0
  %312 = vmatpush1.msra.mxu0 0.0
  %313 = vmatprep.subr.mxu0 0.0
  %314 = vmatpush1.msra.mxu0 0.0
  %315 = vmatprep.subr.mxu0 0.0
  %316 = vmatpush1.msra.mxu0 0.0
  %317 = vmatprep.subr.mxu0 0.0
  %318 = vmatpush1.msra.mxu0 0.0
  %319 = vmatprep.subr.mxu0 0.0
  %320 = vmatpush1.msra.mxu0 0.0
  %321 = vmatprep.subr.mxu0 0.0
  %322 = vmatpush1.msra.mxu0 0.0
  %323 = vmatprep.mubr.f32.mxu0 0.0
  %324 = vmatmul.mubr.f32.gmra.mrb[0].mxu0 %v212
  %v325 = vpop.f32.mrb[0].mxu0
  %v326 = vadd.f32 %v133, %v325
  %v327 = vpop.f32.mrb[0].mxu0
  %v328 = vadd.f32 %v133, %v327
  %329 = vmatprep.mubr.f32.mxu0 0.0
  %330 = vmatmul.mubr.f32.gmra.mrb[0].mxu0 %v215
  %v331 = vpop.f32.mrb[0].mxu0
  %v332 = vadd.f32 %v138, %v331
  %v333 = vpop.f32.mrb[0].mxu0
  %v334 = vadd.f32 %v138, %v333
  %335 = vmatprep.mubr.f32.mxu0 0.0
  %336 = vmatmul.mubr.f32.gmra.mrb[0].mxu0 %v218
  %v337 = vpop.f32.mrb[0].mxu0
  %v338 = vadd.f32 %v143, %v337
  %v339 = vpop.f32.mrb[0].mxu0
  %v340 = vadd.f32 %v143, %v339
  %341 = vmatprep.mubr.f32.mxu0 0.0
  %342 = vmatmul.mubr.f32.gmra.mrb[0].mxu0 %v221
  %v343 = vpop.f32.mrb[0].mxu0
  %v344 = vadd.f32 %v148, %v343
  %v345 = vpop.f32.mrb[0].mxu0
  %v346 = vadd.f32 %v148, %v345
  %347 = vmatprep.mubr.f32.mxu0 0.0
  %348 = vmatmul.mubr.f32.gmra.mrb[0].mxu0 %v224
  %v349 = vpop.f32.mrb[0].mxu0
  %v350 = vadd.f32 %v153, %v349
  %v351 = vpop.f32.mrb[0].mxu0
  %v352 = vadd.f32 %v153, %v351
  %353 = vmatprep.mubr.f32.mxu0 0.0
  %354 = vmatmul.mubr.f32.gmra.mrb[0].mxu0 %v227
  %v355 = vpop.f32.mrb[0].mxu0
  %v356 = vadd.f32 %v158, %v355
  %v357 = vpop.f32.mrb[0].mxu0
  %v358 = vadd.f32 %v158, %v357
  %359 = vmatprep.mubr.f32.mxu0 0.0
  %360 = vmatmul.mubr.f32.gmra.mrb[0].mxu0 %v230
  %v361 = vpop.f32.mrb[0].mxu0
  %v362 = vadd.f32 %v163, %v361
  %v363 = vpop.f32.mrb[0].mxu0
  %v364 = vadd.f32 %v163, %v363
  %365 = vmatprep.mubr.f32.mxu0 0.0
  %366 = vmatmul.mubr.f32.gmra.mrb[0].mxu0 %v233
  %v367 = vpop.f32.mrb[0].mxu0
  %v368 = vadd.f32 %v168, %v367
  %v369 = vpop.f32.mrb[0].mxu0
  %v370 = vadd.f32 %v168, %v369
  %371 = vmatprep.mubr.f32.mxu0 0.0
  %372 = vmatmul.mubr.f32.gmra.mrb[0].mxu0 %v236
  %v373 = vpop.f32.mrb[0].mxu0
  %v374 = vadd.f32 %v173, %v373
  %v375 = vpop.f32.mrb[0].mxu0
  %v376 = vadd.f32 %v173, %v375
  %377 = vmatprep.mubr.f32.mxu0 0.0
  %378 = vmatmul.mubr.f32.gmra.mrb[0].mxu0 %v239
  %v379 = vpop.f32.mrb[0].mxu0
  %v380 = vadd.f32 %v178, %v379
  %v381 = vpop.f32.mrb[0].mxu0
  %v382 = vadd.f32 %v178, %v381
  %383 = vmatprep.mubr.f32.mxu0 0.0
  %384 = vmatmul.mubr.f32.gmra.mrb[0].mxu0 %v242
  %v385 = vpop.f32.mrb[0].mxu0
  %v386 = vadd.f32 %v183, %v385
  %v387 = vpop.f32.mrb[0].mxu0
  %v388 = vadd.f32 %v183, %v387
  %389 = vmatprep.mubr.f32.mxu0 0.0
  %390 = vmatmul.mubr.f32.gmra.mrb[0].mxu0 %v245
  %v391 = vpop.f32.mrb[0].mxu0
  %v392 = vadd.f32 %v188, %v391
  %v393 = vpop.f32.mrb[0].mxu0
  %v394 = vadd.f32 %v188, %v393
  %395 = vmatprep.mubr.f32.mxu0 0.0
  %396 = vmatmul.mubr.f32.gmra.mrb[0].mxu0 %v248
  %v397 = vpop.f32.mrb[0].mxu0
  %v398 = vadd.f32 %v193, %v397
  %v399 = vpop.f32.mrb[0].mxu0
  %v400 = vadd.f32 %v193, %v399
  %401 = vmatprep.mubr.f32.mxu0 0.0
  %402 = vmatmul.mubr.f32.gmra.mrb[0].mxu0 %v251
  %v403 = vpop.f32.mrb[0].mxu0
  %v404 = vadd.f32 %v198, %v403
  %v405 = vpop.f32.mrb[0].mxu0
  %v406 = vadd.f32 %v198, %v405
  %407 = vmatprep.mubr.f32.mxu0 0.0
  %408 = vmatmul.mubr.f32.gmra.mrb[0].mxu0 %v254
  %v409 = vpop.f32.mrb[0].mxu0
  %v410 = vadd.f32 %v203, %v409
  %v411 = vpop.f32.mrb[0].mxu0
  %v412 = vadd.f32 %v203, %v411
  %413 = vmatprep.mubr.f32.mxu0 0.0
  %414 = vmatmul.mubr.f32.gmra.mrb[0].mxu0 %v257
  %v415 = vpop.f32.mrb[0].mxu0
  %v416 = vadd.f32 %v208, %v415
  %v417 = vpop.f32.mrb[0].mxu0
  %v418 = vadd.f32 %v208, %v417
  %419 = vdwg.mxu0
  %420 = vmatprep.subr.mxu0 %v101
  %421 = vmatpush1.msra.mxu0 %v100
  %422 = vmatprep.subr.mxu0 %v109
  %423 = vmatpush1.msra.mxu0 %v108
  %424 = vmatprep.subr.mxu0 0.0
  %425 = vmatpush1.msra.mxu0 0.0
  %426 = vmatprep.subr.mxu0 0.0
  %427 = vmatpush1.msra.mxu0 0.0
  %428 = vmatprep.subr.mxu0 0.0
  %429 = vmatpush1.msra.mxu0 0.0
  %430 = vmatprep.subr.mxu0 0.0
  %431 = vmatpush1.msra.mxu0 0.0
  %432 = vmatprep.subr.mxu0 0.0
  %433 = vmatpush1.msra.mxu0 0.0
  %434 = vmatprep.subr.mxu0 0.0
  %435 = vmatpush1.msra.mxu0 0.0
  %436 = vmatprep.subr.mxu0 0.0
  %437 = vmatpush1.msra.mxu0 0.0
  %438 = vmatprep.subr.mxu0 0.0
  %439 = vmatpush1.msra.mxu0 0.0
  %440 = vmatprep.subr.mxu0 0.0
  %441 = vmatpush1.msra.mxu0 0.0
  %442 = vmatprep.subr.mxu0 0.0
  %443 = vmatpush1.msra.mxu0 0.0
  %444 = vmatprep.subr.mxu0 0.0
  %445 = vmatpush1.msra.mxu0 0.0
  %446 = vmatprep.subr.mxu0 0.0
  %447 = vmatpush1.msra.mxu0 0.0
  %448 = vmatprep.subr.mxu0 0.0
  %449 = vmatpush1.msra.mxu0 0.0
  %450 = vmatprep.subr.mxu0 0.0
  %451 = vmatpush1.msra.mxu0 0.0
  %452 = vmatprep.subr.mxu0 0.0
  %453 = vmatpush1.msra.mxu0 0.0
  %454 = vmatprep.subr.mxu0 0.0
  %455 = vmatpush1.msra.mxu0 0.0
  %456 = vmatprep.subr.mxu0 0.0
  %457 = vmatpush1.msra.mxu0 0.0
  %458 = vmatprep.subr.mxu0 0.0
  %459 = vmatpush1.msra.mxu0 0.0
  %460 = vmatprep.subr.mxu0 0.0
  %461 = vmatpush1.msra.mxu0 0.0
  %462 = vmatprep.subr.mxu0 0.0
  %463 = vmatpush1.msra.mxu0 0.0
  %464 = vmatprep.subr.mxu0 0.0
  %465 = vmatpush1.msra.mxu0 0.0
  %466 = vmatprep.subr.mxu0 0.0
  %467 = vmatpush1.msra.mxu0 0.0
  %468 = vmatprep.subr.mxu0 0.0
  %469 = vmatpush1.msra.mxu0 0.0
  %470 = vmatprep.subr.mxu0 0.0
  %471 = vmatpush1.msra.mxu0 0.0
  %472 = vmatprep.subr.mxu0 0.0
  %473 = vmatpush1.msra.mxu0 0.0
  %474 = vmatprep.subr.mxu0 0.0
  %475 = vmatpush1.msra.mxu0 0.0
  %476 = vmatprep.subr.mxu0 0.0
  %477 = vmatpush1.msra.mxu0 0.0
  %478 = vmatprep.subr.mxu0 0.0
  %479 = vmatpush1.msra.mxu0 0.0
  %480 = vmatprep.subr.mxu0 0.0
  %481 = vmatpush1.msra.mxu0 0.0
  %482 = vmatprep.subr.mxu0 0.0
  %483 = vmatpush1.msra.mxu0 0.0
  %484 = vmatprep.mubr.f32.mxu0 0.0
  %485 = vmatmul.mubr.f32.gmra.mrb[0].mxu0 %v212
  %v486 = vpop.f32.mrb[0].mxu0
  %v487 = vadd.f32 %v133, %v486
  %v488 = vpop.f32.mrb[0].mxu0
  %v489 = vadd.f32 %v133, %v488
  %490 = vmatprep.mubr.f32.mxu0 0.0
  %491 = vmatmul.mubr.f32.gmra.mrb[0].mxu0 %v215
  %v492 = vpop.f32.mrb[0].mxu0
  %v493 = vadd.f32 %v138, %v492
  %v494 = vpop.f32.mrb[0].mxu0
  %v495 = vadd.f32 %v138, %v494
  %496 = vmatprep.mubr.f32.mxu0 0.0
  %497 = vmatmul.mubr.f32.gmra.mrb[0].mxu0 %v218
  %v498 = vpop.f32.mrb[0].mxu0
  %v499 = vadd.f32 %v143, %v498
  %v500 = vpop.f32.mrb[0].mxu0
  %v501 = vadd.f32 %v143, %v500
  %502 = vmatprep.mubr.f32.mxu0 0.0
  %503 = vmatmul.mubr.f32.gmra.mrb[0].mxu0 %v221
  %v504 = vpop.f32.mrb[0].mxu0
  %v505 = vadd.f32 %v148, %v504
  %v506 = vpop.f32.mrb[0].mxu0
  %v507 = vadd.f32 %v148, %v506
  %508 = vmatprep.mubr.f32.mxu0 0.0
  %509 = vmatmul.mubr.f32.gmra.mrb[0].mxu0 %v224
  %v510 = vpop.f32.mrb[0].mxu0
  %v511 = vadd.f32 %v153, %v510
  %v512 = vpop.f32.mrb[0].mxu0
  %v513 = vadd.f32 %v153, %v512
  %514 = vmatprep.mubr.f32.mxu0 0.0
  %515 = vmatmul.mubr.f32.gmra.mrb[0].mxu0 %v227
  %v516 = vpop.f32.mrb[0].mxu0
  %v517 = vadd.f32 %v158, %v516
  %v518 = vpop.f32.mrb[0].mxu0
  %v519 = vadd.f32 %v158, %v518
  %520 = vmatprep.mubr.f32.mxu0 0.0
  %521 = vmatmul.mubr.f32.gmra.mrb[0].mxu0 %v230
  %v522 = vpop.f32.mrb[0].mxu0
  %v523 = vadd.f32 %v163, %v522
  %v524 = vpop.f32.mrb[0].mxu0
  %v525 = vadd.f32 %v163, %v524
  %526 = vmatprep.mubr.f32.mxu0 0.0
  %527 = vmatmul.mubr.f32.gmra.mrb[0].mxu0 %v233
  %v528 = vpop.f32.mrb[0].mxu0
  %v529 = vadd.f32 %v168, %v528
  %v530 = vpop.f32.mrb[0].mxu0
  %v531 = vadd.f32 %v168, %v530
  %532 = vmatprep.mubr.f32.mxu0 0.0
  %533 = vmatmul.mubr.f32.gmra.mrb[0].mxu0 %v236
  %v534 = vpop.f32.mrb[0].mxu0
  %v535 = vadd.f32 %v173, %v534
  %v536 = vpop.f32.mrb[0].mxu0
  %v537 = vadd.f32 %v173, %v536
  %538 = vmatprep.mubr.f32.mxu0 0.0
  %539 = vmatmul.mubr.f32.gmra.mrb[0].mxu0 %v239
  %v540 = vpop.f32.mrb[0].mxu0
  %v541 = vadd.f32 %v178, %v540
  %v542 = vpop.f32.mrb[0].mxu0
  %v543 = vadd.f32 %v178, %v542
  %544 = vmatprep.mubr.f32.mxu0 0.0
  %545 = vmatmul.mubr.f32.gmra.mrb[0].mxu0 %v242
  %v546 = vpop.f32.mrb[0].mxu0
  %v547 = vadd.f32 %v183, %v546
  %v548 = vpop.f32.mrb[0].mxu0
  %v549 = vadd.f32 %v183, %v548
  %550 = vmatprep.mubr.f32.mxu0 0.0
  %551 = vmatmul.mubr.f32.gmra.mrb[0].mxu0 %v245
  %v552 = vpop.f32.mrb[0].mxu0
  %v553 = vadd.f32 %v188, %v552
  %v554 = vpop.f32.mrb[0].mxu0
  %v555 = vadd.f32 %v188, %v554
  %556 = vmatprep.mubr.f32.mxu0 0.0
  %557 = vmatmul.mubr.f32.gmra.mrb[0].mxu0 %v248
  %v558 = vpop.f32.mrb[0].mxu0
  %v559 = vadd.f32 %v193, %v558
  %v560 = vpop.f32.mrb[0].mxu0
  %v561 = vadd.f32 %v193, %v560
  %562 = vmatprep.mubr.f32.mxu0 0.0
  %563 = vmatmul.mubr.f32.gmra.mrb[0].mxu0 %v251
  %v564 = vpop.f32.mrb[0].mxu0
  %v565 = vadd.f32 %v198, %v564
  %v566 = vpop.f32.mrb[0].mxu0
  %v567 = vadd.f32 %v198, %v566
  %568 = vmatprep.mubr.f32.mxu0 0.0
  %569 = vmatmul.mubr.f32.gmra.mrb[0].mxu0 %v254
  %v570 = vpop.f32.mrb[0].mxu0
  %v571 = vadd.f32 %v203, %v570
  %v572 = vpop.f32.mrb[0].mxu0
  %v573 = vadd.f32 %v203, %v572
  %574 = vmatprep.mubr.f32.mxu0 0.0
  %575 = vmatmul.mubr.f32.gmra.mrb[0].mxu0 %v257
  %v576 = vpop.f32.mrb[0].mxu0
  %v577 = vadd.f32 %v208, %v576
  %v578 = vpop.f32.mrb[0].mxu0
  %v579 = vadd.f32 %v208, %v578
  %580 = vdwg.mxu0
  %581 = vmatprep.subr.mxu0 %v103
  %582 = vmatpush1.msra.mxu0 %v102
  %583 = vmatprep.subr.mxu0 %v111
  %584 = vmatpush1.msra.mxu0 %v110
  %585 = vmatprep.subr.mxu0 0.0
  %586 = vmatpush1.msra.mxu0 0.0
  %587 = vmatprep.subr.mxu0 0.0
  %588 = vmatpush1.msra.mxu0 0.0
  %589 = vmatprep.subr.mxu0 0.0
  %590 = vmatpush1.msra.mxu0 0.0
  %591 = vmatprep.subr.mxu0 0.0
  %592 = vmatpush1.msra.mxu0 0.0
  %593 = vmatprep.subr.mxu0 0.0
  %594 = vmatpush1.msra.mxu0 0.0
  %595 = vmatprep.subr.mxu0 0.0
  %596 = vmatpush1.msra.mxu0 0.0
  %597 = vmatprep.subr.mxu0 0.0
  %598 = vmatpush1.msra.mxu0 0.0
  %599 = vmatprep.subr.mxu0 0.0
  %600 = vmatpush1.msra.mxu0 0.0
  %601 = vmatprep.subr.mxu0 0.0
  %602 = vmatpush1.msra.mxu0 0.0
  %603 = vmatprep.subr.mxu0 0.0
  %604 = vmatpush1.msra.mxu0 0.0
  %605 = vmatprep.subr.mxu0 0.0
  %606 = vmatpush1.msra.mxu0 0.0
  %607 = vmatprep.subr.mxu0 0.0
  %608 = vmatpush1.msra.mxu0 0.0
  %609 = vmatprep.subr.mxu0 0.0
  %610 = vmatpush1.msra.mxu0 0.0
  %611 = vmatprep.subr.mxu0 0.0
  %612 = vmatpush1.msra.mxu0 0.0
  %613 = vmatprep.subr.mxu0 0.0
  %614 = vmatpush1.msra.mxu0 0.0
  %615 = vmatprep.subr.mxu0 0.0
  %616 = vmatpush1.msra.mxu0 0.0
  %617 = vmatprep.subr.mxu0 0.0
  %618 = vmatpush1.msra.mxu0 0.0
  %619 = vmatprep.subr.mxu0 0.0
  %620 = vmatpush1.msra.mxu0 0.0
  %621 = vmatprep.subr.mxu0 0.0
  %622 = vmatpush1.msra.mxu0 0.0
  %623 = vmatprep.subr.mxu0 0.0
  %624 = vmatpush1.msra.mxu0 0.0
  %625 = vmatprep.subr.mxu0 0.0
  %626 = vmatpush1.msra.mxu0 0.0
  %627 = vmatprep.subr.mxu0 0.0
  %628 = vmatpush1.msra.mxu0 0.0
  %629 = vmatprep.subr.mxu0 0.0
  %630 = vmatpush1.msra.mxu0 0.0
  %631 = vmatprep.subr.mxu0 0.0
  %632 = vmatpush1.msra.mxu0 0.0
  %633 = vmatprep.subr.mxu0 0.0
  %634 = vmatpush1.msra.mxu0 0.0
  %635 = vmatprep.subr.mxu0 0.0
  %636 = vmatpush1.msra.mxu0 0.0
  %637 = vmatprep.subr.mxu0 0.0
  %638 = vmatpush1.msra.mxu0 0.0
  %639 = vmatprep.subr.mxu0 0.0
  %640 = vmatpush1.msra.mxu0 0.0
  %641 = vmatprep.subr.mxu0 0.0
  %642 = vmatpush1.msra.mxu0 0.0
  %643 = vmatprep.subr.mxu0 0.0
  %644 = vmatpush1.msra.mxu0 0.0
  %645 = vmatprep.mubr.f32.mxu0 0.0
  %646 = vmatmul.mubr.f32.gmra.mrb[0].mxu0 %v212
  %v647 = vpop.f32.mrb[0].mxu0
  %v648 = vadd.f32 %v133, %v647
  %v649 = vpop.f32.mrb[0].mxu0
  %v650 = vadd.f32 %v133, %v649
  %651 = vmatprep.mubr.f32.mxu0 0.0
  %652 = vmatmul.mubr.f32.gmra.mrb[0].mxu0 %v215
  %v653 = vpop.f32.mrb[0].mxu0
  %v654 = vadd.f32 %v138, %v653
  %v655 = vpop.f32.mrb[0].mxu0
  %v656 = vadd.f32 %v138, %v655
  %657 = vmatprep.mubr.f32.mxu0 0.0
  %658 = vmatmul.mubr.f32.gmra.mrb[0].mxu0 %v218
  %v659 = vpop.f32.mrb[0].mxu0
  %v660 = vadd.f32 %v143, %v659
  %v661 = vpop.f32.mrb[0].mxu0
  %v662 = vadd.f32 %v143, %v661
  %663 = vmatprep.mubr.f32.mxu0 0.0
  %664 = vmatmul.mubr.f32.gmra.mrb[0].mxu0 %v221
  %v665 = vpop.f32.mrb[0].mxu0
  %v666 = vadd.f32 %v148, %v665
  %v667 = vpop.f32.mrb[0].mxu0
  %v668 = vadd.f32 %v148, %v667
  %669 = vmatprep.mubr.f32.mxu0 0.0
  %670 = vmatmul.mubr.f32.gmra.mrb[0].mxu0 %v224
  %v671 = vpop.f32.mrb[0].mxu0
  %v672 = vadd.f32 %v153, %v671
  %v673 = vpop.f32.mrb[0].mxu0
  %v674 = vadd.f32 %v153, %v673
  %675 = vmatprep.mubr.f32.mxu0 0.0
  %676 = vmatmul.mubr.f32.gmra.mrb[0].mxu0 %v227
  %v677 = vpop.f32.mrb[0].mxu0
  %v678 = vadd.f32 %v158, %v677
  %v679 = vpop.f32.mrb[0].mxu0
  %v680 = vadd.f32 %v158, %v679
  %681 = vmatprep.mubr.f32.mxu0 0.0
  %682 = vmatmul.mubr.f32.gmra.mrb[0].mxu0 %v230
  %v683 = vpop.f32.mrb[0].mxu0
  %v684 = vadd.f32 %v163, %v683
  %v685 = vpop.f32.mrb[0].mxu0
  %v686 = vadd.f32 %v163, %v685
  %687 = vmatprep.mubr.f32.mxu0 0.0
  %688 = vmatmul.mubr.f32.gmra.mrb[0].mxu0 %v233
  %v689 = vpop.f32.mrb[0].mxu0
  %v690 = vadd.f32 %v168, %v689
  %v691 = vpop.f32.mrb[0].mxu0
  %v692 = vadd.f32 %v168, %v691
  %693 = vmatprep.mubr.f32.mxu0 0.0
  %694 = vmatmul.mubr.f32.gmra.mrb[0].mxu0 %v236
  %v695 = vpop.f32.mrb[0].mxu0
  %v696 = vadd.f32 %v173, %v695
  %v697 = vpop.f32.mrb[0].mxu0
  %v698 = vadd.f32 %v173, %v697
  %699 = vmatprep.mubr.f32.mxu0 0.0
  %700 = vmatmul.mubr.f32.gmra.mrb[0].mxu0 %v239
  %v701 = vpop.f32.mrb[0].mxu0
  %v702 = vadd.f32 %v178, %v701
  %v703 = vpop.f32.mrb[0].mxu0
  %v704 = vadd.f32 %v178, %v703
  %705 = vmatprep.mubr.f32.mxu0 0.0
  %706 = vmatmul.mubr.f32.gmra.mrb[0].mxu0 %v242
  %v707 = vpop.f32.mrb[0].mxu0
  %v708 = vadd.f32 %v183, %v707
  %v709 = vpop.f32.mrb[0].mxu0
  %v710 = vadd.f32 %v183, %v709
  %711 = vmatprep.mubr.f32.mxu0 0.0
  %712 = vmatmul.mubr.f32.gmra.mrb[0].mxu0 %v245
  %v713 = vpop.f32.mrb[0].mxu0
  %v714 = vadd.f32 %v188, %v713
  %v715 = vpop.f32.mrb[0].mxu0
  %v716 = vadd.f32 %v188, %v715
  %717 = vmatprep.mubr.f32.mxu0 0.0
  %718 = vmatmul.mubr.f32.gmra.mrb[0].mxu0 %v248
  %v719 = vpop.f32.mrb[0].mxu0
  %v720 = vadd.f32 %v193, %v719
  %v721 = vpop.f32.mrb[0].mxu0
  %v722 = vadd.f32 %v193, %v721
  %723 = vmatprep.mubr.f32.mxu0 0.0
  %724 = vmatmul.mubr.f32.gmra.mrb[0].mxu0 %v251
  %v725 = vpop.f32.mrb[0].mxu0
  %v726 = vadd.f32 %v198, %v725
  %v727 = vpop.f32.mrb[0].mxu0
  %v728 = vadd.f32 %v198, %v727
  %729 = vmatprep.mubr.f32.mxu0 0.0
  %730 = vmatmul.mubr.f32.gmra.mrb[0].mxu0 %v254
  %v731 = vpop.f32.mrb[0].mxu0
  %v732 = vadd.f32 %v203, %v731
  %v733 = vpop.f32.mrb[0].mxu0
  %v734 = vadd.f32 %v203, %v733
  %735 = vmatprep.mubr.f32.mxu0 0.0
  %736 = vmatmul.mubr.f32.gmra.mrb[0].mxu0 %v257
  %v737 = vpop.f32.mrb[0].mxu0
  %v738 = vadd.f32 %v208, %v737
  %v739 = vpop.f32.mrb[0].mxu0
  %v740 = vadd.f32 %v208, %v739
  %741 = vdwg.mxu0
  %742 = vmatprep.subr.mxu0 %v105
  %743 = vmatpush1.msra.mxu0 %v104
  %744 = vmatprep.subr.mxu0 %v113
  %745 = vmatpush1.msra.mxu0 %v112
  %746 = vmatprep.subr.mxu0 0.0
  %747 = vmatpush1.msra.mxu0 0.0
  %748 = vmatprep.subr.mxu0 0.0
  %749 = vmatpush1.msra.mxu0 0.0
  %750 = vmatprep.subr.mxu0 0.0
  %751 = vmatpush1.msra.mxu0 0.0
  %752 = vmatprep.subr.mxu0 0.0
  %753 = vmatpush1.msra.mxu0 0.0
  %754 = vmatprep.subr.mxu0 0.0
  %755 = vmatpush1.msra.mxu0 0.0
  %756 = vmatprep.subr.mxu0 0.0
  %757 = vmatpush1.msra.mxu0 0.0
  %758 = vmatprep.subr.mxu0 0.0
  %759 = vmatpush1.msra.mxu0 0.0
  %760 = vmatprep.subr.mxu0 0.0
  %761 = vmatpush1.msra.mxu0 0.0
  %762 = vmatprep.subr.mxu0 0.0
  %763 = vmatpush1.msra.mxu0 0.0
  %764 = vmatprep.subr.mxu0 0.0
  %765 = vmatpush1.msra.mxu0 0.0
  %766 = vmatprep.subr.mxu0 0.0
  %767 = vmatpush1.msra.mxu0 0.0
  %768 = vmatprep.subr.mxu0 0.0
  %769 = vmatpush1.msra.mxu0 0.0
  %770 = vmatprep.subr.mxu0 0.0
  %771 = vmatpush1.msra.mxu0 0.0
  %772 = vmatprep.subr.mxu0 0.0
  %773 = vmatpush1.msra.mxu0 0.0
  %774 = vmatprep.subr.mxu0 0.0
  %775 = vmatpush1.msra.mxu0 0.0
  %776 = vmatprep.subr.mxu0 0.0
  %777 = vmatpush1.msra.mxu0 0.0
  %778 = vmatprep.subr.mxu0 0.0
  %779 = vmatpush1.msra.mxu0 0.0
  %780 = vmatprep.subr.mxu0 0.0
  %781 = vmatpush1.msra.mxu0 0.0
  %782 = vmatprep.subr.mxu0 0.0
  %783 = vmatpush1.msra.mxu0 0.0
  %784 = vmatprep.subr.mxu0 0.0
  %785 = vmatpush1.msra.mxu0 0.0
  %786 = vmatprep.subr.mxu0 0.0
  %787 = vmatpush1.msra.mxu0 0.0
  %788 = vmatprep.subr.mxu0 0.0
  %789 = vmatpush1.msra.mxu0 0.0
  %790 = vmatprep.subr.mxu0 0.0
  %791 = vmatpush1.msra.mxu0 0.0
  %792 = vmatprep.subr.mxu0 0.0
  %793 = vmatpush1.msra.mxu0 0.0
  %794 = vmatprep.subr.mxu0 0.0
  %795 = vmatpush1.msra.mxu0 0.0
  %796 = vmatprep.subr.mxu0 0.0
  %797 = vmatpush1.msra.mxu0 0.0
  %798 = vmatprep.subr.mxu0 0.0
  %799 = vmatpush1.msra.mxu0 0.0
  %800 = vmatprep.subr.mxu0 0.0
  %801 = vmatpush1.msra.mxu0 0.0
  %802 = vmatprep.subr.mxu0 0.0
  %803 = vmatpush1.msra.mxu0 0.0
  %804 = vmatprep.subr.mxu0 0.0
  %805 = vmatpush1.msra.mxu0 0.0
  %806 = vmatprep.mubr.f32.mxu0 0.0
  %807 = vmatmul.mubr.f32.gmra.mrb[0].mxu0 %v212
  %v808 = vpop.f32.mrb[0].mxu0
  %v809 = vadd.f32 %v133, %v808
  %v810 = vpop.f32.mrb[0].mxu0
  %v811 = vadd.f32 %v133, %v810
  %812 = vmatprep.mubr.f32.mxu0 0.0
  %813 = vmatmul.mubr.f32.gmra.mrb[0].mxu0 %v215
  %v814 = vpop.f32.mrb[0].mxu0
  %v815 = vadd.f32 %v138, %v814
  %v816 = vpop.f32.mrb[0].mxu0
  %v817 = vadd.f32 %v138, %v816
  %818 = vmatprep.mubr.f32.mxu0 0.0
  %819 = vmatmul.mubr.f32.gmra.mrb[0].mxu0 %v218
  %v820 = vpop.f32.mrb[0].mxu0
  %v821 = vadd.f32 %v143, %v820
  %v822 = vpop.f32.mrb[0].mxu0
  %v823 = vadd.f32 %v143, %v822
  %824 = vmatprep.mubr.f32.mxu0 0.0
  %825 = vmatmul.mubr.f32.gmra.mrb[0].mxu0 %v221
  %v826 = vpop.f32.mrb[0].mxu0
  %v827 = vadd.f32 %v148, %v826
  %v828 = vpop.f32.mrb[0].mxu0
  %v829 = vadd.f32 %v148, %v828
  %830 = vmatprep.mubr.f32.mxu0 0.0
  %831 = vmatmul.mubr.f32.gmra.mrb[0].mxu0 %v224
  %v832 = vpop.f32.mrb[0].mxu0
  %v833 = vadd.f32 %v153, %v832
  %v834 = vpop.f32.mrb[0].mxu0
  %v835 = vadd.f32 %v153, %v834
  %836 = vmatprep.mubr.f32.mxu0 0.0
  %837 = vmatmul.mubr.f32.gmra.mrb[0].mxu0 %v227
  %v838 = vpop.f32.mrb[0].mxu0
  %v839 = vadd.f32 %v158, %v838
  %v840 = vpop.f32.mrb[0].mxu0
  %v841 = vadd.f32 %v158, %v840
  %842 = vmatprep.mubr.f32.mxu0 0.0
  %843 = vmatmul.mubr.f32.gmra.mrb[0].mxu0 %v230
  %v844 = vpop.f32.mrb[0].mxu0
  %v845 = vadd.f32 %v163, %v844
  %v846 = vpop.f32.mrb[0].mxu0
  %v847 = vadd.f32 %v163, %v846
  %848 = vmatprep.mubr.f32.mxu0 0.0
  %849 = vmatmul.mubr.f32.gmra.mrb[0].mxu0 %v233
  %v850 = vpop.f32.mrb[0].mxu0
  %v851 = vadd.f32 %v168, %v850
  %v852 = vpop.f32.mrb[0].mxu0
  %v853 = vadd.f32 %v168, %v852
  %854 = vmatprep.mubr.f32.mxu0 0.0
  %855 = vmatmul.mubr.f32.gmra.mrb[0].mxu0 %v236
  %v856 = vpop.f32.mrb[0].mxu0
  %v857 = vadd.f32 %v173, %v856
  %v858 = vpop.f32.mrb[0].mxu0
  %v859 = vadd.f32 %v173, %v858
  %860 = vmatprep.mubr.f32.mxu0 0.0
  %861 = vmatmul.mubr.f32.gmra.mrb[0].mxu0 %v239
  %v862 = vpop.f32.mrb[0].mxu0
  %v863 = vadd.f32 %v178, %v862
  %v864 = vpop.f32.mrb[0].mxu0
  %v865 = vadd.f32 %v178, %v864
  %866 = vmatprep.mubr.f32.mxu0 0.0
  %867 = vmatmul.mubr.f32.gmra.mrb[0].mxu0 %v242
  %v868 = vpop.f32.mrb[0].mxu0
  %v869 = vadd.f32 %v183, %v868
  %v870 = vpop.f32.mrb[0].mxu0
  %v871 = vadd.f32 %v183, %v870
  %872 = vmatprep.mubr.f32.mxu0 0.0
  %873 = vmatmul.mubr.f32.gmra.mrb[0].mxu0 %v245
  %v874 = vpop.f32.mrb[0].mxu0
  %v875 = vadd.f32 %v188, %v874
  %v876 = vpop.f32.mrb[0].mxu0
  %v877 = vadd.f32 %v188, %v876
  %878 = vmatprep.mubr.f32.mxu0 0.0
  %879 = vmatmul.mubr.f32.gmra.mrb[0].mxu0 %v248
  %v880 = vpop.f32.mrb[0].mxu0
  %v881 = vadd.f32 %v193, %v880
  %v882 = vpop.f32.mrb[0].mxu0
  %v883 = vadd.f32 %v193, %v882
  %884 = vmatprep.mubr.f32.mxu0 0.0
  %885 = vmatmul.mubr.f32.gmra.mrb[0].mxu0 %v251
  %v886 = vpop.f32.mrb[0].mxu0
  %v887 = vadd.f32 %v198, %v886
  %v888 = vpop.f32.mrb[0].mxu0
  %v889 = vadd.f32 %v198, %v888
  %890 = vmatprep.mubr.f32.mxu0 0.0
  %891 = vmatmul.mubr.f32.gmra.mrb[0].mxu0 %v254
  %v892 = vpop.f32.mrb[0].mxu0
  %v893 = vadd.f32 %v203, %v892
  %v894 = vpop.f32.mrb[0].mxu0
  %v895 = vadd.f32 %v203, %v894
  %896 = vmatprep.mubr.f32.mxu0 0.0
  %897 = vmatmul.mubr.f32.gmra.mrb[0].mxu0 %v257
  %v898 = vpop.f32.mrb[0].mxu0
  %v899 = vadd.f32 %v208, %v898
  %v900 = vpop.f32.mrb[0].mxu0
  %v901 = vadd.f32 %v208, %v900
  %902 = vdwg.mxu0
  %vm903 = vcmask 261120
  %v905 = vsel %vm903, %v34, 0
  %v908 = vsel %vm903, %v35, 0
  %v911 = vsel %vm903, %v36, 0
  %v914 = vsel %vm903, %v37, 0
  %v917 = vsel %vm903, %v38, 0
  %v920 = vsel %vm903, %v39, 0
  %v923 = vsel %vm903, %v40, 0
  %v926 = vsel %vm903, %v41, 0
  %v929 = vsel %vm903, %v42, 0
  %v932 = vsel %vm903, %v43, 0
  %v935 = vsel %vm903, %v44, 0
  %v938 = vsel %vm903, %v45, 0
  %v941 = vsel %vm903, %v46, 0
  %v944 = vsel %vm903, %v47, 0
  %v947 = vsel %vm903, %v48, 0
  %v950 = vsel %vm903, %v49, 0
  %952 = vmatprep.subr.mxu0 0.0
  %953 = vmatpush1.msra.mxu0 0.0
  %954 = vmatprep.subr.mxu0 0.0
  %955 = vmatpush1.msra.mxu0 0.0
  %956 = vmatprep.subr.mxu0 0.0
  %957 = vmatpush1.msra.mxu0 0.0
  %958 = vmatprep.subr.mxu0 0.0
  %959 = vmatpush1.msra.mxu0 0.0
  %960 = vmatprep.subr.mxu0 0.0
  %961 = vmatpush1.msra.mxu0 0.0
  %962 = vmatprep.subr.mxu0 0.0
  %963 = vmatpush1.msra.mxu0 0.0
  %964 = vmatprep.subr.mxu0 0.0
  %965 = vmatpush1.msra.mxu0 0.0
  %966 = vmatprep.subr.mxu0 0.0
  %967 = vmatpush1.msra.mxu0 0.0
  %968 = vmatprep.subr.mxu0 0.0
  %969 = vmatpush1.msra.mxu0 0.0
  %970 = vmatprep.subr.mxu0 0.0
  %971 = vmatpush1.msra.mxu0 0.0
  %972 = vmatprep.subr.mxu0 0.0
  %973 = vmatpush1.msra.mxu0 0.0
  %974 = vmatprep.subr.mxu0 0.0
  %975 = vmatpush1.msra.mxu0 0.0
  %976 = vmatprep.subr.mxu0 0.0
  %977 = vmatpush1.msra.mxu0 0.0
  %978 = vmatprep.subr.mxu0 0.0
  %979 = vmatpush1.msra.mxu0 0.0
  %980 = vmatprep.subr.mxu0 0.0
  %981 = vmatpush1.msra.mxu0 0.0
  %982 = vmatprep.subr.mxu0 0.0
  %983 = vmatpush1.msra.mxu0 0.0
  %984 = vmatprep.subr.mxu0 0.0
  %985 = vmatpush1.msra.mxu0 0.0
  %986 = vmatprep.subr.mxu0 0.0
  %987 = vmatpush1.msra.mxu0 0.0
  %988 = vmatprep.subr.mxu0 0.0
  %989 = vmatpush1.msra.mxu0 0.0
  %990 = vmatprep.subr.mxu0 0.0
  %991 = vmatpush1.msra.mxu0 0.0
  %992 = vmatprep.subr.mxu0 0.0
  %993 = vmatpush1.msra.mxu0 0.0
  %994 = vmatprep.subr.mxu0 0.0
  %995 = vmatpush1.msra.mxu0 0.0
  %996 = vmatprep.subr.mxu0 0.0
  %997 = vmatpush1.msra.mxu0 0.0
  %998 = vmatprep.subr.mxu0 0.0
  %999 = vmatpush1.msra.mxu0 0.0
  %1000 = vmatprep.subr.mxu0 0.0
  %1001 = vmatpush1.msra.mxu0 0.0
  %1002 = vmatprep.subr.mxu0 0.0
  %1003 = vmatpush1.msra.mxu0 0.0
  %1004 = vmatprep.subr.mxu0 0.0
  %1005 = vmatpush1.msra.mxu0 0.0
  %1006 = vmatprep.subr.mxu0 0.0
  %1007 = vmatpush1.msra.mxu0 0.0
  %1008 = vmatprep.subr.mxu0 0.0
  %1009 = vmatpush1.msra.mxu0 0.0
  %1010 = vmatprep.subr.mxu0 0.0
  %1011 = vmatpush1.msra.mxu0 0.0
  %1012 = vmatprep.subr.mxu0 0.0
  %1013 = vmatpush1.msra.mxu0 0.0
  %1014 = vmatprep.subr.mxu0 0.0
  %1015 = vmatpush1.msra.mxu0 0.0
  %1016 = vmatprep.mubr.f32.mxu0 0.0
  %1017 = vmatmul.mubr.f32.gmra.mrb[0].mxu0 %v905
  %v1018 = vpop.f32.mrb[0].mxu0
  %v1019 = vadd.f32 0.0, %v1018
  %v1020 = vpop.f32.mrb[0].mxu0
  %1021 = vmatprep.mubr.f32.mxu0 0.0
  %1022 = vmatmul.mubr.f32.gmra.mrb[0].mxu0 %v908
  %v1023 = vpop.f32.mrb[0].mxu0
  %v1024 = vadd.f32 0.0, %v1023
  %v1025 = vpop.f32.mrb[0].mxu0
  %1026 = vmatprep.mubr.f32.mxu0 0.0
  %1027 = vmatmul.mubr.f32.gmra.mrb[0].mxu0 %v911
  %v1028 = vpop.f32.mrb[0].mxu0
  %v1029 = vadd.f32 0.0, %v1028
  %v1030 = vpop.f32.mrb[0].mxu0
  %1031 = vmatprep.mubr.f32.mxu0 0.0
  %1032 = vmatmul.mubr.f32.gmra.mrb[0].mxu0 %v914
  %v1033 = vpop.f32.mrb[0].mxu0
  %v1034 = vadd.f32 0.0, %v1033
  %v1035 = vpop.f32.mrb[0].mxu0
  %1036 = vmatprep.mubr.f32.mxu0 0.0
  %1037 = vmatmul.mubr.f32.gmra.mrb[0].mxu0 %v917
  %v1038 = vpop.f32.mrb[0].mxu0
  %v1039 = vadd.f32 0.0, %v1038
  %v1040 = vpop.f32.mrb[0].mxu0
  %1041 = vmatprep.mubr.f32.mxu0 0.0
  %1042 = vmatmul.mubr.f32.gmra.mrb[0].mxu0 %v920
  %v1043 = vpop.f32.mrb[0].mxu0
  %v1044 = vadd.f32 0.0, %v1043
  %v1045 = vpop.f32.mrb[0].mxu0
  %1046 = vmatprep.mubr.f32.mxu0 0.0
  %1047 = vmatmul.mubr.f32.gmra.mrb[0].mxu0 %v923
  %v1048 = vpop.f32.mrb[0].mxu0
  %v1049 = vadd.f32 0.0, %v1048
  %v1050 = vpop.f32.mrb[0].mxu0
  %1051 = vmatprep.mubr.f32.mxu0 0.0
  %1052 = vmatmul.mubr.f32.gmra.mrb[0].mxu0 %v926
  %v1053 = vpop.f32.mrb[0].mxu0
  %v1054 = vadd.f32 0.0, %v1053
  %v1055 = vpop.f32.mrb[0].mxu0
  %1056 = vmatprep.mubr.f32.mxu0 0.0
  %1057 = vmatmul.mubr.f32.gmra.mrb[0].mxu0 %v929
  %v1058 = vpop.f32.mrb[0].mxu0
  %v1059 = vadd.f32 0.0, %v1058
  %v1060 = vpop.f32.mrb[0].mxu0
  %1061 = vmatprep.mubr.f32.mxu0 0.0
  %1062 = vmatmul.mubr.f32.gmra.mrb[0].mxu0 %v932
  %v1063 = vpop.f32.mrb[0].mxu0
  %v1064 = vadd.f32 0.0, %v1063
  %v1065 = vpop.f32.mrb[0].mxu0
  %1066 = vmatprep.mubr.f32.mxu0 0.0
  %1067 = vmatmul.mubr.f32.gmra.mrb[0].mxu0 %v935
  %v1068 = vpop.f32.mrb[0].mxu0
  %v1069 = vadd.f32 0.0, %v1068
  %v1070 = vpop.f32.mrb[0].mxu0
  %1071 = vmatprep.mubr.f32.mxu0 0.0
  %1072 = vmatmul.mubr.f32.gmra.mrb[0].mxu0 %v938
  %v1073 = vpop.f32.mrb[0].mxu0
  %v1074 = vadd.f32 0.0, %v1073
  %v1075 = vpop.f32.mrb[0].mxu0
  %1076 = vmatprep.mubr.f32.mxu0 0.0
  %1077 = vmatmul.mubr.f32.gmra.mrb[0].mxu0 %v941
  %v1078 = vpop.f32.mrb[0].mxu0
  %v1079 = vadd.f32 0.0, %v1078
  %v1080 = vpop.f32.mrb[0].mxu0
  %1081 = vmatprep.mubr.f32.mxu0 0.0
  %1082 = vmatmul.mubr.f32.gmra.mrb[0].mxu0 %v944
  %v1083 = vpop.f32.mrb[0].mxu0
  %v1084 = vadd.f32 0.0, %v1083
  %v1085 = vpop.f32.mrb[0].mxu0
  %1086 = vmatprep.mubr.f32.mxu0 0.0
  %1087 = vmatmul.mubr.f32.gmra.mrb[0].mxu0 %v947
  %v1088 = vpop.f32.mrb[0].mxu0
  %v1089 = vadd.f32 0.0, %v1088
  %v1090 = vpop.f32.mrb[0].mxu0
  %1091 = vmatprep.mubr.f32.mxu0 0.0
  %1092 = vmatmul.mubr.f32.gmra.mrb[0].mxu0 %v950
  %v1093 = vpop.f32.mrb[0].mxu0
  %v1094 = vadd.f32 0.0, %v1093
  %v1095 = vpop.f32.mrb[0].mxu0
  %1096 = vdwg.mxu0
  %v1097 = vadd.f32 %v326, %v1019
  %v1098 = vadd.f32 %v332, %v1024
  %v1099 = vadd.f32 %v338, %v1029
  %v1100 = vadd.f32 %v344, %v1034
  %v1101 = vadd.f32 %v350, %v1039
  %v1102 = vadd.f32 %v356, %v1044
  %v1103 = vadd.f32 %v362, %v1049
  %v1104 = vadd.f32 %v368, %v1054
  %v1105 = vadd.f32 %v374, %v1059
  %v1106 = vadd.f32 %v380, %v1064
  %v1107 = vadd.f32 %v386, %v1069
  %v1108 = vadd.f32 %v392, %v1074
  %v1109 = vadd.f32 %v398, %v1079
  %v1110 = vadd.f32 %v404, %v1084
  %v1111 = vadd.f32 %v410, %v1089
  %v1112 = vadd.f32 %v416, %v1094
  %v1113 = vxor.u32 %v1097, 2147483648
  %v1114 = vxor.u32 %v1098, 2147483648
  %v1115 = vxor.u32 %v1099, 2147483648
  %v1116 = vxor.u32 %v1100, 2147483648
  %v1117 = vxor.u32 %v1101, 2147483648
  %v1118 = vxor.u32 %v1102, 2147483648
  %v1119 = vxor.u32 %v1103, 2147483648
  %v1120 = vxor.u32 %v1104, 2147483648
  %v1121 = vxor.u32 %v1105, 2147483648
  %v1122 = vxor.u32 %v1106, 2147483648
  %v1123 = vxor.u32 %v1107, 2147483648
  %v1124 = vxor.u32 %v1108, 2147483648
  %v1125 = vmul.f32 %v1113, 1.442695
  %v1126 = vpow.pop %v1125
  %v1127 = vmul.f32 %v1114, 1.442695
  %v1128 = vpow.pop %v1127
  %v1129 = vmul.f32 %v1115, 1.442695
  %v1130 = vpow.pop %v1129
  %v1131 = vmul.f32 %v1116, 1.442695
  %v1132 = vpow.pop %v1131
  %v1133 = vmul.f32 %v1117, 1.442695
  %v1134 = vpow.pop %v1133
  %v1135 = vmul.f32 %v1118, 1.442695
  %v1136 = vpow.pop %v1135
  %v1137 = vmul.f32 %v1119, 1.442695
  %v1138 = vpow.pop %v1137
  %v1139 = vmul.f32 %v1120, 1.442695
  %v1140 = vpow.pop %v1139
  %v1141 = vmul.f32 %v1121, 1.442695
  %v1142 = vpow.pop %v1141
  %v1143 = vmul.f32 %v1122, 1.442695
  %v1144 = vpow.pop %v1143
  %v1145 = vmul.f32 %v1123, 1.442695
  %v1146 = vpow.pop %v1145
  %v1147 = vmul.f32 %v1124, 1.442695
  %v1148 = vpow.pop %v1147
  %v1149 = vadd.f32 %v1126, 1.0
  %v1150 = vadd.f32 %v1128, 1.0
  %v1151 = vadd.f32 %v1130, 1.0
  %v1152 = vadd.f32 %v1132, 1.0
  %v1153 = vadd.f32 %v1134, 1.0
  %v1154 = vadd.f32 %v1136, 1.0
  %v1155 = vadd.f32 %v1138, 1.0
  %v1156 = vadd.f32 %v1140, 1.0
  %v1157 = vadd.f32 %v1142, 1.0
  %v1158 = vadd.f32 %v1144, 1.0
  %v1159 = vadd.f32 %v1146, 1.0
  %v1160 = vadd.f32 %v1148, 1.0
  %v1161 = vrcp.pop %v1149
  %v1162 = vmul.f32 1.0, %v1161
  %v1163 = vrcp.pop %v1150
  %v1164 = vmul.f32 1.0, %v1163
  %v1165 = vrcp.pop %v1151
  %v1166 = vmul.f32 1.0, %v1165
  %v1167 = vrcp.pop %v1152
  %v1168 = vmul.f32 1.0, %v1167
  %v1169 = vrcp.pop %v1153
  %v1170 = vmul.f32 1.0, %v1169
  %v1171 = vrcp.pop %v1154
  %v1172 = vmul.f32 1.0, %v1171
  %v1173 = vrcp.pop %v1155
  %v1174 = vmul.f32 1.0, %v1173
  %v1175 = vrcp.pop %v1156
  %v1176 = vmul.f32 1.0, %v1175
  %v1177 = vrcp.pop %v1157
  %v1178 = vmul.f32 1.0, %v1177
  %v1179 = vrcp.pop %v1158
  %v1180 = vmul.f32 1.0, %v1179
  %v1181 = vrcp.pop %v1159
  %v1182 = vmul.f32 1.0, %v1181
  %v1183 = vrcp.pop %v1160
  %v1184 = vmul.f32 1.0, %v1183
  %v1185 = vtanh.pop %v1109
  %v1186 = vtanh.pop %v1110
  %v1187 = vtanh.pop %v1111
  %v1188 = vtanh.pop %v1112
  %v1189 = vmul.f32 %v1170, 0.0
  %v1190 = vmul.f32 %v1172, 0.0
  %v1191 = vmul.f32 %v1174, 0.0
  %v1192 = vmul.f32 %v1176, 0.0
  %v1193 = vmul.f32 %v1162, %v1185
  %v1194 = vmul.f32 %v1164, %v1186
  %v1195 = vmul.f32 %v1166, %v1187
  %v1196 = vmul.f32 %v1168, %v1188
  %v1197 = vadd.f32 %v1189, %v1193
  %v1198 = vadd.f32 %v1190, %v1194
  %v1199 = vadd.f32 %v1191, %v1195
  %v1200 = vadd.f32 %v1192, %v1196
  %v1201 = vtanh.pop %v1197
  %v1202 = vtanh.pop %v1198
  %v1203 = vtanh.pop %v1199
  %v1204 = vtanh.pop %v1200
  %v1205 = vmul.f32 %v1178, %v1201
  %v1206 = vmul.f32 %v1180, %v1202
  %v1207 = vmul.f32 %v1182, %v1203
  %v1208 = vmul.f32 %v1184, %v1204
  %1209 = vmatprep.subr.mxu0 0.0
  %1210 = vmatpush1.msra.mxu0 %v1205
  %1211 = vmatprep.subr.mxu0 0.0
  %1212 = vmatpush1.msra.mxu0 %v1206
  %1213 = vmatprep.subr.mxu0 0.0
  %1214 = vmatpush1.msra.mxu0 %v1207
  %1215 = vmatprep.subr.mxu0 0.0
  %1216 = vmatpush1.msra.mxu0 %v1208
  %1217 = vmatprep.subr.mxu0 0.0
  %1218 = vmatpush1.msra.mxu0 0.0
  %1219 = vmatprep.subr.mxu0 0.0
  %1220 = vmatpush1.msra.mxu0 0.0
  %1221 = vmatprep.subr.mxu0 0.0
  %1222 = vmatpush1.msra.mxu0 0.0
  %1223 = vmatprep.subr.mxu0 0.0
  %1224 = vmatpush1.msra.mxu0 0.0
  %1225 = vmatprep.subr.mxu0 0.0
  %1226 = vmatpush1.msra.mxu0 0.0
  %1227 = vmatprep.subr.mxu0 0.0
  %1228 = vmatpush1.msra.mxu0 0.0
  %1229 = vmatprep.subr.mxu0 0.0
  %1230 = vmatpush1.msra.mxu0 0.0
  %1231 = vmatprep.subr.mxu0 0.0
  %1232 = vmatpush1.msra.mxu0 0.0
  %1233 = vmatprep.subr.mxu0 0.0
  %1234 = vmatpush1.msra.mxu0 0.0
  %1235 = vmatprep.subr.mxu0 0.0
  %1236 = vmatpush1.msra.mxu0 0.0
  %1237 = vmatprep.subr.mxu0 0.0
  %1238 = vmatpush1.msra.mxu0 0.0
  %1239 = vmatprep.subr.mxu0 0.0
  %1240 = vmatpush1.msra.mxu0 0.0
  %1241 = vmatprep.subr.mxu0 0.0
  %1242 = vmatpush1.msra.mxu0 0.0
  %1243 = vmatprep.subr.mxu0 0.0
  %1244 = vmatpush1.msra.mxu0 0.0
  %1245 = vmatprep.subr.mxu0 0.0
  %1246 = vmatpush1.msra.mxu0 0.0
  %1247 = vmatprep.subr.mxu0 0.0
  %1248 = vmatpush1.msra.mxu0 0.0
  %1249 = vmatprep.subr.mxu0 0.0
  %1250 = vmatpush1.msra.mxu0 0.0
  %1251 = vmatprep.subr.mxu0 0.0
  %1252 = vmatpush1.msra.mxu0 0.0
  %1253 = vmatprep.subr.mxu0 0.0
  %1254 = vmatpush1.msra.mxu0 0.0
  %1255 = vmatprep.subr.mxu0 0.0
  %1256 = vmatpush1.msra.mxu0 0.0
  %1257 = vmatprep.subr.mxu0 0.0
  %1258 = vmatpush1.msra.mxu0 0.0
  %1259 = vmatprep.subr.mxu0 0.0
  %1260 = vmatpush1.msra.mxu0 0.0
  %1261 = vmatprep.subr.mxu0 0.0
  %1262 = vmatpush1.msra.mxu0 0.0
  %1263 = vmatprep.subr.mxu0 0.0
  %1264 = vmatpush1.msra.mxu0 0.0
  %1265 = vmatprep.subr.mxu0 0.0
  %1266 = vmatpush1.msra.mxu0 0.0
  %1267 = vmatprep.subr.mxu0 0.0
  %1268 = vmatpush1.msra.mxu0 0.0
  %1269 = vmatprep.subr.mxu0 0.0
  %1270 = vmatpush1.msra.mxu0 0.0
  %1271 = vmatprep.subr.mxu0 0.0
  %1272 = vmatpush1.msra.mxu0 0.0
  %1273 = vmatprep.mubr.f32.mxu0 0.0
  %1274 = vmatmul.mubr.f32.gmra.mrb[0].mxu0 %v905
  %v1275 = vpop.f32.mrb[0].mxu0
  %v1276 = vadd.f32 0.0, %v1275
  %v1277 = vpop.f32.mrb[0].mxu0
  %1278 = vmatprep.mubr.f32.mxu0 0.0
  %1279 = vmatmul.mubr.f32.gmra.mrb[0].mxu0 %v908
  %v1280 = vpop.f32.mrb[0].mxu0
  %v1281 = vadd.f32 0.0, %v1280
  %v1282 = vpop.f32.mrb[0].mxu0
  %1283 = vmatprep.mubr.f32.mxu0 0.0
  %1284 = vmatmul.mubr.f32.gmra.mrb[0].mxu0 %v911
  %v1285 = vpop.f32.mrb[0].mxu0
  %v1286 = vadd.f32 0.0, %v1285
  %v1287 = vpop.f32.mrb[0].mxu0
  %1288 = vmatprep.mubr.f32.mxu0 0.0
  %1289 = vmatmul.mubr.f32.gmra.mrb[0].mxu0 %v914
  %v1290 = vpop.f32.mrb[0].mxu0
  %v1291 = vadd.f32 0.0, %v1290
  %v1292 = vpop.f32.mrb[0].mxu0
  %1293 = vmatprep.mubr.f32.mxu0 0.0
  %1294 = vmatmul.mubr.f32.gmra.mrb[0].mxu0 %v917
  %v1295 = vpop.f32.mrb[0].mxu0
  %v1296 = vadd.f32 0.0, %v1295
  %v1297 = vpop.f32.mrb[0].mxu0
  %1298 = vmatprep.mubr.f32.mxu0 0.0
  %1299 = vmatmul.mubr.f32.gmra.mrb[0].mxu0 %v920
  %v1300 = vpop.f32.mrb[0].mxu0
  %v1301 = vadd.f32 0.0, %v1300
  %v1302 = vpop.f32.mrb[0].mxu0
  %1303 = vmatprep.mubr.f32.mxu0 0.0
  %1304 = vmatmul.mubr.f32.gmra.mrb[0].mxu0 %v923
  %v1305 = vpop.f32.mrb[0].mxu0
  %v1306 = vadd.f32 0.0, %v1305
  %v1307 = vpop.f32.mrb[0].mxu0
  %1308 = vmatprep.mubr.f32.mxu0 0.0
  %1309 = vmatmul.mubr.f32.gmra.mrb[0].mxu0 %v926
  %v1310 = vpop.f32.mrb[0].mxu0
  %v1311 = vadd.f32 0.0, %v1310
  %v1312 = vpop.f32.mrb[0].mxu0
  %1313 = vmatprep.mubr.f32.mxu0 0.0
  %1314 = vmatmul.mubr.f32.gmra.mrb[0].mxu0 %v929
  %v1315 = vpop.f32.mrb[0].mxu0
  %v1316 = vadd.f32 0.0, %v1315
  %v1317 = vpop.f32.mrb[0].mxu0
  %1318 = vmatprep.mubr.f32.mxu0 0.0
  %1319 = vmatmul.mubr.f32.gmra.mrb[0].mxu0 %v932
  %v1320 = vpop.f32.mrb[0].mxu0
  %v1321 = vadd.f32 0.0, %v1320
  %v1322 = vpop.f32.mrb[0].mxu0
  %1323 = vmatprep.mubr.f32.mxu0 0.0
  %1324 = vmatmul.mubr.f32.gmra.mrb[0].mxu0 %v935
  %v1325 = vpop.f32.mrb[0].mxu0
  %v1326 = vadd.f32 0.0, %v1325
  %v1327 = vpop.f32.mrb[0].mxu0
  %1328 = vmatprep.mubr.f32.mxu0 0.0
  %1329 = vmatmul.mubr.f32.gmra.mrb[0].mxu0 %v938
  %v1330 = vpop.f32.mrb[0].mxu0
  %v1331 = vadd.f32 0.0, %v1330
  %v1332 = vpop.f32.mrb[0].mxu0
  %1333 = vmatprep.mubr.f32.mxu0 0.0
  %1334 = vmatmul.mubr.f32.gmra.mrb[0].mxu0 %v941
  %v1335 = vpop.f32.mrb[0].mxu0
  %v1336 = vadd.f32 0.0, %v1335
  %v1337 = vpop.f32.mrb[0].mxu0
  %1338 = vmatprep.mubr.f32.mxu0 0.0
  %1339 = vmatmul.mubr.f32.gmra.mrb[0].mxu0 %v944
  %v1340 = vpop.f32.mrb[0].mxu0
  %v1341 = vadd.f32 0.0, %v1340
  %v1342 = vpop.f32.mrb[0].mxu0
  %1343 = vmatprep.mubr.f32.mxu0 0.0
  %1344 = vmatmul.mubr.f32.gmra.mrb[0].mxu0 %v947
  %v1345 = vpop.f32.mrb[0].mxu0
  %v1346 = vadd.f32 0.0, %v1345
  %v1347 = vpop.f32.mrb[0].mxu0
  %1348 = vmatprep.mubr.f32.mxu0 0.0
  %1349 = vmatmul.mubr.f32.gmra.mrb[0].mxu0 %v950
  %v1350 = vpop.f32.mrb[0].mxu0
  %v1351 = vadd.f32 0.0, %v1350
  %v1352 = vpop.f32.mrb[0].mxu0
  %1353 = vdwg.mxu0
  %v1354 = vadd.f32 %v328, %v1276
  %v1355 = vadd.f32 %v334, %v1281
  %v1356 = vadd.f32 %v340, %v1286
  %v1357 = vadd.f32 %v346, %v1291
  %v1358 = vadd.f32 %v352, %v1296
  %v1359 = vadd.f32 %v358, %v1301
  %v1360 = vadd.f32 %v364, %v1306
  %v1361 = vadd.f32 %v370, %v1311
  %v1362 = vadd.f32 %v376, %v1316
  %v1363 = vadd.f32 %v382, %v1321
  %v1364 = vadd.f32 %v388, %v1326
  %v1365 = vadd.f32 %v394, %v1331
  %v1366 = vadd.f32 %v400, %v1336
  %v1367 = vadd.f32 %v406, %v1341
  %v1368 = vadd.f32 %v412, %v1346
  %v1369 = vadd.f32 %v418, %v1351
  %v1370 = vxor.u32 %v1354, 2147483648
  %v1371 = vxor.u32 %v1355, 2147483648
  %v1372 = vxor.u32 %v1356, 2147483648
  %v1373 = vxor.u32 %v1357, 2147483648
  %v1374 = vxor.u32 %v1358, 2147483648
  %v1375 = vxor.u32 %v1359, 2147483648
  %v1376 = vxor.u32 %v1360, 2147483648
  %v1377 = vxor.u32 %v1361, 2147483648
  %v1378 = vxor.u32 %v1362, 2147483648
  %v1379 = vxor.u32 %v1363, 2147483648
  %v1380 = vxor.u32 %v1364, 2147483648
  %v1381 = vxor.u32 %v1365, 2147483648
  %v1382 = vmul.f32 %v1370, 1.442695
  %v1383 = vpow.pop %v1382
  %v1384 = vmul.f32 %v1371, 1.442695
  %v1385 = vpow.pop %v1384
  %v1386 = vmul.f32 %v1372, 1.442695
  %v1387 = vpow.pop %v1386
  %v1388 = vmul.f32 %v1373, 1.442695
  %v1389 = vpow.pop %v1388
  %v1390 = vmul.f32 %v1374, 1.442695
  %v1391 = vpow.pop %v1390
  %v1392 = vmul.f32 %v1375, 1.442695
  %v1393 = vpow.pop %v1392
  %v1394 = vmul.f32 %v1376, 1.442695
  %v1395 = vpow.pop %v1394
  %v1396 = vmul.f32 %v1377, 1.442695
  %v1397 = vpow.pop %v1396
  %v1398 = vmul.f32 %v1378, 1.442695
  %v1399 = vpow.pop %v1398
  %v1400 = vmul.f32 %v1379, 1.442695
  %v1401 = vpow.pop %v1400
  %v1402 = vmul.f32 %v1380, 1.442695
  %v1403 = vpow.pop %v1402
  %v1404 = vmul.f32 %v1381, 1.442695
  %v1405 = vpow.pop %v1404
  %v1406 = vadd.f32 %v1383, 1.0
  %v1407 = vadd.f32 %v1385, 1.0
  %v1408 = vadd.f32 %v1387, 1.0
  %v1409 = vadd.f32 %v1389, 1.0
  %v1410 = vadd.f32 %v1391, 1.0
  %v1411 = vadd.f32 %v1393, 1.0
  %v1412 = vadd.f32 %v1395, 1.0
  %v1413 = vadd.f32 %v1397, 1.0
  %v1414 = vadd.f32 %v1399, 1.0
  %v1415 = vadd.f32 %v1401, 1.0
  %v1416 = vadd.f32 %v1403, 1.0
  %v1417 = vadd.f32 %v1405, 1.0
  %v1418 = vrcp.pop %v1406
  %v1419 = vmul.f32 1.0, %v1418
  %v1420 = vrcp.pop %v1407
  %v1421 = vmul.f32 1.0, %v1420
  %v1422 = vrcp.pop %v1408
  %v1423 = vmul.f32 1.0, %v1422
  %v1424 = vrcp.pop %v1409
  %v1425 = vmul.f32 1.0, %v1424
  %v1426 = vrcp.pop %v1410
  %v1427 = vmul.f32 1.0, %v1426
  %v1428 = vrcp.pop %v1411
  %v1429 = vmul.f32 1.0, %v1428
  %v1430 = vrcp.pop %v1412
  %v1431 = vmul.f32 1.0, %v1430
  %v1432 = vrcp.pop %v1413
  %v1433 = vmul.f32 1.0, %v1432
  %v1434 = vrcp.pop %v1414
  %v1435 = vmul.f32 1.0, %v1434
  %v1436 = vrcp.pop %v1415
  %v1437 = vmul.f32 1.0, %v1436
  %v1438 = vrcp.pop %v1416
  %v1439 = vmul.f32 1.0, %v1438
  %v1440 = vrcp.pop %v1417
  %v1441 = vmul.f32 1.0, %v1440
  %v1442 = vtanh.pop %v1366
  %v1443 = vtanh.pop %v1367
  %v1444 = vtanh.pop %v1368
  %v1445 = vtanh.pop %v1369
  %v1446 = vmul.f32 %v1427, %v1197
  %v1447 = vmul.f32 %v1429, %v1198
  %v1448 = vmul.f32 %v1431, %v1199
  %v1449 = vmul.f32 %v1433, %v1200
  %v1450 = vmul.f32 %v1419, %v1442
  %v1451 = vmul.f32 %v1421, %v1443
  %v1452 = vmul.f32 %v1423, %v1444
  %v1453 = vmul.f32 %v1425, %v1445
  %v1454 = vadd.f32 %v1446, %v1450
  %v1455 = vadd.f32 %v1447, %v1451
  %v1456 = vadd.f32 %v1448, %v1452
  %v1457 = vadd.f32 %v1449, %v1453
  %v1458 = vtanh.pop %v1454
  %v1459 = vtanh.pop %v1455
  %v1460 = vtanh.pop %v1456
  %v1461 = vtanh.pop %v1457
  %v1462 = vmul.f32 %v1435, %v1458
  %v1463 = vmul.f32 %v1437, %v1459
  %v1464 = vmul.f32 %v1439, %v1460
  %v1465 = vmul.f32 %v1441, %v1461
  %1466 = vmatprep.subr.mxu0 0.0
  %1467 = vmatpush1.msra.mxu0 %v1462
  %1468 = vmatprep.subr.mxu0 0.0
  %1469 = vmatpush1.msra.mxu0 %v1463
  %1470 = vmatprep.subr.mxu0 0.0
  %1471 = vmatpush1.msra.mxu0 %v1464
  %1472 = vmatprep.subr.mxu0 0.0
  %1473 = vmatpush1.msra.mxu0 %v1465
  %1474 = vmatprep.subr.mxu0 0.0
  %1475 = vmatpush1.msra.mxu0 0.0
  %1476 = vmatprep.subr.mxu0 0.0
  %1477 = vmatpush1.msra.mxu0 0.0
  %1478 = vmatprep.subr.mxu0 0.0
  %1479 = vmatpush1.msra.mxu0 0.0
  %1480 = vmatprep.subr.mxu0 0.0
  %1481 = vmatpush1.msra.mxu0 0.0
  %1482 = vmatprep.subr.mxu0 0.0
  %1483 = vmatpush1.msra.mxu0 0.0
  %1484 = vmatprep.subr.mxu0 0.0
  %1485 = vmatpush1.msra.mxu0 0.0
  %1486 = vmatprep.subr.mxu0 0.0
  %1487 = vmatpush1.msra.mxu0 0.0
  %1488 = vmatprep.subr.mxu0 0.0
  %1489 = vmatpush1.msra.mxu0 0.0
  %1490 = vmatprep.subr.mxu0 0.0
  %1491 = vmatpush1.msra.mxu0 0.0
  %1492 = vmatprep.subr.mxu0 0.0
  %1493 = vmatpush1.msra.mxu0 0.0
  %1494 = vmatprep.subr.mxu0 0.0
  %1495 = vmatpush1.msra.mxu0 0.0
  %1496 = vmatprep.subr.mxu0 0.0
  %1497 = vmatpush1.msra.mxu0 0.0
  %1498 = vmatprep.subr.mxu0 0.0
  %1499 = vmatpush1.msra.mxu0 0.0
  %1500 = vmatprep.subr.mxu0 0.0
  %1501 = vmatpush1.msra.mxu0 0.0
  %1502 = vmatprep.subr.mxu0 0.0
  %1503 = vmatpush1.msra.mxu0 0.0
  %1504 = vmatprep.subr.mxu0 0.0
  %1505 = vmatpush1.msra.mxu0 0.0
  %1506 = vmatprep.subr.mxu0 0.0
  %1507 = vmatpush1.msra.mxu0 0.0
  %1508 = vmatprep.subr.mxu0 0.0
  %1509 = vmatpush1.msra.mxu0 0.0
  %1510 = vmatprep.subr.mxu0 0.0
  %1511 = vmatpush1.msra.mxu0 0.0
  %1512 = vmatprep.subr.mxu0 0.0
  %1513 = vmatpush1.msra.mxu0 0.0
  %1514 = vmatprep.subr.mxu0 0.0
  %1515 = vmatpush1.msra.mxu0 0.0
  %1516 = vmatprep.subr.mxu0 0.0
  %1517 = vmatpush1.msra.mxu0 0.0
  %1518 = vmatprep.subr.mxu0 0.0
  %1519 = vmatpush1.msra.mxu0 0.0
  %1520 = vmatprep.subr.mxu0 0.0
  %1521 = vmatpush1.msra.mxu0 0.0
  %1522 = vmatprep.subr.mxu0 0.0
  %1523 = vmatpush1.msra.mxu0 0.0
  %1524 = vmatprep.subr.mxu0 0.0
  %1525 = vmatpush1.msra.mxu0 0.0
  %1526 = vmatprep.subr.mxu0 0.0
  %1527 = vmatpush1.msra.mxu0 0.0
  %1528 = vmatprep.subr.mxu0 0.0
  %1529 = vmatpush1.msra.mxu0 0.0
  %1530 = vmatprep.mubr.f32.mxu0 0.0
  %1531 = vmatmul.mubr.f32.gmra.mrb[0].mxu0 %v905
  %v1532 = vpop.f32.mrb[0].mxu0
  %v1533 = vadd.f32 0.0, %v1532
  %v1534 = vpop.f32.mrb[0].mxu0
  %1535 = vmatprep.mubr.f32.mxu0 0.0
  %1536 = vmatmul.mubr.f32.gmra.mrb[0].mxu0 %v908
  %v1537 = vpop.f32.mrb[0].mxu0
  %v1538 = vadd.f32 0.0, %v1537
  %v1539 = vpop.f32.mrb[0].mxu0
  %1540 = vmatprep.mubr.f32.mxu0 0.0
  %1541 = vmatmul.mubr.f32.gmra.mrb[0].mxu0 %v911
  %v1542 = vpop.f32.mrb[0].mxu0
  %v1543 = vadd.f32 0.0, %v1542
  %v1544 = vpop.f32.mrb[0].mxu0
  %1545 = vmatprep.mubr.f32.mxu0 0.0
  %1546 = vmatmul.mubr.f32.gmra.mrb[0].mxu0 %v914
  %v1547 = vpop.f32.mrb[0].mxu0
  %v1548 = vadd.f32 0.0, %v1547
  %v1549 = vpop.f32.mrb[0].mxu0
  %1550 = vmatprep.mubr.f32.mxu0 0.0
  %1551 = vmatmul.mubr.f32.gmra.mrb[0].mxu0 %v917
  %v1552 = vpop.f32.mrb[0].mxu0
  %v1553 = vadd.f32 0.0, %v1552
  %v1554 = vpop.f32.mrb[0].mxu0
  %1555 = vmatprep.mubr.f32.mxu0 0.0
  %1556 = vmatmul.mubr.f32.gmra.mrb[0].mxu0 %v920
  %v1557 = vpop.f32.mrb[0].mxu0
  %v1558 = vadd.f32 0.0, %v1557
  %v1559 = vpop.f32.mrb[0].mxu0
  %1560 = vmatprep.mubr.f32.mxu0 0.0
  %1561 = vmatmul.mubr.f32.gmra.mrb[0].mxu0 %v923
  %v1562 = vpop.f32.mrb[0].mxu0
  %v1563 = vadd.f32 0.0, %v1562
  %v1564 = vpop.f32.mrb[0].mxu0
  %1565 = vmatprep.mubr.f32.mxu0 0.0
  %1566 = vmatmul.mubr.f32.gmra.mrb[0].mxu0 %v926
  %v1567 = vpop.f32.mrb[0].mxu0
  %v1568 = vadd.f32 0.0, %v1567
  %v1569 = vpop.f32.mrb[0].mxu0
  %1570 = vmatprep.mubr.f32.mxu0 0.0
  %1571 = vmatmul.mubr.f32.gmra.mrb[0].mxu0 %v929
  %v1572 = vpop.f32.mrb[0].mxu0
  %v1573 = vadd.f32 0.0, %v1572
  %v1574 = vpop.f32.mrb[0].mxu0
  %1575 = vmatprep.mubr.f32.mxu0 0.0
  %1576 = vmatmul.mubr.f32.gmra.mrb[0].mxu0 %v932
  %v1577 = vpop.f32.mrb[0].mxu0
  %v1578 = vadd.f32 0.0, %v1577
  %v1579 = vpop.f32.mrb[0].mxu0
  %1580 = vmatprep.mubr.f32.mxu0 0.0
  %1581 = vmatmul.mubr.f32.gmra.mrb[0].mxu0 %v935
  %v1582 = vpop.f32.mrb[0].mxu0
  %v1583 = vadd.f32 0.0, %v1582
  %v1584 = vpop.f32.mrb[0].mxu0
  %1585 = vmatprep.mubr.f32.mxu0 0.0
  %1586 = vmatmul.mubr.f32.gmra.mrb[0].mxu0 %v938
  %v1587 = vpop.f32.mrb[0].mxu0
  %v1588 = vadd.f32 0.0, %v1587
  %v1589 = vpop.f32.mrb[0].mxu0
  %1590 = vmatprep.mubr.f32.mxu0 0.0
  %1591 = vmatmul.mubr.f32.gmra.mrb[0].mxu0 %v941
  %v1592 = vpop.f32.mrb[0].mxu0
  %v1593 = vadd.f32 0.0, %v1592
  %v1594 = vpop.f32.mrb[0].mxu0
  %1595 = vmatprep.mubr.f32.mxu0 0.0
  %1596 = vmatmul.mubr.f32.gmra.mrb[0].mxu0 %v944
  %v1597 = vpop.f32.mrb[0].mxu0
  %v1598 = vadd.f32 0.0, %v1597
  %v1599 = vpop.f32.mrb[0].mxu0
  %1600 = vmatprep.mubr.f32.mxu0 0.0
  %1601 = vmatmul.mubr.f32.gmra.mrb[0].mxu0 %v947
  %v1602 = vpop.f32.mrb[0].mxu0
  %v1603 = vadd.f32 0.0, %v1602
  %v1604 = vpop.f32.mrb[0].mxu0
  %1605 = vmatprep.mubr.f32.mxu0 0.0
  %1606 = vmatmul.mubr.f32.gmra.mrb[0].mxu0 %v950
  %v1607 = vpop.f32.mrb[0].mxu0
  %v1608 = vadd.f32 0.0, %v1607
  %v1609 = vpop.f32.mrb[0].mxu0
  %1610 = vdwg.mxu0
  %v1611 = vadd.f32 %v487, %v1533
  %v1612 = vadd.f32 %v493, %v1538
  %v1613 = vadd.f32 %v499, %v1543
  %v1614 = vadd.f32 %v505, %v1548
  %v1615 = vadd.f32 %v511, %v1553
  %v1616 = vadd.f32 %v517, %v1558
  %v1617 = vadd.f32 %v523, %v1563
  %v1618 = vadd.f32 %v529, %v1568
  %v1619 = vadd.f32 %v535, %v1573
  %v1620 = vadd.f32 %v541, %v1578
  %v1621 = vadd.f32 %v547, %v1583
  %v1622 = vadd.f32 %v553, %v1588
  %v1623 = vadd.f32 %v559, %v1593
  %v1624 = vadd.f32 %v565, %v1598
  %v1625 = vadd.f32 %v571, %v1603
  %v1626 = vadd.f32 %v577, %v1608
  %v1627 = vxor.u32 %v1611, 2147483648
  %v1628 = vxor.u32 %v1612, 2147483648
  %v1629 = vxor.u32 %v1613, 2147483648
  %v1630 = vxor.u32 %v1614, 2147483648
  %v1631 = vxor.u32 %v1615, 2147483648
  %v1632 = vxor.u32 %v1616, 2147483648
  %v1633 = vxor.u32 %v1617, 2147483648
  %v1634 = vxor.u32 %v1618, 2147483648
  %v1635 = vxor.u32 %v1619, 2147483648
  %v1636 = vxor.u32 %v1620, 2147483648
  %v1637 = vxor.u32 %v1621, 2147483648
  %v1638 = vxor.u32 %v1622, 2147483648
  %v1639 = vmul.f32 %v1627, 1.442695
  %v1640 = vpow.pop %v1639
  %v1641 = vmul.f32 %v1628, 1.442695
  %v1642 = vpow.pop %v1641
  %v1643 = vmul.f32 %v1629, 1.442695
  %v1644 = vpow.pop %v1643
  %v1645 = vmul.f32 %v1630, 1.442695
  %v1646 = vpow.pop %v1645
  %v1647 = vmul.f32 %v1631, 1.442695
  %v1648 = vpow.pop %v1647
  %v1649 = vmul.f32 %v1632, 1.442695
  %v1650 = vpow.pop %v1649
  %v1651 = vmul.f32 %v1633, 1.442695
  %v1652 = vpow.pop %v1651
  %v1653 = vmul.f32 %v1634, 1.442695
  %v1654 = vpow.pop %v1653
  %v1655 = vmul.f32 %v1635, 1.442695
  %v1656 = vpow.pop %v1655
  %v1657 = vmul.f32 %v1636, 1.442695
  %v1658 = vpow.pop %v1657
  %v1659 = vmul.f32 %v1637, 1.442695
  %v1660 = vpow.pop %v1659
  %v1661 = vmul.f32 %v1638, 1.442695
  %v1662 = vpow.pop %v1661
  %v1663 = vadd.f32 %v1640, 1.0
  %v1664 = vadd.f32 %v1642, 1.0
  %v1665 = vadd.f32 %v1644, 1.0
  %v1666 = vadd.f32 %v1646, 1.0
  %v1667 = vadd.f32 %v1648, 1.0
  %v1668 = vadd.f32 %v1650, 1.0
  %v1669 = vadd.f32 %v1652, 1.0
  %v1670 = vadd.f32 %v1654, 1.0
  %v1671 = vadd.f32 %v1656, 1.0
  %v1672 = vadd.f32 %v1658, 1.0
  %v1673 = vadd.f32 %v1660, 1.0
  %v1674 = vadd.f32 %v1662, 1.0
  %v1675 = vrcp.pop %v1663
  %v1676 = vmul.f32 1.0, %v1675
  %v1677 = vrcp.pop %v1664
  %v1678 = vmul.f32 1.0, %v1677
  %v1679 = vrcp.pop %v1665
  %v1680 = vmul.f32 1.0, %v1679
  %v1681 = vrcp.pop %v1666
  %v1682 = vmul.f32 1.0, %v1681
  %v1683 = vrcp.pop %v1667
  %v1684 = vmul.f32 1.0, %v1683
  %v1685 = vrcp.pop %v1668
  %v1686 = vmul.f32 1.0, %v1685
  %v1687 = vrcp.pop %v1669
  %v1688 = vmul.f32 1.0, %v1687
  %v1689 = vrcp.pop %v1670
  %v1690 = vmul.f32 1.0, %v1689
  %v1691 = vrcp.pop %v1671
  %v1692 = vmul.f32 1.0, %v1691
  %v1693 = vrcp.pop %v1672
  %v1694 = vmul.f32 1.0, %v1693
  %v1695 = vrcp.pop %v1673
  %v1696 = vmul.f32 1.0, %v1695
  %v1697 = vrcp.pop %v1674
  %v1698 = vmul.f32 1.0, %v1697
  %v1699 = vtanh.pop %v1623
  %v1700 = vtanh.pop %v1624
  %v1701 = vtanh.pop %v1625
  %v1702 = vtanh.pop %v1626
  %v1703 = vmul.f32 %v1684, %v1454
  %v1704 = vmul.f32 %v1686, %v1455
  %v1705 = vmul.f32 %v1688, %v1456
  %v1706 = vmul.f32 %v1690, %v1457
  %v1707 = vmul.f32 %v1676, %v1699
  %v1708 = vmul.f32 %v1678, %v1700
  %v1709 = vmul.f32 %v1680, %v1701
  %v1710 = vmul.f32 %v1682, %v1702
  %v1711 = vadd.f32 %v1703, %v1707
  %v1712 = vadd.f32 %v1704, %v1708
  %v1713 = vadd.f32 %v1705, %v1709
  %v1714 = vadd.f32 %v1706, %v1710
  %v1715 = vtanh.pop %v1711
  %v1716 = vtanh.pop %v1712
  %v1717 = vtanh.pop %v1713
  %v1718 = vtanh.pop %v1714
  %v1719 = vmul.f32 %v1692, %v1715
  %v1720 = vmul.f32 %v1694, %v1716
  %v1721 = vmul.f32 %v1696, %v1717
  %v1722 = vmul.f32 %v1698, %v1718
  %1723 = vmatprep.subr.mxu0 0.0
  %1724 = vmatpush1.msra.mxu0 %v1719
  %1725 = vmatprep.subr.mxu0 0.0
  %1726 = vmatpush1.msra.mxu0 %v1720
  %1727 = vmatprep.subr.mxu0 0.0
  %1728 = vmatpush1.msra.mxu0 %v1721
  %1729 = vmatprep.subr.mxu0 0.0
  %1730 = vmatpush1.msra.mxu0 %v1722
  %1731 = vmatprep.subr.mxu0 0.0
  %1732 = vmatpush1.msra.mxu0 0.0
  %1733 = vmatprep.subr.mxu0 0.0
  %1734 = vmatpush1.msra.mxu0 0.0
  %1735 = vmatprep.subr.mxu0 0.0
  %1736 = vmatpush1.msra.mxu0 0.0
  %1737 = vmatprep.subr.mxu0 0.0
  %1738 = vmatpush1.msra.mxu0 0.0
  %1739 = vmatprep.subr.mxu0 0.0
  %1740 = vmatpush1.msra.mxu0 0.0
  %1741 = vmatprep.subr.mxu0 0.0
  %1742 = vmatpush1.msra.mxu0 0.0
  %1743 = vmatprep.subr.mxu0 0.0
  %1744 = vmatpush1.msra.mxu0 0.0
  %1745 = vmatprep.subr.mxu0 0.0
  %1746 = vmatpush1.msra.mxu0 0.0
  %1747 = vmatprep.subr.mxu0 0.0
  %1748 = vmatpush1.msra.mxu0 0.0
  %1749 = vmatprep.subr.mxu0 0.0
  %1750 = vmatpush1.msra.mxu0 0.0
  %1751 = vmatprep.subr.mxu0 0.0
  %1752 = vmatpush1.msra.mxu0 0.0
  %1753 = vmatprep.subr.mxu0 0.0
  %1754 = vmatpush1.msra.mxu0 0.0
  %1755 = vmatprep.subr.mxu0 0.0
  %1756 = vmatpush1.msra.mxu0 0.0
  %1757 = vmatprep.subr.mxu0 0.0
  %1758 = vmatpush1.msra.mxu0 0.0
  %1759 = vmatprep.subr.mxu0 0.0
  %1760 = vmatpush1.msra.mxu0 0.0
  %1761 = vmatprep.subr.mxu0 0.0
  %1762 = vmatpush1.msra.mxu0 0.0
  %1763 = vmatprep.subr.mxu0 0.0
  %1764 = vmatpush1.msra.mxu0 0.0
  %1765 = vmatprep.subr.mxu0 0.0
  %1766 = vmatpush1.msra.mxu0 0.0
  %1767 = vmatprep.subr.mxu0 0.0
  %1768 = vmatpush1.msra.mxu0 0.0
  %1769 = vmatprep.subr.mxu0 0.0
  %1770 = vmatpush1.msra.mxu0 0.0
  %1771 = vmatprep.subr.mxu0 0.0
  %1772 = vmatpush1.msra.mxu0 0.0
  %1773 = vmatprep.subr.mxu0 0.0
  %1774 = vmatpush1.msra.mxu0 0.0
  %1775 = vmatprep.subr.mxu0 0.0
  %1776 = vmatpush1.msra.mxu0 0.0
  %1777 = vmatprep.subr.mxu0 0.0
  %1778 = vmatpush1.msra.mxu0 0.0
  %1779 = vmatprep.subr.mxu0 0.0
  %1780 = vmatpush1.msra.mxu0 0.0
  %1781 = vmatprep.subr.mxu0 0.0
  %1782 = vmatpush1.msra.mxu0 0.0
  %1783 = vmatprep.subr.mxu0 0.0
  %1784 = vmatpush1.msra.mxu0 0.0
  %1785 = vmatprep.subr.mxu0 0.0
  %1786 = vmatpush1.msra.mxu0 0.0
  %1787 = vmatprep.mubr.f32.mxu0 0.0
  %1788 = vmatmul.mubr.f32.gmra.mrb[0].mxu0 %v905
  %v1789 = vpop.f32.mrb[0].mxu0
  %v1790 = vadd.f32 0.0, %v1789
  %v1791 = vpop.f32.mrb[0].mxu0
  %1792 = vmatprep.mubr.f32.mxu0 0.0
  %1793 = vmatmul.mubr.f32.gmra.mrb[0].mxu0 %v908
  %v1794 = vpop.f32.mrb[0].mxu0
  %v1795 = vadd.f32 0.0, %v1794
  %v1796 = vpop.f32.mrb[0].mxu0
  %1797 = vmatprep.mubr.f32.mxu0 0.0
  %1798 = vmatmul.mubr.f32.gmra.mrb[0].mxu0 %v911
  %v1799 = vpop.f32.mrb[0].mxu0
  %v1800 = vadd.f32 0.0, %v1799
  %v1801 = vpop.f32.mrb[0].mxu0
  %1802 = vmatprep.mubr.f32.mxu0 0.0
  %1803 = vmatmul.mubr.f32.gmra.mrb[0].mxu0 %v914
  %v1804 = vpop.f32.mrb[0].mxu0
  %v1805 = vadd.f32 0.0, %v1804
  %v1806 = vpop.f32.mrb[0].mxu0
  %1807 = vmatprep.mubr.f32.mxu0 0.0
  %1808 = vmatmul.mubr.f32.gmra.mrb[0].mxu0 %v917
  %v1809 = vpop.f32.mrb[0].mxu0
  %v1810 = vadd.f32 0.0, %v1809
  %v1811 = vpop.f32.mrb[0].mxu0
  %1812 = vmatprep.mubr.f32.mxu0 0.0
  %1813 = vmatmul.mubr.f32.gmra.mrb[0].mxu0 %v920
  %v1814 = vpop.f32.mrb[0].mxu0
  %v1815 = vadd.f32 0.0, %v1814
  %v1816 = vpop.f32.mrb[0].mxu0
  %1817 = vmatprep.mubr.f32.mxu0 0.0
  %1818 = vmatmul.mubr.f32.gmra.mrb[0].mxu0 %v923
  %v1819 = vpop.f32.mrb[0].mxu0
  %v1820 = vadd.f32 0.0, %v1819
  %v1821 = vpop.f32.mrb[0].mxu0
  %1822 = vmatprep.mubr.f32.mxu0 0.0
  %1823 = vmatmul.mubr.f32.gmra.mrb[0].mxu0 %v926
  %v1824 = vpop.f32.mrb[0].mxu0
  %v1825 = vadd.f32 0.0, %v1824
  %v1826 = vpop.f32.mrb[0].mxu0
  %1827 = vmatprep.mubr.f32.mxu0 0.0
  %1828 = vmatmul.mubr.f32.gmra.mrb[0].mxu0 %v929
  %v1829 = vpop.f32.mrb[0].mxu0
  %v1830 = vadd.f32 0.0, %v1829
  %v1831 = vpop.f32.mrb[0].mxu0
  %1832 = vmatprep.mubr.f32.mxu0 0.0
  %1833 = vmatmul.mubr.f32.gmra.mrb[0].mxu0 %v932
  %v1834 = vpop.f32.mrb[0].mxu0
  %v1835 = vadd.f32 0.0, %v1834
  %v1836 = vpop.f32.mrb[0].mxu0
  %1837 = vmatprep.mubr.f32.mxu0 0.0
  %1838 = vmatmul.mubr.f32.gmra.mrb[0].mxu0 %v935
  %v1839 = vpop.f32.mrb[0].mxu0
  %v1840 = vadd.f32 0.0, %v1839
  %v1841 = vpop.f32.mrb[0].mxu0
  %1842 = vmatprep.mubr.f32.mxu0 0.0
  %1843 = vmatmul.mubr.f32.gmra.mrb[0].mxu0 %v938
  %v1844 = vpop.f32.mrb[0].mxu0
  %v1845 = vadd.f32 0.0, %v1844
  %v1846 = vpop.f32.mrb[0].mxu0
  %1847 = vmatprep.mubr.f32.mxu0 0.0
  %1848 = vmatmul.mubr.f32.gmra.mrb[0].mxu0 %v941
  %v1849 = vpop.f32.mrb[0].mxu0
  %v1850 = vadd.f32 0.0, %v1849
  %v1851 = vpop.f32.mrb[0].mxu0
  %1852 = vmatprep.mubr.f32.mxu0 0.0
  %1853 = vmatmul.mubr.f32.gmra.mrb[0].mxu0 %v944
  %v1854 = vpop.f32.mrb[0].mxu0
  %v1855 = vadd.f32 0.0, %v1854
  %v1856 = vpop.f32.mrb[0].mxu0
  %1857 = vmatprep.mubr.f32.mxu0 0.0
  %1858 = vmatmul.mubr.f32.gmra.mrb[0].mxu0 %v947
  %v1859 = vpop.f32.mrb[0].mxu0
  %v1860 = vadd.f32 0.0, %v1859
  %v1861 = vpop.f32.mrb[0].mxu0
  %1862 = vmatprep.mubr.f32.mxu0 0.0
  %1863 = vmatmul.mubr.f32.gmra.mrb[0].mxu0 %v950
  %v1864 = vpop.f32.mrb[0].mxu0
  %v1865 = vadd.f32 0.0, %v1864
  %v1866 = vpop.f32.mrb[0].mxu0
  %1867 = vdwg.mxu0
  %v1868 = vadd.f32 %v489, %v1790
  %v1869 = vadd.f32 %v495, %v1795
  %v1870 = vadd.f32 %v501, %v1800
  %v1871 = vadd.f32 %v507, %v1805
  %v1872 = vadd.f32 %v513, %v1810
  %v1873 = vadd.f32 %v519, %v1815
  %v1874 = vadd.f32 %v525, %v1820
  %v1875 = vadd.f32 %v531, %v1825
  %v1876 = vadd.f32 %v537, %v1830
  %v1877 = vadd.f32 %v543, %v1835
  %v1878 = vadd.f32 %v549, %v1840
  %v1879 = vadd.f32 %v555, %v1845
  %v1880 = vadd.f32 %v561, %v1850
  %v1881 = vadd.f32 %v567, %v1855
  %v1882 = vadd.f32 %v573, %v1860
  %v1883 = vadd.f32 %v579, %v1865
  %v1884 = vxor.u32 %v1868, 2147483648
  %v1885 = vxor.u32 %v1869, 2147483648
  %v1886 = vxor.u32 %v1870, 2147483648
  %v1887 = vxor.u32 %v1871, 2147483648
  %v1888 = vxor.u32 %v1872, 2147483648
  %v1889 = vxor.u32 %v1873, 2147483648
  %v1890 = vxor.u32 %v1874, 2147483648
  %v1891 = vxor.u32 %v1875, 2147483648
  %v1892 = vxor.u32 %v1876, 2147483648
  %v1893 = vxor.u32 %v1877, 2147483648
  %v1894 = vxor.u32 %v1878, 2147483648
  %v1895 = vxor.u32 %v1879, 2147483648
  %v1896 = vmul.f32 %v1884, 1.442695
  %v1897 = vpow.pop %v1896
  %v1898 = vmul.f32 %v1885, 1.442695
  %v1899 = vpow.pop %v1898
  %v1900 = vmul.f32 %v1886, 1.442695
  %v1901 = vpow.pop %v1900
  %v1902 = vmul.f32 %v1887, 1.442695
  %v1903 = vpow.pop %v1902
  %v1904 = vmul.f32 %v1888, 1.442695
  %v1905 = vpow.pop %v1904
  %v1906 = vmul.f32 %v1889, 1.442695
  %v1907 = vpow.pop %v1906
  %v1908 = vmul.f32 %v1890, 1.442695
  %v1909 = vpow.pop %v1908
  %v1910 = vmul.f32 %v1891, 1.442695
  %v1911 = vpow.pop %v1910
  %v1912 = vmul.f32 %v1892, 1.442695
  %v1913 = vpow.pop %v1912
  %v1914 = vmul.f32 %v1893, 1.442695
  %v1915 = vpow.pop %v1914
  %v1916 = vmul.f32 %v1894, 1.442695
  %v1917 = vpow.pop %v1916
  %v1918 = vmul.f32 %v1895, 1.442695
  %v1919 = vpow.pop %v1918
  %v1920 = vadd.f32 %v1897, 1.0
  %v1921 = vadd.f32 %v1899, 1.0
  %v1922 = vadd.f32 %v1901, 1.0
  %v1923 = vadd.f32 %v1903, 1.0
  %v1924 = vadd.f32 %v1905, 1.0
  %v1925 = vadd.f32 %v1907, 1.0
  %v1926 = vadd.f32 %v1909, 1.0
  %v1927 = vadd.f32 %v1911, 1.0
  %v1928 = vadd.f32 %v1913, 1.0
  %v1929 = vadd.f32 %v1915, 1.0
  %v1930 = vadd.f32 %v1917, 1.0
  %v1931 = vadd.f32 %v1919, 1.0
  %v1932 = vrcp.pop %v1920
  %v1933 = vmul.f32 1.0, %v1932
  %v1934 = vrcp.pop %v1921
  %v1935 = vmul.f32 1.0, %v1934
  %v1936 = vrcp.pop %v1922
  %v1937 = vmul.f32 1.0, %v1936
  %v1938 = vrcp.pop %v1923
  %v1939 = vmul.f32 1.0, %v1938
  %v1940 = vrcp.pop %v1924
  %v1941 = vmul.f32 1.0, %v1940
  %v1942 = vrcp.pop %v1925
  %v1943 = vmul.f32 1.0, %v1942
  %v1944 = vrcp.pop %v1926
  %v1945 = vmul.f32 1.0, %v1944
  %v1946 = vrcp.pop %v1927
  %v1947 = vmul.f32 1.0, %v1946
  %v1948 = vrcp.pop %v1928
  %v1949 = vmul.f32 1.0, %v1948
  %v1950 = vrcp.pop %v1929
  %v1951 = vmul.f32 1.0, %v1950
  %v1952 = vrcp.pop %v1930
  %v1953 = vmul.f32 1.0, %v1952
  %v1954 = vrcp.pop %v1931
  %v1955 = vmul.f32 1.0, %v1954
  %v1956 = vtanh.pop %v1880
  %v1957 = vtanh.pop %v1881
  %v1958 = vtanh.pop %v1882
  %v1959 = vtanh.pop %v1883
  %v1960 = vmul.f32 %v1941, %v1711
  %v1961 = vmul.f32 %v1943, %v1712
  %v1962 = vmul.f32 %v1945, %v1713
  %v1963 = vmul.f32 %v1947, %v1714
  %v1964 = vmul.f32 %v1933, %v1956
  %v1965 = vmul.f32 %v1935, %v1957
  %v1966 = vmul.f32 %v1937, %v1958
  %v1967 = vmul.f32 %v1939, %v1959
  %v1968 = vadd.f32 %v1960, %v1964
  %v1969 = vadd.f32 %v1961, %v1965
  %v1970 = vadd.f32 %v1962, %v1966
  %v1971 = vadd.f32 %v1963, %v1967
  %v1972 = vtanh.pop %v1968
  %v1973 = vtanh.pop %v1969
  %v1974 = vtanh.pop %v1970
  %v1975 = vtanh.pop %v1971
  %v1976 = vmul.f32 %v1949, %v1972
  %v1977 = vmul.f32 %v1951, %v1973
  %v1978 = vmul.f32 %v1953, %v1974
  %v1979 = vmul.f32 %v1955, %v1975
  %1980 = vmatprep.subr.mxu0 0.0
  %1981 = vmatpush1.msra.mxu0 %v1976
  %1982 = vmatprep.subr.mxu0 0.0
  %1983 = vmatpush1.msra.mxu0 %v1977
  %1984 = vmatprep.subr.mxu0 0.0
  %1985 = vmatpush1.msra.mxu0 %v1978
  %1986 = vmatprep.subr.mxu0 0.0
  %1987 = vmatpush1.msra.mxu0 %v1979
  %1988 = vmatprep.subr.mxu0 0.0
  %1989 = vmatpush1.msra.mxu0 0.0
  %1990 = vmatprep.subr.mxu0 0.0
  %1991 = vmatpush1.msra.mxu0 0.0
  %1992 = vmatprep.subr.mxu0 0.0
  %1993 = vmatpush1.msra.mxu0 0.0
  %1994 = vmatprep.subr.mxu0 0.0
  %1995 = vmatpush1.msra.mxu0 0.0
  %1996 = vmatprep.subr.mxu0 0.0
  %1997 = vmatpush1.msra.mxu0 0.0
  %1998 = vmatprep.subr.mxu0 0.0
  %1999 = vmatpush1.msra.mxu0 0.0
  %2000 = vmatprep.subr.mxu0 0.0
  %2001 = vmatpush1.msra.mxu0 0.0
  %2002 = vmatprep.subr.mxu0 0.0
  %2003 = vmatpush1.msra.mxu0 0.0
  %2004 = vmatprep.subr.mxu0 0.0
  %2005 = vmatpush1.msra.mxu0 0.0
  %2006 = vmatprep.subr.mxu0 0.0
  %2007 = vmatpush1.msra.mxu0 0.0
  %2008 = vmatprep.subr.mxu0 0.0
  %2009 = vmatpush1.msra.mxu0 0.0
  %2010 = vmatprep.subr.mxu0 0.0
  %2011 = vmatpush1.msra.mxu0 0.0
  %2012 = vmatprep.subr.mxu0 0.0
  %2013 = vmatpush1.msra.mxu0 0.0
  %2014 = vmatprep.subr.mxu0 0.0
  %2015 = vmatpush1.msra.mxu0 0.0
  %2016 = vmatprep.subr.mxu0 0.0
  %2017 = vmatpush1.msra.mxu0 0.0
  %2018 = vmatprep.subr.mxu0 0.0
  %2019 = vmatpush1.msra.mxu0 0.0
  %2020 = vmatprep.subr.mxu0 0.0
  %2021 = vmatpush1.msra.mxu0 0.0
  %2022 = vmatprep.subr.mxu0 0.0
  %2023 = vmatpush1.msra.mxu0 0.0
  %2024 = vmatprep.subr.mxu0 0.0
  %2025 = vmatpush1.msra.mxu0 0.0
  %2026 = vmatprep.subr.mxu0 0.0
  %2027 = vmatpush1.msra.mxu0 0.0
  %2028 = vmatprep.subr.mxu0 0.0
  %2029 = vmatpush1.msra.mxu0 0.0
  %2030 = vmatprep.subr.mxu0 0.0
  %2031 = vmatpush1.msra.mxu0 0.0
  %2032 = vmatprep.subr.mxu0 0.0
  %2033 = vmatpush1.msra.mxu0 0.0
  %2034 = vmatprep.subr.mxu0 0.0
  %2035 = vmatpush1.msra.mxu0 0.0
  %2036 = vmatprep.subr.mxu0 0.0
  %2037 = vmatpush1.msra.mxu0 0.0
  %2038 = vmatprep.subr.mxu0 0.0
  %2039 = vmatpush1.msra.mxu0 0.0
  %2040 = vmatprep.subr.mxu0 0.0
  %2041 = vmatpush1.msra.mxu0 0.0
  %2042 = vmatprep.subr.mxu0 0.0
  %2043 = vmatpush1.msra.mxu0 0.0
  %2044 = vmatprep.mubr.f32.mxu0 0.0
  %2045 = vmatmul.mubr.f32.gmra.mrb[0].mxu0 %v905
  %v2046 = vpop.f32.mrb[0].mxu0
  %v2047 = vadd.f32 0.0, %v2046
  %v2048 = vpop.f32.mrb[0].mxu0
  %2049 = vmatprep.mubr.f32.mxu0 0.0
  %2050 = vmatmul.mubr.f32.gmra.mrb[0].mxu0 %v908
  %v2051 = vpop.f32.mrb[0].mxu0
  %v2052 = vadd.f32 0.0, %v2051
  %v2053 = vpop.f32.mrb[0].mxu0
  %2054 = vmatprep.mubr.f32.mxu0 0.0
  %2055 = vmatmul.mubr.f32.gmra.mrb[0].mxu0 %v911
  %v2056 = vpop.f32.mrb[0].mxu0
  %v2057 = vadd.f32 0.0, %v2056
  %v2058 = vpop.f32.mrb[0].mxu0
  %2059 = vmatprep.mubr.f32.mxu0 0.0
  %2060 = vmatmul.mubr.f32.gmra.mrb[0].mxu0 %v914
  %v2061 = vpop.f32.mrb[0].mxu0
  %v2062 = vadd.f32 0.0, %v2061
  %v2063 = vpop.f32.mrb[0].mxu0
  %2064 = vmatprep.mubr.f32.mxu0 0.0
  %2065 = vmatmul.mubr.f32.gmra.mrb[0].mxu0 %v917
  %v2066 = vpop.f32.mrb[0].mxu0
  %v2067 = vadd.f32 0.0, %v2066
  %v2068 = vpop.f32.mrb[0].mxu0
  %2069 = vmatprep.mubr.f32.mxu0 0.0
  %2070 = vmatmul.mubr.f32.gmra.mrb[0].mxu0 %v920
  %v2071 = vpop.f32.mrb[0].mxu0
  %v2072 = vadd.f32 0.0, %v2071
  %v2073 = vpop.f32.mrb[0].mxu0
  %2074 = vmatprep.mubr.f32.mxu0 0.0
  %2075 = vmatmul.mubr.f32.gmra.mrb[0].mxu0 %v923
  %v2076 = vpop.f32.mrb[0].mxu0
  %v2077 = vadd.f32 0.0, %v2076
  %v2078 = vpop.f32.mrb[0].mxu0
  %2079 = vmatprep.mubr.f32.mxu0 0.0
  %2080 = vmatmul.mubr.f32.gmra.mrb[0].mxu0 %v926
  %v2081 = vpop.f32.mrb[0].mxu0
  %v2082 = vadd.f32 0.0, %v2081
  %v2083 = vpop.f32.mrb[0].mxu0
  %2084 = vmatprep.mubr.f32.mxu0 0.0
  %2085 = vmatmul.mubr.f32.gmra.mrb[0].mxu0 %v929
  %v2086 = vpop.f32.mrb[0].mxu0
  %v2087 = vadd.f32 0.0, %v2086
  %v2088 = vpop.f32.mrb[0].mxu0
  %2089 = vmatprep.mubr.f32.mxu0 0.0
  %2090 = vmatmul.mubr.f32.gmra.mrb[0].mxu0 %v932
  %v2091 = vpop.f32.mrb[0].mxu0
  %v2092 = vadd.f32 0.0, %v2091
  %v2093 = vpop.f32.mrb[0].mxu0
  %2094 = vmatprep.mubr.f32.mxu0 0.0
  %2095 = vmatmul.mubr.f32.gmra.mrb[0].mxu0 %v935
  %v2096 = vpop.f32.mrb[0].mxu0
  %v2097 = vadd.f32 0.0, %v2096
  %v2098 = vpop.f32.mrb[0].mxu0
  %2099 = vmatprep.mubr.f32.mxu0 0.0
  %2100 = vmatmul.mubr.f32.gmra.mrb[0].mxu0 %v938
  %v2101 = vpop.f32.mrb[0].mxu0
  %v2102 = vadd.f32 0.0, %v2101
  %v2103 = vpop.f32.mrb[0].mxu0
  %2104 = vmatprep.mubr.f32.mxu0 0.0
  %2105 = vmatmul.mubr.f32.gmra.mrb[0].mxu0 %v941
  %v2106 = vpop.f32.mrb[0].mxu0
  %v2107 = vadd.f32 0.0, %v2106
  %v2108 = vpop.f32.mrb[0].mxu0
  %2109 = vmatprep.mubr.f32.mxu0 0.0
  %2110 = vmatmul.mubr.f32.gmra.mrb[0].mxu0 %v944
  %v2111 = vpop.f32.mrb[0].mxu0
  %v2112 = vadd.f32 0.0, %v2111
  %v2113 = vpop.f32.mrb[0].mxu0
  %2114 = vmatprep.mubr.f32.mxu0 0.0
  %2115 = vmatmul.mubr.f32.gmra.mrb[0].mxu0 %v947
  %v2116 = vpop.f32.mrb[0].mxu0
  %v2117 = vadd.f32 0.0, %v2116
  %v2118 = vpop.f32.mrb[0].mxu0
  %2119 = vmatprep.mubr.f32.mxu0 0.0
  %2120 = vmatmul.mubr.f32.gmra.mrb[0].mxu0 %v950
  %v2121 = vpop.f32.mrb[0].mxu0
  %v2122 = vadd.f32 0.0, %v2121
  %v2123 = vpop.f32.mrb[0].mxu0
  %2124 = vdwg.mxu0
  %v2125 = vadd.f32 %v648, %v2047
  %v2126 = vadd.f32 %v654, %v2052
  %v2127 = vadd.f32 %v660, %v2057
  %v2128 = vadd.f32 %v666, %v2062
  %v2129 = vadd.f32 %v672, %v2067
  %v2130 = vadd.f32 %v678, %v2072
  %v2131 = vadd.f32 %v684, %v2077
  %v2132 = vadd.f32 %v690, %v2082
  %v2133 = vadd.f32 %v696, %v2087
  %v2134 = vadd.f32 %v702, %v2092
  %v2135 = vadd.f32 %v708, %v2097
  %v2136 = vadd.f32 %v714, %v2102
  %v2137 = vadd.f32 %v720, %v2107
  %v2138 = vadd.f32 %v726, %v2112
  %v2139 = vadd.f32 %v732, %v2117
  %v2140 = vadd.f32 %v738, %v2122
  %v2141 = vxor.u32 %v2125, 2147483648
  %v2142 = vxor.u32 %v2126, 2147483648
  %v2143 = vxor.u32 %v2127, 2147483648
  %v2144 = vxor.u32 %v2128, 2147483648
  %v2145 = vxor.u32 %v2129, 2147483648
  %v2146 = vxor.u32 %v2130, 2147483648
  %v2147 = vxor.u32 %v2131, 2147483648
  %v2148 = vxor.u32 %v2132, 2147483648
  %v2149 = vxor.u32 %v2133, 2147483648
  %v2150 = vxor.u32 %v2134, 2147483648
  %v2151 = vxor.u32 %v2135, 2147483648
  %v2152 = vxor.u32 %v2136, 2147483648
  %v2153 = vmul.f32 %v2141, 1.442695
  %v2154 = vpow.pop %v2153
  %v2155 = vmul.f32 %v2142, 1.442695
  %v2156 = vpow.pop %v2155
  %v2157 = vmul.f32 %v2143, 1.442695
  %v2158 = vpow.pop %v2157
  %v2159 = vmul.f32 %v2144, 1.442695
  %v2160 = vpow.pop %v2159
  %v2161 = vmul.f32 %v2145, 1.442695
  %v2162 = vpow.pop %v2161
  %v2163 = vmul.f32 %v2146, 1.442695
  %v2164 = vpow.pop %v2163
  %v2165 = vmul.f32 %v2147, 1.442695
  %v2166 = vpow.pop %v2165
  %v2167 = vmul.f32 %v2148, 1.442695
  %v2168 = vpow.pop %v2167
  %v2169 = vmul.f32 %v2149, 1.442695
  %v2170 = vpow.pop %v2169
  %v2171 = vmul.f32 %v2150, 1.442695
  %v2172 = vpow.pop %v2171
  %v2173 = vmul.f32 %v2151, 1.442695
  %v2174 = vpow.pop %v2173
  %v2175 = vmul.f32 %v2152, 1.442695
  %v2176 = vpow.pop %v2175
  %v2177 = vadd.f32 %v2154, 1.0
  %v2178 = vadd.f32 %v2156, 1.0
  %v2179 = vadd.f32 %v2158, 1.0
  %v2180 = vadd.f32 %v2160, 1.0
  %v2181 = vadd.f32 %v2162, 1.0
  %v2182 = vadd.f32 %v2164, 1.0
  %v2183 = vadd.f32 %v2166, 1.0
  %v2184 = vadd.f32 %v2168, 1.0
  %v2185 = vadd.f32 %v2170, 1.0
  %v2186 = vadd.f32 %v2172, 1.0
  %v2187 = vadd.f32 %v2174, 1.0
  %v2188 = vadd.f32 %v2176, 1.0
  %v2189 = vrcp.pop %v2177
  %v2190 = vmul.f32 1.0, %v2189
  %v2191 = vrcp.pop %v2178
  %v2192 = vmul.f32 1.0, %v2191
  %v2193 = vrcp.pop %v2179
  %v2194 = vmul.f32 1.0, %v2193
  %v2195 = vrcp.pop %v2180
  %v2196 = vmul.f32 1.0, %v2195
  %v2197 = vrcp.pop %v2181
  %v2198 = vmul.f32 1.0, %v2197
  %v2199 = vrcp.pop %v2182
  %v2200 = vmul.f32 1.0, %v2199
  %v2201 = vrcp.pop %v2183
  %v2202 = vmul.f32 1.0, %v2201
  %v2203 = vrcp.pop %v2184
  %v2204 = vmul.f32 1.0, %v2203
  %v2205 = vrcp.pop %v2185
  %v2206 = vmul.f32 1.0, %v2205
  %v2207 = vrcp.pop %v2186
  %v2208 = vmul.f32 1.0, %v2207
  %v2209 = vrcp.pop %v2187
  %v2210 = vmul.f32 1.0, %v2209
  %v2211 = vrcp.pop %v2188
  %v2212 = vmul.f32 1.0, %v2211
  %v2213 = vtanh.pop %v2137
  %v2214 = vtanh.pop %v2138
  %v2215 = vtanh.pop %v2139
  %v2216 = vtanh.pop %v2140
  %v2217 = vmul.f32 %v2198, %v1968
  %v2218 = vmul.f32 %v2200, %v1969
  %v2219 = vmul.f32 %v2202, %v1970
  %v2220 = vmul.f32 %v2204, %v1971
  %v2221 = vmul.f32 %v2190, %v2213
  %v2222 = vmul.f32 %v2192, %v2214
  %v2223 = vmul.f32 %v2194, %v2215
  %v2224 = vmul.f32 %v2196, %v2216
  %v2225 = vadd.f32 %v2217, %v2221
  %v2226 = vadd.f32 %v2218, %v2222
  %v2227 = vadd.f32 %v2219, %v2223
  %v2228 = vadd.f32 %v2220, %v2224
  %v2229 = vtanh.pop %v2225
  %v2230 = vtanh.pop %v2226
  %v2231 = vtanh.pop %v2227
  %v2232 = vtanh.pop %v2228
  %v2233 = vmul.f32 %v2206, %v2229
  %v2234 = vmul.f32 %v2208, %v2230
  %v2235 = vmul.f32 %v2210, %v2231
  %v2236 = vmul.f32 %v2212, %v2232
  %2237 = vmatprep.subr.mxu0 0.0
  %2238 = vmatpush1.msra.mxu0 %v2233
  %2239 = vmatprep.subr.mxu0 0.0
  %2240 = vmatpush1.msra.mxu0 %v2234
  %2241 = vmatprep.subr.mxu0 0.0
  %2242 = vmatpush1.msra.mxu0 %v2235
  %2243 = vmatprep.subr.mxu0 0.0
  %2244 = vmatpush1.msra.mxu0 %v2236
  %2245 = vmatprep.subr.mxu0 0.0
  %2246 = vmatpush1.msra.mxu0 0.0
  %2247 = vmatprep.subr.mxu0 0.0
  %2248 = vmatpush1.msra.mxu0 0.0
  %2249 = vmatprep.subr.mxu0 0.0
  %2250 = vmatpush1.msra.mxu0 0.0
  %2251 = vmatprep.subr.mxu0 0.0
  %2252 = vmatpush1.msra.mxu0 0.0
  %2253 = vmatprep.subr.mxu0 0.0
  %2254 = vmatpush1.msra.mxu0 0.0
  %2255 = vmatprep.subr.mxu0 0.0
  %2256 = vmatpush1.msra.mxu0 0.0
  %2257 = vmatprep.subr.mxu0 0.0
  %2258 = vmatpush1.msra.mxu0 0.0
  %2259 = vmatprep.subr.mxu0 0.0
  %2260 = vmatpush1.msra.mxu0 0.0
  %2261 = vmatprep.subr.mxu0 0.0
  %2262 = vmatpush1.msra.mxu0 0.0
  %2263 = vmatprep.subr.mxu0 0.0
  %2264 = vmatpush1.msra.mxu0 0.0
  %2265 = vmatprep.subr.mxu0 0.0
  %2266 = vmatpush1.msra.mxu0 0.0
  %2267 = vmatprep.subr.mxu0 0.0
  %2268 = vmatpush1.msra.mxu0 0.0
  %2269 = vmatprep.subr.mxu0 0.0
  %2270 = vmatpush1.msra.mxu0 0.0
  %2271 = vmatprep.subr.mxu0 0.0
  %2272 = vmatpush1.msra.mxu0 0.0
  %2273 = vmatprep.subr.mxu0 0.0
  %2274 = vmatpush1.msra.mxu0 0.0
  %2275 = vmatprep.subr.mxu0 0.0
  %2276 = vmatpush1.msra.mxu0 0.0
  %2277 = vmatprep.subr.mxu0 0.0
  %2278 = vmatpush1.msra.mxu0 0.0
  %2279 = vmatprep.subr.mxu0 0.0
  %2280 = vmatpush1.msra.mxu0 0.0
  %2281 = vmatprep.subr.mxu0 0.0
  %2282 = vmatpush1.msra.mxu0 0.0
  %2283 = vmatprep.subr.mxu0 0.0
  %2284 = vmatpush1.msra.mxu0 0.0
  %2285 = vmatprep.subr.mxu0 0.0
  %2286 = vmatpush1.msra.mxu0 0.0
  %2287 = vmatprep.subr.mxu0 0.0
  %2288 = vmatpush1.msra.mxu0 0.0
  %2289 = vmatprep.subr.mxu0 0.0
  %2290 = vmatpush1.msra.mxu0 0.0
  %2291 = vmatprep.subr.mxu0 0.0
  %2292 = vmatpush1.msra.mxu0 0.0
  %2293 = vmatprep.subr.mxu0 0.0
  %2294 = vmatpush1.msra.mxu0 0.0
  %2295 = vmatprep.subr.mxu0 0.0
  %2296 = vmatpush1.msra.mxu0 0.0
  %2297 = vmatprep.subr.mxu0 0.0
  %2298 = vmatpush1.msra.mxu0 0.0
  %2299 = vmatprep.subr.mxu0 0.0
  %2300 = vmatpush1.msra.mxu0 0.0
  %2301 = vmatprep.mubr.f32.mxu0 0.0
  %2302 = vmatmul.mubr.f32.gmra.mrb[0].mxu0 %v905
  %v2303 = vpop.f32.mrb[0].mxu0
  %v2304 = vadd.f32 0.0, %v2303
  %v2305 = vpop.f32.mrb[0].mxu0
  %2306 = vmatprep.mubr.f32.mxu0 0.0
  %2307 = vmatmul.mubr.f32.gmra.mrb[0].mxu0 %v908
  %v2308 = vpop.f32.mrb[0].mxu0
  %v2309 = vadd.f32 0.0, %v2308
  %v2310 = vpop.f32.mrb[0].mxu0
  %2311 = vmatprep.mubr.f32.mxu0 0.0
  %2312 = vmatmul.mubr.f32.gmra.mrb[0].mxu0 %v911
  %v2313 = vpop.f32.mrb[0].mxu0
  %v2314 = vadd.f32 0.0, %v2313
  %v2315 = vpop.f32.mrb[0].mxu0
  %2316 = vmatprep.mubr.f32.mxu0 0.0
  %2317 = vmatmul.mubr.f32.gmra.mrb[0].mxu0 %v914
  %v2318 = vpop.f32.mrb[0].mxu0
  %v2319 = vadd.f32 0.0, %v2318
  %v2320 = vpop.f32.mrb[0].mxu0
  %2321 = vmatprep.mubr.f32.mxu0 0.0
  %2322 = vmatmul.mubr.f32.gmra.mrb[0].mxu0 %v917
  %v2323 = vpop.f32.mrb[0].mxu0
  %v2324 = vadd.f32 0.0, %v2323
  %v2325 = vpop.f32.mrb[0].mxu0
  %2326 = vmatprep.mubr.f32.mxu0 0.0
  %2327 = vmatmul.mubr.f32.gmra.mrb[0].mxu0 %v920
  %v2328 = vpop.f32.mrb[0].mxu0
  %v2329 = vadd.f32 0.0, %v2328
  %v2330 = vpop.f32.mrb[0].mxu0
  %2331 = vmatprep.mubr.f32.mxu0 0.0
  %2332 = vmatmul.mubr.f32.gmra.mrb[0].mxu0 %v923
  %v2333 = vpop.f32.mrb[0].mxu0
  %v2334 = vadd.f32 0.0, %v2333
  %v2335 = vpop.f32.mrb[0].mxu0
  %2336 = vmatprep.mubr.f32.mxu0 0.0
  %2337 = vmatmul.mubr.f32.gmra.mrb[0].mxu0 %v926
  %v2338 = vpop.f32.mrb[0].mxu0
  %v2339 = vadd.f32 0.0, %v2338
  %v2340 = vpop.f32.mrb[0].mxu0
  %2341 = vmatprep.mubr.f32.mxu0 0.0
  %2342 = vmatmul.mubr.f32.gmra.mrb[0].mxu0 %v929
  %v2343 = vpop.f32.mrb[0].mxu0
  %v2344 = vadd.f32 0.0, %v2343
  %v2345 = vpop.f32.mrb[0].mxu0
  %2346 = vmatprep.mubr.f32.mxu0 0.0
  %2347 = vmatmul.mubr.f32.gmra.mrb[0].mxu0 %v932
  %v2348 = vpop.f32.mrb[0].mxu0
  %v2349 = vadd.f32 0.0, %v2348
  %v2350 = vpop.f32.mrb[0].mxu0
  %2351 = vmatprep.mubr.f32.mxu0 0.0
  %2352 = vmatmul.mubr.f32.gmra.mrb[0].mxu0 %v935
  %v2353 = vpop.f32.mrb[0].mxu0
  %v2354 = vadd.f32 0.0, %v2353
  %v2355 = vpop.f32.mrb[0].mxu0
  %2356 = vmatprep.mubr.f32.mxu0 0.0
  %2357 = vmatmul.mubr.f32.gmra.mrb[0].mxu0 %v938
  %v2358 = vpop.f32.mrb[0].mxu0
  %v2359 = vadd.f32 0.0, %v2358
  %v2360 = vpop.f32.mrb[0].mxu0
  %2361 = vmatprep.mubr.f32.mxu0 0.0
  %2362 = vmatmul.mubr.f32.gmra.mrb[0].mxu0 %v941
  %v2363 = vpop.f32.mrb[0].mxu0
  %v2364 = vadd.f32 0.0, %v2363
  %v2365 = vpop.f32.mrb[0].mxu0
  %2366 = vmatprep.mubr.f32.mxu0 0.0
  %2367 = vmatmul.mubr.f32.gmra.mrb[0].mxu0 %v944
  %v2368 = vpop.f32.mrb[0].mxu0
  %v2369 = vadd.f32 0.0, %v2368
  %v2370 = vpop.f32.mrb[0].mxu0
  %2371 = vmatprep.mubr.f32.mxu0 0.0
  %2372 = vmatmul.mubr.f32.gmra.mrb[0].mxu0 %v947
  %v2373 = vpop.f32.mrb[0].mxu0
  %v2374 = vadd.f32 0.0, %v2373
  %v2375 = vpop.f32.mrb[0].mxu0
  %2376 = vmatprep.mubr.f32.mxu0 0.0
  %2377 = vmatmul.mubr.f32.gmra.mrb[0].mxu0 %v950
  %v2378 = vpop.f32.mrb[0].mxu0
  %v2379 = vadd.f32 0.0, %v2378
  %v2380 = vpop.f32.mrb[0].mxu0
  %2381 = vdwg.mxu0
  %v2382 = vadd.f32 %v650, %v2304
  %v2383 = vadd.f32 %v656, %v2309
  %v2384 = vadd.f32 %v662, %v2314
  %v2385 = vadd.f32 %v668, %v2319
  %v2386 = vadd.f32 %v674, %v2324
  %v2387 = vadd.f32 %v680, %v2329
  %v2388 = vadd.f32 %v686, %v2334
  %v2389 = vadd.f32 %v692, %v2339
  %v2390 = vadd.f32 %v698, %v2344
  %v2391 = vadd.f32 %v704, %v2349
  %v2392 = vadd.f32 %v710, %v2354
  %v2393 = vadd.f32 %v716, %v2359
  %v2394 = vadd.f32 %v722, %v2364
  %v2395 = vadd.f32 %v728, %v2369
  %v2396 = vadd.f32 %v734, %v2374
  %v2397 = vadd.f32 %v740, %v2379
  %v2398 = vxor.u32 %v2382, 2147483648
  %v2399 = vxor.u32 %v2383, 2147483648
  %v2400 = vxor.u32 %v2384, 2147483648
  %v2401 = vxor.u32 %v2385, 2147483648
  %v2402 = vxor.u32 %v2386, 2147483648
  %v2403 = vxor.u32 %v2387, 2147483648
  %v2404 = vxor.u32 %v2388, 2147483648
  %v2405 = vxor.u32 %v2389, 2147483648
  %v2406 = vxor.u32 %v2390, 2147483648
  %v2407 = vxor.u32 %v2391, 2147483648
  %v2408 = vxor.u32 %v2392, 2147483648
  %v2409 = vxor.u32 %v2393, 2147483648
  %v2410 = vmul.f32 %v2398, 1.442695
  %v2411 = vpow.pop %v2410
  %v2412 = vmul.f32 %v2399, 1.442695
  %v2413 = vpow.pop %v2412
  %v2414 = vmul.f32 %v2400, 1.442695
  %v2415 = vpow.pop %v2414
  %v2416 = vmul.f32 %v2401, 1.442695
  %v2417 = vpow.pop %v2416
  %v2418 = vmul.f32 %v2402, 1.442695
  %v2419 = vpow.pop %v2418
  %v2420 = vmul.f32 %v2403, 1.442695
  %v2421 = vpow.pop %v2420
  %v2422 = vmul.f32 %v2404, 1.442695
  %v2423 = vpow.pop %v2422
  %v2424 = vmul.f32 %v2405, 1.442695
  %v2425 = vpow.pop %v2424
  %v2426 = vmul.f32 %v2406, 1.442695
  %v2427 = vpow.pop %v2426
  %v2428 = vmul.f32 %v2407, 1.442695
  %v2429 = vpow.pop %v2428
  %v2430 = vmul.f32 %v2408, 1.442695
  %v2431 = vpow.pop %v2430
  %v2432 = vmul.f32 %v2409, 1.442695
  %v2433 = vpow.pop %v2432
  %v2434 = vadd.f32 %v2411, 1.0
  %v2435 = vadd.f32 %v2413, 1.0
  %v2436 = vadd.f32 %v2415, 1.0
  %v2437 = vadd.f32 %v2417, 1.0
  %v2438 = vadd.f32 %v2419, 1.0
  %v2439 = vadd.f32 %v2421, 1.0
  %v2440 = vadd.f32 %v2423, 1.0
  %v2441 = vadd.f32 %v2425, 1.0
  %v2442 = vadd.f32 %v2427, 1.0
  %v2443 = vadd.f32 %v2429, 1.0
  %v2444 = vadd.f32 %v2431, 1.0
  %v2445 = vadd.f32 %v2433, 1.0
  %v2446 = vrcp.pop %v2434
  %v2447 = vmul.f32 1.0, %v2446
  %v2448 = vrcp.pop %v2435
  %v2449 = vmul.f32 1.0, %v2448
  %v2450 = vrcp.pop %v2436
  %v2451 = vmul.f32 1.0, %v2450
  %v2452 = vrcp.pop %v2437
  %v2453 = vmul.f32 1.0, %v2452
  %v2454 = vrcp.pop %v2438
  %v2455 = vmul.f32 1.0, %v2454
  %v2456 = vrcp.pop %v2439
  %v2457 = vmul.f32 1.0, %v2456
  %v2458 = vrcp.pop %v2440
  %v2459 = vmul.f32 1.0, %v2458
  %v2460 = vrcp.pop %v2441
  %v2461 = vmul.f32 1.0, %v2460
  %v2462 = vrcp.pop %v2442
  %v2463 = vmul.f32 1.0, %v2462
  %v2464 = vrcp.pop %v2443
  %v2465 = vmul.f32 1.0, %v2464
  %v2466 = vrcp.pop %v2444
  %v2467 = vmul.f32 1.0, %v2466
  %v2468 = vrcp.pop %v2445
  %v2469 = vmul.f32 1.0, %v2468
  %v2470 = vtanh.pop %v2394
  %v2471 = vtanh.pop %v2395
  %v2472 = vtanh.pop %v2396
  %v2473 = vtanh.pop %v2397
  %v2474 = vmul.f32 %v2455, %v2225
  %v2475 = vmul.f32 %v2457, %v2226
  %v2476 = vmul.f32 %v2459, %v2227
  %v2477 = vmul.f32 %v2461, %v2228
  %v2478 = vmul.f32 %v2447, %v2470
  %v2479 = vmul.f32 %v2449, %v2471
  %v2480 = vmul.f32 %v2451, %v2472
  %v2481 = vmul.f32 %v2453, %v2473
  %v2482 = vadd.f32 %v2474, %v2478
  %v2483 = vadd.f32 %v2475, %v2479
  %v2484 = vadd.f32 %v2476, %v2480
  %v2485 = vadd.f32 %v2477, %v2481
  %v2486 = vtanh.pop %v2482
  %v2487 = vtanh.pop %v2483
  %v2488 = vtanh.pop %v2484
  %v2489 = vtanh.pop %v2485
  %v2490 = vmul.f32 %v2463, %v2486
  %v2491 = vmul.f32 %v2465, %v2487
  %v2492 = vmul.f32 %v2467, %v2488
  %v2493 = vmul.f32 %v2469, %v2489
  %2494 = vmatprep.subr.mxu0 0.0
  %2495 = vmatpush1.msra.mxu0 %v2490
  %2496 = vmatprep.subr.mxu0 0.0
  %2497 = vmatpush1.msra.mxu0 %v2491
  %2498 = vmatprep.subr.mxu0 0.0
  %2499 = vmatpush1.msra.mxu0 %v2492
  %2500 = vmatprep.subr.mxu0 0.0
  %2501 = vmatpush1.msra.mxu0 %v2493
  %2502 = vmatprep.subr.mxu0 0.0
  %2503 = vmatpush1.msra.mxu0 0.0
  %2504 = vmatprep.subr.mxu0 0.0
  %2505 = vmatpush1.msra.mxu0 0.0
  %2506 = vmatprep.subr.mxu0 0.0
  %2507 = vmatpush1.msra.mxu0 0.0
  %2508 = vmatprep.subr.mxu0 0.0
  %2509 = vmatpush1.msra.mxu0 0.0
  %2510 = vmatprep.subr.mxu0 0.0
  %2511 = vmatpush1.msra.mxu0 0.0
  %2512 = vmatprep.subr.mxu0 0.0
  %2513 = vmatpush1.msra.mxu0 0.0
  %2514 = vmatprep.subr.mxu0 0.0
  %2515 = vmatpush1.msra.mxu0 0.0
  %2516 = vmatprep.subr.mxu0 0.0
  %2517 = vmatpush1.msra.mxu0 0.0
  %2518 = vmatprep.subr.mxu0 0.0
  %2519 = vmatpush1.msra.mxu0 0.0
  %2520 = vmatprep.subr.mxu0 0.0
  %2521 = vmatpush1.msra.mxu0 0.0
  %2522 = vmatprep.subr.mxu0 0.0
  %2523 = vmatpush1.msra.mxu0 0.0
  %2524 = vmatprep.subr.mxu0 0.0
  %2525 = vmatpush1.msra.mxu0 0.0
  %2526 = vmatprep.subr.mxu0 0.0
  %2527 = vmatpush1.msra.mxu0 0.0
  %2528 = vmatprep.subr.mxu0 0.0
  %2529 = vmatpush1.msra.mxu0 0.0
  %2530 = vmatprep.subr.mxu0 0.0
  %2531 = vmatpush1.msra.mxu0 0.0
  %2532 = vmatprep.subr.mxu0 0.0
  %2533 = vmatpush1.msra.mxu0 0.0
  %2534 = vmatprep.subr.mxu0 0.0
  %2535 = vmatpush1.msra.mxu0 0.0
  %2536 = vmatprep.subr.mxu0 0.0
  %2537 = vmatpush1.msra.mxu0 0.0
  %2538 = vmatprep.subr.mxu0 0.0
  %2539 = vmatpush1.msra.mxu0 0.0
  %2540 = vmatprep.subr.mxu0 0.0
  %2541 = vmatpush1.msra.mxu0 0.0
  %2542 = vmatprep.subr.mxu0 0.0
  %2543 = vmatpush1.msra.mxu0 0.0
  %2544 = vmatprep.subr.mxu0 0.0
  %2545 = vmatpush1.msra.mxu0 0.0
  %2546 = vmatprep.subr.mxu0 0.0
  %2547 = vmatpush1.msra.mxu0 0.0
  %2548 = vmatprep.subr.mxu0 0.0
  %2549 = vmatpush1.msra.mxu0 0.0
  %2550 = vmatprep.subr.mxu0 0.0
  %2551 = vmatpush1.msra.mxu0 0.0
  %2552 = vmatprep.subr.mxu0 0.0
  %2553 = vmatpush1.msra.mxu0 0.0
  %2554 = vmatprep.subr.mxu0 0.0
  %2555 = vmatpush1.msra.mxu0 0.0
  %2556 = vmatprep.subr.mxu0 0.0
  %2557 = vmatpush1.msra.mxu0 0.0
  %2558 = vmatprep.mubr.f32.mxu0 0.0
  %2559 = vmatmul.mubr.f32.gmra.mrb[0].mxu0 %v905
  %v2560 = vpop.f32.mrb[0].mxu0
  %v2561 = vadd.f32 0.0, %v2560
  %v2562 = vpop.f32.mrb[0].mxu0
  %2563 = vmatprep.mubr.f32.mxu0 0.0
  %2564 = vmatmul.mubr.f32.gmra.mrb[0].mxu0 %v908
  %v2565 = vpop.f32.mrb[0].mxu0
  %v2566 = vadd.f32 0.0, %v2565
  %v2567 = vpop.f32.mrb[0].mxu0
  %2568 = vmatprep.mubr.f32.mxu0 0.0
  %2569 = vmatmul.mubr.f32.gmra.mrb[0].mxu0 %v911
  %v2570 = vpop.f32.mrb[0].mxu0
  %v2571 = vadd.f32 0.0, %v2570
  %v2572 = vpop.f32.mrb[0].mxu0
  %2573 = vmatprep.mubr.f32.mxu0 0.0
  %2574 = vmatmul.mubr.f32.gmra.mrb[0].mxu0 %v914
  %v2575 = vpop.f32.mrb[0].mxu0
  %v2576 = vadd.f32 0.0, %v2575
  %v2577 = vpop.f32.mrb[0].mxu0
  %2578 = vmatprep.mubr.f32.mxu0 0.0
  %2579 = vmatmul.mubr.f32.gmra.mrb[0].mxu0 %v917
  %v2580 = vpop.f32.mrb[0].mxu0
  %v2581 = vadd.f32 0.0, %v2580
  %v2582 = vpop.f32.mrb[0].mxu0
  %2583 = vmatprep.mubr.f32.mxu0 0.0
  %2584 = vmatmul.mubr.f32.gmra.mrb[0].mxu0 %v920
  %v2585 = vpop.f32.mrb[0].mxu0
  %v2586 = vadd.f32 0.0, %v2585
  %v2587 = vpop.f32.mrb[0].mxu0
  %2588 = vmatprep.mubr.f32.mxu0 0.0
  %2589 = vmatmul.mubr.f32.gmra.mrb[0].mxu0 %v923
  %v2590 = vpop.f32.mrb[0].mxu0
  %v2591 = vadd.f32 0.0, %v2590
  %v2592 = vpop.f32.mrb[0].mxu0
  %2593 = vmatprep.mubr.f32.mxu0 0.0
  %2594 = vmatmul.mubr.f32.gmra.mrb[0].mxu0 %v926
  %v2595 = vpop.f32.mrb[0].mxu0
  %v2596 = vadd.f32 0.0, %v2595
  %v2597 = vpop.f32.mrb[0].mxu0
  %2598 = vmatprep.mubr.f32.mxu0 0.0
  %2599 = vmatmul.mubr.f32.gmra.mrb[0].mxu0 %v929
  %v2600 = vpop.f32.mrb[0].mxu0
  %v2601 = vadd.f32 0.0, %v2600
  %v2602 = vpop.f32.mrb[0].mxu0
  %2603 = vmatprep.mubr.f32.mxu0 0.0
  %2604 = vmatmul.mubr.f32.gmra.mrb[0].mxu0 %v932
  %v2605 = vpop.f32.mrb[0].mxu0
  %v2606 = vadd.f32 0.0, %v2605
  %v2607 = vpop.f32.mrb[0].mxu0
  %2608 = vmatprep.mubr.f32.mxu0 0.0
  %2609 = vmatmul.mubr.f32.gmra.mrb[0].mxu0 %v935
  %v2610 = vpop.f32.mrb[0].mxu0
  %v2611 = vadd.f32 0.0, %v2610
  %v2612 = vpop.f32.mrb[0].mxu0
  %2613 = vmatprep.mubr.f32.mxu0 0.0
  %2614 = vmatmul.mubr.f32.gmra.mrb[0].mxu0 %v938
  %v2615 = vpop.f32.mrb[0].mxu0
  %v2616 = vadd.f32 0.0, %v2615
  %v2617 = vpop.f32.mrb[0].mxu0
  %2618 = vmatprep.mubr.f32.mxu0 0.0
  %2619 = vmatmul.mubr.f32.gmra.mrb[0].mxu0 %v941
  %v2620 = vpop.f32.mrb[0].mxu0
  %v2621 = vadd.f32 0.0, %v2620
  %v2622 = vpop.f32.mrb[0].mxu0
  %2623 = vmatprep.mubr.f32.mxu0 0.0
  %2624 = vmatmul.mubr.f32.gmra.mrb[0].mxu0 %v944
  %v2625 = vpop.f32.mrb[0].mxu0
  %v2626 = vadd.f32 0.0, %v2625
  %v2627 = vpop.f32.mrb[0].mxu0
  %2628 = vmatprep.mubr.f32.mxu0 0.0
  %2629 = vmatmul.mubr.f32.gmra.mrb[0].mxu0 %v947
  %v2630 = vpop.f32.mrb[0].mxu0
  %v2631 = vadd.f32 0.0, %v2630
  %v2632 = vpop.f32.mrb[0].mxu0
  %2633 = vmatprep.mubr.f32.mxu0 0.0
  %2634 = vmatmul.mubr.f32.gmra.mrb[0].mxu0 %v950
  %v2635 = vpop.f32.mrb[0].mxu0
  %v2636 = vadd.f32 0.0, %v2635
  %v2637 = vpop.f32.mrb[0].mxu0
  %2638 = vdwg.mxu0
  %v2639 = vadd.f32 %v809, %v2561
  %v2640 = vadd.f32 %v815, %v2566
  %v2641 = vadd.f32 %v821, %v2571
  %v2642 = vadd.f32 %v827, %v2576
  %v2643 = vadd.f32 %v833, %v2581
  %v2644 = vadd.f32 %v839, %v2586
  %v2645 = vadd.f32 %v845, %v2591
  %v2646 = vadd.f32 %v851, %v2596
  %v2647 = vadd.f32 %v857, %v2601
  %v2648 = vadd.f32 %v863, %v2606
  %v2649 = vadd.f32 %v869, %v2611
  %v2650 = vadd.f32 %v875, %v2616
  %v2651 = vadd.f32 %v881, %v2621
  %v2652 = vadd.f32 %v887, %v2626
  %v2653 = vadd.f32 %v893, %v2631
  %v2654 = vadd.f32 %v899, %v2636
  %v2655 = vxor.u32 %v2639, 2147483648
  %v2656 = vxor.u32 %v2640, 2147483648
  %v2657 = vxor.u32 %v2641, 2147483648
  %v2658 = vxor.u32 %v2642, 2147483648
  %v2659 = vxor.u32 %v2643, 2147483648
  %v2660 = vxor.u32 %v2644, 2147483648
  %v2661 = vxor.u32 %v2645, 2147483648
  %v2662 = vxor.u32 %v2646, 2147483648
  %v2663 = vxor.u32 %v2647, 2147483648
  %v2664 = vxor.u32 %v2648, 2147483648
  %v2665 = vxor.u32 %v2649, 2147483648
  %v2666 = vxor.u32 %v2650, 2147483648
  %v2667 = vmul.f32 %v2655, 1.442695
  %v2668 = vpow.pop %v2667
  %v2669 = vmul.f32 %v2656, 1.442695
  %v2670 = vpow.pop %v2669
  %v2671 = vmul.f32 %v2657, 1.442695
  %v2672 = vpow.pop %v2671
  %v2673 = vmul.f32 %v2658, 1.442695
  %v2674 = vpow.pop %v2673
  %v2675 = vmul.f32 %v2659, 1.442695
  %v2676 = vpow.pop %v2675
  %v2677 = vmul.f32 %v2660, 1.442695
  %v2678 = vpow.pop %v2677
  %v2679 = vmul.f32 %v2661, 1.442695
  %v2680 = vpow.pop %v2679
  %v2681 = vmul.f32 %v2662, 1.442695
  %v2682 = vpow.pop %v2681
  %v2683 = vmul.f32 %v2663, 1.442695
  %v2684 = vpow.pop %v2683
  %v2685 = vmul.f32 %v2664, 1.442695
  %v2686 = vpow.pop %v2685
  %v2687 = vmul.f32 %v2665, 1.442695
  %v2688 = vpow.pop %v2687
  %v2689 = vmul.f32 %v2666, 1.442695
  %v2690 = vpow.pop %v2689
  %v2691 = vadd.f32 %v2668, 1.0
  %v2692 = vadd.f32 %v2670, 1.0
  %v2693 = vadd.f32 %v2672, 1.0
  %v2694 = vadd.f32 %v2674, 1.0
  %v2695 = vadd.f32 %v2676, 1.0
  %v2696 = vadd.f32 %v2678, 1.0
  %v2697 = vadd.f32 %v2680, 1.0
  %v2698 = vadd.f32 %v2682, 1.0
  %v2699 = vadd.f32 %v2684, 1.0
  %v2700 = vadd.f32 %v2686, 1.0
  %v2701 = vadd.f32 %v2688, 1.0
  %v2702 = vadd.f32 %v2690, 1.0
  %v2703 = vrcp.pop %v2691
  %v2704 = vmul.f32 1.0, %v2703
  %v2705 = vrcp.pop %v2692
  %v2706 = vmul.f32 1.0, %v2705
  %v2707 = vrcp.pop %v2693
  %v2708 = vmul.f32 1.0, %v2707
  %v2709 = vrcp.pop %v2694
  %v2710 = vmul.f32 1.0, %v2709
  %v2711 = vrcp.pop %v2695
  %v2712 = vmul.f32 1.0, %v2711
  %v2713 = vrcp.pop %v2696
  %v2714 = vmul.f32 1.0, %v2713
  %v2715 = vrcp.pop %v2697
  %v2716 = vmul.f32 1.0, %v2715
  %v2717 = vrcp.pop %v2698
  %v2718 = vmul.f32 1.0, %v2717
  %v2719 = vrcp.pop %v2699
  %v2720 = vmul.f32 1.0, %v2719
  %v2721 = vrcp.pop %v2700
  %v2722 = vmul.f32 1.0, %v2721
  %v2723 = vrcp.pop %v2701
  %v2724 = vmul.f32 1.0, %v2723
  %v2725 = vrcp.pop %v2702
  %v2726 = vmul.f32 1.0, %v2725
  %v2727 = vtanh.pop %v2651
  %v2728 = vtanh.pop %v2652
  %v2729 = vtanh.pop %v2653
  %v2730 = vtanh.pop %v2654
  %v2731 = vmul.f32 %v2712, %v2482
  %v2732 = vmul.f32 %v2714, %v2483
  %v2733 = vmul.f32 %v2716, %v2484
  %v2734 = vmul.f32 %v2718, %v2485
  %v2735 = vmul.f32 %v2704, %v2727
  %v2736 = vmul.f32 %v2706, %v2728
  %v2737 = vmul.f32 %v2708, %v2729
  %v2738 = vmul.f32 %v2710, %v2730
  %v2739 = vadd.f32 %v2731, %v2735
  %v2740 = vadd.f32 %v2732, %v2736
  %v2741 = vadd.f32 %v2733, %v2737
  %v2742 = vadd.f32 %v2734, %v2738
  %v2743 = vtanh.pop %v2739
  %v2744 = vtanh.pop %v2740
  %v2745 = vtanh.pop %v2741
  %v2746 = vtanh.pop %v2742
  %v2747 = vmul.f32 %v2720, %v2743
  %v2748 = vmul.f32 %v2722, %v2744
  %v2749 = vmul.f32 %v2724, %v2745
  %v2750 = vmul.f32 %v2726, %v2746
  %2751 = vmatprep.subr.mxu0 0.0
  %2752 = vmatpush1.msra.mxu0 %v2747
  %2753 = vmatprep.subr.mxu0 0.0
  %2754 = vmatpush1.msra.mxu0 %v2748
  %2755 = vmatprep.subr.mxu0 0.0
  %2756 = vmatpush1.msra.mxu0 %v2749
  %2757 = vmatprep.subr.mxu0 0.0
  %2758 = vmatpush1.msra.mxu0 %v2750
  %2759 = vmatprep.subr.mxu0 0.0
  %2760 = vmatpush1.msra.mxu0 0.0
  %2761 = vmatprep.subr.mxu0 0.0
  %2762 = vmatpush1.msra.mxu0 0.0
  %2763 = vmatprep.subr.mxu0 0.0
  %2764 = vmatpush1.msra.mxu0 0.0
  %2765 = vmatprep.subr.mxu0 0.0
  %2766 = vmatpush1.msra.mxu0 0.0
  %2767 = vmatprep.subr.mxu0 0.0
  %2768 = vmatpush1.msra.mxu0 0.0
  %2769 = vmatprep.subr.mxu0 0.0
  %2770 = vmatpush1.msra.mxu0 0.0
  %2771 = vmatprep.subr.mxu0 0.0
  %2772 = vmatpush1.msra.mxu0 0.0
  %2773 = vmatprep.subr.mxu0 0.0
  %2774 = vmatpush1.msra.mxu0 0.0
  %2775 = vmatprep.subr.mxu0 0.0
  %2776 = vmatpush1.msra.mxu0 0.0
  %2777 = vmatprep.subr.mxu0 0.0
  %2778 = vmatpush1.msra.mxu0 0.0
  %2779 = vmatprep.subr.mxu0 0.0
  %2780 = vmatpush1.msra.mxu0 0.0
  %2781 = vmatprep.subr.mxu0 0.0
  %2782 = vmatpush1.msra.mxu0 0.0
  %2783 = vmatprep.subr.mxu0 0.0
  %2784 = vmatpush1.msra.mxu0 0.0
  %2785 = vmatprep.subr.mxu0 0.0
  %2786 = vmatpush1.msra.mxu0 0.0
  %2787 = vmatprep.subr.mxu0 0.0
  %2788 = vmatpush1.msra.mxu0 0.0
  %2789 = vmatprep.subr.mxu0 0.0
  %2790 = vmatpush1.msra.mxu0 0.0
  %2791 = vmatprep.subr.mxu0 0.0
  %2792 = vmatpush1.msra.mxu0 0.0
  %2793 = vmatprep.subr.mxu0 0.0
  %2794 = vmatpush1.msra.mxu0 0.0
  %2795 = vmatprep.subr.mxu0 0.0
  %2796 = vmatpush1.msra.mxu0 0.0
  %2797 = vmatprep.subr.mxu0 0.0
  %2798 = vmatpush1.msra.mxu0 0.0
  %2799 = vmatprep.subr.mxu0 0.0
  %2800 = vmatpush1.msra.mxu0 0.0
  %2801 = vmatprep.subr.mxu0 0.0
  %2802 = vmatpush1.msra.mxu0 0.0
  %2803 = vmatprep.subr.mxu0 0.0
  %2804 = vmatpush1.msra.mxu0 0.0
  %2805 = vmatprep.subr.mxu0 0.0
  %2806 = vmatpush1.msra.mxu0 0.0
  %2807 = vmatprep.subr.mxu0 0.0
  %2808 = vmatpush1.msra.mxu0 0.0
  %2809 = vmatprep.subr.mxu0 0.0
  %2810 = vmatpush1.msra.mxu0 0.0
  %2811 = vmatprep.subr.mxu0 0.0
  %2812 = vmatpush1.msra.mxu0 0.0
  %2813 = vmatprep.subr.mxu0 0.0
  %2814 = vmatpush1.msra.mxu0 0.0
  %2815 = vmatprep.mubr.f32.mxu0 0.0
  %2816 = vmatmul.mubr.f32.gmra.mrb[0].mxu0 %v905
  %v2817 = vpop.f32.mrb[0].mxu0
  %v2818 = vadd.f32 0.0, %v2817
  %v2819 = vpop.f32.mrb[0].mxu0
  %2820 = vmatprep.mubr.f32.mxu0 0.0
  %2821 = vmatmul.mubr.f32.gmra.mrb[0].mxu0 %v908
  %v2822 = vpop.f32.mrb[0].mxu0
  %v2823 = vadd.f32 0.0, %v2822
  %v2824 = vpop.f32.mrb[0].mxu0
  %2825 = vmatprep.mubr.f32.mxu0 0.0
  %2826 = vmatmul.mubr.f32.gmra.mrb[0].mxu0 %v911
  %v2827 = vpop.f32.mrb[0].mxu0
  %v2828 = vadd.f32 0.0, %v2827
  %v2829 = vpop.f32.mrb[0].mxu0
  %2830 = vmatprep.mubr.f32.mxu0 0.0
  %2831 = vmatmul.mubr.f32.gmra.mrb[0].mxu0 %v914
  %v2832 = vpop.f32.mrb[0].mxu0
  %v2833 = vadd.f32 0.0, %v2832
  %v2834 = vpop.f32.mrb[0].mxu0
  %2835 = vmatprep.mubr.f32.mxu0 0.0
  %2836 = vmatmul.mubr.f32.gmra.mrb[0].mxu0 %v917
  %v2837 = vpop.f32.mrb[0].mxu0
  %v2838 = vadd.f32 0.0, %v2837
  %v2839 = vpop.f32.mrb[0].mxu0
  %2840 = vmatprep.mubr.f32.mxu0 0.0
  %2841 = vmatmul.mubr.f32.gmra.mrb[0].mxu0 %v920
  %v2842 = vpop.f32.mrb[0].mxu0
  %v2843 = vadd.f32 0.0, %v2842
  %v2844 = vpop.f32.mrb[0].mxu0
  %2845 = vmatprep.mubr.f32.mxu0 0.0
  %2846 = vmatmul.mubr.f32.gmra.mrb[0].mxu0 %v923
  %v2847 = vpop.f32.mrb[0].mxu0
  %v2848 = vadd.f32 0.0, %v2847
  %v2849 = vpop.f32.mrb[0].mxu0
  %2850 = vmatprep.mubr.f32.mxu0 0.0
  %2851 = vmatmul.mubr.f32.gmra.mrb[0].mxu0 %v926
  %v2852 = vpop.f32.mrb[0].mxu0
  %v2853 = vadd.f32 0.0, %v2852
  %v2854 = vpop.f32.mrb[0].mxu0
  %2855 = vmatprep.mubr.f32.mxu0 0.0
  %2856 = vmatmul.mubr.f32.gmra.mrb[0].mxu0 %v929
  %v2857 = vpop.f32.mrb[0].mxu0
  %v2858 = vadd.f32 0.0, %v2857
  %v2859 = vpop.f32.mrb[0].mxu0
  %2860 = vmatprep.mubr.f32.mxu0 0.0
  %2861 = vmatmul.mubr.f32.gmra.mrb[0].mxu0 %v932
  %v2862 = vpop.f32.mrb[0].mxu0
  %v2863 = vadd.f32 0.0, %v2862
  %v2864 = vpop.f32.mrb[0].mxu0
  %2865 = vmatprep.mubr.f32.mxu0 0.0
  %2866 = vmatmul.mubr.f32.gmra.mrb[0].mxu0 %v935
  %v2867 = vpop.f32.mrb[0].mxu0
  %v2868 = vadd.f32 0.0, %v2867
  %v2869 = vpop.f32.mrb[0].mxu0
  %2870 = vmatprep.mubr.f32.mxu0 0.0
  %2871 = vmatmul.mubr.f32.gmra.mrb[0].mxu0 %v938
  %v2872 = vpop.f32.mrb[0].mxu0
  %v2873 = vadd.f32 0.0, %v2872
  %v2874 = vpop.f32.mrb[0].mxu0
  %2875 = vmatprep.mubr.f32.mxu0 0.0
  %2876 = vmatmul.mubr.f32.gmra.mrb[0].mxu0 %v941
  %v2877 = vpop.f32.mrb[0].mxu0
  %v2878 = vadd.f32 0.0, %v2877
  %v2879 = vpop.f32.mrb[0].mxu0
  %2880 = vmatprep.mubr.f32.mxu0 0.0
  %2881 = vmatmul.mubr.f32.gmra.mrb[0].mxu0 %v944
  %v2882 = vpop.f32.mrb[0].mxu0
  %v2883 = vadd.f32 0.0, %v2882
  %v2884 = vpop.f32.mrb[0].mxu0
  %2885 = vmatprep.mubr.f32.mxu0 0.0
  %2886 = vmatmul.mubr.f32.gmra.mrb[0].mxu0 %v947
  %v2887 = vpop.f32.mrb[0].mxu0
  %v2888 = vadd.f32 0.0, %v2887
  %v2889 = vpop.f32.mrb[0].mxu0
  %2890 = vmatprep.mubr.f32.mxu0 0.0
  %2891 = vmatmul.mubr.f32.gmra.mrb[0].mxu0 %v950
  %v2892 = vpop.f32.mrb[0].mxu0
  %v2893 = vadd.f32 0.0, %v2892
  %v2894 = vpop.f32.mrb[0].mxu0
  %2895 = vdwg.mxu0
  %v2896 = vadd.f32 %v811, %v2818
  %v2897 = vadd.f32 %v817, %v2823
  %v2898 = vadd.f32 %v823, %v2828
  %v2899 = vadd.f32 %v829, %v2833
  %v2900 = vadd.f32 %v835, %v2838
  %v2901 = vadd.f32 %v841, %v2843
  %v2902 = vadd.f32 %v847, %v2848
  %v2903 = vadd.f32 %v853, %v2853
  %v2904 = vadd.f32 %v859, %v2858
  %v2905 = vadd.f32 %v865, %v2863
  %v2906 = vadd.f32 %v871, %v2868
  %v2907 = vadd.f32 %v877, %v2873
  %v2908 = vadd.f32 %v883, %v2878
  %v2909 = vadd.f32 %v889, %v2883
  %v2910 = vadd.f32 %v895, %v2888
  %v2911 = vadd.f32 %v901, %v2893
  %v2912 = vxor.u32 %v2896, 2147483648
  %v2913 = vxor.u32 %v2897, 2147483648
  %v2914 = vxor.u32 %v2898, 2147483648
  %v2915 = vxor.u32 %v2899, 2147483648
  %v2916 = vxor.u32 %v2900, 2147483648
  %v2917 = vxor.u32 %v2901, 2147483648
  %v2918 = vxor.u32 %v2902, 2147483648
  %v2919 = vxor.u32 %v2903, 2147483648
  %v2920 = vxor.u32 %v2904, 2147483648
  %v2921 = vxor.u32 %v2905, 2147483648
  %v2922 = vxor.u32 %v2906, 2147483648
  %v2923 = vxor.u32 %v2907, 2147483648
  %v2924 = vmul.f32 %v2912, 1.442695
  %v2925 = vpow.pop %v2924
  %v2926 = vmul.f32 %v2913, 1.442695
  %v2927 = vpow.pop %v2926
  %v2928 = vmul.f32 %v2914, 1.442695
  %v2929 = vpow.pop %v2928
  %v2930 = vmul.f32 %v2915, 1.442695
  %v2931 = vpow.pop %v2930
  %v2932 = vmul.f32 %v2916, 1.442695
  %v2933 = vpow.pop %v2932
  %v2934 = vmul.f32 %v2917, 1.442695
  %v2935 = vpow.pop %v2934
  %v2936 = vmul.f32 %v2918, 1.442695
  %v2937 = vpow.pop %v2936
  %v2938 = vmul.f32 %v2919, 1.442695
  %v2939 = vpow.pop %v2938
  %v2940 = vmul.f32 %v2920, 1.442695
  %v2941 = vpow.pop %v2940
  %v2942 = vmul.f32 %v2921, 1.442695
  %v2943 = vpow.pop %v2942
  %v2944 = vmul.f32 %v2922, 1.442695
  %v2945 = vpow.pop %v2944
  %v2946 = vmul.f32 %v2923, 1.442695
  %v2947 = vpow.pop %v2946
  %v2948 = vadd.f32 %v2925, 1.0
  %v2949 = vadd.f32 %v2927, 1.0
  %v2950 = vadd.f32 %v2929, 1.0
  %v2951 = vadd.f32 %v2931, 1.0
  %v2952 = vadd.f32 %v2933, 1.0
  %v2953 = vadd.f32 %v2935, 1.0
  %v2954 = vadd.f32 %v2937, 1.0
  %v2955 = vadd.f32 %v2939, 1.0
  %v2956 = vadd.f32 %v2941, 1.0
  %v2957 = vadd.f32 %v2943, 1.0
  %v2958 = vadd.f32 %v2945, 1.0
  %v2959 = vadd.f32 %v2947, 1.0
  %v2960 = vrcp.pop %v2948
  %v2961 = vmul.f32 1.0, %v2960
  %v2962 = vrcp.pop %v2949
  %v2963 = vmul.f32 1.0, %v2962
  %v2964 = vrcp.pop %v2950
  %v2965 = vmul.f32 1.0, %v2964
  %v2966 = vrcp.pop %v2951
  %v2967 = vmul.f32 1.0, %v2966
  %v2968 = vrcp.pop %v2952
  %v2969 = vmul.f32 1.0, %v2968
  %v2970 = vrcp.pop %v2953
  %v2971 = vmul.f32 1.0, %v2970
  %v2972 = vrcp.pop %v2954
  %v2973 = vmul.f32 1.0, %v2972
  %v2974 = vrcp.pop %v2955
  %v2975 = vmul.f32 1.0, %v2974
  %v2976 = vrcp.pop %v2956
  %v2977 = vmul.f32 1.0, %v2976
  %v2978 = vrcp.pop %v2957
  %v2979 = vmul.f32 1.0, %v2978
  %v2980 = vrcp.pop %v2958
  %v2981 = vmul.f32 1.0, %v2980
  %v2982 = vrcp.pop %v2959
  %v2983 = vmul.f32 1.0, %v2982
  %v2984 = vtanh.pop %v2908
  %v2985 = vtanh.pop %v2909
  %v2986 = vtanh.pop %v2910
  %v2987 = vtanh.pop %v2911
  %v2988 = vmul.f32 %v2969, %v2739
  %v2989 = vmul.f32 %v2971, %v2740
  %v2990 = vmul.f32 %v2973, %v2741
  %v2991 = vmul.f32 %v2975, %v2742
  %v2992 = vmul.f32 %v2961, %v2984
  %v2993 = vmul.f32 %v2963, %v2985
  %v2994 = vmul.f32 %v2965, %v2986
  %v2995 = vmul.f32 %v2967, %v2987
  %v2996 = vadd.f32 %v2988, %v2992
  %v2997 = vadd.f32 %v2989, %v2993
  %v2998 = vadd.f32 %v2990, %v2994
  %v2999 = vadd.f32 %v2991, %v2995
  %v3000 = vtanh.pop %v2996
  %v3001 = vtanh.pop %v2997
  %v3002 = vtanh.pop %v2998
  %v3003 = vtanh.pop %v2999
  %v3004 = vmul.f32 %v2977, %v3000
  %v3005 = vmul.f32 %v2979, %v3001
  %v3006 = vmul.f32 %v2981, %v3002
  %v3007 = vmul.f32 %v2983, %v3003
  %3008 = vst [vmem:[%s9] sm:$0xff] %v3004
  %3009 = vst [vmem:[%s9 + $0x8] sm:$0xff] %v3005
  %3010 = vst [vmem:[%s9 + $0x10] sm:$0xff] %v3006
  %3011 = vst [vmem:[%s9 + $0x18] sm:$0xff] %v3007
  %v3012 = vld [vmem:[%s4] sm:$0xff]
  %v3013 = vld [vmem:[%s4 + $0x8] sm:$0xff]
  %v3014 = vld [vmem:[%s4 + $0x10] sm:$0xff]
  %v3015 = vld [vmem:[%s4 + $0x18] sm:$0xff]
  %v3016 = vld [vmem:[%s4 + $0x20] sm:$0xff]
  %v3017 = vld [vmem:[%s4 + $0x28] sm:$0xff]
  %v3018 = vld [vmem:[%s4 + $0x30] sm:$0xff]
  %v3019 = vld [vmem:[%s4 + $0x38] sm:$0xff]
  %v3020 = vld [vmem:[%s4 + $0x40] sm:$0xff]
  %v3021 = vld [vmem:[%s4 + $0x48] sm:$0xff]
  %v3022 = vld [vmem:[%s4 + $0x50] sm:$0xff]
  %v3023 = vld [vmem:[%s4 + $0x58] sm:$0xff]
  %v3024 = vld [vmem:[%s4 + $0x60] sm:$0xff]
  %v3025 = vld [vmem:[%s4 + $0x68] sm:$0xff]
  %v3026 = vld [vmem:[%s4 + $0x70] sm:$0xff]
  %v3027 = vld [vmem:[%s4 + $0x78] sm:$0xff]
  %v3028 = vld [vmem:[%s4 + $0x80] sm:$0xff]
  %v3029 = vld [vmem:[%s4 + $0x88] sm:$0xff]
  %v3030 = vld [vmem:[%s4 + $0x90] sm:$0xff]
  %v3031 = vld [vmem:[%s4 + $0x98] sm:$0xff]
  %v3032 = vld [vmem:[%s4 + $0xa0] sm:$0xff]
  %v3033 = vld [vmem:[%s4 + $0xa8] sm:$0xff]
  %v3034 = vld [vmem:[%s4 + $0xb0] sm:$0xff]
  %v3035 = vld [vmem:[%s4 + $0xb8] sm:$0xff]
  %v3036 = vld [vmem:[%s4 + $0xc0] sm:$0xff]
  %v3037 = vld [vmem:[%s4 + $0xc8] sm:$0xff]
  %v3038 = vld [vmem:[%s4 + $0xd0] sm:$0xff]
  %v3039 = vld [vmem:[%s4 + $0xd8] sm:$0xff]
  %v3040 = vld [vmem:[%s4 + $0xe0] sm:$0xff]
  %v3041 = vld [vmem:[%s4 + $0xe8] sm:$0xff]
  %v3042 = vld [vmem:[%s4 + $0xf0] sm:$0xff]
  %v3043 = vld [vmem:[%s4 + $0xf8] sm:$0xff]
  %v3044 = vld [vmem:[%s6] sm:$0xff]
  %v3045 = vld [vmem:[%s6 + $0x8] sm:$0xff]
  %v3046 = vld [vmem:[%s6 + $0x10] sm:$0xff]
  %v3047 = vld [vmem:[%s6 + $0x18] sm:$0xff]
  %v3048 = vld [vmem:[%s6 + $0x20] sm:$0xff]
  %v3049 = vld [vmem:[%s6 + $0x28] sm:$0xff]
  %v3050 = vld [vmem:[%s6 + $0x30] sm:$0xff]
  %v3051 = vld [vmem:[%s6 + $0x38] sm:$0xff]
  %v3052 = vld [vmem:[%s6 + $0x40] sm:$0xff]
  %v3053 = vld [vmem:[%s6 + $0x48] sm:$0xff]
  %v3054 = vld [vmem:[%s6 + $0x50] sm:$0xff]
  %v3055 = vld [vmem:[%s6 + $0x58] sm:$0xff]
  %v3056 = vld [vmem:[%s6 + $0x60] sm:$0xff]
  %v3057 = vld [vmem:[%s6 + $0x68] sm:$0xff]
  %v3058 = vld [vmem:[%s6 + $0x70] sm:$0xff]
  %v3059 = vld [vmem:[%s6 + $0x78] sm:$0xff]
  %v3060 = vld [vmem:[%s6 + $0x80] sm:$0xff]
  %v3061 = vld [vmem:[%s6 + $0x88] sm:$0xff]
  %v3062 = vld [vmem:[%s6 + $0x90] sm:$0xff]
  %v3063 = vld [vmem:[%s6 + $0x98] sm:$0xff]
  %v3064 = vld [vmem:[%s6 + $0xa0] sm:$0xff]
  %v3065 = vld [vmem:[%s6 + $0xa8] sm:$0xff]
  %v3066 = vld [vmem:[%s6 + $0xb0] sm:$0xff]
  %v3067 = vld [vmem:[%s6 + $0xb8] sm:$0xff]
  %v3068 = vld [vmem:[%s6 + $0xc0] sm:$0xff]
  %v3069 = vld [vmem:[%s6 + $0xc8] sm:$0xff]
  %v3070 = vld [vmem:[%s6 + $0xd0] sm:$0xff]
  %v3071 = vld [vmem:[%s6 + $0xd8] sm:$0xff]
  %v3072 = vld [vmem:[%s6 + $0xe0] sm:$0xff]
  %v3073 = vld [vmem:[%s6 + $0xe8] sm:$0xff]
  %v3074 = vld [vmem:[%s6 + $0xf0] sm:$0xff]
  %v3075 = vld [vmem:[%s6 + $0xf8] sm:$0xff]
  %3077 = vset.pattern.permute.xlu0 0
  %3078 = vperm.xlu0 %3077, %v3044
  %v3079 = vpop.permute.xlu0 %3078
  %3082 = vset.pattern.permute.xlu0 0
  %3083 = vperm.xlu0 %3082, %v3045
  %v3084 = vpop.permute.xlu0 %3083
  %3087 = vset.pattern.permute.xlu0 0
  %3088 = vperm.xlu0 %3087, %v3046
  %v3089 = vpop.permute.xlu0 %3088
  %3092 = vset.pattern.permute.xlu0 0
  %3093 = vperm.xlu0 %3092, %v3047
  %v3094 = vpop.permute.xlu0 %3093
  %3097 = vset.pattern.permute.xlu0 0
  %3098 = vperm.xlu0 %3097, %v3048
  %v3099 = vpop.permute.xlu0 %3098
  %3102 = vset.pattern.permute.xlu0 0
  %3103 = vperm.xlu0 %3102, %v3049
  %v3104 = vpop.permute.xlu0 %3103
  %3107 = vset.pattern.permute.xlu0 0
  %3108 = vperm.xlu0 %3107, %v3050
  %v3109 = vpop.permute.xlu0 %3108
  %3112 = vset.pattern.permute.xlu0 0
  %3113 = vperm.xlu0 %3112, %v3051
  %v3114 = vpop.permute.xlu0 %3113
  %3117 = vset.pattern.permute.xlu0 0
  %3118 = vperm.xlu0 %3117, %v3052
  %v3119 = vpop.permute.xlu0 %3118
  %3122 = vset.pattern.permute.xlu0 0
  %3123 = vperm.xlu0 %3122, %v3053
  %v3124 = vpop.permute.xlu0 %3123
  %3127 = vset.pattern.permute.xlu0 0
  %3128 = vperm.xlu0 %3127, %v3054
  %v3129 = vpop.permute.xlu0 %3128
  %3132 = vset.pattern.permute.xlu0 0
  %3133 = vperm.xlu0 %3132, %v3055
  %v3134 = vpop.permute.xlu0 %3133
  %3137 = vset.pattern.permute.xlu0 0
  %3138 = vperm.xlu0 %3137, %v3056
  %v3139 = vpop.permute.xlu0 %3138
  %3142 = vset.pattern.permute.xlu0 0
  %3143 = vperm.xlu0 %3142, %v3057
  %v3144 = vpop.permute.xlu0 %3143
  %3147 = vset.pattern.permute.xlu0 0
  %3148 = vperm.xlu0 %3147, %v3058
  %v3149 = vpop.permute.xlu0 %3148
  %3152 = vset.pattern.permute.xlu0 0
  %3153 = vperm.xlu0 %3152, %v3059
  %v3154 = vpop.permute.xlu0 %3153
  %3157 = vset.pattern.permute.xlu0 0
  %3158 = vperm.xlu0 %3157, %v3060
  %v3159 = vpop.permute.xlu0 %3158
  %3162 = vset.pattern.permute.xlu0 0
  %3163 = vperm.xlu0 %3162, %v3061
  %v3164 = vpop.permute.xlu0 %3163
  %3167 = vset.pattern.permute.xlu0 0
  %3168 = vperm.xlu0 %3167, %v3062
  %v3169 = vpop.permute.xlu0 %3168
  %3172 = vset.pattern.permute.xlu0 0
  %3173 = vperm.xlu0 %3172, %v3063
  %v3174 = vpop.permute.xlu0 %3173
  %3177 = vset.pattern.permute.xlu0 0
  %3178 = vperm.xlu0 %3177, %v3064
  %v3179 = vpop.permute.xlu0 %3178
  %3182 = vset.pattern.permute.xlu0 0
  %3183 = vperm.xlu0 %3182, %v3065
  %v3184 = vpop.permute.xlu0 %3183
  %3187 = vset.pattern.permute.xlu0 0
  %3188 = vperm.xlu0 %3187, %v3066
  %v3189 = vpop.permute.xlu0 %3188
  %3192 = vset.pattern.permute.xlu0 0
  %3193 = vperm.xlu0 %3192, %v3067
  %v3194 = vpop.permute.xlu0 %3193
  %3197 = vset.pattern.permute.xlu0 0
  %3198 = vperm.xlu0 %3197, %v3068
  %v3199 = vpop.permute.xlu0 %3198
  %3202 = vset.pattern.permute.xlu0 0
  %3203 = vperm.xlu0 %3202, %v3069
  %v3204 = vpop.permute.xlu0 %3203
  %3207 = vset.pattern.permute.xlu0 0
  %3208 = vperm.xlu0 %3207, %v3070
  %v3209 = vpop.permute.xlu0 %3208
  %3212 = vset.pattern.permute.xlu0 0
  %3213 = vperm.xlu0 %3212, %v3071
  %v3214 = vpop.permute.xlu0 %3213
  %3217 = vset.pattern.permute.xlu0 0
  %3218 = vperm.xlu0 %3217, %v3072
  %v3219 = vpop.permute.xlu0 %3218
  %3222 = vset.pattern.permute.xlu0 0
  %3223 = vperm.xlu0 %3222, %v3073
  %v3224 = vpop.permute.xlu0 %3223
  %3227 = vset.pattern.permute.xlu0 0
  %3228 = vperm.xlu0 %3227, %v3074
  %v3229 = vpop.permute.xlu0 %3228
  %3232 = vset.pattern.permute.xlu0 0
  %3233 = vperm.xlu0 %3232, %v3075
  %v3234 = vpop.permute.xlu0 %3233
  %v3237 = vsel %vm903, %v3012, 0
  %v3240 = vsel %vm903, %v3013, 0
  %v3243 = vsel %vm903, %v3014, 0
  %v3246 = vsel %vm903, %v3015, 0
  %v3249 = vsel %vm903, %v3016, 0
  %v3252 = vsel %vm903, %v3017, 0
  %v3255 = vsel %vm903, %v3018, 0
  %v3258 = vsel %vm903, %v3019, 0
  %v3261 = vsel %vm903, %v3020, 0
  %v3264 = vsel %vm903, %v3021, 0
  %v3267 = vsel %vm903, %v3022, 0
  %v3270 = vsel %vm903, %v3023, 0
  %v3273 = vsel %vm903, %v3024, 0
  %v3276 = vsel %vm903, %v3025, 0
  %v3279 = vsel %vm903, %v3026, 0
  %v3282 = vsel %vm903, %v3027, 0
  %v3285 = vsel %vm903, %v3028, 0
  %v3288 = vsel %vm903, %v3029, 0
  %v3291 = vsel %vm903, %v3030, 0
  %v3294 = vsel %vm903, %v3031, 0
  %v3297 = vsel %vm903, %v3032, 0
  %v3300 = vsel %vm903, %v3033, 0
  %v3303 = vsel %vm903, %v3034, 0
  %v3306 = vsel %vm903, %v3035, 0
  %v3309 = vsel %vm903, %v3036, 0
  %v3312 = vsel %vm903, %v3037, 0
  %v3315 = vsel %vm903, %v3038, 0
  %v3318 = vsel %vm903, %v3039, 0
  %v3321 = vsel %vm903, %v3040, 0
  %v3324 = vsel %vm903, %v3041, 0
  %v3327 = vsel %vm903, %v3042, 0
  %v3330 = vsel %vm903, %v3043, 0
  %3332 = vmatprep.subr.mxu0 0.0
  %3333 = vmatpush1.msra.mxu0 %v3004
  %3334 = vmatprep.subr.mxu0 0.0
  %3335 = vmatpush1.msra.mxu0 %v3005
  %3336 = vmatprep.subr.mxu0 0.0
  %3337 = vmatpush1.msra.mxu0 %v3006
  %3338 = vmatprep.subr.mxu0 0.0
  %3339 = vmatpush1.msra.mxu0 %v3007
  %3340 = vmatprep.subr.mxu0 0.0
  %3341 = vmatpush1.msra.mxu0 0.0
  %3342 = vmatprep.subr.mxu0 0.0
  %3343 = vmatpush1.msra.mxu0 0.0
  %3344 = vmatprep.subr.mxu0 0.0
  %3345 = vmatpush1.msra.mxu0 0.0
  %3346 = vmatprep.subr.mxu0 0.0
  %3347 = vmatpush1.msra.mxu0 0.0
  %3348 = vmatprep.subr.mxu0 0.0
  %3349 = vmatpush1.msra.mxu0 0.0
  %3350 = vmatprep.subr.mxu0 0.0
  %3351 = vmatpush1.msra.mxu0 0.0
  %3352 = vmatprep.subr.mxu0 0.0
  %3353 = vmatpush1.msra.mxu0 0.0
  %3354 = vmatprep.subr.mxu0 0.0
  %3355 = vmatpush1.msra.mxu0 0.0
  %3356 = vmatprep.subr.mxu0 0.0
  %3357 = vmatpush1.msra.mxu0 0.0
  %3358 = vmatprep.subr.mxu0 0.0
  %3359 = vmatpush1.msra.mxu0 0.0
  %3360 = vmatprep.subr.mxu0 0.0
  %3361 = vmatpush1.msra.mxu0 0.0
  %3362 = vmatprep.subr.mxu0 0.0
  %3363 = vmatpush1.msra.mxu0 0.0
  %3364 = vmatprep.subr.mxu0 0.0
  %3365 = vmatpush1.msra.mxu0 0.0
  %3366 = vmatprep.subr.mxu0 0.0
  %3367 = vmatpush1.msra.mxu0 0.0
  %3368 = vmatprep.subr.mxu0 0.0
  %3369 = vmatpush1.msra.mxu0 0.0
  %3370 = vmatprep.subr.mxu0 0.0
  %3371 = vmatpush1.msra.mxu0 0.0
  %3372 = vmatprep.subr.mxu0 0.0
  %3373 = vmatpush1.msra.mxu0 0.0
  %3374 = vmatprep.subr.mxu0 0.0
  %3375 = vmatpush1.msra.mxu0 0.0
  %3376 = vmatprep.subr.mxu0 0.0
  %3377 = vmatpush1.msra.mxu0 0.0
  %3378 = vmatprep.subr.mxu0 0.0
  %3379 = vmatpush1.msra.mxu0 0.0
  %3380 = vmatprep.subr.mxu0 0.0
  %3381 = vmatpush1.msra.mxu0 0.0
  %3382 = vmatprep.subr.mxu0 0.0
  %3383 = vmatpush1.msra.mxu0 0.0
  %3384 = vmatprep.subr.mxu0 0.0
  %3385 = vmatpush1.msra.mxu0 0.0
  %3386 = vmatprep.subr.mxu0 0.0
  %3387 = vmatpush1.msra.mxu0 0.0
  %3388 = vmatprep.subr.mxu0 0.0
  %3389 = vmatpush1.msra.mxu0 0.0
  %3390 = vmatprep.subr.mxu0 0.0
  %3391 = vmatpush1.msra.mxu0 0.0
  %3392 = vmatprep.subr.mxu0 0.0
  %3393 = vmatpush1.msra.mxu0 0.0
  %3394 = vmatprep.subr.mxu0 0.0
  %3395 = vmatpush1.msra.mxu0 0.0
  %3396 = vmatprep.mubr.f32.mxu0 0.0
  %3397 = vmatmul.mubr.f32.gmra.mrb[0].mxu0 %v3237
  %v3398 = vpop.f32.mrb[0].mxu0
  %v3399 = vadd.f32 %v3079, %v3398
  %v3400 = vpop.f32.mrb[0].mxu0
  %3401 = vmatprep.mubr.f32.mxu0 0.0
  %3402 = vmatmul.mubr.f32.gmra.mrb[0].mxu0 %v3240
  %v3403 = vpop.f32.mrb[0].mxu0
  %v3404 = vadd.f32 %v3084, %v3403
  %v3405 = vpop.f32.mrb[0].mxu0
  %3406 = vmatprep.mubr.f32.mxu0 0.0
  %3407 = vmatmul.mubr.f32.gmra.mrb[0].mxu0 %v3243
  %v3408 = vpop.f32.mrb[0].mxu0
  %v3409 = vadd.f32 %v3089, %v3408
  %v3410 = vpop.f32.mrb[0].mxu0
  %3411 = vmatprep.mubr.f32.mxu0 0.0
  %3412 = vmatmul.mubr.f32.gmra.mrb[0].mxu0 %v3246
  %v3413 = vpop.f32.mrb[0].mxu0
  %v3414 = vadd.f32 %v3094, %v3413
  %v3415 = vpop.f32.mrb[0].mxu0
  %3416 = vmatprep.mubr.f32.mxu0 0.0
  %3417 = vmatmul.mubr.f32.gmra.mrb[0].mxu0 %v3249
  %v3418 = vpop.f32.mrb[0].mxu0
  %v3419 = vadd.f32 %v3099, %v3418
  %v3420 = vpop.f32.mrb[0].mxu0
  %3421 = vmatprep.mubr.f32.mxu0 0.0
  %3422 = vmatmul.mubr.f32.gmra.mrb[0].mxu0 %v3252
  %v3423 = vpop.f32.mrb[0].mxu0
  %v3424 = vadd.f32 %v3104, %v3423
  %v3425 = vpop.f32.mrb[0].mxu0
  %3426 = vmatprep.mubr.f32.mxu0 0.0
  %3427 = vmatmul.mubr.f32.gmra.mrb[0].mxu0 %v3255
  %v3428 = vpop.f32.mrb[0].mxu0
  %v3429 = vadd.f32 %v3109, %v3428
  %v3430 = vpop.f32.mrb[0].mxu0
  %3431 = vmatprep.mubr.f32.mxu0 0.0
  %3432 = vmatmul.mubr.f32.gmra.mrb[0].mxu0 %v3258
  %v3433 = vpop.f32.mrb[0].mxu0
  %v3434 = vadd.f32 %v3114, %v3433
  %v3435 = vpop.f32.mrb[0].mxu0
  %3436 = vmatprep.mubr.f32.mxu0 0.0
  %3437 = vmatmul.mubr.f32.gmra.mrb[0].mxu0 %v3261
  %v3438 = vpop.f32.mrb[0].mxu0
  %v3439 = vadd.f32 %v3119, %v3438
  %v3440 = vpop.f32.mrb[0].mxu0
  %3441 = vmatprep.mubr.f32.mxu0 0.0
  %3442 = vmatmul.mubr.f32.gmra.mrb[0].mxu0 %v3264
  %v3443 = vpop.f32.mrb[0].mxu0
  %v3444 = vadd.f32 %v3124, %v3443
  %v3445 = vpop.f32.mrb[0].mxu0
  %3446 = vmatprep.mubr.f32.mxu0 0.0
  %3447 = vmatmul.mubr.f32.gmra.mrb[0].mxu0 %v3267
  %v3448 = vpop.f32.mrb[0].mxu0
  %v3449 = vadd.f32 %v3129, %v3448
  %v3450 = vpop.f32.mrb[0].mxu0
  %3451 = vmatprep.mubr.f32.mxu0 0.0
  %3452 = vmatmul.mubr.f32.gmra.mrb[0].mxu0 %v3270
  %v3453 = vpop.f32.mrb[0].mxu0
  %v3454 = vadd.f32 %v3134, %v3453
  %v3455 = vpop.f32.mrb[0].mxu0
  %3456 = vmatprep.mubr.f32.mxu0 0.0
  %3457 = vmatmul.mubr.f32.gmra.mrb[0].mxu0 %v3273
  %v3458 = vpop.f32.mrb[0].mxu0
  %v3459 = vadd.f32 %v3139, %v3458
  %v3460 = vpop.f32.mrb[0].mxu0
  %3461 = vmatprep.mubr.f32.mxu0 0.0
  %3462 = vmatmul.mubr.f32.gmra.mrb[0].mxu0 %v3276
  %v3463 = vpop.f32.mrb[0].mxu0
  %v3464 = vadd.f32 %v3144, %v3463
  %v3465 = vpop.f32.mrb[0].mxu0
  %3466 = vmatprep.mubr.f32.mxu0 0.0
  %3467 = vmatmul.mubr.f32.gmra.mrb[0].mxu0 %v3279
  %v3468 = vpop.f32.mrb[0].mxu0
  %v3469 = vadd.f32 %v3149, %v3468
  %v3470 = vpop.f32.mrb[0].mxu0
  %3471 = vmatprep.mubr.f32.mxu0 0.0
  %3472 = vmatmul.mubr.f32.gmra.mrb[0].mxu0 %v3282
  %v3473 = vpop.f32.mrb[0].mxu0
  %v3474 = vadd.f32 %v3154, %v3473
  %v3475 = vpop.f32.mrb[0].mxu0
  %3476 = vmatprep.mubr.f32.mxu0 0.0
  %3477 = vmatmul.mubr.f32.gmra.mrb[0].mxu0 %v3285
  %v3478 = vpop.f32.mrb[0].mxu0
  %v3479 = vadd.f32 %v3159, %v3478
  %v3480 = vpop.f32.mrb[0].mxu0
  %3481 = vmatprep.mubr.f32.mxu0 0.0
  %3482 = vmatmul.mubr.f32.gmra.mrb[0].mxu0 %v3288
  %v3483 = vpop.f32.mrb[0].mxu0
  %v3484 = vadd.f32 %v3164, %v3483
  %v3485 = vpop.f32.mrb[0].mxu0
  %3486 = vmatprep.mubr.f32.mxu0 0.0
  %3487 = vmatmul.mubr.f32.gmra.mrb[0].mxu0 %v3291
  %v3488 = vpop.f32.mrb[0].mxu0
  %v3489 = vadd.f32 %v3169, %v3488
  %v3490 = vpop.f32.mrb[0].mxu0
  %3491 = vmatprep.mubr.f32.mxu0 0.0
  %3492 = vmatmul.mubr.f32.gmra.mrb[0].mxu0 %v3294
  %v3493 = vpop.f32.mrb[0].mxu0
  %v3494 = vadd.f32 %v3174, %v3493
  %v3495 = vpop.f32.mrb[0].mxu0
  %3496 = vmatprep.mubr.f32.mxu0 0.0
  %3497 = vmatmul.mubr.f32.gmra.mrb[0].mxu0 %v3297
  %v3498 = vpop.f32.mrb[0].mxu0
  %v3499 = vadd.f32 %v3179, %v3498
  %v3500 = vpop.f32.mrb[0].mxu0
  %3501 = vmatprep.mubr.f32.mxu0 0.0
  %3502 = vmatmul.mubr.f32.gmra.mrb[0].mxu0 %v3300
  %v3503 = vpop.f32.mrb[0].mxu0
  %v3504 = vadd.f32 %v3184, %v3503
  %v3505 = vpop.f32.mrb[0].mxu0
  %3506 = vmatprep.mubr.f32.mxu0 0.0
  %3507 = vmatmul.mubr.f32.gmra.mrb[0].mxu0 %v3303
  %v3508 = vpop.f32.mrb[0].mxu0
  %v3509 = vadd.f32 %v3189, %v3508
  %v3510 = vpop.f32.mrb[0].mxu0
  %3511 = vmatprep.mubr.f32.mxu0 0.0
  %3512 = vmatmul.mubr.f32.gmra.mrb[0].mxu0 %v3306
  %v3513 = vpop.f32.mrb[0].mxu0
  %v3514 = vadd.f32 %v3194, %v3513
  %v3515 = vpop.f32.mrb[0].mxu0
  %3516 = vmatprep.mubr.f32.mxu0 0.0
  %3517 = vmatmul.mubr.f32.gmra.mrb[0].mxu0 %v3309
  %v3518 = vpop.f32.mrb[0].mxu0
  %v3519 = vadd.f32 %v3199, %v3518
  %v3520 = vpop.f32.mrb[0].mxu0
  %3521 = vmatprep.mubr.f32.mxu0 0.0
  %3522 = vmatmul.mubr.f32.gmra.mrb[0].mxu0 %v3312
  %v3523 = vpop.f32.mrb[0].mxu0
  %v3524 = vadd.f32 %v3204, %v3523
  %v3525 = vpop.f32.mrb[0].mxu0
  %3526 = vmatprep.mubr.f32.mxu0 0.0
  %3527 = vmatmul.mubr.f32.gmra.mrb[0].mxu0 %v3315
  %v3528 = vpop.f32.mrb[0].mxu0
  %v3529 = vadd.f32 %v3209, %v3528
  %v3530 = vpop.f32.mrb[0].mxu0
  %3531 = vmatprep.mubr.f32.mxu0 0.0
  %3532 = vmatmul.mubr.f32.gmra.mrb[0].mxu0 %v3318
  %v3533 = vpop.f32.mrb[0].mxu0
  %v3534 = vadd.f32 %v3214, %v3533
  %v3535 = vpop.f32.mrb[0].mxu0
  %3536 = vmatprep.mubr.f32.mxu0 0.0
  %3537 = vmatmul.mubr.f32.gmra.mrb[0].mxu0 %v3321
  %v3538 = vpop.f32.mrb[0].mxu0
  %v3539 = vadd.f32 %v3219, %v3538
  %v3540 = vpop.f32.mrb[0].mxu0
  %3541 = vmatprep.mubr.f32.mxu0 0.0
  %3542 = vmatmul.mubr.f32.gmra.mrb[0].mxu0 %v3324
  %v3543 = vpop.f32.mrb[0].mxu0
  %v3544 = vadd.f32 %v3224, %v3543
  %v3545 = vpop.f32.mrb[0].mxu0
  %3546 = vmatprep.mubr.f32.mxu0 0.0
  %3547 = vmatmul.mubr.f32.gmra.mrb[0].mxu0 %v3327
  %v3548 = vpop.f32.mrb[0].mxu0
  %v3549 = vadd.f32 %v3229, %v3548
  %v3550 = vpop.f32.mrb[0].mxu0
  %3551 = vmatprep.mubr.f32.mxu0 0.0
  %3552 = vmatmul.mubr.f32.gmra.mrb[0].mxu0 %v3330
  %v3553 = vpop.f32.mrb[0].mxu0
  %v3554 = vadd.f32 %v3234, %v3553
  %v3555 = vpop.f32.mrb[0].mxu0
  %3556 = vdwg.mxu0
  %vm3557 = vcmask 523264
  %v3559 = vsel %vm3557, %v50, 0
  %v3562 = vsel %vm3557, %v51, 0
  %v3565 = vsel %vm3557, %v52, 0
  %v3568 = vsel %vm3557, %v53, 0
  %v3571 = vsel %vm3557, %v54, 0
  %v3574 = vsel %vm3557, %v55, 0
  %v3577 = vsel %vm3557, %v56, 0
  %v3580 = vsel %vm3557, %v57, 0
  %v3583 = vsel %vm3557, %v58, 0
  %v3586 = vsel %vm3557, %v59, 0
  %v3589 = vsel %vm3557, %v60, 0
  %v3592 = vsel %vm3557, %v61, 0
  %v3595 = vsel %vm3557, %v62, 0
  %v3598 = vsel %vm3557, %v63, 0
  %v3601 = vsel %vm3557, %v64, 0
  %v3604 = vsel %vm3557, %v65, 0
  %v3607 = vsel %vm3557, %v66, 0
  %v3610 = vsel %vm3557, %v67, 0
  %v3613 = vsel %vm3557, %v68, 0
  %v3616 = vsel %vm3557, %v69, 0
  %v3619 = vsel %vm3557, %v70, 0
  %v3622 = vsel %vm3557, %v71, 0
  %v3625 = vsel %vm3557, %v72, 0
  %v3628 = vsel %vm3557, %v73, 0
  %v3631 = vsel %vm3557, %v74, 0
  %v3634 = vsel %vm3557, %v75, 0
  %v3637 = vsel %vm3557, %v76, 0
  %v3640 = vsel %vm3557, %v77, 0
  %v3643 = vsel %vm3557, %v78, 0
  %v3646 = vsel %vm3557, %v79, 0
  %v3649 = vsel %vm3557, %v80, 0
  %v3652 = vsel %vm3557, %v81, 0
  %3654 = vmatprep.subr.mxu0 0.0
  %3655 = vmatpush1.msra.mxu0 0.0
  %3656 = vmatprep.subr.mxu0 0.0
  %3657 = vmatpush1.msra.mxu0 0.0
  %3658 = vmatprep.subr.mxu0 0.0
  %3659 = vmatpush1.msra.mxu0 0.0
  %3660 = vmatprep.subr.mxu0 0.0
  %3661 = vmatpush1.msra.mxu0 0.0
  %3662 = vmatprep.subr.mxu0 0.0
  %3663 = vmatpush1.msra.mxu0 0.0
  %3664 = vmatprep.subr.mxu0 0.0
  %3665 = vmatpush1.msra.mxu0 0.0
  %3666 = vmatprep.subr.mxu0 0.0
  %3667 = vmatpush1.msra.mxu0 0.0
  %3668 = vmatprep.subr.mxu0 0.0
  %3669 = vmatpush1.msra.mxu0 0.0
  %3670 = vmatprep.subr.mxu0 0.0
  %3671 = vmatpush1.msra.mxu0 0.0
  %3672 = vmatprep.subr.mxu0 0.0
  %3673 = vmatpush1.msra.mxu0 0.0
  %3674 = vmatprep.subr.mxu0 0.0
  %3675 = vmatpush1.msra.mxu0 0.0
  %3676 = vmatprep.subr.mxu0 0.0
  %3677 = vmatpush1.msra.mxu0 0.0
  %3678 = vmatprep.subr.mxu0 0.0
  %3679 = vmatpush1.msra.mxu0 0.0
  %3680 = vmatprep.subr.mxu0 0.0
  %3681 = vmatpush1.msra.mxu0 0.0
  %3682 = vmatprep.subr.mxu0 0.0
  %3683 = vmatpush1.msra.mxu0 0.0
  %3684 = vmatprep.subr.mxu0 0.0
  %3685 = vmatpush1.msra.mxu0 0.0
  %3686 = vmatprep.subr.mxu0 0.0
  %3687 = vmatpush1.msra.mxu0 0.0
  %3688 = vmatprep.subr.mxu0 0.0
  %3689 = vmatpush1.msra.mxu0 0.0
  %3690 = vmatprep.subr.mxu0 0.0
  %3691 = vmatpush1.msra.mxu0 0.0
  %3692 = vmatprep.subr.mxu0 0.0
  %3693 = vmatpush1.msra.mxu0 0.0
  %3694 = vmatprep.subr.mxu0 0.0
  %3695 = vmatpush1.msra.mxu0 0.0
  %3696 = vmatprep.subr.mxu0 0.0
  %3697 = vmatpush1.msra.mxu0 0.0
  %3698 = vmatprep.subr.mxu0 0.0
  %3699 = vmatpush1.msra.mxu0 0.0
  %3700 = vmatprep.subr.mxu0 0.0
  %3701 = vmatpush1.msra.mxu0 0.0
  %3702 = vmatprep.subr.mxu0 0.0
  %3703 = vmatpush1.msra.mxu0 0.0
  %3704 = vmatprep.subr.mxu0 0.0
  %3705 = vmatpush1.msra.mxu0 0.0
  %3706 = vmatprep.subr.mxu0 0.0
  %3707 = vmatpush1.msra.mxu0 0.0
  %3708 = vmatprep.subr.mxu0 0.0
  %3709 = vmatpush1.msra.mxu0 0.0
  %3710 = vmatprep.subr.mxu0 0.0
  %3711 = vmatpush1.msra.mxu0 0.0
  %3712 = vmatprep.subr.mxu0 0.0
  %3713 = vmatpush1.msra.mxu0 0.0
  %3714 = vmatprep.subr.mxu0 0.0
  %3715 = vmatpush1.msra.mxu0 0.0
  %3716 = vmatprep.subr.mxu0 0.0
  %3717 = vmatpush1.msra.mxu0 0.0
  %3718 = vmatprep.mubr.f32.mxu0 0.0
  %3719 = vmatmul.mubr.f32.gmra.mrb[0].mxu0 %v3559
  %v3720 = vpop.f32.mrb[0].mxu0
  %v3721 = vadd.f32 0.0, %v3720
  %v3722 = vpop.f32.mrb[0].mxu0
  %3723 = vmatprep.mubr.f32.mxu0 0.0
  %3724 = vmatmul.mubr.f32.gmra.mrb[0].mxu0 %v3562
  %v3725 = vpop.f32.mrb[0].mxu0
  %v3726 = vadd.f32 0.0, %v3725
  %v3727 = vpop.f32.mrb[0].mxu0
  %3728 = vmatprep.mubr.f32.mxu0 0.0
  %3729 = vmatmul.mubr.f32.gmra.mrb[0].mxu0 %v3565
  %v3730 = vpop.f32.mrb[0].mxu0
  %v3731 = vadd.f32 0.0, %v3730
  %v3732 = vpop.f32.mrb[0].mxu0
  %3733 = vmatprep.mubr.f32.mxu0 0.0
  %3734 = vmatmul.mubr.f32.gmra.mrb[0].mxu0 %v3568
  %v3735 = vpop.f32.mrb[0].mxu0
  %v3736 = vadd.f32 0.0, %v3735
  %v3737 = vpop.f32.mrb[0].mxu0
  %3738 = vmatprep.mubr.f32.mxu0 0.0
  %3739 = vmatmul.mubr.f32.gmra.mrb[0].mxu0 %v3571
  %v3740 = vpop.f32.mrb[0].mxu0
  %v3741 = vadd.f32 0.0, %v3740
  %v3742 = vpop.f32.mrb[0].mxu0
  %3743 = vmatprep.mubr.f32.mxu0 0.0
  %3744 = vmatmul.mubr.f32.gmra.mrb[0].mxu0 %v3574
  %v3745 = vpop.f32.mrb[0].mxu0
  %v3746 = vadd.f32 0.0, %v3745
  %v3747 = vpop.f32.mrb[0].mxu0
  %3748 = vmatprep.mubr.f32.mxu0 0.0
  %3749 = vmatmul.mubr.f32.gmra.mrb[0].mxu0 %v3577
  %v3750 = vpop.f32.mrb[0].mxu0
  %v3751 = vadd.f32 0.0, %v3750
  %v3752 = vpop.f32.mrb[0].mxu0
  %3753 = vmatprep.mubr.f32.mxu0 0.0
  %3754 = vmatmul.mubr.f32.gmra.mrb[0].mxu0 %v3580
  %v3755 = vpop.f32.mrb[0].mxu0
  %v3756 = vadd.f32 0.0, %v3755
  %v3757 = vpop.f32.mrb[0].mxu0
  %3758 = vmatprep.mubr.f32.mxu0 0.0
  %3759 = vmatmul.mubr.f32.gmra.mrb[0].mxu0 %v3583
  %v3760 = vpop.f32.mrb[0].mxu0
  %v3761 = vadd.f32 0.0, %v3760
  %v3762 = vpop.f32.mrb[0].mxu0
  %3763 = vmatprep.mubr.f32.mxu0 0.0
  %3764 = vmatmul.mubr.f32.gmra.mrb[0].mxu0 %v3586
  %v3765 = vpop.f32.mrb[0].mxu0
  %v3766 = vadd.f32 0.0, %v3765
  %v3767 = vpop.f32.mrb[0].mxu0
  %3768 = vmatprep.mubr.f32.mxu0 0.0
  %3769 = vmatmul.mubr.f32.gmra.mrb[0].mxu0 %v3589
  %v3770 = vpop.f32.mrb[0].mxu0
  %v3771 = vadd.f32 0.0, %v3770
  %v3772 = vpop.f32.mrb[0].mxu0
  %3773 = vmatprep.mubr.f32.mxu0 0.0
  %3774 = vmatmul.mubr.f32.gmra.mrb[0].mxu0 %v3592
  %v3775 = vpop.f32.mrb[0].mxu0
  %v3776 = vadd.f32 0.0, %v3775
  %v3777 = vpop.f32.mrb[0].mxu0
  %3778 = vmatprep.mubr.f32.mxu0 0.0
  %3779 = vmatmul.mubr.f32.gmra.mrb[0].mxu0 %v3595
  %v3780 = vpop.f32.mrb[0].mxu0
  %v3781 = vadd.f32 0.0, %v3780
  %v3782 = vpop.f32.mrb[0].mxu0
  %3783 = vmatprep.mubr.f32.mxu0 0.0
  %3784 = vmatmul.mubr.f32.gmra.mrb[0].mxu0 %v3598
  %v3785 = vpop.f32.mrb[0].mxu0
  %v3786 = vadd.f32 0.0, %v3785
  %v3787 = vpop.f32.mrb[0].mxu0
  %3788 = vmatprep.mubr.f32.mxu0 0.0
  %3789 = vmatmul.mubr.f32.gmra.mrb[0].mxu0 %v3601
  %v3790 = vpop.f32.mrb[0].mxu0
  %v3791 = vadd.f32 0.0, %v3790
  %v3792 = vpop.f32.mrb[0].mxu0
  %3793 = vmatprep.mubr.f32.mxu0 0.0
  %3794 = vmatmul.mubr.f32.gmra.mrb[0].mxu0 %v3604
  %v3795 = vpop.f32.mrb[0].mxu0
  %v3796 = vadd.f32 0.0, %v3795
  %v3797 = vpop.f32.mrb[0].mxu0
  %3798 = vmatprep.mubr.f32.mxu0 0.0
  %3799 = vmatmul.mubr.f32.gmra.mrb[0].mxu0 %v3607
  %v3800 = vpop.f32.mrb[0].mxu0
  %v3801 = vadd.f32 0.0, %v3800
  %v3802 = vpop.f32.mrb[0].mxu0
  %3803 = vmatprep.mubr.f32.mxu0 0.0
  %3804 = vmatmul.mubr.f32.gmra.mrb[0].mxu0 %v3610
  %v3805 = vpop.f32.mrb[0].mxu0
  %v3806 = vadd.f32 0.0, %v3805
  %v3807 = vpop.f32.mrb[0].mxu0
  %3808 = vmatprep.mubr.f32.mxu0 0.0
  %3809 = vmatmul.mubr.f32.gmra.mrb[0].mxu0 %v3613
  %v3810 = vpop.f32.mrb[0].mxu0
  %v3811 = vadd.f32 0.0, %v3810
  %v3812 = vpop.f32.mrb[0].mxu0
  %3813 = vmatprep.mubr.f32.mxu0 0.0
  %3814 = vmatmul.mubr.f32.gmra.mrb[0].mxu0 %v3616
  %v3815 = vpop.f32.mrb[0].mxu0
  %v3816 = vadd.f32 0.0, %v3815
  %v3817 = vpop.f32.mrb[0].mxu0
  %3818 = vmatprep.mubr.f32.mxu0 0.0
  %3819 = vmatmul.mubr.f32.gmra.mrb[0].mxu0 %v3619
  %v3820 = vpop.f32.mrb[0].mxu0
  %v3821 = vadd.f32 0.0, %v3820
  %v3822 = vpop.f32.mrb[0].mxu0
  %3823 = vmatprep.mubr.f32.mxu0 0.0
  %3824 = vmatmul.mubr.f32.gmra.mrb[0].mxu0 %v3622
  %v3825 = vpop.f32.mrb[0].mxu0
  %v3826 = vadd.f32 0.0, %v3825
  %v3827 = vpop.f32.mrb[0].mxu0
  %3828 = vmatprep.mubr.f32.mxu0 0.0
  %3829 = vmatmul.mubr.f32.gmra.mrb[0].mxu0 %v3625
  %v3830 = vpop.f32.mrb[0].mxu0
  %v3831 = vadd.f32 0.0, %v3830
  %v3832 = vpop.f32.mrb[0].mxu0
  %3833 = vmatprep.mubr.f32.mxu0 0.0
  %3834 = vmatmul.mubr.f32.gmra.mrb[0].mxu0 %v3628
  %v3835 = vpop.f32.mrb[0].mxu0
  %v3836 = vadd.f32 0.0, %v3835
  %v3837 = vpop.f32.mrb[0].mxu0
  %3838 = vmatprep.mubr.f32.mxu0 0.0
  %3839 = vmatmul.mubr.f32.gmra.mrb[0].mxu0 %v3631
  %v3840 = vpop.f32.mrb[0].mxu0
  %v3841 = vadd.f32 0.0, %v3840
  %v3842 = vpop.f32.mrb[0].mxu0
  %3843 = vmatprep.mubr.f32.mxu0 0.0
  %3844 = vmatmul.mubr.f32.gmra.mrb[0].mxu0 %v3634
  %v3845 = vpop.f32.mrb[0].mxu0
  %v3846 = vadd.f32 0.0, %v3845
  %v3847 = vpop.f32.mrb[0].mxu0
  %3848 = vmatprep.mubr.f32.mxu0 0.0
  %3849 = vmatmul.mubr.f32.gmra.mrb[0].mxu0 %v3637
  %v3850 = vpop.f32.mrb[0].mxu0
  %v3851 = vadd.f32 0.0, %v3850
  %v3852 = vpop.f32.mrb[0].mxu0
  %3853 = vmatprep.mubr.f32.mxu0 0.0
  %3854 = vmatmul.mubr.f32.gmra.mrb[0].mxu0 %v3640
  %v3855 = vpop.f32.mrb[0].mxu0
  %v3856 = vadd.f32 0.0, %v3855
  %v3857 = vpop.f32.mrb[0].mxu0
  %3858 = vmatprep.mubr.f32.mxu0 0.0
  %3859 = vmatmul.mubr.f32.gmra.mrb[0].mxu0 %v3643
  %v3860 = vpop.f32.mrb[0].mxu0
  %v3861 = vadd.f32 0.0, %v3860
  %v3862 = vpop.f32.mrb[0].mxu0
  %3863 = vmatprep.mubr.f32.mxu0 0.0
  %3864 = vmatmul.mubr.f32.gmra.mrb[0].mxu0 %v3646
  %v3865 = vpop.f32.mrb[0].mxu0
  %v3866 = vadd.f32 0.0, %v3865
  %v3867 = vpop.f32.mrb[0].mxu0
  %3868 = vmatprep.mubr.f32.mxu0 0.0
  %3869 = vmatmul.mubr.f32.gmra.mrb[0].mxu0 %v3649
  %v3870 = vpop.f32.mrb[0].mxu0
  %v3871 = vadd.f32 0.0, %v3870
  %v3872 = vpop.f32.mrb[0].mxu0
  %3873 = vmatprep.mubr.f32.mxu0 0.0
  %3874 = vmatmul.mubr.f32.gmra.mrb[0].mxu0 %v3652
  %v3875 = vpop.f32.mrb[0].mxu0
  %v3876 = vadd.f32 0.0, %v3875
  %v3877 = vpop.f32.mrb[0].mxu0
  %3878 = vdwg.mxu0
  %v3879 = vadd.f32 %v3399, %v3721
  %v3880 = vadd.f32 %v3404, %v3726
  %v3881 = vadd.f32 %v3409, %v3731
  %v3882 = vadd.f32 %v3414, %v3736
  %v3883 = vadd.f32 %v3419, %v3741
  %v3884 = vadd.f32 %v3424, %v3746
  %v3885 = vadd.f32 %v3429, %v3751
  %v3886 = vadd.f32 %v3434, %v3756
  %v3887 = vadd.f32 %v3439, %v3761
  %v3888 = vadd.f32 %v3444, %v3766
  %v3889 = vadd.f32 %v3449, %v3771
  %v3890 = vadd.f32 %v3454, %v3776
  %v3891 = vadd.f32 %v3459, %v3781
  %v3892 = vadd.f32 %v3464, %v3786
  %v3893 = vadd.f32 %v3469, %v3791
  %v3894 = vadd.f32 %v3474, %v3796
  %v3895 = vadd.f32 %v3479, %v3801
  %v3896 = vadd.f32 %v3484, %v3806
  %v3897 = vadd.f32 %v3489, %v3811
  %v3898 = vadd.f32 %v3494, %v3816
  %v3899 = vadd.f32 %v3499, %v3821
  %v3900 = vadd.f32 %v3504, %v3826
  %v3901 = vadd.f32 %v3509, %v3831
  %v3902 = vadd.f32 %v3514, %v3836
  %v3903 = vadd.f32 %v3519, %v3841
  %v3904 = vadd.f32 %v3524, %v3846
  %v3905 = vadd.f32 %v3529, %v3851
  %v3906 = vadd.f32 %v3534, %v3856
  %v3907 = vadd.f32 %v3539, %v3861
  %v3908 = vadd.f32 %v3544, %v3866
  %v3909 = vadd.f32 %v3549, %v3871
  %v3910 = vadd.f32 %v3554, %v3876
  %v3911 = vxor.u32 %v3879, 2147483648
  %v3912 = vxor.u32 %v3880, 2147483648
  %v3913 = vxor.u32 %v3881, 2147483648
  %v3914 = vxor.u32 %v3882, 2147483648
  %v3915 = vxor.u32 %v3883, 2147483648
  %v3916 = vxor.u32 %v3884, 2147483648
  %v3917 = vxor.u32 %v3885, 2147483648
  %v3918 = vxor.u32 %v3886, 2147483648
  %v3919 = vxor.u32 %v3887, 2147483648
  %v3920 = vxor.u32 %v3888, 2147483648
  %v3921 = vxor.u32 %v3889, 2147483648
  %v3922 = vxor.u32 %v3890, 2147483648
  %v3923 = vxor.u32 %v3891, 2147483648
  %v3924 = vxor.u32 %v3892, 2147483648
  %v3925 = vxor.u32 %v3893, 2147483648
  %v3926 = vxor.u32 %v3894, 2147483648
  %v3927 = vxor.u32 %v3895, 2147483648
  %v3928 = vxor.u32 %v3896, 2147483648
  %v3929 = vxor.u32 %v3897, 2147483648
  %v3930 = vxor.u32 %v3898, 2147483648
  %v3931 = vxor.u32 %v3899, 2147483648
  %v3932 = vxor.u32 %v3900, 2147483648
  %v3933 = vxor.u32 %v3901, 2147483648
  %v3934 = vxor.u32 %v3902, 2147483648
  %v3935 = vmul.f32 %v3911, 1.442695
  %v3936 = vpow.pop %v3935
  %v3937 = vmul.f32 %v3912, 1.442695
  %v3938 = vpow.pop %v3937
  %v3939 = vmul.f32 %v3913, 1.442695
  %v3940 = vpow.pop %v3939
  %v3941 = vmul.f32 %v3914, 1.442695
  %v3942 = vpow.pop %v3941
  %v3943 = vmul.f32 %v3915, 1.442695
  %v3944 = vpow.pop %v3943
  %v3945 = vmul.f32 %v3916, 1.442695
  %v3946 = vpow.pop %v3945
  %v3947 = vmul.f32 %v3917, 1.442695
  %v3948 = vpow.pop %v3947
  %v3949 = vmul.f32 %v3918, 1.442695
  %v3950 = vpow.pop %v3949
  %v3951 = vmul.f32 %v3919, 1.442695
  %v3952 = vpow.pop %v3951
  %v3953 = vmul.f32 %v3920, 1.442695
  %v3954 = vpow.pop %v3953
  %v3955 = vmul.f32 %v3921, 1.442695
  %v3956 = vpow.pop %v3955
  %v3957 = vmul.f32 %v3922, 1.442695
  %v3958 = vpow.pop %v3957
  %v3959 = vmul.f32 %v3923, 1.442695
  %v3960 = vpow.pop %v3959
  %v3961 = vmul.f32 %v3924, 1.442695
  %v3962 = vpow.pop %v3961
  %v3963 = vmul.f32 %v3925, 1.442695
  %v3964 = vpow.pop %v3963
  %v3965 = vmul.f32 %v3926, 1.442695
  %v3966 = vpow.pop %v3965
  %v3967 = vmul.f32 %v3927, 1.442695
  %v3968 = vpow.pop %v3967
  %v3969 = vmul.f32 %v3928, 1.442695
  %v3970 = vpow.pop %v3969
  %v3971 = vmul.f32 %v3929, 1.442695
  %v3972 = vpow.pop %v3971
  %v3973 = vmul.f32 %v3930, 1.442695
  %v3974 = vpow.pop %v3973
  %v3975 = vmul.f32 %v3931, 1.442695
  %v3976 = vpow.pop %v3975
  %v3977 = vmul.f32 %v3932, 1.442695
  %v3978 = vpow.pop %v3977
  %v3979 = vmul.f32 %v3933, 1.442695
  %v3980 = vpow.pop %v3979
  %v3981 = vmul.f32 %v3934, 1.442695
  %v3982 = vpow.pop %v3981
  %v3983 = vadd.f32 %v3936, 1.0
  %v3984 = vadd.f32 %v3938, 1.0
  %v3985 = vadd.f32 %v3940, 1.0
  %v3986 = vadd.f32 %v3942, 1.0
  %v3987 = vadd.f32 %v3944, 1.0
  %v3988 = vadd.f32 %v3946, 1.0
  %v3989 = vadd.f32 %v3948, 1.0
  %v3990 = vadd.f32 %v3950, 1.0
  %v3991 = vadd.f32 %v3952, 1.0
  %v3992 = vadd.f32 %v3954, 1.0
  %v3993 = vadd.f32 %v3956, 1.0
  %v3994 = vadd.f32 %v3958, 1.0
  %v3995 = vadd.f32 %v3960, 1.0
  %v3996 = vadd.f32 %v3962, 1.0
  %v3997 = vadd.f32 %v3964, 1.0
  %v3998 = vadd.f32 %v3966, 1.0
  %v3999 = vadd.f32 %v3968, 1.0
  %v4000 = vadd.f32 %v3970, 1.0
  %v4001 = vadd.f32 %v3972, 1.0
  %v4002 = vadd.f32 %v3974, 1.0
  %v4003 = vadd.f32 %v3976, 1.0
  %v4004 = vadd.f32 %v3978, 1.0
  %v4005 = vadd.f32 %v3980, 1.0
  %v4006 = vadd.f32 %v3982, 1.0
  %v4007 = vrcp.pop %v3983
  %v4008 = vmul.f32 1.0, %v4007
  %v4009 = vrcp.pop %v3984
  %v4010 = vmul.f32 1.0, %v4009
  %v4011 = vrcp.pop %v3985
  %v4012 = vmul.f32 1.0, %v4011
  %v4013 = vrcp.pop %v3986
  %v4014 = vmul.f32 1.0, %v4013
  %v4015 = vrcp.pop %v3987
  %v4016 = vmul.f32 1.0, %v4015
  %v4017 = vrcp.pop %v3988
  %v4018 = vmul.f32 1.0, %v4017
  %v4019 = vrcp.pop %v3989
  %v4020 = vmul.f32 1.0, %v4019
  %v4021 = vrcp.pop %v3990
  %v4022 = vmul.f32 1.0, %v4021
  %v4023 = vrcp.pop %v3991
  %v4024 = vmul.f32 1.0, %v4023
  %v4025 = vrcp.pop %v3992
  %v4026 = vmul.f32 1.0, %v4025
  %v4027 = vrcp.pop %v3993
  %v4028 = vmul.f32 1.0, %v4027
  %v4029 = vrcp.pop %v3994
  %v4030 = vmul.f32 1.0, %v4029
  %v4031 = vrcp.pop %v3995
  %v4032 = vmul.f32 1.0, %v4031
  %v4033 = vrcp.pop %v3996
  %v4034 = vmul.f32 1.0, %v4033
  %v4035 = vrcp.pop %v3997
  %v4036 = vmul.f32 1.0, %v4035
  %v4037 = vrcp.pop %v3998
  %v4038 = vmul.f32 1.0, %v4037
  %v4039 = vrcp.pop %v3999
  %v4040 = vmul.f32 1.0, %v4039
  %v4041 = vrcp.pop %v4000
  %v4042 = vmul.f32 1.0, %v4041
  %v4043 = vrcp.pop %v4001
  %v4044 = vmul.f32 1.0, %v4043
  %v4045 = vrcp.pop %v4002
  %v4046 = vmul.f32 1.0, %v4045
  %v4047 = vrcp.pop %v4003
  %v4048 = vmul.f32 1.0, %v4047
  %v4049 = vrcp.pop %v4004
  %v4050 = vmul.f32 1.0, %v4049
  %v4051 = vrcp.pop %v4005
  %v4052 = vmul.f32 1.0, %v4051
  %v4053 = vrcp.pop %v4006
  %v4054 = vmul.f32 1.0, %v4053
  %v4055 = vtanh.pop %v3903
  %v4056 = vtanh.pop %v3904
  %v4057 = vtanh.pop %v3905
  %v4058 = vtanh.pop %v3906
  %v4059 = vtanh.pop %v3907
  %v4060 = vtanh.pop %v3908
  %v4061 = vtanh.pop %v3909
  %v4062 = vtanh.pop %v3910
  %v4063 = vmul.f32 %v4024, 0.0
  %v4064 = vmul.f32 %v4026, 0.0
  %v4065 = vmul.f32 %v4028, 0.0
  %v4066 = vmul.f32 %v4030, 0.0
  %v4067 = vmul.f32 %v4032, 0.0
  %v4068 = vmul.f32 %v4034, 0.0
  %v4069 = vmul.f32 %v4036, 0.0
  %v4070 = vmul.f32 %v4038, 0.0
  %v4071 = vmul.f32 %v4008, %v4055
  %v4072 = vmul.f32 %v4010, %v4056
  %v4073 = vmul.f32 %v4012, %v4057
  %v4074 = vmul.f32 %v4014, %v4058
  %v4075 = vmul.f32 %v4016, %v4059
  %v4076 = vmul.f32 %v4018, %v4060
  %v4077 = vmul.f32 %v4020, %v4061
  %v4078 = vmul.f32 %v4022, %v4062
  %v4079 = vadd.f32 %v4063, %v4071
  %v4080 = vadd.f32 %v4064, %v4072
  %v4081 = vadd.f32 %v4065, %v4073
  %v4082 = vadd.f32 %v4066, %v4074
  %v4083 = vadd.f32 %v4067, %v4075
  %v4084 = vadd.f32 %v4068, %v4076
  %v4085 = vadd.f32 %v4069, %v4077
  %v4086 = vadd.f32 %v4070, %v4078
  %v4087 = vtanh.pop %v4079
  %v4088 = vtanh.pop %v4080
  %v4089 = vtanh.pop %v4081
  %v4090 = vtanh.pop %v4082
  %v4091 = vtanh.pop %v4083
  %v4092 = vtanh.pop %v4084
  %v4093 = vtanh.pop %v4085
  %v4094 = vtanh.pop %v4086
  %v4095 = vmul.f32 %v4040, %v4087
  %v4096 = vmul.f32 %v4042, %v4088
  %v4097 = vmul.f32 %v4044, %v4089
  %v4098 = vmul.f32 %v4046, %v4090
  %v4099 = vmul.f32 %v4048, %v4091
  %v4100 = vmul.f32 %v4050, %v4092
  %v4101 = vmul.f32 %v4052, %v4093
  %v4102 = vmul.f32 %v4054, %v4094
  %4103 = vst [vmem:[#allocation2] sm:$0xff] %v4095
  %4104 = vst [vmem:[#allocation2 + $0x40] sm:$0xff] %v4096
  %4105 = vst [vmem:[#allocation2 + $0x80] sm:$0xff] %v4097
  %4106 = vst [vmem:[#allocation2 + $0xc0] sm:$0xff] %v4098
  %4107 = vst [vmem:[#allocation2 + $0x100] sm:$0xff] %v4099
  %4108 = vst [vmem:[#allocation2 + $0x140] sm:$0xff] %v4100
  %4109 = vst [vmem:[#allocation2 + $0x180] sm:$0xff] %v4101
  %4110 = vst [vmem:[#allocation2 + $0x1c0] sm:$0xff] %v4102
  %4111 = vmatprep.subr.mxu0 0.0
  %4112 = vmatpush1.msra.mxu0 %v4095
  %4113 = vmatprep.subr.mxu0 0.0
  %4114 = vmatpush1.msra.mxu0 %v4096
  %4115 = vmatprep.subr.mxu0 0.0
  %4116 = vmatpush1.msra.mxu0 %v4097
  %4117 = vmatprep.subr.mxu0 0.0
  %4118 = vmatpush1.msra.mxu0 %v4098
  %4119 = vmatprep.subr.mxu0 0.0
  %4120 = vmatpush1.msra.mxu0 %v4099
  %4121 = vmatprep.subr.mxu0 0.0
  %4122 = vmatpush1.msra.mxu0 %v4100
  %4123 = vmatprep.subr.mxu0 0.0
  %4124 = vmatpush1.msra.mxu0 %v4101
  %4125 = vmatprep.subr.mxu0 0.0
  %4126 = vmatpush1.msra.mxu0 %v4102
  %4127 = vmatprep.subr.mxu0 0.0
  %4128 = vmatpush1.msra.mxu0 0.0
  %4129 = vmatprep.subr.mxu0 0.0
  %4130 = vmatpush1.msra.mxu0 0.0
  %4131 = vmatprep.subr.mxu0 0.0
  %4132 = vmatpush1.msra.mxu0 0.0
  %4133 = vmatprep.subr.mxu0 0.0
  %4134 = vmatpush1.msra.mxu0 0.0
  %4135 = vmatprep.subr.mxu0 0.0
  %4136 = vmatpush1.msra.mxu0 0.0
  %4137 = vmatprep.subr.mxu0 0.0
  %4138 = vmatpush1.msra.mxu0 0.0
  %4139 = vmatprep.subr.mxu0 0.0
  %4140 = vmatpush1.msra.mxu0 0.0
  %4141 = vmatprep.subr.mxu0 0.0
  %4142 = vmatpush1.msra.mxu0 0.0
  %4143 = vmatprep.subr.mxu0 0.0
  %4144 = vmatpush1.msra.mxu0 0.0
  %4145 = vmatprep.subr.mxu0 0.0
  %4146 = vmatpush1.msra.mxu0 0.0
  %4147 = vmatprep.subr.mxu0 0.0
  %4148 = vmatpush1.msra.mxu0 0.0
  %4149 = vmatprep.subr.mxu0 0.0
  %4150 = vmatpush1.msra.mxu0 0.0
  %4151 = vmatprep.subr.mxu0 0.0
  %4152 = vmatpush1.msra.mxu0 0.0
  %4153 = vmatprep.subr.mxu0 0.0
  %4154 = vmatpush1.msra.mxu0 0.0
  %4155 = vmatprep.subr.mxu0 0.0
  %4156 = vmatpush1.msra.mxu0 0.0
  %4157 = vmatprep.subr.mxu0 0.0
  %4158 = vmatpush1.msra.mxu0 0.0
  %4159 = vmatprep.subr.mxu0 0.0
  %4160 = vmatpush1.msra.mxu0 0.0
  %4161 = vmatprep.subr.mxu0 0.0
  %4162 = vmatpush1.msra.mxu0 0.0
  %4163 = vmatprep.subr.mxu0 0.0
  %4164 = vmatpush1.msra.mxu0 0.0
  %4165 = vmatprep.subr.mxu0 0.0
  %4166 = vmatpush1.msra.mxu0 0.0
  %4167 = vmatprep.subr.mxu0 0.0
  %4168 = vmatpush1.msra.mxu0 0.0
  %4169 = vmatprep.subr.mxu0 0.0
  %4170 = vmatpush1.msra.mxu0 0.0
  %4171 = vmatprep.subr.mxu0 0.0
  %4172 = vmatpush1.msra.mxu0 0.0
  %4173 = vmatprep.subr.mxu0 0.0
  %4174 = vmatpush1.msra.mxu0 0.0
  %4175 = vmatprep.mubr.f32.mxu0 0.0
  %4176 = vmatmul.mubr.f32.gmra.mrb[0].mxu0 %v3559
  %v4177 = vpop.f32.mrb[0].mxu0
  %v4178 = vadd.f32 0.0, %v4177
  %v4179 = vpop.f32.mrb[0].mxu0
  %4180 = vmatprep.mubr.f32.mxu0 0.0
  %4181 = vmatmul.mubr.f32.gmra.mrb[0].mxu0 %v3562
  %v4182 = vpop.f32.mrb[0].mxu0
  %v4183 = vadd.f32 0.0, %v4182
  %v4184 = vpop.f32.mrb[0].mxu0
  %4185 = vmatprep.mubr.f32.mxu0 0.0
  %4186 = vmatmul.mubr.f32.gmra.mrb[0].mxu0 %v3565
  %v4187 = vpop.f32.mrb[0].mxu0
  %v4188 = vadd.f32 0.0, %v4187
  %v4189 = vpop.f32.mrb[0].mxu0
  %4190 = vmatprep.mubr.f32.mxu0 0.0
  %4191 = vmatmul.mubr.f32.gmra.mrb[0].mxu0 %v3568
  %v4192 = vpop.f32.mrb[0].mxu0
  %v4193 = vadd.f32 0.0, %v4192
  %v4194 = vpop.f32.mrb[0].mxu0
  %4195 = vmatprep.mubr.f32.mxu0 0.0
  %4196 = vmatmul.mubr.f32.gmra.mrb[0].mxu0 %v3571
  %v4197 = vpop.f32.mrb[0].mxu0
  %v4198 = vadd.f32 0.0, %v4197
  %v4199 = vpop.f32.mrb[0].mxu0
  %4200 = vmatprep.mubr.f32.mxu0 0.0
  %4201 = vmatmul.mubr.f32.gmra.mrb[0].mxu0 %v3574
  %v4202 = vpop.f32.mrb[0].mxu0
  %v4203 = vadd.f32 0.0, %v4202
  %v4204 = vpop.f32.mrb[0].mxu0
  %4205 = vmatprep.mubr.f32.mxu0 0.0
  %4206 = vmatmul.mubr.f32.gmra.mrb[0].mxu0 %v3577
  %v4207 = vpop.f32.mrb[0].mxu0
  %v4208 = vadd.f32 0.0, %v4207
  %v4209 = vpop.f32.mrb[0].mxu0
  %4210 = vmatprep.mubr.f32.mxu0 0.0
  %4211 = vmatmul.mubr.f32.gmra.mrb[0].mxu0 %v3580
  %v4212 = vpop.f32.mrb[0].mxu0
  %v4213 = vadd.f32 0.0, %v4212
  %v4214 = vpop.f32.mrb[0].mxu0
  %4215 = vmatprep.mubr.f32.mxu0 0.0
  %4216 = vmatmul.mubr.f32.gmra.mrb[0].mxu0 %v3583
  %v4217 = vpop.f32.mrb[0].mxu0
  %v4218 = vadd.f32 0.0, %v4217
  %v4219 = vpop.f32.mrb[0].mxu0
  %4220 = vmatprep.mubr.f32.mxu0 0.0
  %4221 = vmatmul.mubr.f32.gmra.mrb[0].mxu0 %v3586
  %v4222 = vpop.f32.mrb[0].mxu0
  %v4223 = vadd.f32 0.0, %v4222
  %v4224 = vpop.f32.mrb[0].mxu0
  %4225 = vmatprep.mubr.f32.mxu0 0.0
  %4226 = vmatmul.mubr.f32.gmra.mrb[0].mxu0 %v3589
  %v4227 = vpop.f32.mrb[0].mxu0
  %v4228 = vadd.f32 0.0, %v4227
  %v4229 = vpop.f32.mrb[0].mxu0
  %4230 = vmatprep.mubr.f32.mxu0 0.0
  %4231 = vmatmul.mubr.f32.gmra.mrb[0].mxu0 %v3592
  %v4232 = vpop.f32.mrb[0].mxu0
  %v4233 = vadd.f32 0.0, %v4232
  %v4234 = vpop.f32.mrb[0].mxu0
  %4235 = vmatprep.mubr.f32.mxu0 0.0
  %4236 = vmatmul.mubr.f32.gmra.mrb[0].mxu0 %v3595
  %v4237 = vpop.f32.mrb[0].mxu0
  %v4238 = vadd.f32 0.0, %v4237
  %v4239 = vpop.f32.mrb[0].mxu0
  %4240 = vmatprep.mubr.f32.mxu0 0.0
  %4241 = vmatmul.mubr.f32.gmra.mrb[0].mxu0 %v3598
  %v4242 = vpop.f32.mrb[0].mxu0
  %v4243 = vadd.f32 0.0, %v4242
  %v4244 = vpop.f32.mrb[0].mxu0
  %4245 = vmatprep.mubr.f32.mxu0 0.0
  %4246 = vmatmul.mubr.f32.gmra.mrb[0].mxu0 %v3601
  %v4247 = vpop.f32.mrb[0].mxu0
  %v4248 = vadd.f32 0.0, %v4247
  %v4249 = vpop.f32.mrb[0].mxu0
  %4250 = vmatprep.mubr.f32.mxu0 0.0
  %4251 = vmatmul.mubr.f32.gmra.mrb[0].mxu0 %v3604
  %v4252 = vpop.f32.mrb[0].mxu0
  %v4253 = vadd.f32 0.0, %v4252
  %v4254 = vpop.f32.mrb[0].mxu0
  %4255 = vmatprep.mubr.f32.mxu0 0.0
  %4256 = vmatmul.mubr.f32.gmra.mrb[0].mxu0 %v3607
  %v4257 = vpop.f32.mrb[0].mxu0
  %v4258 = vadd.f32 0.0, %v4257
  %v4259 = vpop.f32.mrb[0].mxu0
  %4260 = vmatprep.mubr.f32.mxu0 0.0
  %4261 = vmatmul.mubr.f32.gmra.mrb[0].mxu0 %v3610
  %v4262 = vpop.f32.mrb[0].mxu0
  %v4263 = vadd.f32 0.0, %v4262
  %v4264 = vpop.f32.mrb[0].mxu0
  %4265 = vmatprep.mubr.f32.mxu0 0.0
  %4266 = vmatmul.mubr.f32.gmra.mrb[0].mxu0 %v3613
  %v4267 = vpop.f32.mrb[0].mxu0
  %v4268 = vadd.f32 0.0, %v4267
  %v4269 = vpop.f32.mrb[0].mxu0
  %4270 = vmatprep.mubr.f32.mxu0 0.0
  %4271 = vmatmul.mubr.f32.gmra.mrb[0].mxu0 %v3616
  %v4272 = vpop.f32.mrb[0].mxu0
  %v4273 = vadd.f32 0.0, %v4272
  %v4274 = vpop.f32.mrb[0].mxu0
  %4275 = vmatprep.mubr.f32.mxu0 0.0
  %4276 = vmatmul.mubr.f32.gmra.mrb[0].mxu0 %v3619
  %v4277 = vpop.f32.mrb[0].mxu0
  %v4278 = vadd.f32 0.0, %v4277
  %v4279 = vpop.f32.mrb[0].mxu0
  %4280 = vmatprep.mubr.f32.mxu0 0.0
  %4281 = vmatmul.mubr.f32.gmra.mrb[0].mxu0 %v3622
  %v4282 = vpop.f32.mrb[0].mxu0
  %v4283 = vadd.f32 0.0, %v4282
  %v4284 = vpop.f32.mrb[0].mxu0
  %4285 = vmatprep.mubr.f32.mxu0 0.0
  %4286 = vmatmul.mubr.f32.gmra.mrb[0].mxu0 %v3625
  %v4287 = vpop.f32.mrb[0].mxu0
  %v4288 = vadd.f32 0.0, %v4287
  %v4289 = vpop.f32.mrb[0].mxu0
  %4290 = vmatprep.mubr.f32.mxu0 0.0
  %4291 = vmatmul.mubr.f32.gmra.mrb[0].mxu0 %v3628
  %v4292 = vpop.f32.mrb[0].mxu0
  %v4293 = vadd.f32 0.0, %v4292
  %v4294 = vpop.f32.mrb[0].mxu0
  %4295 = vmatprep.mubr.f32.mxu0 0.0
  %4296 = vmatmul.mubr.f32.gmra.mrb[0].mxu0 %v3631
  %v4297 = vpop.f32.mrb[0].mxu0
  %v4298 = vadd.f32 0.0, %v4297
  %v4299 = vpop.f32.mrb[0].mxu0
  %4300 = vmatprep.mubr.f32.mxu0 0.0
  %4301 = vmatmul.mubr.f32.gmra.mrb[0].mxu0 %v3634
  %v4302 = vpop.f32.mrb[0].mxu0
  %v4303 = vadd.f32 0.0, %v4302
  %v4304 = vpop.f32.mrb[0].mxu0
  %4305 = vmatprep.mubr.f32.mxu0 0.0
  %4306 = vmatmul.mubr.f32.gmra.mrb[0].mxu0 %v3637
  %v4307 = vpop.f32.mrb[0].mxu0
  %v4308 = vadd.f32 0.0, %v4307
  %v4309 = vpop.f32.mrb[0].mxu0
  %4310 = vmatprep.mubr.f32.mxu0 0.0
  %4311 = vmatmul.mubr.f32.gmra.mrb[0].mxu0 %v3640
  %v4312 = vpop.f32.mrb[0].mxu0
  %v4313 = vadd.f32 0.0, %v4312
  %v4314 = vpop.f32.mrb[0].mxu0
  %4315 = vmatprep.mubr.f32.mxu0 0.0
  %4316 = vmatmul.mubr.f32.gmra.mrb[0].mxu0 %v3643
  %v4317 = vpop.f32.mrb[0].mxu0
  %v4318 = vadd.f32 0.0, %v4317
  %v4319 = vpop.f32.mrb[0].mxu0
  %4320 = vmatprep.mubr.f32.mxu0 0.0
  %4321 = vmatmul.mubr.f32.gmra.mrb[0].mxu0 %v3646
  %v4322 = vpop.f32.mrb[0].mxu0
  %v4323 = vadd.f32 0.0, %v4322
  %v4324 = vpop.f32.mrb[0].mxu0
  %4325 = vmatprep.mubr.f32.mxu0 0.0
  %4326 = vmatmul.mubr.f32.gmra.mrb[0].mxu0 %v3649
  %v4327 = vpop.f32.mrb[0].mxu0
  %v4328 = vadd.f32 0.0, %v4327
  %v4329 = vpop.f32.mrb[0].mxu0
  %4330 = vmatprep.mubr.f32.mxu0 0.0
  %4331 = vmatmul.mubr.f32.gmra.mrb[0].mxu0 %v3652
  %v4332 = vpop.f32.mrb[0].mxu0
  %v4333 = vadd.f32 0.0, %v4332
  %v4334 = vpop.f32.mrb[0].mxu0
  %4335 = vdwg.mxu0
  %v4336 = vadd.f32 %v3399, %v4178
  %v4337 = vadd.f32 %v3404, %v4183
  %v4338 = vadd.f32 %v3409, %v4188
  %v4339 = vadd.f32 %v3414, %v4193
  %v4340 = vadd.f32 %v3419, %v4198
  %v4341 = vadd.f32 %v3424, %v4203
  %v4342 = vadd.f32 %v3429, %v4208
  %v4343 = vadd.f32 %v3434, %v4213
  %v4344 = vadd.f32 %v3439, %v4218
  %v4345 = vadd.f32 %v3444, %v4223
  %v4346 = vadd.f32 %v3449, %v4228
  %v4347 = vadd.f32 %v3454, %v4233
  %v4348 = vadd.f32 %v3459, %v4238
  %v4349 = vadd.f32 %v3464, %v4243
  %v4350 = vadd.f32 %v3469, %v4248
  %v4351 = vadd.f32 %v3474, %v4253
  %v4352 = vadd.f32 %v3479, %v4258
  %v4353 = vadd.f32 %v3484, %v4263
  %v4354 = vadd.f32 %v3489, %v4268
  %v4355 = vadd.f32 %v3494, %v4273
  %v4356 = vadd.f32 %v3499, %v4278
  %v4357 = vadd.f32 %v3504, %v4283
  %v4358 = vadd.f32 %v3509, %v4288
  %v4359 = vadd.f32 %v3514, %v4293
  %v4360 = vadd.f32 %v3519, %v4298
  %v4361 = vadd.f32 %v3524, %v4303
  %v4362 = vadd.f32 %v3529, %v4308
  %v4363 = vadd.f32 %v3534, %v4313
  %v4364 = vadd.f32 %v3539, %v4318
  %v4365 = vadd.f32 %v3544, %v4323
  %v4366 = vadd.f32 %v3549, %v4328
  %v4367 = vadd.f32 %v3554, %v4333
  %v4368 = vxor.u32 %v4336, 2147483648
  %v4369 = vxor.u32 %v4337, 2147483648
  %v4370 = vxor.u32 %v4338, 2147483648
  %v4371 = vxor.u32 %v4339, 2147483648
  %v4372 = vxor.u32 %v4340, 2147483648
  %v4373 = vxor.u32 %v4341, 2147483648
  %v4374 = vxor.u32 %v4342, 2147483648
  %v4375 = vxor.u32 %v4343, 2147483648
  %v4376 = vxor.u32 %v4344, 2147483648
  %v4377 = vxor.u32 %v4345, 2147483648
  %v4378 = vxor.u32 %v4346, 2147483648
  %v4379 = vxor.u32 %v4347, 2147483648
  %v4380 = vxor.u32 %v4348, 2147483648
  %v4381 = vxor.u32 %v4349, 2147483648
  %v4382 = vxor.u32 %v4350, 2147483648
  %v4383 = vxor.u32 %v4351, 2147483648
  %v4384 = vxor.u32 %v4352, 2147483648
  %v4385 = vxor.u32 %v4353, 2147483648
  %v4386 = vxor.u32 %v4354, 2147483648
  %v4387 = vxor.u32 %v4355, 2147483648
  %v4388 = vxor.u32 %v4356, 2147483648
  %v4389 = vxor.u32 %v4357, 2147483648
  %v4390 = vxor.u32 %v4358, 2147483648
  %v4391 = vxor.u32 %v4359, 2147483648
  %v4392 = vmul.f32 %v4368, 1.442695
  %v4393 = vpow.pop %v4392
  %v4394 = vmul.f32 %v4369, 1.442695
  %v4395 = vpow.pop %v4394
  %v4396 = vmul.f32 %v4370, 1.442695
  %v4397 = vpow.pop %v4396
  %v4398 = vmul.f32 %v4371, 1.442695
  %v4399 = vpow.pop %v4398
  %v4400 = vmul.f32 %v4372, 1.442695
  %v4401 = vpow.pop %v4400
  %v4402 = vmul.f32 %v4373, 1.442695
  %v4403 = vpow.pop %v4402
  %v4404 = vmul.f32 %v4374, 1.442695
  %v4405 = vpow.pop %v4404
  %v4406 = vmul.f32 %v4375, 1.442695
  %v4407 = vpow.pop %v4406
  %v4408 = vmul.f32 %v4376, 1.442695
  %v4409 = vpow.pop %v4408
  %v4410 = vmul.f32 %v4377, 1.442695
  %v4411 = vpow.pop %v4410
  %v4412 = vmul.f32 %v4378, 1.442695
  %v4413 = vpow.pop %v4412
  %v4414 = vmul.f32 %v4379, 1.442695
  %v4415 = vpow.pop %v4414
  %v4416 = vmul.f32 %v4380, 1.442695
  %v4417 = vpow.pop %v4416
  %v4418 = vmul.f32 %v4381, 1.442695
  %v4419 = vpow.pop %v4418
  %v4420 = vmul.f32 %v4382, 1.442695
  %v4421 = vpow.pop %v4420
  %v4422 = vmul.f32 %v4383, 1.442695
  %v4423 = vpow.pop %v4422
  %v4424 = vmul.f32 %v4384, 1.442695
  %v4425 = vpow.pop %v4424
  %v4426 = vmul.f32 %v4385, 1.442695
  %v4427 = vpow.pop %v4426
  %v4428 = vmul.f32 %v4386, 1.442695
  %v4429 = vpow.pop %v4428
  %v4430 = vmul.f32 %v4387, 1.442695
  %v4431 = vpow.pop %v4430
  %v4432 = vmul.f32 %v4388, 1.442695
  %v4433 = vpow.pop %v4432
  %v4434 = vmul.f32 %v4389, 1.442695
  %v4435 = vpow.pop %v4434
  %v4436 = vmul.f32 %v4390, 1.442695
  %v4437 = vpow.pop %v4436
  %v4438 = vmul.f32 %v4391, 1.442695
  %v4439 = vpow.pop %v4438
  %v4440 = vadd.f32 %v4393, 1.0
  %v4441 = vadd.f32 %v4395, 1.0
  %v4442 = vadd.f32 %v4397, 1.0
  %v4443 = vadd.f32 %v4399, 1.0
  %v4444 = vadd.f32 %v4401, 1.0
  %v4445 = vadd.f32 %v4403, 1.0
  %v4446 = vadd.f32 %v4405, 1.0
  %v4447 = vadd.f32 %v4407, 1.0
  %v4448 = vadd.f32 %v4409, 1.0
  %v4449 = vadd.f32 %v4411, 1.0
  %v4450 = vadd.f32 %v4413, 1.0
  %v4451 = vadd.f32 %v4415, 1.0
  %v4452 = vadd.f32 %v4417, 1.0
  %v4453 = vadd.f32 %v4419, 1.0
  %v4454 = vadd.f32 %v4421, 1.0
  %v4455 = vadd.f32 %v4423, 1.0
  %v4456 = vadd.f32 %v4425, 1.0
  %v4457 = vadd.f32 %v4427, 1.0
  %v4458 = vadd.f32 %v4429, 1.0
  %v4459 = vadd.f32 %v4431, 1.0
  %v4460 = vadd.f32 %v4433, 1.0
  %v4461 = vadd.f32 %v4435, 1.0
  %v4462 = vadd.f32 %v4437, 1.0
  %v4463 = vadd.f32 %v4439, 1.0
  %v4464 = vrcp.pop %v4440
  %v4465 = vmul.f32 1.0, %v4464
  %v4466 = vrcp.pop %v4441
  %v4467 = vmul.f32 1.0, %v4466
  %v4468 = vrcp.pop %v4442
  %v4469 = vmul.f32 1.0, %v4468
  %v4470 = vrcp.pop %v4443
  %v4471 = vmul.f32 1.0, %v4470
  %v4472 = vrcp.pop %v4444
  %v4473 = vmul.f32 1.0, %v4472
  %v4474 = vrcp.pop %v4445
  %v4475 = vmul.f32 1.0, %v4474
  %v4476 = vrcp.pop %v4446
  %v4477 = vmul.f32 1.0, %v4476
  %v4478 = vrcp.pop %v4447
  %v4479 = vmul.f32 1.0, %v4478
  %v4480 = vrcp.pop %v4448
  %v4481 = vmul.f32 1.0, %v4480
  %v4482 = vrcp.pop %v4449
  %v4483 = vmul.f32 1.0, %v4482
  %v4484 = vrcp.pop %v4450
  %v4485 = vmul.f32 1.0, %v4484
  %v4486 = vrcp.pop %v4451
  %v4487 = vmul.f32 1.0, %v4486
  %v4488 = vrcp.pop %v4452
  %v4489 = vmul.f32 1.0, %v4488
  %v4490 = vrcp.pop %v4453
  %v4491 = vmul.f32 1.0, %v4490
  %v4492 = vrcp.pop %v4454
  %v4493 = vmul.f32 1.0, %v4492
  %v4494 = vrcp.pop %v4455
  %v4495 = vmul.f32 1.0, %v4494
  %v4496 = vrcp.pop %v4456
  %v4497 = vmul.f32 1.0, %v4496
  %v4498 = vrcp.pop %v4457
  %v4499 = vmul.f32 1.0, %v4498
  %v4500 = vrcp.pop %v4458
  %v4501 = vmul.f32 1.0, %v4500
  %v4502 = vrcp.pop %v4459
  %v4503 = vmul.f32 1.0, %v4502
  %v4504 = vrcp.pop %v4460
  %v4505 = vmul.f32 1.0, %v4504
  %v4506 = vrcp.pop %v4461
  %v4507 = vmul.f32 1.0, %v4506
  %v4508 = vrcp.pop %v4462
  %v4509 = vmul.f32 1.0, %v4508
  %v4510 = vrcp.pop %v4463
  %v4511 = vmul.f32 1.0, %v4510
  %v4512 = vtanh.pop %v4360
  %v4513 = vtanh.pop %v4361
  %v4514 = vtanh.pop %v4362
  %v4515 = vtanh.pop %v4363
  %v4516 = vtanh.pop %v4364
  %v4517 = vtanh.pop %v4365
  %v4518 = vtanh.pop %v4366
  %v4519 = vtanh.pop %v4367
  %v4520 = vmul.f32 %v4481, %v4079
  %v4521 = vmul.f32 %v4483, %v4080
  %v4522 = vmul.f32 %v4485, %v4081
  %v4523 = vmul.f32 %v4487, %v4082
  %v4524 = vmul.f32 %v4489, %v4083
  %v4525 = vmul.f32 %v4491, %v4084
  %v4526 = vmul.f32 %v4493, %v4085
  %v4527 = vmul.f32 %v4495, %v4086
  %v4528 = vmul.f32 %v4465, %v4512
  %v4529 = vmul.f32 %v4467, %v4513
  %v4530 = vmul.f32 %v4469, %v4514
  %v4531 = vmul.f32 %v4471, %v4515
  %v4532 = vmul.f32 %v4473, %v4516
  %v4533 = vmul.f32 %v4475, %v4517
  %v4534 = vmul.f32 %v4477, %v4518
  %v4535 = vmul.f32 %v4479, %v4519
  %v4536 = vadd.f32 %v4520, %v4528
  %v4537 = vadd.f32 %v4521, %v4529
  %v4538 = vadd.f32 %v4522, %v4530
  %v4539 = vadd.f32 %v4523, %v4531
  %v4540 = vadd.f32 %v4524, %v4532
  %v4541 = vadd.f32 %v4525, %v4533
  %v4542 = vadd.f32 %v4526, %v4534
  %v4543 = vadd.f32 %v4527, %v4535
  %v4544 = vtanh.pop %v4536
  %v4545 = vtanh.pop %v4537
  %v4546 = vtanh.pop %v4538
  %v4547 = vtanh.pop %v4539
  %v4548 = vtanh.pop %v4540
  %v4549 = vtanh.pop %v4541
  %v4550 = vtanh.pop %v4542
  %v4551 = vtanh.pop %v4543
  %v4552 = vmul.f32 %v4497, %v4544
  %v4553 = vmul.f32 %v4499, %v4545
  %v4554 = vmul.f32 %v4501, %v4546
  %v4555 = vmul.f32 %v4503, %v4547
  %v4556 = vmul.f32 %v4505, %v4548
  %v4557 = vmul.f32 %v4507, %v4549
  %v4558 = vmul.f32 %v4509, %v4550
  %v4559 = vmul.f32 %v4511, %v4551
  %4560 = vst [vmem:[#allocation2 + $0x8] sm:$0xff] %v4552
  %4561 = vst [vmem:[#allocation2 + $0x48] sm:$0xff] %v4553
  %4562 = vst [vmem:[#allocation2 + $0x88] sm:$0xff] %v4554
  %4563 = vst [vmem:[#allocation2 + $0xc8] sm:$0xff] %v4555
  %4564 = vst [vmem:[#allocation2 + $0x108] sm:$0xff] %v4556
  %4565 = vst [vmem:[#allocation2 + $0x148] sm:$0xff] %v4557
  %4566 = vst [vmem:[#allocation2 + $0x188] sm:$0xff] %v4558
  %4567 = vst [vmem:[#allocation2 + $0x1c8] sm:$0xff] %v4559
  %4568 = vmatprep.subr.mxu0 0.0
  %4569 = vmatpush1.msra.mxu0 %v4552
  %4570 = vmatprep.subr.mxu0 0.0
  %4571 = vmatpush1.msra.mxu0 %v4553
  %4572 = vmatprep.subr.mxu0 0.0
  %4573 = vmatpush1.msra.mxu0 %v4554
  %4574 = vmatprep.subr.mxu0 0.0
  %4575 = vmatpush1.msra.mxu0 %v4555
  %4576 = vmatprep.subr.mxu0 0.0
  %4577 = vmatpush1.msra.mxu0 %v4556
  %4578 = vmatprep.subr.mxu0 0.0
  %4579 = vmatpush1.msra.mxu0 %v4557
  %4580 = vmatprep.subr.mxu0 0.0
  %4581 = vmatpush1.msra.mxu0 %v4558
  %4582 = vmatprep.subr.mxu0 0.0
  %4583 = vmatpush1.msra.mxu0 %v4559
  %4584 = vmatprep.subr.mxu0 0.0
  %4585 = vmatpush1.msra.mxu0 0.0
  %4586 = vmatprep.subr.mxu0 0.0
  %4587 = vmatpush1.msra.mxu0 0.0
  %4588 = vmatprep.subr.mxu0 0.0
  %4589 = vmatpush1.msra.mxu0 0.0
  %4590 = vmatprep.subr.mxu0 0.0
  %4591 = vmatpush1.msra.mxu0 0.0
  %4592 = vmatprep.subr.mxu0 0.0
  %4593 = vmatpush1.msra.mxu0 0.0
  %4594 = vmatprep.subr.mxu0 0.0
  %4595 = vmatpush1.msra.mxu0 0.0
  %4596 = vmatprep.subr.mxu0 0.0
  %4597 = vmatpush1.msra.mxu0 0.0
  %4598 = vmatprep.subr.mxu0 0.0
  %4599 = vmatpush1.msra.mxu0 0.0
  %4600 = vmatprep.subr.mxu0 0.0
  %4601 = vmatpush1.msra.mxu0 0.0
  %4602 = vmatprep.subr.mxu0 0.0
  %4603 = vmatpush1.msra.mxu0 0.0
  %4604 = vmatprep.subr.mxu0 0.0
  %4605 = vmatpush1.msra.mxu0 0.0
  %4606 = vmatprep.subr.mxu0 0.0
  %4607 = vmatpush1.msra.mxu0 0.0
  %4608 = vmatprep.subr.mxu0 0.0
  %4609 = vmatpush1.msra.mxu0 0.0
  %4610 = vmatprep.subr.mxu0 0.0
  %4611 = vmatpush1.msra.mxu0 0.0
  %4612 = vmatprep.subr.mxu0 0.0
  %4613 = vmatpush1.msra.mxu0 0.0
  %4614 = vmatprep.subr.mxu0 0.0
  %4615 = vmatpush1.msra.mxu0 0.0
  %4616 = vmatprep.subr.mxu0 0.0
  %4617 = vmatpush1.msra.mxu0 0.0
  %4618 = vmatprep.subr.mxu0 0.0
  %4619 = vmatpush1.msra.mxu0 0.0
  %4620 = vmatprep.subr.mxu0 0.0
  %4621 = vmatpush1.msra.mxu0 0.0
  %4622 = vmatprep.subr.mxu0 0.0
  %4623 = vmatpush1.msra.mxu0 0.0
  %4624 = vmatprep.subr.mxu0 0.0
  %4625 = vmatpush1.msra.mxu0 0.0
  %4626 = vmatprep.subr.mxu0 0.0
  %4627 = vmatpush1.msra.mxu0 0.0
  %4628 = vmatprep.subr.mxu0 0.0
  %4629 = vmatpush1.msra.mxu0 0.0
  %4630 = vmatprep.subr.mxu0 0.0
  %4631 = vmatpush1.msra.mxu0 0.0
  %4632 = vmatprep.mubr.f32.mxu0 0.0
  %4633 = vmatmul.mubr.f32.gmra.mrb[0].mxu0 %v3559
  %v4634 = vpop.f32.mrb[0].mxu0
  %v4635 = vadd.f32 0.0, %v4634
  %v4636 = vpop.f32.mrb[0].mxu0
  %4637 = vmatprep.mubr.f32.mxu0 0.0
  %4638 = vmatmul.mubr.f32.gmra.mrb[0].mxu0 %v3562
  %v4639 = vpop.f32.mrb[0].mxu0
  %v4640 = vadd.f32 0.0, %v4639
  %v4641 = vpop.f32.mrb[0].mxu0
  %4642 = vmatprep.mubr.f32.mxu0 0.0
  %4643 = vmatmul.mubr.f32.gmra.mrb[0].mxu0 %v3565
  %v4644 = vpop.f32.mrb[0].mxu0
  %v4645 = vadd.f32 0.0, %v4644
  %v4646 = vpop.f32.mrb[0].mxu0
  %4647 = vmatprep.mubr.f32.mxu0 0.0
  %4648 = vmatmul.mubr.f32.gmra.mrb[0].mxu0 %v3568
  %v4649 = vpop.f32.mrb[0].mxu0
  %v4650 = vadd.f32 0.0, %v4649
  %v4651 = vpop.f32.mrb[0].mxu0
  %4652 = vmatprep.mubr.f32.mxu0 0.0
  %4653 = vmatmul.mubr.f32.gmra.mrb[0].mxu0 %v3571
  %v4654 = vpop.f32.mrb[0].mxu0
  %v4655 = vadd.f32 0.0, %v4654
  %v4656 = vpop.f32.mrb[0].mxu0
  %4657 = vmatprep.mubr.f32.mxu0 0.0
  %4658 = vmatmul.mubr.f32.gmra.mrb[0].mxu0 %v3574
  %v4659 = vpop.f32.mrb[0].mxu0
  %v4660 = vadd.f32 0.0, %v4659
  %v4661 = vpop.f32.mrb[0].mxu0
  %4662 = vmatprep.mubr.f32.mxu0 0.0
  %4663 = vmatmul.mubr.f32.gmra.mrb[0].mxu0 %v3577
  %v4664 = vpop.f32.mrb[0].mxu0
  %v4665 = vadd.f32 0.0, %v4664
  %v4666 = vpop.f32.mrb[0].mxu0
  %4667 = vmatprep.mubr.f32.mxu0 0.0
  %4668 = vmatmul.mubr.f32.gmra.mrb[0].mxu0 %v3580
  %v4669 = vpop.f32.mrb[0].mxu0
  %v4670 = vadd.f32 0.0, %v4669
  %v4671 = vpop.f32.mrb[0].mxu0
  %4672 = vmatprep.mubr.f32.mxu0 0.0
  %4673 = vmatmul.mubr.f32.gmra.mrb[0].mxu0 %v3583
  %v4674 = vpop.f32.mrb[0].mxu0
  %v4675 = vadd.f32 0.0, %v4674
  %v4676 = vpop.f32.mrb[0].mxu0
  %4677 = vmatprep.mubr.f32.mxu0 0.0
  %4678 = vmatmul.mubr.f32.gmra.mrb[0].mxu0 %v3586
  %v4679 = vpop.f32.mrb[0].mxu0
  %v4680 = vadd.f32 0.0, %v4679
  %v4681 = vpop.f32.mrb[0].mxu0
  %4682 = vmatprep.mubr.f32.mxu0 0.0
  %4683 = vmatmul.mubr.f32.gmra.mrb[0].mxu0 %v3589
  %v4684 = vpop.f32.mrb[0].mxu0
  %v4685 = vadd.f32 0.0, %v4684
  %v4686 = vpop.f32.mrb[0].mxu0
  %4687 = vmatprep.mubr.f32.mxu0 0.0
  %4688 = vmatmul.mubr.f32.gmra.mrb[0].mxu0 %v3592
  %v4689 = vpop.f32.mrb[0].mxu0
  %v4690 = vadd.f32 0.0, %v4689
  %v4691 = vpop.f32.mrb[0].mxu0
  %4692 = vmatprep.mubr.f32.mxu0 0.0
  %4693 = vmatmul.mubr.f32.gmra.mrb[0].mxu0 %v3595
  %v4694 = vpop.f32.mrb[0].mxu0
  %v4695 = vadd.f32 0.0, %v4694
  %v4696 = vpop.f32.mrb[0].mxu0
  %4697 = vmatprep.mubr.f32.mxu0 0.0
  %4698 = vmatmul.mubr.f32.gmra.mrb[0].mxu0 %v3598
  %v4699 = vpop.f32.mrb[0].mxu0
  %v4700 = vadd.f32 0.0, %v4699
  %v4701 = vpop.f32.mrb[0].mxu0
  %4702 = vmatprep.mubr.f32.mxu0 0.0
  %4703 = vmatmul.mubr.f32.gmra.mrb[0].mxu0 %v3601
  %v4704 = vpop.f32.mrb[0].mxu0
  %v4705 = vadd.f32 0.0, %v4704
  %v4706 = vpop.f32.mrb[0].mxu0
  %4707 = vmatprep.mubr.f32.mxu0 0.0
  %4708 = vmatmul.mubr.f32.gmra.mrb[0].mxu0 %v3604
  %v4709 = vpop.f32.mrb[0].mxu0
  %v4710 = vadd.f32 0.0, %v4709
  %v4711 = vpop.f32.mrb[0].mxu0
  %4712 = vmatprep.mubr.f32.mxu0 0.0
  %4713 = vmatmul.mubr.f32.gmra.mrb[0].mxu0 %v3607
  %v4714 = vpop.f32.mrb[0].mxu0
  %v4715 = vadd.f32 0.0, %v4714
  %v4716 = vpop.f32.mrb[0].mxu0
  %4717 = vmatprep.mubr.f32.mxu0 0.0
  %4718 = vmatmul.mubr.f32.gmra.mrb[0].mxu0 %v3610
  %v4719 = vpop.f32.mrb[0].mxu0
  %v4720 = vadd.f32 0.0, %v4719
  %v4721 = vpop.f32.mrb[0].mxu0
  %4722 = vmatprep.mubr.f32.mxu0 0.0
  %4723 = vmatmul.mubr.f32.gmra.mrb[0].mxu0 %v3613
  %v4724 = vpop.f32.mrb[0].mxu0
  %v4725 = vadd.f32 0.0, %v4724
  %v4726 = vpop.f32.mrb[0].mxu0
  %4727 = vmatprep.mubr.f32.mxu0 0.0
  %4728 = vmatmul.mubr.f32.gmra.mrb[0].mxu0 %v3616
  %v4729 = vpop.f32.mrb[0].mxu0
  %v4730 = vadd.f32 0.0, %v4729
  %v4731 = vpop.f32.mrb[0].mxu0
  %4732 = vmatprep.mubr.f32.mxu0 0.0
  %4733 = vmatmul.mubr.f32.gmra.mrb[0].mxu0 %v3619
  %v4734 = vpop.f32.mrb[0].mxu0
  %v4735 = vadd.f32 0.0, %v4734
  %v4736 = vpop.f32.mrb[0].mxu0
  %4737 = vmatprep.mubr.f32.mxu0 0.0
  %4738 = vmatmul.mubr.f32.gmra.mrb[0].mxu0 %v3622
  %v4739 = vpop.f32.mrb[0].mxu0
  %v4740 = vadd.f32 0.0, %v4739
  %v4741 = vpop.f32.mrb[0].mxu0
  %4742 = vmatprep.mubr.f32.mxu0 0.0
  %4743 = vmatmul.mubr.f32.gmra.mrb[0].mxu0 %v3625
  %v4744 = vpop.f32.mrb[0].mxu0
  %v4745 = vadd.f32 0.0, %v4744
  %v4746 = vpop.f32.mrb[0].mxu0
  %4747 = vmatprep.mubr.f32.mxu0 0.0
  %4748 = vmatmul.mubr.f32.gmra.mrb[0].mxu0 %v3628
  %v4749 = vpop.f32.mrb[0].mxu0
  %v4750 = vadd.f32 0.0, %v4749
  %v4751 = vpop.f32.mrb[0].mxu0
  %4752 = vmatprep.mubr.f32.mxu0 0.0
  %4753 = vmatmul.mubr.f32.gmra.mrb[0].mxu0 %v3631
  %v4754 = vpop.f32.mrb[0].mxu0
  %v4755 = vadd.f32 0.0, %v4754
  %v4756 = vpop.f32.mrb[0].mxu0
  %4757 = vmatprep.mubr.f32.mxu0 0.0
  %4758 = vmatmul.mubr.f32.gmra.mrb[0].mxu0 %v3634
  %v4759 = vpop.f32.mrb[0].mxu0
  %v4760 = vadd.f32 0.0, %v4759
  %v4761 = vpop.f32.mrb[0].mxu0
  %4762 = vmatprep.mubr.f32.mxu0 0.0
  %4763 = vmatmul.mubr.f32.gmra.mrb[0].mxu0 %v3637
  %v4764 = vpop.f32.mrb[0].mxu0
  %v4765 = vadd.f32 0.0, %v4764
  %v4766 = vpop.f32.mrb[0].mxu0
  %4767 = vmatprep.mubr.f32.mxu0 0.0
  %4768 = vmatmul.mubr.f32.gmra.mrb[0].mxu0 %v3640
  %v4769 = vpop.f32.mrb[0].mxu0
  %v4770 = vadd.f32 0.0, %v4769
  %v4771 = vpop.f32.mrb[0].mxu0
  %4772 = vmatprep.mubr.f32.mxu0 0.0
  %4773 = vmatmul.mubr.f32.gmra.mrb[0].mxu0 %v3643
  %v4774 = vpop.f32.mrb[0].mxu0
  %v4775 = vadd.f32 0.0, %v4774
  %v4776 = vpop.f32.mrb[0].mxu0
  %4777 = vmatprep.mubr.f32.mxu0 0.0
  %4778 = vmatmul.mubr.f32.gmra.mrb[0].mxu0 %v3646
  %v4779 = vpop.f32.mrb[0].mxu0
  %v4780 = vadd.f32 0.0, %v4779
  %v4781 = vpop.f32.mrb[0].mxu0
  %4782 = vmatprep.mubr.f32.mxu0 0.0
  %4783 = vmatmul.mubr.f32.gmra.mrb[0].mxu0 %v3649
  %v4784 = vpop.f32.mrb[0].mxu0
  %v4785 = vadd.f32 0.0, %v4784
  %v4786 = vpop.f32.mrb[0].mxu0
  %4787 = vmatprep.mubr.f32.mxu0 0.0
  %4788 = vmatmul.mubr.f32.gmra.mrb[0].mxu0 %v3652
  %v4789 = vpop.f32.mrb[0].mxu0
  %v4790 = vadd.f32 0.0, %v4789
  %v4791 = vpop.f32.mrb[0].mxu0
  %4792 = vdwg.mxu0
  %v4793 = vadd.f32 %v3399, %v4635
  %v4794 = vadd.f32 %v3404, %v4640
  %v4795 = vadd.f32 %v3409, %v4645
  %v4796 = vadd.f32 %v3414, %v4650
  %v4797 = vadd.f32 %v3419, %v4655
  %v4798 = vadd.f32 %v3424, %v4660
  %v4799 = vadd.f32 %v3429, %v4665
  %v4800 = vadd.f32 %v3434, %v4670
  %v4801 = vadd.f32 %v3439, %v4675
  %v4802 = vadd.f32 %v3444, %v4680
  %v4803 = vadd.f32 %v3449, %v4685
  %v4804 = vadd.f32 %v3454, %v4690
  %v4805 = vadd.f32 %v3459, %v4695
  %v4806 = vadd.f32 %v3464, %v4700
  %v4807 = vadd.f32 %v3469, %v4705
  %v4808 = vadd.f32 %v3474, %v4710
  %v4809 = vadd.f32 %v3479, %v4715
  %v4810 = vadd.f32 %v3484, %v4720
  %v4811 = vadd.f32 %v3489, %v4725
  %v4812 = vadd.f32 %v3494, %v4730
  %v4813 = vadd.f32 %v3499, %v4735
  %v4814 = vadd.f32 %v3504, %v4740
  %v4815 = vadd.f32 %v3509, %v4745
  %v4816 = vadd.f32 %v3514, %v4750
  %v4817 = vadd.f32 %v3519, %v4755
  %v4818 = vadd.f32 %v3524, %v4760
  %v4819 = vadd.f32 %v3529, %v4765
  %v4820 = vadd.f32 %v3534, %v4770
  %v4821 = vadd.f32 %v3539, %v4775
  %v4822 = vadd.f32 %v3544, %v4780
  %v4823 = vadd.f32 %v3549, %v4785
  %v4824 = vadd.f32 %v3554, %v4790
  %v4825 = vxor.u32 %v4793, 2147483648
  %v4826 = vxor.u32 %v4794, 2147483648
  %v4827 = vxor.u32 %v4795, 2147483648
  %v4828 = vxor.u32 %v4796, 2147483648
  %v4829 = vxor.u32 %v4797, 2147483648
  %v4830 = vxor.u32 %v4798, 2147483648
  %v4831 = vxor.u32 %v4799, 2147483648
  %v4832 = vxor.u32 %v4800, 2147483648
  %v4833 = vxor.u32 %v4801, 2147483648
  %v4834 = vxor.u32 %v4802, 2147483648
  %v4835 = vxor.u32 %v4803, 2147483648
  %v4836 = vxor.u32 %v4804, 2147483648
  %v4837 = vxor.u32 %v4805, 2147483648
  %v4838 = vxor.u32 %v4806, 2147483648
  %v4839 = vxor.u32 %v4807, 2147483648
  %v4840 = vxor.u32 %v4808, 2147483648
  %v4841 = vxor.u32 %v4809, 2147483648
  %v4842 = vxor.u32 %v4810, 2147483648
  %v4843 = vxor.u32 %v4811, 2147483648
  %v4844 = vxor.u32 %v4812, 2147483648
  %v4845 = vxor.u32 %v4813, 2147483648
  %v4846 = vxor.u32 %v4814, 2147483648
  %v4847 = vxor.u32 %v4815, 2147483648
  %v4848 = vxor.u32 %v4816, 2147483648
  %v4849 = vmul.f32 %v4825, 1.442695
  %v4850 = vpow.pop %v4849
  %v4851 = vmul.f32 %v4826, 1.442695
  %v4852 = vpow.pop %v4851
  %v4853 = vmul.f32 %v4827, 1.442695
  %v4854 = vpow.pop %v4853
  %v4855 = vmul.f32 %v4828, 1.442695
  %v4856 = vpow.pop %v4855
  %v4857 = vmul.f32 %v4829, 1.442695
  %v4858 = vpow.pop %v4857
  %v4859 = vmul.f32 %v4830, 1.442695
  %v4860 = vpow.pop %v4859
  %v4861 = vmul.f32 %v4831, 1.442695
  %v4862 = vpow.pop %v4861
  %v4863 = vmul.f32 %v4832, 1.442695
  %v4864 = vpow.pop %v4863
  %v4865 = vmul.f32 %v4833, 1.442695
  %v4866 = vpow.pop %v4865
  %v4867 = vmul.f32 %v4834, 1.442695
  %v4868 = vpow.pop %v4867
  %v4869 = vmul.f32 %v4835, 1.442695
  %v4870 = vpow.pop %v4869
  %v4871 = vmul.f32 %v4836, 1.442695
  %v4872 = vpow.pop %v4871
  %v4873 = vmul.f32 %v4837, 1.442695
  %v4874 = vpow.pop %v4873
  %v4875 = vmul.f32 %v4838, 1.442695
  %v4876 = vpow.pop %v4875
  %v4877 = vmul.f32 %v4839, 1.442695
  %v4878 = vpow.pop %v4877
  %v4879 = vmul.f32 %v4840, 1.442695
  %v4880 = vpow.pop %v4879
  %v4881 = vmul.f32 %v4841, 1.442695
  %v4882 = vpow.pop %v4881
  %v4883 = vmul.f32 %v4842, 1.442695
  %v4884 = vpow.pop %v4883
  %v4885 = vmul.f32 %v4843, 1.442695
  %v4886 = vpow.pop %v4885
  %v4887 = vmul.f32 %v4844, 1.442695
  %v4888 = vpow.pop %v4887
  %v4889 = vmul.f32 %v4845, 1.442695
  %v4890 = vpow.pop %v4889
  %v4891 = vmul.f32 %v4846, 1.442695
  %v4892 = vpow.pop %v4891
  %v4893 = vmul.f32 %v4847, 1.442695
  %v4894 = vpow.pop %v4893
  %v4895 = vmul.f32 %v4848, 1.442695
  %v4896 = vpow.pop %v4895
  %v4897 = vadd.f32 %v4850, 1.0
  %v4898 = vadd.f32 %v4852, 1.0
  %v4899 = vadd.f32 %v4854, 1.0
  %v4900 = vadd.f32 %v4856, 1.0
  %v4901 = vadd.f32 %v4858, 1.0
  %v4902 = vadd.f32 %v4860, 1.0
  %v4903 = vadd.f32 %v4862, 1.0
  %v4904 = vadd.f32 %v4864, 1.0
  %v4905 = vadd.f32 %v4866, 1.0
  %v4906 = vadd.f32 %v4868, 1.0
  %v4907 = vadd.f32 %v4870, 1.0
  %v4908 = vadd.f32 %v4872, 1.0
  %v4909 = vadd.f32 %v4874, 1.0
  %v4910 = vadd.f32 %v4876, 1.0
  %v4911 = vadd.f32 %v4878, 1.0
  %v4912 = vadd.f32 %v4880, 1.0
  %v4913 = vadd.f32 %v4882, 1.0
  %v4914 = vadd.f32 %v4884, 1.0
  %v4915 = vadd.f32 %v4886, 1.0
  %v4916 = vadd.f32 %v4888, 1.0
  %v4917 = vadd.f32 %v4890, 1.0
  %v4918 = vadd.f32 %v4892, 1.0
  %v4919 = vadd.f32 %v4894, 1.0
  %v4920 = vadd.f32 %v4896, 1.0
  %v4921 = vrcp.pop %v4897
  %v4922 = vmul.f32 1.0, %v4921
  %v4923 = vrcp.pop %v4898
  %v4924 = vmul.f32 1.0, %v4923
  %v4925 = vrcp.pop %v4899
  %v4926 = vmul.f32 1.0, %v4925
  %v4927 = vrcp.pop %v4900
  %v4928 = vmul.f32 1.0, %v4927
  %v4929 = vrcp.pop %v4901
  %v4930 = vmul.f32 1.0, %v4929
  %v4931 = vrcp.pop %v4902
  %v4932 = vmul.f32 1.0, %v4931
  %v4933 = vrcp.pop %v4903
  %v4934 = vmul.f32 1.0, %v4933
  %v4935 = vrcp.pop %v4904
  %v4936 = vmul.f32 1.0, %v4935
  %v4937 = vrcp.pop %v4905
  %v4938 = vmul.f32 1.0, %v4937
  %v4939 = vrcp.pop %v4906
  %v4940 = vmul.f32 1.0, %v4939
  %v4941 = vrcp.pop %v4907
  %v4942 = vmul.f32 1.0, %v4941
  %v4943 = vrcp.pop %v4908
  %v4944 = vmul.f32 1.0, %v4943
  %v4945 = vrcp.pop %v4909
  %v4946 = vmul.f32 1.0, %v4945
  %v4947 = vrcp.pop %v4910
  %v4948 = vmul.f32 1.0, %v4947
  %v4949 = vrcp.pop %v4911
  %v4950 = vmul.f32 1.0, %v4949
  %v4951 = vrcp.pop %v4912
  %v4952 = vmul.f32 1.0, %v4951
  %v4953 = vrcp.pop %v4913
  %v4954 = vmul.f32 1.0, %v4953
  %v4955 = vrcp.pop %v4914
  %v4956 = vmul.f32 1.0, %v4955
  %v4957 = vrcp.pop %v4915
  %v4958 = vmul.f32 1.0, %v4957
  %v4959 = vrcp.pop %v4916
  %v4960 = vmul.f32 1.0, %v4959
  %v4961 = vrcp.pop %v4917
  %v4962 = vmul.f32 1.0, %v4961
  %v4963 = vrcp.pop %v4918
  %v4964 = vmul.f32 1.0, %v4963
  %v4965 = vrcp.pop %v4919
  %v4966 = vmul.f32 1.0, %v4965
  %v4967 = vrcp.pop %v4920
  %v4968 = vmul.f32 1.0, %v4967
  %v4969 = vtanh.pop %v4817
  %v4970 = vtanh.pop %v4818
  %v4971 = vtanh.pop %v4819
  %v4972 = vtanh.pop %v4820
  %v4973 = vtanh.pop %v4821
  %v4974 = vtanh.pop %v4822
  %v4975 = vtanh.pop %v4823
  %v4976 = vtanh.pop %v4824
  %v4977 = vmul.f32 %v4938, %v4536
  %v4978 = vmul.f32 %v4940, %v4537
  %v4979 = vmul.f32 %v4942, %v4538
  %v4980 = vmul.f32 %v4944, %v4539
  %v4981 = vmul.f32 %v4946, %v4540
  %v4982 = vmul.f32 %v4948, %v4541
  %v4983 = vmul.f32 %v4950, %v4542
  %v4984 = vmul.f32 %v4952, %v4543
  %v4985 = vmul.f32 %v4922, %v4969
  %v4986 = vmul.f32 %v4924, %v4970
  %v4987 = vmul.f32 %v4926, %v4971
  %v4988 = vmul.f32 %v4928, %v4972
  %v4989 = vmul.f32 %v4930, %v4973
  %v4990 = vmul.f32 %v4932, %v4974
  %v4991 = vmul.f32 %v4934, %v4975
  %v4992 = vmul.f32 %v4936, %v4976
  %v4993 = vadd.f32 %v4977, %v4985
  %v4994 = vadd.f32 %v4978, %v4986
  %v4995 = vadd.f32 %v4979, %v4987
  %v4996 = vadd.f32 %v4980, %v4988
  %v4997 = vadd.f32 %v4981, %v4989
  %v4998 = vadd.f32 %v4982, %v4990
  %v4999 = vadd.f32 %v4983, %v4991
  %v5000 = vadd.f32 %v4984, %v4992
  %v5001 = vtanh.pop %v4993
  %v5002 = vtanh.pop %v4994
  %v5003 = vtanh.pop %v4995
  %v5004 = vtanh.pop %v4996
  %v5005 = vtanh.pop %v4997
  %v5006 = vtanh.pop %v4998
  %v5007 = vtanh.pop %v4999
  %v5008 = vtanh.pop %v5000
  %v5009 = vmul.f32 %v4954, %v5001
  %v5010 = vmul.f32 %v4956, %v5002
  %v5011 = vmul.f32 %v4958, %v5003
  %v5012 = vmul.f32 %v4960, %v5004
  %v5013 = vmul.f32 %v4962, %v5005
  %v5014 = vmul.f32 %v4964, %v5006
  %v5015 = vmul.f32 %v4966, %v5007
  %v5016 = vmul.f32 %v4968, %v5008
  %5017 = vst [vmem:[#allocation2 + $0x10] sm:$0xff] %v5009
  %5018 = vst [vmem:[#allocation2 + $0x50] sm:$0xff] %v5010
  %5019 = vst [vmem:[#allocation2 + $0x90] sm:$0xff] %v5011
  %5020 = vst [vmem:[#allocation2 + $0xd0] sm:$0xff] %v5012
  %5021 = vst [vmem:[#allocation2 + $0x110] sm:$0xff] %v5013
  %5022 = vst [vmem:[#allocation2 + $0x150] sm:$0xff] %v5014
  %5023 = vst [vmem:[#allocation2 + $0x190] sm:$0xff] %v5015
  %5024 = vst [vmem:[#allocation2 + $0x1d0] sm:$0xff] %v5016
  %5025 = vmatprep.subr.mxu0 0.0
  %5026 = vmatpush1.msra.mxu0 %v5009
  %5027 = vmatprep.subr.mxu0 0.0
  %5028 = vmatpush1.msra.mxu0 %v5010
  %5029 = vmatprep.subr.mxu0 0.0
  %5030 = vmatpush1.msra.mxu0 %v5011
  %5031 = vmatprep.subr.mxu0 0.0
  %5032 = vmatpush1.msra.mxu0 %v5012
  %5033 = vmatprep.subr.mxu0 0.0
  %5034 = vmatpush1.msra.mxu0 %v5013
  %5035 = vmatprep.subr.mxu0 0.0
  %5036 = vmatpush1.msra.mxu0 %v5014
  %5037 = vmatprep.subr.mxu0 0.0
  %5038 = vmatpush1.msra.mxu0 %v5015
  %5039 = vmatprep.subr.mxu0 0.0
  %5040 = vmatpush1.msra.mxu0 %v5016
  %5041 = vmatprep.subr.mxu0 0.0
  %5042 = vmatpush1.msra.mxu0 0.0
  %5043 = vmatprep.subr.mxu0 0.0
  %5044 = vmatpush1.msra.mxu0 0.0
  %5045 = vmatprep.subr.mxu0 0.0
  %5046 = vmatpush1.msra.mxu0 0.0
  %5047 = vmatprep.subr.mxu0 0.0
  %5048 = vmatpush1.msra.mxu0 0.0
  %5049 = vmatprep.subr.mxu0 0.0
  %5050 = vmatpush1.msra.mxu0 0.0
  %5051 = vmatprep.subr.mxu0 0.0
  %5052 = vmatpush1.msra.mxu0 0.0
  %5053 = vmatprep.subr.mxu0 0.0
  %5054 = vmatpush1.msra.mxu0 0.0
  %5055 = vmatprep.subr.mxu0 0.0
  %5056 = vmatpush1.msra.mxu0 0.0
  %5057 = vmatprep.subr.mxu0 0.0
  %5058 = vmatpush1.msra.mxu0 0.0
  %5059 = vmatprep.subr.mxu0 0.0
  %5060 = vmatpush1.msra.mxu0 0.0
  %5061 = vmatprep.subr.mxu0 0.0
  %5062 = vmatpush1.msra.mxu0 0.0
  %5063 = vmatprep.subr.mxu0 0.0
  %5064 = vmatpush1.msra.mxu0 0.0
  %5065 = vmatprep.subr.mxu0 0.0
  %5066 = vmatpush1.msra.mxu0 0.0
  %5067 = vmatprep.subr.mxu0 0.0
  %5068 = vmatpush1.msra.mxu0 0.0
  %5069 = vmatprep.subr.mxu0 0.0
  %5070 = vmatpush1.msra.mxu0 0.0
  %5071 = vmatprep.subr.mxu0 0.0
  %5072 = vmatpush1.msra.mxu0 0.0
  %5073 = vmatprep.subr.mxu0 0.0
  %5074 = vmatpush1.msra.mxu0 0.0
  %5075 = vmatprep.subr.mxu0 0.0
  %5076 = vmatpush1.msra.mxu0 0.0
  %5077 = vmatprep.subr.mxu0 0.0
  %5078 = vmatpush1.msra.mxu0 0.0
  %5079 = vmatprep.subr.mxu0 0.0
  %5080 = vmatpush1.msra.mxu0 0.0
  %5081 = vmatprep.subr.mxu0 0.0
  %5082 = vmatpush1.msra.mxu0 0.0
  %5083 = vmatprep.subr.mxu0 0.0
  %5084 = vmatpush1.msra.mxu0 0.0
  %5085 = vmatprep.subr.mxu0 0.0
  %5086 = vmatpush1.msra.mxu0 0.0
  %5087 = vmatprep.subr.mxu0 0.0
  %5088 = vmatpush1.msra.mxu0 0.0
  %5089 = vmatprep.mubr.f32.mxu0 0.0
  %5090 = vmatmul.mubr.f32.gmra.mrb[0].mxu0 %v3559
  %v5091 = vpop.f32.mrb[0].mxu0
  %v5092 = vadd.f32 0.0, %v5091
  %v5093 = vpop.f32.mrb[0].mxu0
  %5094 = vmatprep.mubr.f32.mxu0 0.0
  %5095 = vmatmul.mubr.f32.gmra.mrb[0].mxu0 %v3562
  %v5096 = vpop.f32.mrb[0].mxu0
  %v5097 = vadd.f32 0.0, %v5096
  %v5098 = vpop.f32.mrb[0].mxu0
  %5099 = vmatprep.mubr.f32.mxu0 0.0
  %5100 = vmatmul.mubr.f32.gmra.mrb[0].mxu0 %v3565
  %v5101 = vpop.f32.mrb[0].mxu0
  %v5102 = vadd.f32 0.0, %v5101
  %v5103 = vpop.f32.mrb[0].mxu0
  %5104 = vmatprep.mubr.f32.mxu0 0.0
  %5105 = vmatmul.mubr.f32.gmra.mrb[0].mxu0 %v3568
  %v5106 = vpop.f32.mrb[0].mxu0
  %v5107 = vadd.f32 0.0, %v5106
  %v5108 = vpop.f32.mrb[0].mxu0
  %5109 = vmatprep.mubr.f32.mxu0 0.0
  %5110 = vmatmul.mubr.f32.gmra.mrb[0].mxu0 %v3571
  %v5111 = vpop.f32.mrb[0].mxu0
  %v5112 = vadd.f32 0.0, %v5111
  %v5113 = vpop.f32.mrb[0].mxu0
  %5114 = vmatprep.mubr.f32.mxu0 0.0
  %5115 = vmatmul.mubr.f32.gmra.mrb[0].mxu0 %v3574
  %v5116 = vpop.f32.mrb[0].mxu0
  %v5117 = vadd.f32 0.0, %v5116
  %v5118 = vpop.f32.mrb[0].mxu0
  %5119 = vmatprep.mubr.f32.mxu0 0.0
  %5120 = vmatmul.mubr.f32.gmra.mrb[0].mxu0 %v3577
  %v5121 = vpop.f32.mrb[0].mxu0
  %v5122 = vadd.f32 0.0, %v5121
  %v5123 = vpop.f32.mrb[0].mxu0
  %5124 = vmatprep.mubr.f32.mxu0 0.0
  %5125 = vmatmul.mubr.f32.gmra.mrb[0].mxu0 %v3580
  %v5126 = vpop.f32.mrb[0].mxu0
  %v5127 = vadd.f32 0.0, %v5126
  %v5128 = vpop.f32.mrb[0].mxu0
  %5129 = vmatprep.mubr.f32.mxu0 0.0
  %5130 = vmatmul.mubr.f32.gmra.mrb[0].mxu0 %v3583
  %v5131 = vpop.f32.mrb[0].mxu0
  %v5132 = vadd.f32 0.0, %v5131
  %v5133 = vpop.f32.mrb[0].mxu0
  %5134 = vmatprep.mubr.f32.mxu0 0.0
  %5135 = vmatmul.mubr.f32.gmra.mrb[0].mxu0 %v3586
  %v5136 = vpop.f32.mrb[0].mxu0
  %v5137 = vadd.f32 0.0, %v5136
  %v5138 = vpop.f32.mrb[0].mxu0
  %5139 = vmatprep.mubr.f32.mxu0 0.0
  %5140 = vmatmul.mubr.f32.gmra.mrb[0].mxu0 %v3589
  %v5141 = vpop.f32.mrb[0].mxu0
  %v5142 = vadd.f32 0.0, %v5141
  %v5143 = vpop.f32.mrb[0].mxu0
  %5144 = vmatprep.mubr.f32.mxu0 0.0
  %5145 = vmatmul.mubr.f32.gmra.mrb[0].mxu0 %v3592
  %v5146 = vpop.f32.mrb[0].mxu0
  %v5147 = vadd.f32 0.0, %v5146
  %v5148 = vpop.f32.mrb[0].mxu0
  %5149 = vmatprep.mubr.f32.mxu0 0.0
  %5150 = vmatmul.mubr.f32.gmra.mrb[0].mxu0 %v3595
  %v5151 = vpop.f32.mrb[0].mxu0
  %v5152 = vadd.f32 0.0, %v5151
  %v5153 = vpop.f32.mrb[0].mxu0
  %5154 = vmatprep.mubr.f32.mxu0 0.0
  %5155 = vmatmul.mubr.f32.gmra.mrb[0].mxu0 %v3598
  %v5156 = vpop.f32.mrb[0].mxu0
  %v5157 = vadd.f32 0.0, %v5156
  %v5158 = vpop.f32.mrb[0].mxu0
  %5159 = vmatprep.mubr.f32.mxu0 0.0
  %5160 = vmatmul.mubr.f32.gmra.mrb[0].mxu0 %v3601
  %v5161 = vpop.f32.mrb[0].mxu0
  %v5162 = vadd.f32 0.0, %v5161
  %v5163 = vpop.f32.mrb[0].mxu0
  %5164 = vmatprep.mubr.f32.mxu0 0.0
  %5165 = vmatmul.mubr.f32.gmra.mrb[0].mxu0 %v3604
  %v5166 = vpop.f32.mrb[0].mxu0
  %v5167 = vadd.f32 0.0, %v5166
  %v5168 = vpop.f32.mrb[0].mxu0
  %5169 = vmatprep.mubr.f32.mxu0 0.0
  %5170 = vmatmul.mubr.f32.gmra.mrb[0].mxu0 %v3607
  %v5171 = vpop.f32.mrb[0].mxu0
  %v5172 = vadd.f32 0.0, %v5171
  %v5173 = vpop.f32.mrb[0].mxu0
  %5174 = vmatprep.mubr.f32.mxu0 0.0
  %5175 = vmatmul.mubr.f32.gmra.mrb[0].mxu0 %v3610
  %v5176 = vpop.f32.mrb[0].mxu0
  %v5177 = vadd.f32 0.0, %v5176
  %v5178 = vpop.f32.mrb[0].mxu0
  %5179 = vmatprep.mubr.f32.mxu0 0.0
  %5180 = vmatmul.mubr.f32.gmra.mrb[0].mxu0 %v3613
  %v5181 = vpop.f32.mrb[0].mxu0
  %v5182 = vadd.f32 0.0, %v5181
  %v5183 = vpop.f32.mrb[0].mxu0
  %5184 = vmatprep.mubr.f32.mxu0 0.0
  %5185 = vmatmul.mubr.f32.gmra.mrb[0].mxu0 %v3616
  %v5186 = vpop.f32.mrb[0].mxu0
  %v5187 = vadd.f32 0.0, %v5186
  %v5188 = vpop.f32.mrb[0].mxu0
  %5189 = vmatprep.mubr.f32.mxu0 0.0
  %5190 = vmatmul.mubr.f32.gmra.mrb[0].mxu0 %v3619
  %v5191 = vpop.f32.mrb[0].mxu0
  %v5192 = vadd.f32 0.0, %v5191
  %v5193 = vpop.f32.mrb[0].mxu0
  %5194 = vmatprep.mubr.f32.mxu0 0.0
  %5195 = vmatmul.mubr.f32.gmra.mrb[0].mxu0 %v3622
  %v5196 = vpop.f32.mrb[0].mxu0
  %v5197 = vadd.f32 0.0, %v5196
  %v5198 = vpop.f32.mrb[0].mxu0
  %5199 = vmatprep.mubr.f32.mxu0 0.0
  %5200 = vmatmul.mubr.f32.gmra.mrb[0].mxu0 %v3625
  %v5201 = vpop.f32.mrb[0].mxu0
  %v5202 = vadd.f32 0.0, %v5201
  %v5203 = vpop.f32.mrb[0].mxu0
  %5204 = vmatprep.mubr.f32.mxu0 0.0
  %5205 = vmatmul.mubr.f32.gmra.mrb[0].mxu0 %v3628
  %v5206 = vpop.f32.mrb[0].mxu0
  %v5207 = vadd.f32 0.0, %v5206
  %v5208 = vpop.f32.mrb[0].mxu0
  %5209 = vmatprep.mubr.f32.mxu0 0.0
  %5210 = vmatmul.mubr.f32.gmra.mrb[0].mxu0 %v3631
  %v5211 = vpop.f32.mrb[0].mxu0
  %v5212 = vadd.f32 0.0, %v5211
  %v5213 = vpop.f32.mrb[0].mxu0
  %5214 = vmatprep.mubr.f32.mxu0 0.0
  %5215 = vmatmul.mubr.f32.gmra.mrb[0].mxu0 %v3634
  %v5216 = vpop.f32.mrb[0].mxu0
  %v5217 = vadd.f32 0.0, %v5216
  %v5218 = vpop.f32.mrb[0].mxu0
  %5219 = vmatprep.mubr.f32.mxu0 0.0
  %5220 = vmatmul.mubr.f32.gmra.mrb[0].mxu0 %v3637
  %v5221 = vpop.f32.mrb[0].mxu0
  %v5222 = vadd.f32 0.0, %v5221
  %v5223 = vpop.f32.mrb[0].mxu0
  %5224 = vmatprep.mubr.f32.mxu0 0.0
  %5225 = vmatmul.mubr.f32.gmra.mrb[0].mxu0 %v3640
  %v5226 = vpop.f32.mrb[0].mxu0
  %v5227 = vadd.f32 0.0, %v5226
  %v5228 = vpop.f32.mrb[0].mxu0
  %5229 = vmatprep.mubr.f32.mxu0 0.0
  %5230 = vmatmul.mubr.f32.gmra.mrb[0].mxu0 %v3643
  %v5231 = vpop.f32.mrb[0].mxu0
  %v5232 = vadd.f32 0.0, %v5231
  %v5233 = vpop.f32.mrb[0].mxu0
  %5234 = vmatprep.mubr.f32.mxu0 0.0
  %5235 = vmatmul.mubr.f32.gmra.mrb[0].mxu0 %v3646
  %v5236 = vpop.f32.mrb[0].mxu0
  %v5237 = vadd.f32 0.0, %v5236
  %v5238 = vpop.f32.mrb[0].mxu0
  %5239 = vmatprep.mubr.f32.mxu0 0.0
  %5240 = vmatmul.mubr.f32.gmra.mrb[0].mxu0 %v3649
  %v5241 = vpop.f32.mrb[0].mxu0
  %v5242 = vadd.f32 0.0, %v5241
  %v5243 = vpop.f32.mrb[0].mxu0
  %5244 = vmatprep.mubr.f32.mxu0 0.0
  %5245 = vmatmul.mubr.f32.gmra.mrb[0].mxu0 %v3652
  %v5246 = vpop.f32.mrb[0].mxu0
  %v5247 = vadd.f32 0.0, %v5246
  %v5248 = vpop.f32.mrb[0].mxu0
  %5249 = vdwg.mxu0
  %v5250 = vadd.f32 %v3399, %v5092
  %v5251 = vadd.f32 %v3404, %v5097
  %v5252 = vadd.f32 %v3409, %v5102
  %v5253 = vadd.f32 %v3414, %v5107
  %v5254 = vadd.f32 %v3419, %v5112
  %v5255 = vadd.f32 %v3424, %v5117
  %v5256 = vadd.f32 %v3429, %v5122
  %v5257 = vadd.f32 %v3434, %v5127
  %v5258 = vadd.f32 %v3439, %v5132
  %v5259 = vadd.f32 %v3444, %v5137
  %v5260 = vadd.f32 %v3449, %v5142
  %v5261 = vadd.f32 %v3454, %v5147
  %v5262 = vadd.f32 %v3459, %v5152
  %v5263 = vadd.f32 %v3464, %v5157
  %v5264 = vadd.f32 %v3469, %v5162
  %v5265 = vadd.f32 %v3474, %v5167
  %v5266 = vadd.f32 %v3479, %v5172
  %v5267 = vadd.f32 %v3484, %v5177
  %v5268 = vadd.f32 %v3489, %v5182
  %v5269 = vadd.f32 %v3494, %v5187
  %v5270 = vadd.f32 %v3499, %v5192
  %v5271 = vadd.f32 %v3504, %v5197
  %v5272 = vadd.f32 %v3509, %v5202
  %v5273 = vadd.f32 %v3514, %v5207
  %v5274 = vadd.f32 %v3519, %v5212
  %v5275 = vadd.f32 %v3524, %v5217
  %v5276 = vadd.f32 %v3529, %v5222
  %v5277 = vadd.f32 %v3534, %v5227
  %v5278 = vadd.f32 %v3539, %v5232
  %v5279 = vadd.f32 %v3544, %v5237
  %v5280 = vadd.f32 %v3549, %v5242
  %v5281 = vadd.f32 %v3554, %v5247
  %v5282 = vxor.u32 %v5250, 2147483648
  %v5283 = vxor.u32 %v5251, 2147483648
  %v5284 = vxor.u32 %v5252, 2147483648
  %v5285 = vxor.u32 %v5253, 2147483648
  %v5286 = vxor.u32 %v5254, 2147483648
  %v5287 = vxor.u32 %v5255, 2147483648
  %v5288 = vxor.u32 %v5256, 2147483648
  %v5289 = vxor.u32 %v5257, 2147483648
  %v5290 = vxor.u32 %v5258, 2147483648
  %v5291 = vxor.u32 %v5259, 2147483648
  %v5292 = vxor.u32 %v5260, 2147483648
  %v5293 = vxor.u32 %v5261, 2147483648
  %v5294 = vxor.u32 %v5262, 2147483648
  %v5295 = vxor.u32 %v5263, 2147483648
  %v5296 = vxor.u32 %v5264, 2147483648
  %v5297 = vxor.u32 %v5265, 2147483648
  %v5298 = vxor.u32 %v5266, 2147483648
  %v5299 = vxor.u32 %v5267, 2147483648
  %v5300 = vxor.u32 %v5268, 2147483648
  %v5301 = vxor.u32 %v5269, 2147483648
  %v5302 = vxor.u32 %v5270, 2147483648
  %v5303 = vxor.u32 %v5271, 2147483648
  %v5304 = vxor.u32 %v5272, 2147483648
  %v5305 = vxor.u32 %v5273, 2147483648
  %v5306 = vmul.f32 %v5282, 1.442695
  %v5307 = vpow.pop %v5306
  %v5308 = vmul.f32 %v5283, 1.442695
  %v5309 = vpow.pop %v5308
  %v5310 = vmul.f32 %v5284, 1.442695
  %v5311 = vpow.pop %v5310
  %v5312 = vmul.f32 %v5285, 1.442695
  %v5313 = vpow.pop %v5312
  %v5314 = vmul.f32 %v5286, 1.442695
  %v5315 = vpow.pop %v5314
  %v5316 = vmul.f32 %v5287, 1.442695
  %v5317 = vpow.pop %v5316
  %v5318 = vmul.f32 %v5288, 1.442695
  %v5319 = vpow.pop %v5318
  %v5320 = vmul.f32 %v5289, 1.442695
  %v5321 = vpow.pop %v5320
  %v5322 = vmul.f32 %v5290, 1.442695
  %v5323 = vpow.pop %v5322
  %v5324 = vmul.f32 %v5291, 1.442695
  %v5325 = vpow.pop %v5324
  %v5326 = vmul.f32 %v5292, 1.442695
  %v5327 = vpow.pop %v5326
  %v5328 = vmul.f32 %v5293, 1.442695
  %v5329 = vpow.pop %v5328
  %v5330 = vmul.f32 %v5294, 1.442695
  %v5331 = vpow.pop %v5330
  %v5332 = vmul.f32 %v5295, 1.442695
  %v5333 = vpow.pop %v5332
  %v5334 = vmul.f32 %v5296, 1.442695
  %v5335 = vpow.pop %v5334
  %v5336 = vmul.f32 %v5297, 1.442695
  %v5337 = vpow.pop %v5336
  %v5338 = vmul.f32 %v5298, 1.442695
  %v5339 = vpow.pop %v5338
  %v5340 = vmul.f32 %v5299, 1.442695
  %v5341 = vpow.pop %v5340
  %v5342 = vmul.f32 %v5300, 1.442695
  %v5343 = vpow.pop %v5342
  %v5344 = vmul.f32 %v5301, 1.442695
  %v5345 = vpow.pop %v5344
  %v5346 = vmul.f32 %v5302, 1.442695
  %v5347 = vpow.pop %v5346
  %v5348 = vmul.f32 %v5303, 1.442695
  %v5349 = vpow.pop %v5348
  %v5350 = vmul.f32 %v5304, 1.442695
  %v5351 = vpow.pop %v5350
  %v5352 = vmul.f32 %v5305, 1.442695
  %v5353 = vpow.pop %v5352
  %v5354 = vadd.f32 %v5307, 1.0
  %v5355 = vadd.f32 %v5309, 1.0
  %v5356 = vadd.f32 %v5311, 1.0
  %v5357 = vadd.f32 %v5313, 1.0
  %v5358 = vadd.f32 %v5315, 1.0
  %v5359 = vadd.f32 %v5317, 1.0
  %v5360 = vadd.f32 %v5319, 1.0
  %v5361 = vadd.f32 %v5321, 1.0
  %v5362 = vadd.f32 %v5323, 1.0
  %v5363 = vadd.f32 %v5325, 1.0
  %v5364 = vadd.f32 %v5327, 1.0
  %v5365 = vadd.f32 %v5329, 1.0
  %v5366 = vadd.f32 %v5331, 1.0
  %v5367 = vadd.f32 %v5333, 1.0
  %v5368 = vadd.f32 %v5335, 1.0
  %v5369 = vadd.f32 %v5337, 1.0
  %v5370 = vadd.f32 %v5339, 1.0
  %v5371 = vadd.f32 %v5341, 1.0
  %v5372 = vadd.f32 %v5343, 1.0
  %v5373 = vadd.f32 %v5345, 1.0
  %v5374 = vadd.f32 %v5347, 1.0
  %v5375 = vadd.f32 %v5349, 1.0
  %v5376 = vadd.f32 %v5351, 1.0
  %v5377 = vadd.f32 %v5353, 1.0
  %v5378 = vrcp.pop %v5354
  %v5379 = vmul.f32 1.0, %v5378
  %v5380 = vrcp.pop %v5355
  %v5381 = vmul.f32 1.0, %v5380
  %v5382 = vrcp.pop %v5356
  %v5383 = vmul.f32 1.0, %v5382
  %v5384 = vrcp.pop %v5357
  %v5385 = vmul.f32 1.0, %v5384
  %v5386 = vrcp.pop %v5358
  %v5387 = vmul.f32 1.0, %v5386
  %v5388 = vrcp.pop %v5359
  %v5389 = vmul.f32 1.0, %v5388
  %v5390 = vrcp.pop %v5360
  %v5391 = vmul.f32 1.0, %v5390
  %v5392 = vrcp.pop %v5361
  %v5393 = vmul.f32 1.0, %v5392
  %v5394 = vrcp.pop %v5362
  %v5395 = vmul.f32 1.0, %v5394
  %v5396 = vrcp.pop %v5363
  %v5397 = vmul.f32 1.0, %v5396
  %v5398 = vrcp.pop %v5364
  %v5399 = vmul.f32 1.0, %v5398
  %v5400 = vrcp.pop %v5365
  %v5401 = vmul.f32 1.0, %v5400
  %v5402 = vrcp.pop %v5366
  %v5403 = vmul.f32 1.0, %v5402
  %v5404 = vrcp.pop %v5367
  %v5405 = vmul.f32 1.0, %v5404
  %v5406 = vrcp.pop %v5368
  %v5407 = vmul.f32 1.0, %v5406
  %v5408 = vrcp.pop %v5369
  %v5409 = vmul.f32 1.0, %v5408
  %v5410 = vrcp.pop %v5370
  %v5411 = vmul.f32 1.0, %v5410
  %v5412 = vrcp.pop %v5371
  %v5413 = vmul.f32 1.0, %v5412
  %v5414 = vrcp.pop %v5372
  %v5415 = vmul.f32 1.0, %v5414
  %v5416 = vrcp.pop %v5373
  %v5417 = vmul.f32 1.0, %v5416
  %v5418 = vrcp.pop %v5374
  %v5419 = vmul.f32 1.0, %v5418
  %v5420 = vrcp.pop %v5375
  %v5421 = vmul.f32 1.0, %v5420
  %v5422 = vrcp.pop %v5376
  %v5423 = vmul.f32 1.0, %v5422
  %v5424 = vrcp.pop %v5377
  %v5425 = vmul.f32 1.0, %v5424
  %v5426 = vtanh.pop %v5274
  %v5427 = vtanh.pop %v5275
  %v5428 = vtanh.pop %v5276
  %v5429 = vtanh.pop %v5277
  %v5430 = vtanh.pop %v5278
  %v5431 = vtanh.pop %v5279
  %v5432 = vtanh.pop %v5280
  %v5433 = vtanh.pop %v5281
  %v5434 = vmul.f32 %v5395, %v4993
  %v5435 = vmul.f32 %v5397, %v4994
  %v5436 = vmul.f32 %v5399, %v4995
  %v5437 = vmul.f32 %v5401, %v4996
  %v5438 = vmul.f32 %v5403, %v4997
  %v5439 = vmul.f32 %v5405, %v4998
  %v5440 = vmul.f32 %v5407, %v4999
  %v5441 = vmul.f32 %v5409, %v5000
  %v5442 = vmul.f32 %v5379, %v5426
  %v5443 = vmul.f32 %v5381, %v5427
  %v5444 = vmul.f32 %v5383, %v5428
  %v5445 = vmul.f32 %v5385, %v5429
  %v5446 = vmul.f32 %v5387, %v5430
  %v5447 = vmul.f32 %v5389, %v5431
  %v5448 = vmul.f32 %v5391, %v5432
  %v5449 = vmul.f32 %v5393, %v5433
  %v5450 = vadd.f32 %v5434, %v5442
  %v5451 = vadd.f32 %v5435, %v5443
  %v5452 = vadd.f32 %v5436, %v5444
  %v5453 = vadd.f32 %v5437, %v5445
  %v5454 = vadd.f32 %v5438, %v5446
  %v5455 = vadd.f32 %v5439, %v5447
  %v5456 = vadd.f32 %v5440, %v5448
  %v5457 = vadd.f32 %v5441, %v5449
  %v5458 = vtanh.pop %v5450
  %v5459 = vtanh.pop %v5451
  %v5460 = vtanh.pop %v5452
  %v5461 = vtanh.pop %v5453
  %v5462 = vtanh.pop %v5454
  %v5463 = vtanh.pop %v5455
  %v5464 = vtanh.pop %v5456
  %v5465 = vtanh.pop %v5457
  %v5466 = vmul.f32 %v5411, %v5458
  %v5467 = vmul.f32 %v5413, %v5459
  %v5468 = vmul.f32 %v5415, %v5460
  %v5469 = vmul.f32 %v5417, %v5461
  %v5470 = vmul.f32 %v5419, %v5462
  %v5471 = vmul.f32 %v5421, %v5463
  %v5472 = vmul.f32 %v5423, %v5464
  %v5473 = vmul.f32 %v5425, %v5465
  %5474 = vst [vmem:[#allocation2 + $0x18] sm:$0xff] %v5466
  %5475 = vst [vmem:[#allocation2 + $0x58] sm:$0xff] %v5467
  %5476 = vst [vmem:[#allocation2 + $0x98] sm:$0xff] %v5468
  %5477 = vst [vmem:[#allocation2 + $0xd8] sm:$0xff] %v5469
  %5478 = vst [vmem:[#allocation2 + $0x118] sm:$0xff] %v5470
  %5479 = vst [vmem:[#allocation2 + $0x158] sm:$0xff] %v5471
  %5480 = vst [vmem:[#allocation2 + $0x198] sm:$0xff] %v5472
  %5481 = vst [vmem:[#allocation2 + $0x1d8] sm:$0xff] %v5473
  %5482 = vmatprep.subr.mxu0 0.0
  %5483 = vmatpush1.msra.mxu0 %v5466
  %5484 = vmatprep.subr.mxu0 0.0
  %5485 = vmatpush1.msra.mxu0 %v5467
  %5486 = vmatprep.subr.mxu0 0.0
  %5487 = vmatpush1.msra.mxu0 %v5468
  %5488 = vmatprep.subr.mxu0 0.0
  %5489 = vmatpush1.msra.mxu0 %v5469
  %5490 = vmatprep.subr.mxu0 0.0
  %5491 = vmatpush1.msra.mxu0 %v5470
  %5492 = vmatprep.subr.mxu0 0.0
  %5493 = vmatpush1.msra.mxu0 %v5471
  %5494 = vmatprep.subr.mxu0 0.0
  %5495 = vmatpush1.msra.mxu0 %v5472
  %5496 = vmatprep.subr.mxu0 0.0
  %5497 = vmatpush1.msra.mxu0 %v5473
  %5498 = vmatprep.subr.mxu0 0.0
  %5499 = vmatpush1.msra.mxu0 0.0
  %5500 = vmatprep.subr.mxu0 0.0
  %5501 = vmatpush1.msra.mxu0 0.0
  %5502 = vmatprep.subr.mxu0 0.0
  %5503 = vmatpush1.msra.mxu0 0.0
  %5504 = vmatprep.subr.mxu0 0.0
  %5505 = vmatpush1.msra.mxu0 0.0
  %5506 = vmatprep.subr.mxu0 0.0
  %5507 = vmatpush1.msra.mxu0 0.0
  %5508 = vmatprep.subr.mxu0 0.0
  %5509 = vmatpush1.msra.mxu0 0.0
  %5510 = vmatprep.subr.mxu0 0.0
  %5511 = vmatpush1.msra.mxu0 0.0
  %5512 = vmatprep.subr.mxu0 0.0
  %5513 = vmatpush1.msra.mxu0 0.0
  %5514 = vmatprep.subr.mxu0 0.0
  %5515 = vmatpush1.msra.mxu0 0.0
  %5516 = vmatprep.subr.mxu0 0.0
  %5517 = vmatpush1.msra.mxu0 0.0
  %5518 = vmatprep.subr.mxu0 0.0
  %5519 = vmatpush1.msra.mxu0 0.0
  %5520 = vmatprep.subr.mxu0 0.0
  %5521 = vmatpush1.msra.mxu0 0.0
  %5522 = vmatprep.subr.mxu0 0.0
  %5523 = vmatpush1.msra.mxu0 0.0
  %5524 = vmatprep.subr.mxu0 0.0
  %5525 = vmatpush1.msra.mxu0 0.0
  %5526 = vmatprep.subr.mxu0 0.0
  %5527 = vmatpush1.msra.mxu0 0.0
  %5528 = vmatprep.subr.mxu0 0.0
  %5529 = vmatpush1.msra.mxu0 0.0
  %5530 = vmatprep.subr.mxu0 0.0
  %5531 = vmatpush1.msra.mxu0 0.0
  %5532 = vmatprep.subr.mxu0 0.0
  %5533 = vmatpush1.msra.mxu0 0.0
  %5534 = vmatprep.subr.mxu0 0.0
  %5535 = vmatpush1.msra.mxu0 0.0
  %5536 = vmatprep.subr.mxu0 0.0
  %5537 = vmatpush1.msra.mxu0 0.0
  %5538 = vmatprep.subr.mxu0 0.0
  %5539 = vmatpush1.msra.mxu0 0.0
  %5540 = vmatprep.subr.mxu0 0.0
  %5541 = vmatpush1.msra.mxu0 0.0
  %5542 = vmatprep.subr.mxu0 0.0
  %5543 = vmatpush1.msra.mxu0 0.0
  %5544 = vmatprep.subr.mxu0 0.0
  %5545 = vmatpush1.msra.mxu0 0.0
  %5546 = vmatprep.mubr.f32.mxu0 0.0
  %5547 = vmatmul.mubr.f32.gmra.mrb[0].mxu0 %v3559
  %v5548 = vpop.f32.mrb[0].mxu0
  %v5549 = vadd.f32 0.0, %v5548
  %v5550 = vpop.f32.mrb[0].mxu0
  %5551 = vmatprep.mubr.f32.mxu0 0.0
  %5552 = vmatmul.mubr.f32.gmra.mrb[0].mxu0 %v3562
  %v5553 = vpop.f32.mrb[0].mxu0
  %v5554 = vadd.f32 0.0, %v5553
  %v5555 = vpop.f32.mrb[0].mxu0
  %5556 = vmatprep.mubr.f32.mxu0 0.0
  %5557 = vmatmul.mubr.f32.gmra.mrb[0].mxu0 %v3565
  %v5558 = vpop.f32.mrb[0].mxu0
  %v5559 = vadd.f32 0.0, %v5558
  %v5560 = vpop.f32.mrb[0].mxu0
  %5561 = vmatprep.mubr.f32.mxu0 0.0
  %5562 = vmatmul.mubr.f32.gmra.mrb[0].mxu0 %v3568
  %v5563 = vpop.f32.mrb[0].mxu0
  %v5564 = vadd.f32 0.0, %v5563
  %v5565 = vpop.f32.mrb[0].mxu0
  %5566 = vmatprep.mubr.f32.mxu0 0.0
  %5567 = vmatmul.mubr.f32.gmra.mrb[0].mxu0 %v3571
  %v5568 = vpop.f32.mrb[0].mxu0
  %v5569 = vadd.f32 0.0, %v5568
  %v5570 = vpop.f32.mrb[0].mxu0
  %5571 = vmatprep.mubr.f32.mxu0 0.0
  %5572 = vmatmul.mubr.f32.gmra.mrb[0].mxu0 %v3574
  %v5573 = vpop.f32.mrb[0].mxu0
  %v5574 = vadd.f32 0.0, %v5573
  %v5575 = vpop.f32.mrb[0].mxu0
  %5576 = vmatprep.mubr.f32.mxu0 0.0
  %5577 = vmatmul.mubr.f32.gmra.mrb[0].mxu0 %v3577
  %v5578 = vpop.f32.mrb[0].mxu0
  %v5579 = vadd.f32 0.0, %v5578
  %v5580 = vpop.f32.mrb[0].mxu0
  %5581 = vmatprep.mubr.f32.mxu0 0.0
  %5582 = vmatmul.mubr.f32.gmra.mrb[0].mxu0 %v3580
  %v5583 = vpop.f32.mrb[0].mxu0
  %v5584 = vadd.f32 0.0, %v5583
  %v5585 = vpop.f32.mrb[0].mxu0
  %5586 = vmatprep.mubr.f32.mxu0 0.0
  %5587 = vmatmul.mubr.f32.gmra.mrb[0].mxu0 %v3583
  %v5588 = vpop.f32.mrb[0].mxu0
  %v5589 = vadd.f32 0.0, %v5588
  %v5590 = vpop.f32.mrb[0].mxu0
  %5591 = vmatprep.mubr.f32.mxu0 0.0
  %5592 = vmatmul.mubr.f32.gmra.mrb[0].mxu0 %v3586
  %v5593 = vpop.f32.mrb[0].mxu0
  %v5594 = vadd.f32 0.0, %v5593
  %v5595 = vpop.f32.mrb[0].mxu0
  %5596 = vmatprep.mubr.f32.mxu0 0.0
  %5597 = vmatmul.mubr.f32.gmra.mrb[0].mxu0 %v3589
  %v5598 = vpop.f32.mrb[0].mxu0
  %v5599 = vadd.f32 0.0, %v5598
  %v5600 = vpop.f32.mrb[0].mxu0
  %5601 = vmatprep.mubr.f32.mxu0 0.0
  %5602 = vmatmul.mubr.f32.gmra.mrb[0].mxu0 %v3592
  %v5603 = vpop.f32.mrb[0].mxu0
  %v5604 = vadd.f32 0.0, %v5603
  %v5605 = vpop.f32.mrb[0].mxu0
  %5606 = vmatprep.mubr.f32.mxu0 0.0
  %5607 = vmatmul.mubr.f32.gmra.mrb[0].mxu0 %v3595
  %v5608 = vpop.f32.mrb[0].mxu0
  %v5609 = vadd.f32 0.0, %v5608
  %v5610 = vpop.f32.mrb[0].mxu0
  %5611 = vmatprep.mubr.f32.mxu0 0.0
  %5612 = vmatmul.mubr.f32.gmra.mrb[0].mxu0 %v3598
  %v5613 = vpop.f32.mrb[0].mxu0
  %v5614 = vadd.f32 0.0, %v5613
  %v5615 = vpop.f32.mrb[0].mxu0
  %5616 = vmatprep.mubr.f32.mxu0 0.0
  %5617 = vmatmul.mubr.f32.gmra.mrb[0].mxu0 %v3601
  %v5618 = vpop.f32.mrb[0].mxu0
  %v5619 = vadd.f32 0.0, %v5618
  %v5620 = vpop.f32.mrb[0].mxu0
  %5621 = vmatprep.mubr.f32.mxu0 0.0
  %5622 = vmatmul.mubr.f32.gmra.mrb[0].mxu0 %v3604
  %v5623 = vpop.f32.mrb[0].mxu0
  %v5624 = vadd.f32 0.0, %v5623
  %v5625 = vpop.f32.mrb[0].mxu0
  %5626 = vmatprep.mubr.f32.mxu0 0.0
  %5627 = vmatmul.mubr.f32.gmra.mrb[0].mxu0 %v3607
  %v5628 = vpop.f32.mrb[0].mxu0
  %v5629 = vadd.f32 0.0, %v5628
  %v5630 = vpop.f32.mrb[0].mxu0
  %5631 = vmatprep.mubr.f32.mxu0 0.0
  %5632 = vmatmul.mubr.f32.gmra.mrb[0].mxu0 %v3610
  %v5633 = vpop.f32.mrb[0].mxu0
  %v5634 = vadd.f32 0.0, %v5633
  %v5635 = vpop.f32.mrb[0].mxu0
  %5636 = vmatprep.mubr.f32.mxu0 0.0
  %5637 = vmatmul.mubr.f32.gmra.mrb[0].mxu0 %v3613
  %v5638 = vpop.f32.mrb[0].mxu0
  %v5639 = vadd.f32 0.0, %v5638
  %v5640 = vpop.f32.mrb[0].mxu0
  %5641 = vmatprep.mubr.f32.mxu0 0.0
  %5642 = vmatmul.mubr.f32.gmra.mrb[0].mxu0 %v3616
  %v5643 = vpop.f32.mrb[0].mxu0
  %v5644 = vadd.f32 0.0, %v5643
  %v5645 = vpop.f32.mrb[0].mxu0
  %5646 = vmatprep.mubr.f32.mxu0 0.0
  %5647 = vmatmul.mubr.f32.gmra.mrb[0].mxu0 %v3619
  %v5648 = vpop.f32.mrb[0].mxu0
  %v5649 = vadd.f32 0.0, %v5648
  %v5650 = vpop.f32.mrb[0].mxu0
  %5651 = vmatprep.mubr.f32.mxu0 0.0
  %5652 = vmatmul.mubr.f32.gmra.mrb[0].mxu0 %v3622
  %v5653 = vpop.f32.mrb[0].mxu0
  %v5654 = vadd.f32 0.0, %v5653
  %v5655 = vpop.f32.mrb[0].mxu0
  %5656 = vmatprep.mubr.f32.mxu0 0.0
  %5657 = vmatmul.mubr.f32.gmra.mrb[0].mxu0 %v3625
  %v5658 = vpop.f32.mrb[0].mxu0
  %v5659 = vadd.f32 0.0, %v5658
  %v5660 = vpop.f32.mrb[0].mxu0
  %5661 = vmatprep.mubr.f32.mxu0 0.0
  %5662 = vmatmul.mubr.f32.gmra.mrb[0].mxu0 %v3628
  %v5663 = vpop.f32.mrb[0].mxu0
  %v5664 = vadd.f32 0.0, %v5663
  %v5665 = vpop.f32.mrb[0].mxu0
  %5666 = vmatprep.mubr.f32.mxu0 0.0
  %5667 = vmatmul.mubr.f32.gmra.mrb[0].mxu0 %v3631
  %v5668 = vpop.f32.mrb[0].mxu0
  %v5669 = vadd.f32 0.0, %v5668
  %v5670 = vpop.f32.mrb[0].mxu0
  %5671 = vmatprep.mubr.f32.mxu0 0.0
  %5672 = vmatmul.mubr.f32.gmra.mrb[0].mxu0 %v3634
  %v5673 = vpop.f32.mrb[0].mxu0
  %v5674 = vadd.f32 0.0, %v5673
  %v5675 = vpop.f32.mrb[0].mxu0
  %5676 = vmatprep.mubr.f32.mxu0 0.0
  %5677 = vmatmul.mubr.f32.gmra.mrb[0].mxu0 %v3637
  %v5678 = vpop.f32.mrb[0].mxu0
  %v5679 = vadd.f32 0.0, %v5678
  %v5680 = vpop.f32.mrb[0].mxu0
  %5681 = vmatprep.mubr.f32.mxu0 0.0
  %5682 = vmatmul.mubr.f32.gmra.mrb[0].mxu0 %v3640
  %v5683 = vpop.f32.mrb[0].mxu0
  %v5684 = vadd.f32 0.0, %v5683
  %v5685 = vpop.f32.mrb[0].mxu0
  %5686 = vmatprep.mubr.f32.mxu0 0.0
  %5687 = vmatmul.mubr.f32.gmra.mrb[0].mxu0 %v3643
  %v5688 = vpop.f32.mrb[0].mxu0
  %v5689 = vadd.f32 0.0, %v5688
  %v5690 = vpop.f32.mrb[0].mxu0
  %5691 = vmatprep.mubr.f32.mxu0 0.0
  %5692 = vmatmul.mubr.f32.gmra.mrb[0].mxu0 %v3646
  %v5693 = vpop.f32.mrb[0].mxu0
  %v5694 = vadd.f32 0.0, %v5693
  %v5695 = vpop.f32.mrb[0].mxu0
  %5696 = vmatprep.mubr.f32.mxu0 0.0
  %5697 = vmatmul.mubr.f32.gmra.mrb[0].mxu0 %v3649
  %v5698 = vpop.f32.mrb[0].mxu0
  %v5699 = vadd.f32 0.0, %v5698
  %v5700 = vpop.f32.mrb[0].mxu0
  %5701 = vmatprep.mubr.f32.mxu0 0.0
  %5702 = vmatmul.mubr.f32.gmra.mrb[0].mxu0 %v3652
  %v5703 = vpop.f32.mrb[0].mxu0
  %v5704 = vadd.f32 0.0, %v5703
  %v5705 = vpop.f32.mrb[0].mxu0
  %5706 = vdwg.mxu0
  %v5707 = vadd.f32 %v3399, %v5549
  %v5708 = vadd.f32 %v3404, %v5554
  %v5709 = vadd.f32 %v3409, %v5559
  %v5710 = vadd.f32 %v3414, %v5564
  %v5711 = vadd.f32 %v3419, %v5569
  %v5712 = vadd.f32 %v3424, %v5574
  %v5713 = vadd.f32 %v3429, %v5579
  %v5714 = vadd.f32 %v3434, %v5584
  %v5715 = vadd.f32 %v3439, %v5589
  %v5716 = vadd.f32 %v3444, %v5594
  %v5717 = vadd.f32 %v3449, %v5599
  %v5718 = vadd.f32 %v3454, %v5604
  %v5719 = vadd.f32 %v3459, %v5609
  %v5720 = vadd.f32 %v3464, %v5614
  %v5721 = vadd.f32 %v3469, %v5619
  %v5722 = vadd.f32 %v3474, %v5624
  %v5723 = vadd.f32 %v3479, %v5629
  %v5724 = vadd.f32 %v3484, %v5634
  %v5725 = vadd.f32 %v3489, %v5639
  %v5726 = vadd.f32 %v3494, %v5644
  %v5727 = vadd.f32 %v3499, %v5649
  %v5728 = vadd.f32 %v3504, %v5654
  %v5729 = vadd.f32 %v3509, %v5659
  %v5730 = vadd.f32 %v3514, %v5664
  %v5731 = vadd.f32 %v3519, %v5669
  %v5732 = vadd.f32 %v3524, %v5674
  %v5733 = vadd.f32 %v3529, %v5679
  %v5734 = vadd.f32 %v3534, %v5684
  %v5735 = vadd.f32 %v3539, %v5689
  %v5736 = vadd.f32 %v3544, %v5694
  %v5737 = vadd.f32 %v3549, %v5699
  %v5738 = vadd.f32 %v3554, %v5704
  %v5739 = vxor.u32 %v5707, 2147483648
  %v5740 = vxor.u32 %v5708, 2147483648
  %v5741 = vxor.u32 %v5709, 2147483648
  %v5742 = vxor.u32 %v5710, 2147483648
  %v5743 = vxor.u32 %v5711, 2147483648
  %v5744 = vxor.u32 %v5712, 2147483648
  %v5745 = vxor.u32 %v5713, 2147483648
  %v5746 = vxor.u32 %v5714, 2147483648
  %v5747 = vxor.u32 %v5715, 2147483648
  %v5748 = vxor.u32 %v5716, 2147483648
  %v5749 = vxor.u32 %v5717, 2147483648
  %v5750 = vxor.u32 %v5718, 2147483648
  %v5751 = vxor.u32 %v5719, 2147483648
  %v5752 = vxor.u32 %v5720, 2147483648
  %v5753 = vxor.u32 %v5721, 2147483648
  %v5754 = vxor.u32 %v5722, 2147483648
  %v5755 = vxor.u32 %v5723, 2147483648
  %v5756 = vxor.u32 %v5724, 2147483648
  %v5757 = vxor.u32 %v5725, 2147483648
  %v5758 = vxor.u32 %v5726, 2147483648
  %v5759 = vxor.u32 %v5727, 2147483648
  %v5760 = vxor.u32 %v5728, 2147483648
  %v5761 = vxor.u32 %v5729, 2147483648
  %v5762 = vxor.u32 %v5730, 2147483648
  %v5763 = vmul.f32 %v5739, 1.442695
  %v5764 = vpow.pop %v5763
  %v5765 = vmul.f32 %v5740, 1.442695
  %v5766 = vpow.pop %v5765
  %v5767 = vmul.f32 %v5741, 1.442695
  %v5768 = vpow.pop %v5767
  %v5769 = vmul.f32 %v5742, 1.442695
  %v5770 = vpow.pop %v5769
  %v5771 = vmul.f32 %v5743, 1.442695
  %v5772 = vpow.pop %v5771
  %v5773 = vmul.f32 %v5744, 1.442695
  %v5774 = vpow.pop %v5773
  %v5775 = vmul.f32 %v5745, 1.442695
  %v5776 = vpow.pop %v5775
  %v5777 = vmul.f32 %v5746, 1.442695
  %v5778 = vpow.pop %v5777
  %v5779 = vmul.f32 %v5747, 1.442695
  %v5780 = vpow.pop %v5779
  %v5781 = vmul.f32 %v5748, 1.442695
  %v5782 = vpow.pop %v5781
  %v5783 = vmul.f32 %v5749, 1.442695
  %v5784 = vpow.pop %v5783
  %v5785 = vmul.f32 %v5750, 1.442695
  %v5786 = vpow.pop %v5785
  %v5787 = vmul.f32 %v5751, 1.442695
  %v5788 = vpow.pop %v5787
  %v5789 = vmul.f32 %v5752, 1.442695
  %v5790 = vpow.pop %v5789
  %v5791 = vmul.f32 %v5753, 1.442695
  %v5792 = vpow.pop %v5791
  %v5793 = vmul.f32 %v5754, 1.442695
  %v5794 = vpow.pop %v5793
  %v5795 = vmul.f32 %v5755, 1.442695
  %v5796 = vpow.pop %v5795
  %v5797 = vmul.f32 %v5756, 1.442695
  %v5798 = vpow.pop %v5797
  %v5799 = vmul.f32 %v5757, 1.442695
  %v5800 = vpow.pop %v5799
  %v5801 = vmul.f32 %v5758, 1.442695
  %v5802 = vpow.pop %v5801
  %v5803 = vmul.f32 %v5759, 1.442695
  %v5804 = vpow.pop %v5803
  %v5805 = vmul.f32 %v5760, 1.442695
  %v5806 = vpow.pop %v5805
  %v5807 = vmul.f32 %v5761, 1.442695
  %v5808 = vpow.pop %v5807
  %v5809 = vmul.f32 %v5762, 1.442695
  %v5810 = vpow.pop %v5809
  %v5811 = vadd.f32 %v5764, 1.0
  %v5812 = vadd.f32 %v5766, 1.0
  %v5813 = vadd.f32 %v5768, 1.0
  %v5814 = vadd.f32 %v5770, 1.0
  %v5815 = vadd.f32 %v5772, 1.0
  %v5816 = vadd.f32 %v5774, 1.0
  %v5817 = vadd.f32 %v5776, 1.0
  %v5818 = vadd.f32 %v5778, 1.0
  %v5819 = vadd.f32 %v5780, 1.0
  %v5820 = vadd.f32 %v5782, 1.0
  %v5821 = vadd.f32 %v5784, 1.0
  %v5822 = vadd.f32 %v5786, 1.0
  %v5823 = vadd.f32 %v5788, 1.0
  %v5824 = vadd.f32 %v5790, 1.0
  %v5825 = vadd.f32 %v5792, 1.0
  %v5826 = vadd.f32 %v5794, 1.0
  %v5827 = vadd.f32 %v5796, 1.0
  %v5828 = vadd.f32 %v5798, 1.0
  %v5829 = vadd.f32 %v5800, 1.0
  %v5830 = vadd.f32 %v5802, 1.0
  %v5831 = vadd.f32 %v5804, 1.0
  %v5832 = vadd.f32 %v5806, 1.0
  %v5833 = vadd.f32 %v5808, 1.0
  %v5834 = vadd.f32 %v5810, 1.0
  %v5835 = vrcp.pop %v5811
  %v5836 = vmul.f32 1.0, %v5835
  %v5837 = vrcp.pop %v5812
  %v5838 = vmul.f32 1.0, %v5837
  %v5839 = vrcp.pop %v5813
  %v5840 = vmul.f32 1.0, %v5839
  %v5841 = vrcp.pop %v5814
  %v5842 = vmul.f32 1.0, %v5841
  %v5843 = vrcp.pop %v5815
  %v5844 = vmul.f32 1.0, %v5843
  %v5845 = vrcp.pop %v5816
  %v5846 = vmul.f32 1.0, %v5845
  %v5847 = vrcp.pop %v5817
  %v5848 = vmul.f32 1.0, %v5847
  %v5849 = vrcp.pop %v5818
  %v5850 = vmul.f32 1.0, %v5849
  %v5851 = vrcp.pop %v5819
  %v5852 = vmul.f32 1.0, %v5851
  %v5853 = vrcp.pop %v5820
  %v5854 = vmul.f32 1.0, %v5853
  %v5855 = vrcp.pop %v5821
  %v5856 = vmul.f32 1.0, %v5855
  %v5857 = vrcp.pop %v5822
  %v5858 = vmul.f32 1.0, %v5857
  %v5859 = vrcp.pop %v5823
  %v5860 = vmul.f32 1.0, %v5859
  %v5861 = vrcp.pop %v5824
  %v5862 = vmul.f32 1.0, %v5861
  %v5863 = vrcp.pop %v5825
  %v5864 = vmul.f32 1.0, %v5863
  %v5865 = vrcp.pop %v5826
  %v5866 = vmul.f32 1.0, %v5865
  %v5867 = vrcp.pop %v5827
  %v5868 = vmul.f32 1.0, %v5867
  %v5869 = vrcp.pop %v5828
  %v5870 = vmul.f32 1.0, %v5869
  %v5871 = vrcp.pop %v5829
  %v5872 = vmul.f32 1.0, %v5871
  %v5873 = vrcp.pop %v5830
  %v5874 = vmul.f32 1.0, %v5873
  %v5875 = vrcp.pop %v5831
  %v5876 = vmul.f32 1.0, %v5875
  %v5877 = vrcp.pop %v5832
  %v5878 = vmul.f32 1.0, %v5877
  %v5879 = vrcp.pop %v5833
  %v5880 = vmul.f32 1.0, %v5879
  %v5881 = vrcp.pop %v5834
  %v5882 = vmul.f32 1.0, %v5881
  %v5883 = vtanh.pop %v5731
  %v5884 = vtanh.pop %v5732
  %v5885 = vtanh.pop %v5733
  %v5886 = vtanh.pop %v5734
  %v5887 = vtanh.pop %v5735
  %v5888 = vtanh.pop %v5736
  %v5889 = vtanh.pop %v5737
  %v5890 = vtanh.pop %v5738
  %v5891 = vmul.f32 %v5852, %v5450
  %v5892 = vmul.f32 %v5854, %v5451
  %v5893 = vmul.f32 %v5856, %v5452
  %v5894 = vmul.f32 %v5858, %v5453
  %v5895 = vmul.f32 %v5860, %v5454
  %v5896 = vmul.f32 %v5862, %v5455
  %v5897 = vmul.f32 %v5864, %v5456
  %v5898 = vmul.f32 %v5866, %v5457
  %v5899 = vmul.f32 %v5836, %v5883
  %v5900 = vmul.f32 %v5838, %v5884
  %v5901 = vmul.f32 %v5840, %v5885
  %v5902 = vmul.f32 %v5842, %v5886
  %v5903 = vmul.f32 %v5844, %v5887
  %v5904 = vmul.f32 %v5846, %v5888
  %v5905 = vmul.f32 %v5848, %v5889
  %v5906 = vmul.f32 %v5850, %v5890
  %v5907 = vadd.f32 %v5891, %v5899
  %v5908 = vadd.f32 %v5892, %v5900
  %v5909 = vadd.f32 %v5893, %v5901
  %v5910 = vadd.f32 %v5894, %v5902
  %v5911 = vadd.f32 %v5895, %v5903
  %v5912 = vadd.f32 %v5896, %v5904
  %v5913 = vadd.f32 %v5897, %v5905
  %v5914 = vadd.f32 %v5898, %v5906
  %v5915 = vtanh.pop %v5907
  %v5916 = vtanh.pop %v5908
  %v5917 = vtanh.pop %v5909
  %v5918 = vtanh.pop %v5910
  %v5919 = vtanh.pop %v5911
  %v5920 = vtanh.pop %v5912
  %v5921 = vtanh.pop %v5913
  %v5922 = vtanh.pop %v5914
  %v5923 = vmul.f32 %v5868, %v5915
  %v5924 = vmul.f32 %v5870, %v5916
  %v5925 = vmul.f32 %v5872, %v5917
  %v5926 = vmul.f32 %v5874, %v5918
  %v5927 = vmul.f32 %v5876, %v5919
  %v5928 = vmul.f32 %v5878, %v5920
  %v5929 = vmul.f32 %v5880, %v5921
  %v5930 = vmul.f32 %v5882, %v5922
  %5931 = vst [vmem:[#allocation2 + $0x20] sm:$0xff] %v5923
  %5932 = vst [vmem:[#allocation2 + $0x60] sm:$0xff] %v5924
  %5933 = vst [vmem:[#allocation2 + $0xa0] sm:$0xff] %v5925
  %5934 = vst [vmem:[#allocation2 + $0xe0] sm:$0xff] %v5926
  %5935 = vst [vmem:[#allocation2 + $0x120] sm:$0xff] %v5927
  %5936 = vst [vmem:[#allocation2 + $0x160] sm:$0xff] %v5928
  %5937 = vst [vmem:[#allocation2 + $0x1a0] sm:$0xff] %v5929
  %5938 = vst [vmem:[#allocation2 + $0x1e0] sm:$0xff] %v5930
  %5939 = vmatprep.subr.mxu0 0.0
  %5940 = vmatpush1.msra.mxu0 %v5923
  %5941 = vmatprep.subr.mxu0 0.0
  %5942 = vmatpush1.msra.mxu0 %v5924
  %5943 = vmatprep.subr.mxu0 0.0
  %5944 = vmatpush1.msra.mxu0 %v5925
  %5945 = vmatprep.subr.mxu0 0.0
  %5946 = vmatpush1.msra.mxu0 %v5926
  %5947 = vmatprep.subr.mxu0 0.0
  %5948 = vmatpush1.msra.mxu0 %v5927
  %5949 = vmatprep.subr.mxu0 0.0
  %5950 = vmatpush1.msra.mxu0 %v5928
  %5951 = vmatprep.subr.mxu0 0.0
  %5952 = vmatpush1.msra.mxu0 %v5929
  %5953 = vmatprep.subr.mxu0 0.0
  %5954 = vmatpush1.msra.mxu0 %v5930
  %5955 = vmatprep.subr.mxu0 0.0
  %5956 = vmatpush1.msra.mxu0 0.0
  %5957 = vmatprep.subr.mxu0 0.0
  %5958 = vmatpush1.msra.mxu0 0.0
  %5959 = vmatprep.subr.mxu0 0.0
  %5960 = vmatpush1.msra.mxu0 0.0
  %5961 = vmatprep.subr.mxu0 0.0
  %5962 = vmatpush1.msra.mxu0 0.0
  %5963 = vmatprep.subr.mxu0 0.0
  %5964 = vmatpush1.msra.mxu0 0.0
  %5965 = vmatprep.subr.mxu0 0.0
  %5966 = vmatpush1.msra.mxu0 0.0
  %5967 = vmatprep.subr.mxu0 0.0
  %5968 = vmatpush1.msra.mxu0 0.0
  %5969 = vmatprep.subr.mxu0 0.0
  %5970 = vmatpush1.msra.mxu0 0.0
  %5971 = vmatprep.subr.mxu0 0.0
  %5972 = vmatpush1.msra.mxu0 0.0
  %5973 = vmatprep.subr.mxu0 0.0
  %5974 = vmatpush1.msra.mxu0 0.0
  %5975 = vmatprep.subr.mxu0 0.0
  %5976 = vmatpush1.msra.mxu0 0.0
  %5977 = vmatprep.subr.mxu0 0.0
  %5978 = vmatpush1.msra.mxu0 0.0
  %5979 = vmatprep.subr.mxu0 0.0
  %5980 = vmatpush1.msra.mxu0 0.0
  %5981 = vmatprep.subr.mxu0 0.0
  %5982 = vmatpush1.msra.mxu0 0.0
  %5983 = vmatprep.subr.mxu0 0.0
  %5984 = vmatpush1.msra.mxu0 0.0
  %5985 = vmatprep.subr.mxu0 0.0
  %5986 = vmatpush1.msra.mxu0 0.0
  %5987 = vmatprep.subr.mxu0 0.0
  %5988 = vmatpush1.msra.mxu0 0.0
  %5989 = vmatprep.subr.mxu0 0.0
  %5990 = vmatpush1.msra.mxu0 0.0
  %5991 = vmatprep.subr.mxu0 0.0
  %5992 = vmatpush1.msra.mxu0 0.0
  %5993 = vmatprep.subr.mxu0 0.0
  %5994 = vmatpush1.msra.mxu0 0.0
  %5995 = vmatprep.subr.mxu0 0.0
  %5996 = vmatpush1.msra.mxu0 0.0
  %5997 = vmatprep.subr.mxu0 0.0
  %5998 = vmatpush1.msra.mxu0 0.0
  %5999 = vmatprep.subr.mxu0 0.0
  %6000 = vmatpush1.msra.mxu0 0.0
  %6001 = vmatprep.subr.mxu0 0.0
  %6002 = vmatpush1.msra.mxu0 0.0
  %6003 = vmatprep.mubr.f32.mxu0 0.0
  %6004 = vmatmul.mubr.f32.gmra.mrb[0].mxu0 %v3559
  %v6005 = vpop.f32.mrb[0].mxu0
  %v6006 = vadd.f32 0.0, %v6005
  %v6007 = vpop.f32.mrb[0].mxu0
  %6008 = vmatprep.mubr.f32.mxu0 0.0
  %6009 = vmatmul.mubr.f32.gmra.mrb[0].mxu0 %v3562
  %v6010 = vpop.f32.mrb[0].mxu0
  %v6011 = vadd.f32 0.0, %v6010
  %v6012 = vpop.f32.mrb[0].mxu0
  %6013 = vmatprep.mubr.f32.mxu0 0.0
  %6014 = vmatmul.mubr.f32.gmra.mrb[0].mxu0 %v3565
  %v6015 = vpop.f32.mrb[0].mxu0
  %v6016 = vadd.f32 0.0, %v6015
  %v6017 = vpop.f32.mrb[0].mxu0
  %6018 = vmatprep.mubr.f32.mxu0 0.0
  %6019 = vmatmul.mubr.f32.gmra.mrb[0].mxu0 %v3568
  %v6020 = vpop.f32.mrb[0].mxu0
  %v6021 = vadd.f32 0.0, %v6020
  %v6022 = vpop.f32.mrb[0].mxu0
  %6023 = vmatprep.mubr.f32.mxu0 0.0
  %6024 = vmatmul.mubr.f32.gmra.mrb[0].mxu0 %v3571
  %v6025 = vpop.f32.mrb[0].mxu0
  %v6026 = vadd.f32 0.0, %v6025
  %v6027 = vpop.f32.mrb[0].mxu0
  %6028 = vmatprep.mubr.f32.mxu0 0.0
  %6029 = vmatmul.mubr.f32.gmra.mrb[0].mxu0 %v3574
  %v6030 = vpop.f32.mrb[0].mxu0
  %v6031 = vadd.f32 0.0, %v6030
  %v6032 = vpop.f32.mrb[0].mxu0
  %6033 = vmatprep.mubr.f32.mxu0 0.0
  %6034 = vmatmul.mubr.f32.gmra.mrb[0].mxu0 %v3577
  %v6035 = vpop.f32.mrb[0].mxu0
  %v6036 = vadd.f32 0.0, %v6035
  %v6037 = vpop.f32.mrb[0].mxu0
  %6038 = vmatprep.mubr.f32.mxu0 0.0
  %6039 = vmatmul.mubr.f32.gmra.mrb[0].mxu0 %v3580
  %v6040 = vpop.f32.mrb[0].mxu0
  %v6041 = vadd.f32 0.0, %v6040
  %v6042 = vpop.f32.mrb[0].mxu0
  %6043 = vmatprep.mubr.f32.mxu0 0.0
  %6044 = vmatmul.mubr.f32.gmra.mrb[0].mxu0 %v3583
  %v6045 = vpop.f32.mrb[0].mxu0
  %v6046 = vadd.f32 0.0, %v6045
  %v6047 = vpop.f32.mrb[0].mxu0
  %6048 = vmatprep.mubr.f32.mxu0 0.0
  %6049 = vmatmul.mubr.f32.gmra.mrb[0].mxu0 %v3586
  %v6050 = vpop.f32.mrb[0].mxu0
  %v6051 = vadd.f32 0.0, %v6050
  %v6052 = vpop.f32.mrb[0].mxu0
  %6053 = vmatprep.mubr.f32.mxu0 0.0
  %6054 = vmatmul.mubr.f32.gmra.mrb[0].mxu0 %v3589
  %v6055 = vpop.f32.mrb[0].mxu0
  %v6056 = vadd.f32 0.0, %v6055
  %v6057 = vpop.f32.mrb[0].mxu0
  %6058 = vmatprep.mubr.f32.mxu0 0.0
  %6059 = vmatmul.mubr.f32.gmra.mrb[0].mxu0 %v3592
  %v6060 = vpop.f32.mrb[0].mxu0
  %v6061 = vadd.f32 0.0, %v6060
  %v6062 = vpop.f32.mrb[0].mxu0
  %6063 = vmatprep.mubr.f32.mxu0 0.0
  %6064 = vmatmul.mubr.f32.gmra.mrb[0].mxu0 %v3595
  %v6065 = vpop.f32.mrb[0].mxu0
  %v6066 = vadd.f32 0.0, %v6065
  %v6067 = vpop.f32.mrb[0].mxu0
  %6068 = vmatprep.mubr.f32.mxu0 0.0
  %6069 = vmatmul.mubr.f32.gmra.mrb[0].mxu0 %v3598
  %v6070 = vpop.f32.mrb[0].mxu0
  %v6071 = vadd.f32 0.0, %v6070
  %v6072 = vpop.f32.mrb[0].mxu0
  %6073 = vmatprep.mubr.f32.mxu0 0.0
  %6074 = vmatmul.mubr.f32.gmra.mrb[0].mxu0 %v3601
  %v6075 = vpop.f32.mrb[0].mxu0
  %v6076 = vadd.f32 0.0, %v6075
  %v6077 = vpop.f32.mrb[0].mxu0
  %6078 = vmatprep.mubr.f32.mxu0 0.0
  %6079 = vmatmul.mubr.f32.gmra.mrb[0].mxu0 %v3604
  %v6080 = vpop.f32.mrb[0].mxu0
  %v6081 = vadd.f32 0.0, %v6080
  %v6082 = vpop.f32.mrb[0].mxu0
  %6083 = vmatprep.mubr.f32.mxu0 0.0
  %6084 = vmatmul.mubr.f32.gmra.mrb[0].mxu0 %v3607
  %v6085 = vpop.f32.mrb[0].mxu0
  %v6086 = vadd.f32 0.0, %v6085
  %v6087 = vpop.f32.mrb[0].mxu0
  %6088 = vmatprep.mubr.f32.mxu0 0.0
  %6089 = vmatmul.mubr.f32.gmra.mrb[0].mxu0 %v3610
  %v6090 = vpop.f32.mrb[0].mxu0
  %v6091 = vadd.f32 0.0, %v6090
  %v6092 = vpop.f32.mrb[0].mxu0
  %6093 = vmatprep.mubr.f32.mxu0 0.0
  %6094 = vmatmul.mubr.f32.gmra.mrb[0].mxu0 %v3613
  %v6095 = vpop.f32.mrb[0].mxu0
  %v6096 = vadd.f32 0.0, %v6095
  %v6097 = vpop.f32.mrb[0].mxu0
  %6098 = vmatprep.mubr.f32.mxu0 0.0
  %6099 = vmatmul.mubr.f32.gmra.mrb[0].mxu0 %v3616
  %v6100 = vpop.f32.mrb[0].mxu0
  %v6101 = vadd.f32 0.0, %v6100
  %v6102 = vpop.f32.mrb[0].mxu0
  %6103 = vmatprep.mubr.f32.mxu0 0.0
  %6104 = vmatmul.mubr.f32.gmra.mrb[0].mxu0 %v3619
  %v6105 = vpop.f32.mrb[0].mxu0
  %v6106 = vadd.f32 0.0, %v6105
  %v6107 = vpop.f32.mrb[0].mxu0
  %6108 = vmatprep.mubr.f32.mxu0 0.0
  %6109 = vmatmul.mubr.f32.gmra.mrb[0].mxu0 %v3622
  %v6110 = vpop.f32.mrb[0].mxu0
  %v6111 = vadd.f32 0.0, %v6110
  %v6112 = vpop.f32.mrb[0].mxu0
  %6113 = vmatprep.mubr.f32.mxu0 0.0
  %6114 = vmatmul.mubr.f32.gmra.mrb[0].mxu0 %v3625
  %v6115 = vpop.f32.mrb[0].mxu0
  %v6116 = vadd.f32 0.0, %v6115
  %v6117 = vpop.f32.mrb[0].mxu0
  %6118 = vmatprep.mubr.f32.mxu0 0.0
  %6119 = vmatmul.mubr.f32.gmra.mrb[0].mxu0 %v3628
  %v6120 = vpop.f32.mrb[0].mxu0
  %v6121 = vadd.f32 0.0, %v6120
  %v6122 = vpop.f32.mrb[0].mxu0
  %6123 = vmatprep.mubr.f32.mxu0 0.0
  %6124 = vmatmul.mubr.f32.gmra.mrb[0].mxu0 %v3631
  %v6125 = vpop.f32.mrb[0].mxu0
  %v6126 = vadd.f32 0.0, %v6125
  %v6127 = vpop.f32.mrb[0].mxu0
  %6128 = vmatprep.mubr.f32.mxu0 0.0
  %6129 = vmatmul.mubr.f32.gmra.mrb[0].mxu0 %v3634
  %v6130 = vpop.f32.mrb[0].mxu0
  %v6131 = vadd.f32 0.0, %v6130
  %v6132 = vpop.f32.mrb[0].mxu0
  %6133 = vmatprep.mubr.f32.mxu0 0.0
  %6134 = vmatmul.mubr.f32.gmra.mrb[0].mxu0 %v3637
  %v6135 = vpop.f32.mrb[0].mxu0
  %v6136 = vadd.f32 0.0, %v6135
  %v6137 = vpop.f32.mrb[0].mxu0
  %6138 = vmatprep.mubr.f32.mxu0 0.0
  %6139 = vmatmul.mubr.f32.gmra.mrb[0].mxu0 %v3640
  %v6140 = vpop.f32.mrb[0].mxu0
  %v6141 = vadd.f32 0.0, %v6140
  %v6142 = vpop.f32.mrb[0].mxu0
  %6143 = vmatprep.mubr.f32.mxu0 0.0
  %6144 = vmatmul.mubr.f32.gmra.mrb[0].mxu0 %v3643
  %v6145 = vpop.f32.mrb[0].mxu0
  %v6146 = vadd.f32 0.0, %v6145
  %v6147 = vpop.f32.mrb[0].mxu0
  %6148 = vmatprep.mubr.f32.mxu0 0.0
  %6149 = vmatmul.mubr.f32.gmra.mrb[0].mxu0 %v3646
  %v6150 = vpop.f32.mrb[0].mxu0
  %v6151 = vadd.f32 0.0, %v6150
  %v6152 = vpop.f32.mrb[0].mxu0
  %6153 = vmatprep.mubr.f32.mxu0 0.0
  %6154 = vmatmul.mubr.f32.gmra.mrb[0].mxu0 %v3649
  %v6155 = vpop.f32.mrb[0].mxu0
  %v6156 = vadd.f32 0.0, %v6155
  %v6157 = vpop.f32.mrb[0].mxu0
  %6158 = vmatprep.mubr.f32.mxu0 0.0
  %6159 = vmatmul.mubr.f32.gmra.mrb[0].mxu0 %v3652
  %v6160 = vpop.f32.mrb[0].mxu0
  %v6161 = vadd.f32 0.0, %v6160
  %v6162 = vpop.f32.mrb[0].mxu0
  %6163 = vdwg.mxu0
  %v6164 = vadd.f32 %v3399, %v6006
  %v6165 = vadd.f32 %v3404, %v6011
  %v6166 = vadd.f32 %v3409, %v6016
  %v6167 = vadd.f32 %v3414, %v6021
  %v6168 = vadd.f32 %v3419, %v6026
  %v6169 = vadd.f32 %v3424, %v6031
  %v6170 = vadd.f32 %v3429, %v6036
  %v6171 = vadd.f32 %v3434, %v6041
  %v6172 = vadd.f32 %v3439, %v6046
  %v6173 = vadd.f32 %v3444, %v6051
  %v6174 = vadd.f32 %v3449, %v6056
  %v6175 = vadd.f32 %v3454, %v6061
  %v6176 = vadd.f32 %v3459, %v6066
  %v6177 = vadd.f32 %v3464, %v6071
  %v6178 = vadd.f32 %v3469, %v6076
  %v6179 = vadd.f32 %v3474, %v6081
  %v6180 = vadd.f32 %v3479, %v6086
  %v6181 = vadd.f32 %v3484, %v6091
  %v6182 = vadd.f32 %v3489, %v6096
  %v6183 = vadd.f32 %v3494, %v6101
  %v6184 = vadd.f32 %v3499, %v6106
  %v6185 = vadd.f32 %v3504, %v6111
  %v6186 = vadd.f32 %v3509, %v6116
  %v6187 = vadd.f32 %v3514, %v6121
  %v6188 = vadd.f32 %v3519, %v6126
  %v6189 = vadd.f32 %v3524, %v6131
  %v6190 = vadd.f32 %v3529, %v6136
  %v6191 = vadd.f32 %v3534, %v6141
  %v6192 = vadd.f32 %v3539, %v6146
  %v6193 = vadd.f32 %v3544, %v6151
  %v6194 = vadd.f32 %v3549, %v6156
  %v6195 = vadd.f32 %v3554, %v6161
  %v6196 = vxor.u32 %v6164, 2147483648
  %v6197 = vxor.u32 %v6165, 2147483648
  %v6198 = vxor.u32 %v6166, 2147483648
  %v6199 = vxor.u32 %v6167, 2147483648
  %v6200 = vxor.u32 %v6168, 2147483648
  %v6201 = vxor.u32 %v6169, 2147483648
  %v6202 = vxor.u32 %v6170, 2147483648
  %v6203 = vxor.u32 %v6171, 2147483648
  %v6204 = vxor.u32 %v6172, 2147483648
  %v6205 = vxor.u32 %v6173, 2147483648
  %v6206 = vxor.u32 %v6174, 2147483648
  %v6207 = vxor.u32 %v6175, 2147483648
  %v6208 = vxor.u32 %v6176, 2147483648
  %v6209 = vxor.u32 %v6177, 2147483648
  %v6210 = vxor.u32 %v6178, 2147483648
  %v6211 = vxor.u32 %v6179, 2147483648
  %v6212 = vxor.u32 %v6180, 2147483648
  %v6213 = vxor.u32 %v6181, 2147483648
  %v6214 = vxor.u32 %v6182, 2147483648
  %v6215 = vxor.u32 %v6183, 2147483648
  %v6216 = vxor.u32 %v6184, 2147483648
  %v6217 = vxor.u32 %v6185, 2147483648
  %v6218 = vxor.u32 %v6186, 2147483648
  %v6219 = vxor.u32 %v6187, 2147483648
  %v6220 = vmul.f32 %v6196, 1.442695
  %v6221 = vpow.pop %v6220
  %v6222 = vmul.f32 %v6197, 1.442695
  %v6223 = vpow.pop %v6222
  %v6224 = vmul.f32 %v6198, 1.442695
  %v6225 = vpow.pop %v6224
  %v6226 = vmul.f32 %v6199, 1.442695
  %v6227 = vpow.pop %v6226
  %v6228 = vmul.f32 %v6200, 1.442695
  %v6229 = vpow.pop %v6228
  %v6230 = vmul.f32 %v6201, 1.442695
  %v6231 = vpow.pop %v6230
  %v6232 = vmul.f32 %v6202, 1.442695
  %v6233 = vpow.pop %v6232
  %v6234 = vmul.f32 %v6203, 1.442695
  %v6235 = vpow.pop %v6234
  %v6236 = vmul.f32 %v6204, 1.442695
  %v6237 = vpow.pop %v6236
  %v6238 = vmul.f32 %v6205, 1.442695
  %v6239 = vpow.pop %v6238
  %v6240 = vmul.f32 %v6206, 1.442695
  %v6241 = vpow.pop %v6240
  %v6242 = vmul.f32 %v6207, 1.442695
  %v6243 = vpow.pop %v6242
  %v6244 = vmul.f32 %v6208, 1.442695
  %v6245 = vpow.pop %v6244
  %v6246 = vmul.f32 %v6209, 1.442695
  %v6247 = vpow.pop %v6246
  %v6248 = vmul.f32 %v6210, 1.442695
  %v6249 = vpow.pop %v6248
  %v6250 = vmul.f32 %v6211, 1.442695
  %v6251 = vpow.pop %v6250
  %v6252 = vmul.f32 %v6212, 1.442695
  %v6253 = vpow.pop %v6252
  %v6254 = vmul.f32 %v6213, 1.442695
  %v6255 = vpow.pop %v6254
  %v6256 = vmul.f32 %v6214, 1.442695
  %v6257 = vpow.pop %v6256
  %v6258 = vmul.f32 %v6215, 1.442695
  %v6259 = vpow.pop %v6258
  %v6260 = vmul.f32 %v6216, 1.442695
  %v6261 = vpow.pop %v6260
  %v6262 = vmul.f32 %v6217, 1.442695
  %v6263 = vpow.pop %v6262
  %v6264 = vmul.f32 %v6218, 1.442695
  %v6265 = vpow.pop %v6264
  %v6266 = vmul.f32 %v6219, 1.442695
  %v6267 = vpow.pop %v6266
  %v6268 = vadd.f32 %v6221, 1.0
  %v6269 = vadd.f32 %v6223, 1.0
  %v6270 = vadd.f32 %v6225, 1.0
  %v6271 = vadd.f32 %v6227, 1.0
  %v6272 = vadd.f32 %v6229, 1.0
  %v6273 = vadd.f32 %v6231, 1.0
  %v6274 = vadd.f32 %v6233, 1.0
  %v6275 = vadd.f32 %v6235, 1.0
  %v6276 = vadd.f32 %v6237, 1.0
  %v6277 = vadd.f32 %v6239, 1.0
  %v6278 = vadd.f32 %v6241, 1.0
  %v6279 = vadd.f32 %v6243, 1.0
  %v6280 = vadd.f32 %v6245, 1.0
  %v6281 = vadd.f32 %v6247, 1.0
  %v6282 = vadd.f32 %v6249, 1.0
  %v6283 = vadd.f32 %v6251, 1.0
  %v6284 = vadd.f32 %v6253, 1.0
  %v6285 = vadd.f32 %v6255, 1.0
  %v6286 = vadd.f32 %v6257, 1.0
  %v6287 = vadd.f32 %v6259, 1.0
  %v6288 = vadd.f32 %v6261, 1.0
  %v6289 = vadd.f32 %v6263, 1.0
  %v6290 = vadd.f32 %v6265, 1.0
  %v6291 = vadd.f32 %v6267, 1.0
  %v6292 = vrcp.pop %v6268
  %v6293 = vmul.f32 1.0, %v6292
  %v6294 = vrcp.pop %v6269
  %v6295 = vmul.f32 1.0, %v6294
  %v6296 = vrcp.pop %v6270
  %v6297 = vmul.f32 1.0, %v6296
  %v6298 = vrcp.pop %v6271
  %v6299 = vmul.f32 1.0, %v6298
  %v6300 = vrcp.pop %v6272
  %v6301 = vmul.f32 1.0, %v6300
  %v6302 = vrcp.pop %v6273
  %v6303 = vmul.f32 1.0, %v6302
  %v6304 = vrcp.pop %v6274
  %v6305 = vmul.f32 1.0, %v6304
  %v6306 = vrcp.pop %v6275
  %v6307 = vmul.f32 1.0, %v6306
  %v6308 = vrcp.pop %v6276
  %v6309 = vmul.f32 1.0, %v6308
  %v6310 = vrcp.pop %v6277
  %v6311 = vmul.f32 1.0, %v6310
  %v6312 = vrcp.pop %v6278
  %v6313 = vmul.f32 1.0, %v6312
  %v6314 = vrcp.pop %v6279
  %v6315 = vmul.f32 1.0, %v6314
  %v6316 = vrcp.pop %v6280
  %v6317 = vmul.f32 1.0, %v6316
  %v6318 = vrcp.pop %v6281
  %v6319 = vmul.f32 1.0, %v6318
  %v6320 = vrcp.pop %v6282
  %v6321 = vmul.f32 1.0, %v6320
  %v6322 = vrcp.pop %v6283
  %v6323 = vmul.f32 1.0, %v6322
  %v6324 = vrcp.pop %v6284
  %v6325 = vmul.f32 1.0, %v6324
  %v6326 = vrcp.pop %v6285
  %v6327 = vmul.f32 1.0, %v6326
  %v6328 = vrcp.pop %v6286
  %v6329 = vmul.f32 1.0, %v6328
  %v6330 = vrcp.pop %v6287
  %v6331 = vmul.f32 1.0, %v6330
  %v6332 = vrcp.pop %v6288
  %v6333 = vmul.f32 1.0, %v6332
  %v6334 = vrcp.pop %v6289
  %v6335 = vmul.f32 1.0, %v6334
  %v6336 = vrcp.pop %v6290
  %v6337 = vmul.f32 1.0, %v6336
  %v6338 = vrcp.pop %v6291
  %v6339 = vmul.f32 1.0, %v6338
  %v6340 = vtanh.pop %v6188
  %v6341 = vtanh.pop %v6189
  %v6342 = vtanh.pop %v6190
  %v6343 = vtanh.pop %v6191
  %v6344 = vtanh.pop %v6192
  %v6345 = vtanh.pop %v6193
  %v6346 = vtanh.pop %v6194
  %v6347 = vtanh.pop %v6195
  %v6348 = vmul.f32 %v6309, %v5907
  %v6349 = vmul.f32 %v6311, %v5908
  %v6350 = vmul.f32 %v6313, %v5909
  %v6351 = vmul.f32 %v6315, %v5910
  %v6352 = vmul.f32 %v6317, %v5911
  %v6353 = vmul.f32 %v6319, %v5912
  %v6354 = vmul.f32 %v6321, %v5913
  %v6355 = vmul.f32 %v6323, %v5914
  %v6356 = vmul.f32 %v6293, %v6340
  %v6357 = vmul.f32 %v6295, %v6341
  %v6358 = vmul.f32 %v6297, %v6342
  %v6359 = vmul.f32 %v6299, %v6343
  %v6360 = vmul.f32 %v6301, %v6344
  %v6361 = vmul.f32 %v6303, %v6345
  %v6362 = vmul.f32 %v6305, %v6346
  %v6363 = vmul.f32 %v6307, %v6347
  %v6364 = vadd.f32 %v6348, %v6356
  %v6365 = vadd.f32 %v6349, %v6357
  %v6366 = vadd.f32 %v6350, %v6358
  %v6367 = vadd.f32 %v6351, %v6359
  %v6368 = vadd.f32 %v6352, %v6360
  %v6369 = vadd.f32 %v6353, %v6361
  %v6370 = vadd.f32 %v6354, %v6362
  %v6371 = vadd.f32 %v6355, %v6363
  %v6372 = vtanh.pop %v6364
  %v6373 = vtanh.pop %v6365
  %v6374 = vtanh.pop %v6366
  %v6375 = vtanh.pop %v6367
  %v6376 = vtanh.pop %v6368
  %v6377 = vtanh.pop %v6369
  %v6378 = vtanh.pop %v6370
  %v6379 = vtanh.pop %v6371
  %v6380 = vmul.f32 %v6325, %v6372
  %v6381 = vmul.f32 %v6327, %v6373
  %v6382 = vmul.f32 %v6329, %v6374
  %v6383 = vmul.f32 %v6331, %v6375
  %v6384 = vmul.f32 %v6333, %v6376
  %v6385 = vmul.f32 %v6335, %v6377
  %v6386 = vmul.f32 %v6337, %v6378
  %v6387 = vmul.f32 %v6339, %v6379
  %6388 = vst [vmem:[#allocation2 + $0x28] sm:$0xff] %v6380
  %6389 = vst [vmem:[#allocation2 + $0x68] sm:$0xff] %v6381
  %6390 = vst [vmem:[#allocation2 + $0xa8] sm:$0xff] %v6382
  %6391 = vst [vmem:[#allocation2 + $0xe8] sm:$0xff] %v6383
  %6392 = vst [vmem:[#allocation2 + $0x128] sm:$0xff] %v6384
  %6393 = vst [vmem:[#allocation2 + $0x168] sm:$0xff] %v6385
  %6394 = vst [vmem:[#allocation2 + $0x1a8] sm:$0xff] %v6386
  %6395 = vst [vmem:[#allocation2 + $0x1e8] sm:$0xff] %v6387
  %6396 = vmatprep.subr.mxu0 0.0
  %6397 = vmatpush1.msra.mxu0 %v6380
  %6398 = vmatprep.subr.mxu0 0.0
  %6399 = vmatpush1.msra.mxu0 %v6381
  %6400 = vmatprep.subr.mxu0 0.0
  %6401 = vmatpush1.msra.mxu0 %v6382
  %6402 = vmatprep.subr.mxu0 0.0
  %6403 = vmatpush1.msra.mxu0 %v6383
  %6404 = vmatprep.subr.mxu0 0.0
  %6405 = vmatpush1.msra.mxu0 %v6384
  %6406 = vmatprep.subr.mxu0 0.0
  %6407 = vmatpush1.msra.mxu0 %v6385
  %6408 = vmatprep.subr.mxu0 0.0
  %6409 = vmatpush1.msra.mxu0 %v6386
  %6410 = vmatprep.subr.mxu0 0.0
  %6411 = vmatpush1.msra.mxu0 %v6387
  %6412 = vmatprep.subr.mxu0 0.0
  %6413 = vmatpush1.msra.mxu0 0.0
  %6414 = vmatprep.subr.mxu0 0.0
  %6415 = vmatpush1.msra.mxu0 0.0
  %6416 = vmatprep.subr.mxu0 0.0
  %6417 = vmatpush1.msra.mxu0 0.0
  %6418 = vmatprep.subr.mxu0 0.0
  %6419 = vmatpush1.msra.mxu0 0.0
  %6420 = vmatprep.subr.mxu0 0.0
  %6421 = vmatpush1.msra.mxu0 0.0
  %6422 = vmatprep.subr.mxu0 0.0
  %6423 = vmatpush1.msra.mxu0 0.0
  %6424 = vmatprep.subr.mxu0 0.0
  %6425 = vmatpush1.msra.mxu0 0.0
  %6426 = vmatprep.subr.mxu0 0.0
  %6427 = vmatpush1.msra.mxu0 0.0
  %6428 = vmatprep.subr.mxu0 0.0
  %6429 = vmatpush1.msra.mxu0 0.0
  %6430 = vmatprep.subr.mxu0 0.0
  %6431 = vmatpush1.msra.mxu0 0.0
  %6432 = vmatprep.subr.mxu0 0.0
  %6433 = vmatpush1.msra.mxu0 0.0
  %6434 = vmatprep.subr.mxu0 0.0
  %6435 = vmatpush1.msra.mxu0 0.0
  %6436 = vmatprep.subr.mxu0 0.0
  %6437 = vmatpush1.msra.mxu0 0.0
  %6438 = vmatprep.subr.mxu0 0.0
  %6439 = vmatpush1.msra.mxu0 0.0
  %6440 = vmatprep.subr.mxu0 0.0
  %6441 = vmatpush1.msra.mxu0 0.0
  %6442 = vmatprep.subr.mxu0 0.0
  %6443 = vmatpush1.msra.mxu0 0.0
  %6444 = vmatprep.subr.mxu0 0.0
  %6445 = vmatpush1.msra.mxu0 0.0
  %6446 = vmatprep.subr.mxu0 0.0
  %6447 = vmatpush1.msra.mxu0 0.0
  %6448 = vmatprep.subr.mxu0 0.0
  %6449 = vmatpush1.msra.mxu0 0.0
  %6450 = vmatprep.subr.mxu0 0.0
  %6451 = vmatpush1.msra.mxu0 0.0
  %6452 = vmatprep.subr.mxu0 0.0
  %6453 = vmatpush1.msra.mxu0 0.0
  %6454 = vmatprep.subr.mxu0 0.0
  %6455 = vmatpush1.msra.mxu0 0.0
  %6456 = vmatprep.subr.mxu0 0.0
  %6457 = vmatpush1.msra.mxu0 0.0
  %6458 = vmatprep.subr.mxu0 0.0
  %6459 = vmatpush1.msra.mxu0 0.0
  %6460 = vmatprep.mubr.f32.mxu0 0.0
  %6461 = vmatmul.mubr.f32.gmra.mrb[0].mxu0 %v3559
  %v6462 = vpop.f32.mrb[0].mxu0
  %v6463 = vadd.f32 0.0, %v6462
  %v6464 = vpop.f32.mrb[0].mxu0
  %6465 = vmatprep.mubr.f32.mxu0 0.0
  %6466 = vmatmul.mubr.f32.gmra.mrb[0].mxu0 %v3562
  %v6467 = vpop.f32.mrb[0].mxu0
  %v6468 = vadd.f32 0.0, %v6467
  %v6469 = vpop.f32.mrb[0].mxu0
  %6470 = vmatprep.mubr.f32.mxu0 0.0
  %6471 = vmatmul.mubr.f32.gmra.mrb[0].mxu0 %v3565
  %v6472 = vpop.f32.mrb[0].mxu0
  %v6473 = vadd.f32 0.0, %v6472
  %v6474 = vpop.f32.mrb[0].mxu0
  %6475 = vmatprep.mubr.f32.mxu0 0.0
  %6476 = vmatmul.mubr.f32.gmra.mrb[0].mxu0 %v3568
  %v6477 = vpop.f32.mrb[0].mxu0
  %v6478 = vadd.f32 0.0, %v6477
  %v6479 = vpop.f32.mrb[0].mxu0
  %6480 = vmatprep.mubr.f32.mxu0 0.0
  %6481 = vmatmul.mubr.f32.gmra.mrb[0].mxu0 %v3571
  %v6482 = vpop.f32.mrb[0].mxu0
  %v6483 = vadd.f32 0.0, %v6482
  %v6484 = vpop.f32.mrb[0].mxu0
  %6485 = vmatprep.mubr.f32.mxu0 0.0
  %6486 = vmatmul.mubr.f32.gmra.mrb[0].mxu0 %v3574
  %v6487 = vpop.f32.mrb[0].mxu0
  %v6488 = vadd.f32 0.0, %v6487
  %v6489 = vpop.f32.mrb[0].mxu0
  %6490 = vmatprep.mubr.f32.mxu0 0.0
  %6491 = vmatmul.mubr.f32.gmra.mrb[0].mxu0 %v3577
  %v6492 = vpop.f32.mrb[0].mxu0
  %v6493 = vadd.f32 0.0, %v6492
  %v6494 = vpop.f32.mrb[0].mxu0
  %6495 = vmatprep.mubr.f32.mxu0 0.0
  %6496 = vmatmul.mubr.f32.gmra.mrb[0].mxu0 %v3580
  %v6497 = vpop.f32.mrb[0].mxu0
  %v6498 = vadd.f32 0.0, %v6497
  %v6499 = vpop.f32.mrb[0].mxu0
  %6500 = vmatprep.mubr.f32.mxu0 0.0
  %6501 = vmatmul.mubr.f32.gmra.mrb[0].mxu0 %v3583
  %v6502 = vpop.f32.mrb[0].mxu0
  %v6503 = vadd.f32 0.0, %v6502
  %v6504 = vpop.f32.mrb[0].mxu0
  %6505 = vmatprep.mubr.f32.mxu0 0.0
  %6506 = vmatmul.mubr.f32.gmra.mrb[0].mxu0 %v3586
  %v6507 = vpop.f32.mrb[0].mxu0
  %v6508 = vadd.f32 0.0, %v6507
  %v6509 = vpop.f32.mrb[0].mxu0
  %6510 = vmatprep.mubr.f32.mxu0 0.0
  %6511 = vmatmul.mubr.f32.gmra.mrb[0].mxu0 %v3589
  %v6512 = vpop.f32.mrb[0].mxu0
  %v6513 = vadd.f32 0.0, %v6512
  %v6514 = vpop.f32.mrb[0].mxu0
  %6515 = vmatprep.mubr.f32.mxu0 0.0
  %6516 = vmatmul.mubr.f32.gmra.mrb[0].mxu0 %v3592
  %v6517 = vpop.f32.mrb[0].mxu0
  %v6518 = vadd.f32 0.0, %v6517
  %v6519 = vpop.f32.mrb[0].mxu0
  %6520 = vmatprep.mubr.f32.mxu0 0.0
  %6521 = vmatmul.mubr.f32.gmra.mrb[0].mxu0 %v3595
  %v6522 = vpop.f32.mrb[0].mxu0
  %v6523 = vadd.f32 0.0, %v6522
  %v6524 = vpop.f32.mrb[0].mxu0
  %6525 = vmatprep.mubr.f32.mxu0 0.0
  %6526 = vmatmul.mubr.f32.gmra.mrb[0].mxu0 %v3598
  %v6527 = vpop.f32.mrb[0].mxu0
  %v6528 = vadd.f32 0.0, %v6527
  %v6529 = vpop.f32.mrb[0].mxu0
  %6530 = vmatprep.mubr.f32.mxu0 0.0
  %6531 = vmatmul.mubr.f32.gmra.mrb[0].mxu0 %v3601
  %v6532 = vpop.f32.mrb[0].mxu0
  %v6533 = vadd.f32 0.0, %v6532
  %v6534 = vpop.f32.mrb[0].mxu0
  %6535 = vmatprep.mubr.f32.mxu0 0.0
  %6536 = vmatmul.mubr.f32.gmra.mrb[0].mxu0 %v3604
  %v6537 = vpop.f32.mrb[0].mxu0
  %v6538 = vadd.f32 0.0, %v6537
  %v6539 = vpop.f32.mrb[0].mxu0
  %6540 = vmatprep.mubr.f32.mxu0 0.0
  %6541 = vmatmul.mubr.f32.gmra.mrb[0].mxu0 %v3607
  %v6542 = vpop.f32.mrb[0].mxu0
  %v6543 = vadd.f32 0.0, %v6542
  %v6544 = vpop.f32.mrb[0].mxu0
  %6545 = vmatprep.mubr.f32.mxu0 0.0
  %6546 = vmatmul.mubr.f32.gmra.mrb[0].mxu0 %v3610
  %v6547 = vpop.f32.mrb[0].mxu0
  %v6548 = vadd.f32 0.0, %v6547
  %v6549 = vpop.f32.mrb[0].mxu0
  %6550 = vmatprep.mubr.f32.mxu0 0.0
  %6551 = vmatmul.mubr.f32.gmra.mrb[0].mxu0 %v3613
  %v6552 = vpop.f32.mrb[0].mxu0
  %v6553 = vadd.f32 0.0, %v6552
  %v6554 = vpop.f32.mrb[0].mxu0
  %6555 = vmatprep.mubr.f32.mxu0 0.0
  %6556 = vmatmul.mubr.f32.gmra.mrb[0].mxu0 %v3616
  %v6557 = vpop.f32.mrb[0].mxu0
  %v6558 = vadd.f32 0.0, %v6557
  %v6559 = vpop.f32.mrb[0].mxu0
  %6560 = vmatprep.mubr.f32.mxu0 0.0
  %6561 = vmatmul.mubr.f32.gmra.mrb[0].mxu0 %v3619
  %v6562 = vpop.f32.mrb[0].mxu0
  %v6563 = vadd.f32 0.0, %v6562
  %v6564 = vpop.f32.mrb[0].mxu0
  %6565 = vmatprep.mubr.f32.mxu0 0.0
  %6566 = vmatmul.mubr.f32.gmra.mrb[0].mxu0 %v3622
  %v6567 = vpop.f32.mrb[0].mxu0
  %v6568 = vadd.f32 0.0, %v6567
  %v6569 = vpop.f32.mrb[0].mxu0
  %6570 = vmatprep.mubr.f32.mxu0 0.0
  %6571 = vmatmul.mubr.f32.gmra.mrb[0].mxu0 %v3625
  %v6572 = vpop.f32.mrb[0].mxu0
  %v6573 = vadd.f32 0.0, %v6572
  %v6574 = vpop.f32.mrb[0].mxu0
  %6575 = vmatprep.mubr.f32.mxu0 0.0
  %6576 = vmatmul.mubr.f32.gmra.mrb[0].mxu0 %v3628
  %v6577 = vpop.f32.mrb[0].mxu0
  %v6578 = vadd.f32 0.0, %v6577
  %v6579 = vpop.f32.mrb[0].mxu0
  %6580 = vmatprep.mubr.f32.mxu0 0.0
  %6581 = vmatmul.mubr.f32.gmra.mrb[0].mxu0 %v3631
  %v6582 = vpop.f32.mrb[0].mxu0
  %v6583 = vadd.f32 0.0, %v6582
  %v6584 = vpop.f32.mrb[0].mxu0
  %6585 = vmatprep.mubr.f32.mxu0 0.0
  %6586 = vmatmul.mubr.f32.gmra.mrb[0].mxu0 %v3634
  %v6587 = vpop.f32.mrb[0].mxu0
  %v6588 = vadd.f32 0.0, %v6587
  %v6589 = vpop.f32.mrb[0].mxu0
  %6590 = vmatprep.mubr.f32.mxu0 0.0
  %6591 = vmatmul.mubr.f32.gmra.mrb[0].mxu0 %v3637
  %v6592 = vpop.f32.mrb[0].mxu0
  %v6593 = vadd.f32 0.0, %v6592
  %v6594 = vpop.f32.mrb[0].mxu0
  %6595 = vmatprep.mubr.f32.mxu0 0.0
  %6596 = vmatmul.mubr.f32.gmra.mrb[0].mxu0 %v3640
  %v6597 = vpop.f32.mrb[0].mxu0
  %v6598 = vadd.f32 0.0, %v6597
  %v6599 = vpop.f32.mrb[0].mxu0
  %6600 = vmatprep.mubr.f32.mxu0 0.0
  %6601 = vmatmul.mubr.f32.gmra.mrb[0].mxu0 %v3643
  %v6602 = vpop.f32.mrb[0].mxu0
  %v6603 = vadd.f32 0.0, %v6602
  %v6604 = vpop.f32.mrb[0].mxu0
  %6605 = vmatprep.mubr.f32.mxu0 0.0
  %6606 = vmatmul.mubr.f32.gmra.mrb[0].mxu0 %v3646
  %v6607 = vpop.f32.mrb[0].mxu0
  %v6608 = vadd.f32 0.0, %v6607
  %v6609 = vpop.f32.mrb[0].mxu0
  %6610 = vmatprep.mubr.f32.mxu0 0.0
  %6611 = vmatmul.mubr.f32.gmra.mrb[0].mxu0 %v3649
  %v6612 = vpop.f32.mrb[0].mxu0
  %v6613 = vadd.f32 0.0, %v6612
  %v6614 = vpop.f32.mrb[0].mxu0
  %6615 = vmatprep.mubr.f32.mxu0 0.0
  %6616 = vmatmul.mubr.f32.gmra.mrb[0].mxu0 %v3652
  %v6617 = vpop.f32.mrb[0].mxu0
  %v6618 = vadd.f32 0.0, %v6617
  %v6619 = vpop.f32.mrb[0].mxu0
  %6620 = vdwg.mxu0
  %v6621 = vadd.f32 %v3399, %v6463
  %v6622 = vadd.f32 %v3404, %v6468
  %v6623 = vadd.f32 %v3409, %v6473
  %v6624 = vadd.f32 %v3414, %v6478
  %v6625 = vadd.f32 %v3419, %v6483
  %v6626 = vadd.f32 %v3424, %v6488
  %v6627 = vadd.f32 %v3429, %v6493
  %v6628 = vadd.f32 %v3434, %v6498
  %v6629 = vadd.f32 %v3439, %v6503
  %v6630 = vadd.f32 %v3444, %v6508
  %v6631 = vadd.f32 %v3449, %v6513
  %v6632 = vadd.f32 %v3454, %v6518
  %v6633 = vadd.f32 %v3459, %v6523
  %v6634 = vadd.f32 %v3464, %v6528
  %v6635 = vadd.f32 %v3469, %v6533
  %v6636 = vadd.f32 %v3474, %v6538
  %v6637 = vadd.f32 %v3479, %v6543
  %v6638 = vadd.f32 %v3484, %v6548
  %v6639 = vadd.f32 %v3489, %v6553
  %v6640 = vadd.f32 %v3494, %v6558
  %v6641 = vadd.f32 %v3499, %v6563
  %v6642 = vadd.f32 %v3504, %v6568
  %v6643 = vadd.f32 %v3509, %v6573
  %v6644 = vadd.f32 %v3514, %v6578
  %v6645 = vadd.f32 %v3519, %v6583
  %v6646 = vadd.f32 %v3524, %v6588
  %v6647 = vadd.f32 %v3529, %v6593
  %v6648 = vadd.f32 %v3534, %v6598
  %v6649 = vadd.f32 %v3539, %v6603
  %v6650 = vadd.f32 %v3544, %v6608
  %v6651 = vadd.f32 %v3549, %v6613
  %v6652 = vadd.f32 %v3554, %v6618
  %v6653 = vxor.u32 %v6621, 2147483648
  %v6654 = vxor.u32 %v6622, 2147483648
  %v6655 = vxor.u32 %v6623, 2147483648
  %v6656 = vxor.u32 %v6624, 2147483648
  %v6657 = vxor.u32 %v6625, 2147483648
  %v6658 = vxor.u32 %v6626, 2147483648
  %v6659 = vxor.u32 %v6627, 2147483648
  %v6660 = vxor.u32 %v6628, 2147483648
  %v6661 = vxor.u32 %v6629, 2147483648
  %v6662 = vxor.u32 %v6630, 2147483648
  %v6663 = vxor.u32 %v6631, 2147483648
  %v6664 = vxor.u32 %v6632, 2147483648
  %v6665 = vxor.u32 %v6633, 2147483648
  %v6666 = vxor.u32 %v6634, 2147483648
  %v6667 = vxor.u32 %v6635, 2147483648
  %v6668 = vxor.u32 %v6636, 2147483648
  %v6669 = vxor.u32 %v6637, 2147483648
  %v6670 = vxor.u32 %v6638, 2147483648
  %v6671 = vxor.u32 %v6639, 2147483648
  %v6672 = vxor.u32 %v6640, 2147483648
  %v6673 = vxor.u32 %v6641, 2147483648
  %v6674 = vxor.u32 %v6642, 2147483648
  %v6675 = vxor.u32 %v6643, 2147483648
  %v6676 = vxor.u32 %v6644, 2147483648
  %v6677 = vmul.f32 %v6653, 1.442695
  %v6678 = vpow.pop %v6677
  %v6679 = vmul.f32 %v6654, 1.442695
  %v6680 = vpow.pop %v6679
  %v6681 = vmul.f32 %v6655, 1.442695
  %v6682 = vpow.pop %v6681
  %v6683 = vmul.f32 %v6656, 1.442695
  %v6684 = vpow.pop %v6683
  %v6685 = vmul.f32 %v6657, 1.442695
  %v6686 = vpow.pop %v6685
  %v6687 = vmul.f32 %v6658, 1.442695
  %v6688 = vpow.pop %v6687
  %v6689 = vmul.f32 %v6659, 1.442695
  %v6690 = vpow.pop %v6689
  %v6691 = vmul.f32 %v6660, 1.442695
  %v6692 = vpow.pop %v6691
  %v6693 = vmul.f32 %v6661, 1.442695
  %v6694 = vpow.pop %v6693
  %v6695 = vmul.f32 %v6662, 1.442695
  %v6696 = vpow.pop %v6695
  %v6697 = vmul.f32 %v6663, 1.442695
  %v6698 = vpow.pop %v6697
  %v6699 = vmul.f32 %v6664, 1.442695
  %v6700 = vpow.pop %v6699
  %v6701 = vmul.f32 %v6665, 1.442695
  %v6702 = vpow.pop %v6701
  %v6703 = vmul.f32 %v6666, 1.442695
  %v6704 = vpow.pop %v6703
  %v6705 = vmul.f32 %v6667, 1.442695
  %v6706 = vpow.pop %v6705
  %v6707 = vmul.f32 %v6668, 1.442695
  %v6708 = vpow.pop %v6707
  %v6709 = vmul.f32 %v6669, 1.442695
  %v6710 = vpow.pop %v6709
  %v6711 = vmul.f32 %v6670, 1.442695
  %v6712 = vpow.pop %v6711
  %v6713 = vmul.f32 %v6671, 1.442695
  %v6714 = vpow.pop %v6713
  %v6715 = vmul.f32 %v6672, 1.442695
  %v6716 = vpow.pop %v6715
  %v6717 = vmul.f32 %v6673, 1.442695
  %v6718 = vpow.pop %v6717
  %v6719 = vmul.f32 %v6674, 1.442695
  %v6720 = vpow.pop %v6719
  %v6721 = vmul.f32 %v6675, 1.442695
  %v6722 = vpow.pop %v6721
  %v6723 = vmul.f32 %v6676, 1.442695
  %v6724 = vpow.pop %v6723
  %v6725 = vadd.f32 %v6678, 1.0
  %v6726 = vadd.f32 %v6680, 1.0
  %v6727 = vadd.f32 %v6682, 1.0
  %v6728 = vadd.f32 %v6684, 1.0
  %v6729 = vadd.f32 %v6686, 1.0
  %v6730 = vadd.f32 %v6688, 1.0
  %v6731 = vadd.f32 %v6690, 1.0
  %v6732 = vadd.f32 %v6692, 1.0
  %v6733 = vadd.f32 %v6694, 1.0
  %v6734 = vadd.f32 %v6696, 1.0
  %v6735 = vadd.f32 %v6698, 1.0
  %v6736 = vadd.f32 %v6700, 1.0
  %v6737 = vadd.f32 %v6702, 1.0
  %v6738 = vadd.f32 %v6704, 1.0
  %v6739 = vadd.f32 %v6706, 1.0
  %v6740 = vadd.f32 %v6708, 1.0
  %v6741 = vadd.f32 %v6710, 1.0
  %v6742 = vadd.f32 %v6712, 1.0
  %v6743 = vadd.f32 %v6714, 1.0
  %v6744 = vadd.f32 %v6716, 1.0
  %v6745 = vadd.f32 %v6718, 1.0
  %v6746 = vadd.f32 %v6720, 1.0
  %v6747 = vadd.f32 %v6722, 1.0
  %v6748 = vadd.f32 %v6724, 1.0
  %v6749 = vrcp.pop %v6725
  %v6750 = vmul.f32 1.0, %v6749
  %v6751 = vrcp.pop %v6726
  %v6752 = vmul.f32 1.0, %v6751
  %v6753 = vrcp.pop %v6727
  %v6754 = vmul.f32 1.0, %v6753
  %v6755 = vrcp.pop %v6728
  %v6756 = vmul.f32 1.0, %v6755
  %v6757 = vrcp.pop %v6729
  %v6758 = vmul.f32 1.0, %v6757
  %v6759 = vrcp.pop %v6730
  %v6760 = vmul.f32 1.0, %v6759
  %v6761 = vrcp.pop %v6731
  %v6762 = vmul.f32 1.0, %v6761
  %v6763 = vrcp.pop %v6732
  %v6764 = vmul.f32 1.0, %v6763
  %v6765 = vrcp.pop %v6733
  %v6766 = vmul.f32 1.0, %v6765
  %v6767 = vrcp.pop %v6734
  %v6768 = vmul.f32 1.0, %v6767
  %v6769 = vrcp.pop %v6735
  %v6770 = vmul.f32 1.0, %v6769
  %v6771 = vrcp.pop %v6736
  %v6772 = vmul.f32 1.0, %v6771
  %v6773 = vrcp.pop %v6737
  %v6774 = vmul.f32 1.0, %v6773
  %v6775 = vrcp.pop %v6738
  %v6776 = vmul.f32 1.0, %v6775
  %v6777 = vrcp.pop %v6739
  %v6778 = vmul.f32 1.0, %v6777
  %v6779 = vrcp.pop %v6740
  %v6780 = vmul.f32 1.0, %v6779
  %v6781 = vrcp.pop %v6741
  %v6782 = vmul.f32 1.0, %v6781
  %v6783 = vrcp.pop %v6742
  %v6784 = vmul.f32 1.0, %v6783
  %v6785 = vrcp.pop %v6743
  %v6786 = vmul.f32 1.0, %v6785
  %v6787 = vrcp.pop %v6744
  %v6788 = vmul.f32 1.0, %v6787
  %v6789 = vrcp.pop %v6745
  %v6790 = vmul.f32 1.0, %v6789
  %v6791 = vrcp.pop %v6746
  %v6792 = vmul.f32 1.0, %v6791
  %v6793 = vrcp.pop %v6747
  %v6794 = vmul.f32 1.0, %v6793
  %v6795 = vrcp.pop %v6748
  %v6796 = vmul.f32 1.0, %v6795
  %v6797 = vtanh.pop %v6645
  %v6798 = vtanh.pop %v6646
  %v6799 = vtanh.pop %v6647
  %v6800 = vtanh.pop %v6648
  %v6801 = vtanh.pop %v6649
  %v6802 = vtanh.pop %v6650
  %v6803 = vtanh.pop %v6651
  %v6804 = vtanh.pop %v6652
  %v6805 = vmul.f32 %v6766, %v6364
  %v6806 = vmul.f32 %v6768, %v6365
  %v6807 = vmul.f32 %v6770, %v6366
  %v6808 = vmul.f32 %v6772, %v6367
  %v6809 = vmul.f32 %v6774, %v6368
  %v6810 = vmul.f32 %v6776, %v6369
  %v6811 = vmul.f32 %v6778, %v6370
  %v6812 = vmul.f32 %v6780, %v6371
  %v6813 = vmul.f32 %v6750, %v6797
  %v6814 = vmul.f32 %v6752, %v6798
  %v6815 = vmul.f32 %v6754, %v6799
  %v6816 = vmul.f32 %v6756, %v6800
  %v6817 = vmul.f32 %v6758, %v6801
  %v6818 = vmul.f32 %v6760, %v6802
  %v6819 = vmul.f32 %v6762, %v6803
  %v6820 = vmul.f32 %v6764, %v6804
  %v6821 = vadd.f32 %v6805, %v6813
  %v6822 = vadd.f32 %v6806, %v6814
  %v6823 = vadd.f32 %v6807, %v6815
  %v6824 = vadd.f32 %v6808, %v6816
  %v6825 = vadd.f32 %v6809, %v6817
  %v6826 = vadd.f32 %v6810, %v6818
  %v6827 = vadd.f32 %v6811, %v6819
  %v6828 = vadd.f32 %v6812, %v6820
  %v6829 = vtanh.pop %v6821
  %v6830 = vtanh.pop %v6822
  %v6831 = vtanh.pop %v6823
  %v6832 = vtanh.pop %v6824
  %v6833 = vtanh.pop %v6825
  %v6834 = vtanh.pop %v6826
  %v6835 = vtanh.pop %v6827
  %v6836 = vtanh.pop %v6828
  %v6837 = vmul.f32 %v6782, %v6829
  %v6838 = vmul.f32 %v6784, %v6830
  %v6839 = vmul.f32 %v6786, %v6831
  %v6840 = vmul.f32 %v6788, %v6832
  %v6841 = vmul.f32 %v6790, %v6833
  %v6842 = vmul.f32 %v6792, %v6834
  %v6843 = vmul.f32 %v6794, %v6835
  %v6844 = vmul.f32 %v6796, %v6836
  %6845 = vst [vmem:[#allocation2 + $0x30] sm:$0xff] %v6837
  %6846 = vst [vmem:[#allocation2 + $0x70] sm:$0xff] %v6838
  %6847 = vst [vmem:[#allocation2 + $0xb0] sm:$0xff] %v6839
  %6848 = vst [vmem:[#allocation2 + $0xf0] sm:$0xff] %v6840
  %6849 = vst [vmem:[#allocation2 + $0x130] sm:$0xff] %v6841
  %6850 = vst [vmem:[#allocation2 + $0x170] sm:$0xff] %v6842
  %6851 = vst [vmem:[#allocation2 + $0x1b0] sm:$0xff] %v6843
  %6852 = vst [vmem:[#allocation2 + $0x1f0] sm:$0xff] %v6844
  %6853 = vmatprep.subr.mxu0 0.0
  %6854 = vmatpush1.msra.mxu0 %v6837
  %6855 = vmatprep.subr.mxu0 0.0
  %6856 = vmatpush1.msra.mxu0 %v6838
  %6857 = vmatprep.subr.mxu0 0.0
  %6858 = vmatpush1.msra.mxu0 %v6839
  %6859 = vmatprep.subr.mxu0 0.0
  %6860 = vmatpush1.msra.mxu0 %v6840
  %6861 = vmatprep.subr.mxu0 0.0
  %6862 = vmatpush1.msra.mxu0 %v6841
  %6863 = vmatprep.subr.mxu0 0.0
  %6864 = vmatpush1.msra.mxu0 %v6842
  %6865 = vmatprep.subr.mxu0 0.0
  %6866 = vmatpush1.msra.mxu0 %v6843
  %6867 = vmatprep.subr.mxu0 0.0
  %6868 = vmatpush1.msra.mxu0 %v6844
  %6869 = vmatprep.subr.mxu0 0.0
  %6870 = vmatpush1.msra.mxu0 0.0
  %6871 = vmatprep.subr.mxu0 0.0
  %6872 = vmatpush1.msra.mxu0 0.0
  %6873 = vmatprep.subr.mxu0 0.0
  %6874 = vmatpush1.msra.mxu0 0.0
  %6875 = vmatprep.subr.mxu0 0.0
  %6876 = vmatpush1.msra.mxu0 0.0
  %6877 = vmatprep.subr.mxu0 0.0
  %6878 = vmatpush1.msra.mxu0 0.0
  %6879 = vmatprep.subr.mxu0 0.0
  %6880 = vmatpush1.msra.mxu0 0.0
  %6881 = vmatprep.subr.mxu0 0.0
  %6882 = vmatpush1.msra.mxu0 0.0
  %6883 = vmatprep.subr.mxu0 0.0
  %6884 = vmatpush1.msra.mxu0 0.0
  %6885 = vmatprep.subr.mxu0 0.0
  %6886 = vmatpush1.msra.mxu0 0.0
  %6887 = vmatprep.subr.mxu0 0.0
  %6888 = vmatpush1.msra.mxu0 0.0
  %6889 = vmatprep.subr.mxu0 0.0
  %6890 = vmatpush1.msra.mxu0 0.0
  %6891 = vmatprep.subr.mxu0 0.0
  %6892 = vmatpush1.msra.mxu0 0.0
  %6893 = vmatprep.subr.mxu0 0.0
  %6894 = vmatpush1.msra.mxu0 0.0
  %6895 = vmatprep.subr.mxu0 0.0
  %6896 = vmatpush1.msra.mxu0 0.0
  %6897 = vmatprep.subr.mxu0 0.0
  %6898 = vmatpush1.msra.mxu0 0.0
  %6899 = vmatprep.subr.mxu0 0.0
  %6900 = vmatpush1.msra.mxu0 0.0
  %6901 = vmatprep.subr.mxu0 0.0
  %6902 = vmatpush1.msra.mxu0 0.0
  %6903 = vmatprep.subr.mxu0 0.0
  %6904 = vmatpush1.msra.mxu0 0.0
  %6905 = vmatprep.subr.mxu0 0.0
  %6906 = vmatpush1.msra.mxu0 0.0
  %6907 = vmatprep.subr.mxu0 0.0
  %6908 = vmatpush1.msra.mxu0 0.0
  %6909 = vmatprep.subr.mxu0 0.0
  %6910 = vmatpush1.msra.mxu0 0.0
  %6911 = vmatprep.subr.mxu0 0.0
  %6912 = vmatpush1.msra.mxu0 0.0
  %6913 = vmatprep.subr.mxu0 0.0
  %6914 = vmatpush1.msra.mxu0 0.0
  %6915 = vmatprep.subr.mxu0 0.0
  %6916 = vmatpush1.msra.mxu0 0.0
  %6917 = vmatprep.mubr.f32.mxu0 0.0
  %6918 = vmatmul.mubr.f32.gmra.mrb[0].mxu0 %v3559
  %v6919 = vpop.f32.mrb[0].mxu0
  %v6920 = vadd.f32 0.0, %v6919
  %v6921 = vpop.f32.mrb[0].mxu0
  %6922 = vmatprep.mubr.f32.mxu0 0.0
  %6923 = vmatmul.mubr.f32.gmra.mrb[0].mxu0 %v3562
  %v6924 = vpop.f32.mrb[0].mxu0
  %v6925 = vadd.f32 0.0, %v6924
  %v6926 = vpop.f32.mrb[0].mxu0
  %6927 = vmatprep.mubr.f32.mxu0 0.0
  %6928 = vmatmul.mubr.f32.gmra.mrb[0].mxu0 %v3565
  %v6929 = vpop.f32.mrb[0].mxu0
  %v6930 = vadd.f32 0.0, %v6929
  %v6931 = vpop.f32.mrb[0].mxu0
  %6932 = vmatprep.mubr.f32.mxu0 0.0
  %6933 = vmatmul.mubr.f32.gmra.mrb[0].mxu0 %v3568
  %v6934 = vpop.f32.mrb[0].mxu0
  %v6935 = vadd.f32 0.0, %v6934
  %v6936 = vpop.f32.mrb[0].mxu0
  %6937 = vmatprep.mubr.f32.mxu0 0.0
  %6938 = vmatmul.mubr.f32.gmra.mrb[0].mxu0 %v3571
  %v6939 = vpop.f32.mrb[0].mxu0
  %v6940 = vadd.f32 0.0, %v6939
  %v6941 = vpop.f32.mrb[0].mxu0
  %6942 = vmatprep.mubr.f32.mxu0 0.0
  %6943 = vmatmul.mubr.f32.gmra.mrb[0].mxu0 %v3574
  %v6944 = vpop.f32.mrb[0].mxu0
  %v6945 = vadd.f32 0.0, %v6944
  %v6946 = vpop.f32.mrb[0].mxu0
  %6947 = vmatprep.mubr.f32.mxu0 0.0
  %6948 = vmatmul.mubr.f32.gmra.mrb[0].mxu0 %v3577
  %v6949 = vpop.f32.mrb[0].mxu0
  %v6950 = vadd.f32 0.0, %v6949
  %v6951 = vpop.f32.mrb[0].mxu0
  %6952 = vmatprep.mubr.f32.mxu0 0.0
  %6953 = vmatmul.mubr.f32.gmra.mrb[0].mxu0 %v3580
  %v6954 = vpop.f32.mrb[0].mxu0
  %v6955 = vadd.f32 0.0, %v6954
  %v6956 = vpop.f32.mrb[0].mxu0
  %6957 = vmatprep.mubr.f32.mxu0 0.0
  %6958 = vmatmul.mubr.f32.gmra.mrb[0].mxu0 %v3583
  %v6959 = vpop.f32.mrb[0].mxu0
  %v6960 = vadd.f32 0.0, %v6959
  %v6961 = vpop.f32.mrb[0].mxu0
  %6962 = vmatprep.mubr.f32.mxu0 0.0
  %6963 = vmatmul.mubr.f32.gmra.mrb[0].mxu0 %v3586
  %v6964 = vpop.f32.mrb[0].mxu0
  %v6965 = vadd.f32 0.0, %v6964
  %v6966 = vpop.f32.mrb[0].mxu0
  %6967 = vmatprep.mubr.f32.mxu0 0.0
  %6968 = vmatmul.mubr.f32.gmra.mrb[0].mxu0 %v3589
  %v6969 = vpop.f32.mrb[0].mxu0
  %v6970 = vadd.f32 0.0, %v6969
  %v6971 = vpop.f32.mrb[0].mxu0
  %6972 = vmatprep.mubr.f32.mxu0 0.0
  %6973 = vmatmul.mubr.f32.gmra.mrb[0].mxu0 %v3592
  %v6974 = vpop.f32.mrb[0].mxu0
  %v6975 = vadd.f32 0.0, %v6974
  %v6976 = vpop.f32.mrb[0].mxu0
  %6977 = vmatprep.mubr.f32.mxu0 0.0
  %6978 = vmatmul.mubr.f32.gmra.mrb[0].mxu0 %v3595
  %v6979 = vpop.f32.mrb[0].mxu0
  %v6980 = vadd.f32 0.0, %v6979
  %v6981 = vpop.f32.mrb[0].mxu0
  %6982 = vmatprep.mubr.f32.mxu0 0.0
  %6983 = vmatmul.mubr.f32.gmra.mrb[0].mxu0 %v3598
  %v6984 = vpop.f32.mrb[0].mxu0
  %v6985 = vadd.f32 0.0, %v6984
  %v6986 = vpop.f32.mrb[0].mxu0
  %6987 = vmatprep.mubr.f32.mxu0 0.0
  %6988 = vmatmul.mubr.f32.gmra.mrb[0].mxu0 %v3601
  %v6989 = vpop.f32.mrb[0].mxu0
  %v6990 = vadd.f32 0.0, %v6989
  %v6991 = vpop.f32.mrb[0].mxu0
  %6992 = vmatprep.mubr.f32.mxu0 0.0
  %6993 = vmatmul.mubr.f32.gmra.mrb[0].mxu0 %v3604
  %v6994 = vpop.f32.mrb[0].mxu0
  %v6995 = vadd.f32 0.0, %v6994
  %v6996 = vpop.f32.mrb[0].mxu0
  %6997 = vmatprep.mubr.f32.mxu0 0.0
  %6998 = vmatmul.mubr.f32.gmra.mrb[0].mxu0 %v3607
  %v6999 = vpop.f32.mrb[0].mxu0
  %v7000 = vadd.f32 0.0, %v6999
  %v7001 = vpop.f32.mrb[0].mxu0
  %7002 = vmatprep.mubr.f32.mxu0 0.0
  %7003 = vmatmul.mubr.f32.gmra.mrb[0].mxu0 %v3610
  %v7004 = vpop.f32.mrb[0].mxu0
  %v7005 = vadd.f32 0.0, %v7004
  %v7006 = vpop.f32.mrb[0].mxu0
  %7007 = vmatprep.mubr.f32.mxu0 0.0
  %7008 = vmatmul.mubr.f32.gmra.mrb[0].mxu0 %v3613
  %v7009 = vpop.f32.mrb[0].mxu0
  %v7010 = vadd.f32 0.0, %v7009
  %v7011 = vpop.f32.mrb[0].mxu0
  %7012 = vmatprep.mubr.f32.mxu0 0.0
  %7013 = vmatmul.mubr.f32.gmra.mrb[0].mxu0 %v3616
  %v7014 = vpop.f32.mrb[0].mxu0
  %v7015 = vadd.f32 0.0, %v7014
  %v7016 = vpop.f32.mrb[0].mxu0
  %7017 = vmatprep.mubr.f32.mxu0 0.0
  %7018 = vmatmul.mubr.f32.gmra.mrb[0].mxu0 %v3619
  %v7019 = vpop.f32.mrb[0].mxu0
  %v7020 = vadd.f32 0.0, %v7019
  %v7021 = vpop.f32.mrb[0].mxu0
  %7022 = vmatprep.mubr.f32.mxu0 0.0
  %7023 = vmatmul.mubr.f32.gmra.mrb[0].mxu0 %v3622
  %v7024 = vpop.f32.mrb[0].mxu0
  %v7025 = vadd.f32 0.0, %v7024
  %v7026 = vpop.f32.mrb[0].mxu0
  %7027 = vmatprep.mubr.f32.mxu0 0.0
  %7028 = vmatmul.mubr.f32.gmra.mrb[0].mxu0 %v3625
  %v7029 = vpop.f32.mrb[0].mxu0
  %v7030 = vadd.f32 0.0, %v7029
  %v7031 = vpop.f32.mrb[0].mxu0
  %7032 = vmatprep.mubr.f32.mxu0 0.0
  %7033 = vmatmul.mubr.f32.gmra.mrb[0].mxu0 %v3628
  %v7034 = vpop.f32.mrb[0].mxu0
  %v7035 = vadd.f32 0.0, %v7034
  %v7036 = vpop.f32.mrb[0].mxu0
  %7037 = vmatprep.mubr.f32.mxu0 0.0
  %7038 = vmatmul.mubr.f32.gmra.mrb[0].mxu0 %v3631
  %v7039 = vpop.f32.mrb[0].mxu0
  %v7040 = vadd.f32 0.0, %v7039
  %v7041 = vpop.f32.mrb[0].mxu0
  %7042 = vmatprep.mubr.f32.mxu0 0.0
  %7043 = vmatmul.mubr.f32.gmra.mrb[0].mxu0 %v3634
  %v7044 = vpop.f32.mrb[0].mxu0
  %v7045 = vadd.f32 0.0, %v7044
  %v7046 = vpop.f32.mrb[0].mxu0
  %7047 = vmatprep.mubr.f32.mxu0 0.0
  %7048 = vmatmul.mubr.f32.gmra.mrb[0].mxu0 %v3637
  %v7049 = vpop.f32.mrb[0].mxu0
  %v7050 = vadd.f32 0.0, %v7049
  %v7051 = vpop.f32.mrb[0].mxu0
  %7052 = vmatprep.mubr.f32.mxu0 0.0
  %7053 = vmatmul.mubr.f32.gmra.mrb[0].mxu0 %v3640
  %v7054 = vpop.f32.mrb[0].mxu0
  %v7055 = vadd.f32 0.0, %v7054
  %v7056 = vpop.f32.mrb[0].mxu0
  %7057 = vmatprep.mubr.f32.mxu0 0.0
  %7058 = vmatmul.mubr.f32.gmra.mrb[0].mxu0 %v3643
  %v7059 = vpop.f32.mrb[0].mxu0
  %v7060 = vadd.f32 0.0, %v7059
  %v7061 = vpop.f32.mrb[0].mxu0
  %7062 = vmatprep.mubr.f32.mxu0 0.0
  %7063 = vmatmul.mubr.f32.gmra.mrb[0].mxu0 %v3646
  %v7064 = vpop.f32.mrb[0].mxu0
  %v7065 = vadd.f32 0.0, %v7064
  %v7066 = vpop.f32.mrb[0].mxu0
  %7067 = vmatprep.mubr.f32.mxu0 0.0
  %7068 = vmatmul.mubr.f32.gmra.mrb[0].mxu0 %v3649
  %v7069 = vpop.f32.mrb[0].mxu0
  %v7070 = vadd.f32 0.0, %v7069
  %v7071 = vpop.f32.mrb[0].mxu0
  %7072 = vmatprep.mubr.f32.mxu0 0.0
  %7073 = vmatmul.mubr.f32.gmra.mrb[0].mxu0 %v3652
  %v7074 = vpop.f32.mrb[0].mxu0
  %v7075 = vadd.f32 0.0, %v7074
  %v7076 = vpop.f32.mrb[0].mxu0
  %7077 = vdwg.mxu0
  %v7078 = vadd.f32 %v3399, %v6920
  %v7079 = vadd.f32 %v3404, %v6925
  %v7080 = vadd.f32 %v3409, %v6930
  %v7081 = vadd.f32 %v3414, %v6935
  %v7082 = vadd.f32 %v3419, %v6940
  %v7083 = vadd.f32 %v3424, %v6945
  %v7084 = vadd.f32 %v3429, %v6950
  %v7085 = vadd.f32 %v3434, %v6955
  %v7086 = vadd.f32 %v3439, %v6960
  %v7087 = vadd.f32 %v3444, %v6965
  %v7088 = vadd.f32 %v3449, %v6970
  %v7089 = vadd.f32 %v3454, %v6975
  %v7090 = vadd.f32 %v3459, %v6980
  %v7091 = vadd.f32 %v3464, %v6985
  %v7092 = vadd.f32 %v3469, %v6990
  %v7093 = vadd.f32 %v3474, %v6995
  %v7094 = vadd.f32 %v3479, %v7000
  %v7095 = vadd.f32 %v3484, %v7005
  %v7096 = vadd.f32 %v3489, %v7010
  %v7097 = vadd.f32 %v3494, %v7015
  %v7098 = vadd.f32 %v3499, %v7020
  %v7099 = vadd.f32 %v3504, %v7025
  %v7100 = vadd.f32 %v3509, %v7030
  %v7101 = vadd.f32 %v3514, %v7035
  %v7102 = vadd.f32 %v3519, %v7040
  %v7103 = vadd.f32 %v3524, %v7045
  %v7104 = vadd.f32 %v3529, %v7050
  %v7105 = vadd.f32 %v3534, %v7055
  %v7106 = vadd.f32 %v3539, %v7060
  %v7107 = vadd.f32 %v3544, %v7065
  %v7108 = vadd.f32 %v3549, %v7070
  %v7109 = vadd.f32 %v3554, %v7075
  %v7110 = vxor.u32 %v7078, 2147483648
  %v7111 = vxor.u32 %v7079, 2147483648
  %v7112 = vxor.u32 %v7080, 2147483648
  %v7113 = vxor.u32 %v7081, 2147483648
  %v7114 = vxor.u32 %v7082, 2147483648
  %v7115 = vxor.u32 %v7083, 2147483648
  %v7116 = vxor.u32 %v7084, 2147483648
  %v7117 = vxor.u32 %v7085, 2147483648
  %v7118 = vxor.u32 %v7086, 2147483648
  %v7119 = vxor.u32 %v7087, 2147483648
  %v7120 = vxor.u32 %v7088, 2147483648
  %v7121 = vxor.u32 %v7089, 2147483648
  %v7122 = vxor.u32 %v7090, 2147483648
  %v7123 = vxor.u32 %v7091, 2147483648
  %v7124 = vxor.u32 %v7092, 2147483648
  %v7125 = vxor.u32 %v7093, 2147483648
  %v7126 = vxor.u32 %v7094, 2147483648
  %v7127 = vxor.u32 %v7095, 2147483648
  %v7128 = vxor.u32 %v7096, 2147483648
  %v7129 = vxor.u32 %v7097, 2147483648
  %v7130 = vxor.u32 %v7098, 2147483648
  %v7131 = vxor.u32 %v7099, 2147483648
  %v7132 = vxor.u32 %v7100, 2147483648
  %v7133 = vxor.u32 %v7101, 2147483648
  %v7134 = vmul.f32 %v7110, 1.442695
  %v7135 = vpow.pop %v7134
  %v7136 = vmul.f32 %v7111, 1.442695
  %v7137 = vpow.pop %v7136
  %v7138 = vmul.f32 %v7112, 1.442695
  %v7139 = vpow.pop %v7138
  %v7140 = vmul.f32 %v7113, 1.442695
  %v7141 = vpow.pop %v7140
  %v7142 = vmul.f32 %v7114, 1.442695
  %v7143 = vpow.pop %v7142
  %v7144 = vmul.f32 %v7115, 1.442695
  %v7145 = vpow.pop %v7144
  %v7146 = vmul.f32 %v7116, 1.442695
  %v7147 = vpow.pop %v7146
  %v7148 = vmul.f32 %v7117, 1.442695
  %v7149 = vpow.pop %v7148
  %v7150 = vmul.f32 %v7118, 1.442695
  %v7151 = vpow.pop %v7150
  %v7152 = vmul.f32 %v7119, 1.442695
  %v7153 = vpow.pop %v7152
  %v7154 = vmul.f32 %v7120, 1.442695
  %v7155 = vpow.pop %v7154
  %v7156 = vmul.f32 %v7121, 1.442695
  %v7157 = vpow.pop %v7156
  %v7158 = vmul.f32 %v7122, 1.442695
  %v7159 = vpow.pop %v7158
  %v7160 = vmul.f32 %v7123, 1.442695
  %v7161 = vpow.pop %v7160
  %v7162 = vmul.f32 %v7124, 1.442695
  %v7163 = vpow.pop %v7162
  %v7164 = vmul.f32 %v7125, 1.442695
  %v7165 = vpow.pop %v7164
  %v7166 = vmul.f32 %v7126, 1.442695
  %v7167 = vpow.pop %v7166
  %v7168 = vmul.f32 %v7127, 1.442695
  %v7169 = vpow.pop %v7168
  %v7170 = vmul.f32 %v7128, 1.442695
  %v7171 = vpow.pop %v7170
  %v7172 = vmul.f32 %v7129, 1.442695
  %v7173 = vpow.pop %v7172
  %v7174 = vmul.f32 %v7130, 1.442695
  %v7175 = vpow.pop %v7174
  %v7176 = vmul.f32 %v7131, 1.442695
  %v7177 = vpow.pop %v7176
  %v7178 = vmul.f32 %v7132, 1.442695
  %v7179 = vpow.pop %v7178
  %v7180 = vmul.f32 %v7133, 1.442695
  %v7181 = vpow.pop %v7180
  %v7182 = vadd.f32 %v7135, 1.0
  %v7183 = vadd.f32 %v7137, 1.0
  %v7184 = vadd.f32 %v7139, 1.0
  %v7185 = vadd.f32 %v7141, 1.0
  %v7186 = vadd.f32 %v7143, 1.0
  %v7187 = vadd.f32 %v7145, 1.0
  %v7188 = vadd.f32 %v7147, 1.0
  %v7189 = vadd.f32 %v7149, 1.0
  %v7190 = vadd.f32 %v7151, 1.0
  %v7191 = vadd.f32 %v7153, 1.0
  %v7192 = vadd.f32 %v7155, 1.0
  %v7193 = vadd.f32 %v7157, 1.0
  %v7194 = vadd.f32 %v7159, 1.0
  %v7195 = vadd.f32 %v7161, 1.0
  %v7196 = vadd.f32 %v7163, 1.0
  %v7197 = vadd.f32 %v7165, 1.0
  %v7198 = vadd.f32 %v7167, 1.0
  %v7199 = vadd.f32 %v7169, 1.0
  %v7200 = vadd.f32 %v7171, 1.0
  %v7201 = vadd.f32 %v7173, 1.0
  %v7202 = vadd.f32 %v7175, 1.0
  %v7203 = vadd.f32 %v7177, 1.0
  %v7204 = vadd.f32 %v7179, 1.0
  %v7205 = vadd.f32 %v7181, 1.0
  %v7206 = vrcp.pop %v7182
  %v7207 = vmul.f32 1.0, %v7206
  %v7208 = vrcp.pop %v7183
  %v7209 = vmul.f32 1.0, %v7208
  %v7210 = vrcp.pop %v7184
  %v7211 = vmul.f32 1.0, %v7210
  %v7212 = vrcp.pop %v7185
  %v7213 = vmul.f32 1.0, %v7212
  %v7214 = vrcp.pop %v7186
  %v7215 = vmul.f32 1.0, %v7214
  %v7216 = vrcp.pop %v7187
  %v7217 = vmul.f32 1.0, %v7216
  %v7218 = vrcp.pop %v7188
  %v7219 = vmul.f32 1.0, %v7218
  %v7220 = vrcp.pop %v7189
  %v7221 = vmul.f32 1.0, %v7220
  %v7222 = vrcp.pop %v7190
  %v7223 = vmul.f32 1.0, %v7222
  %v7224 = vrcp.pop %v7191
  %v7225 = vmul.f32 1.0, %v7224
  %v7226 = vrcp.pop %v7192
  %v7227 = vmul.f32 1.0, %v7226
  %v7228 = vrcp.pop %v7193
  %v7229 = vmul.f32 1.0, %v7228
  %v7230 = vrcp.pop %v7194
  %v7231 = vmul.f32 1.0, %v7230
  %v7232 = vrcp.pop %v7195
  %v7233 = vmul.f32 1.0, %v7232
  %v7234 = vrcp.pop %v7196
  %v7235 = vmul.f32 1.0, %v7234
  %v7236 = vrcp.pop %v7197
  %v7237 = vmul.f32 1.0, %v7236
  %v7238 = vrcp.pop %v7198
  %v7239 = vmul.f32 1.0, %v7238
  %v7240 = vrcp.pop %v7199
  %v7241 = vmul.f32 1.0, %v7240
  %v7242 = vrcp.pop %v7200
  %v7243 = vmul.f32 1.0, %v7242
  %v7244 = vrcp.pop %v7201
  %v7245 = vmul.f32 1.0, %v7244
  %v7246 = vrcp.pop %v7202
  %v7247 = vmul.f32 1.0, %v7246
  %v7248 = vrcp.pop %v7203
  %v7249 = vmul.f32 1.0, %v7248
  %v7250 = vrcp.pop %v7204
  %v7251 = vmul.f32 1.0, %v7250
  %v7252 = vrcp.pop %v7205
  %v7253 = vmul.f32 1.0, %v7252
  %v7254 = vtanh.pop %v7102
  %v7255 = vtanh.pop %v7103
  %v7256 = vtanh.pop %v7104
  %v7257 = vtanh.pop %v7105
  %v7258 = vtanh.pop %v7106
  %v7259 = vtanh.pop %v7107
  %v7260 = vtanh.pop %v7108
  %v7261 = vtanh.pop %v7109
  %v7262 = vmul.f32 %v7223, %v6821
  %v7263 = vmul.f32 %v7225, %v6822
  %v7264 = vmul.f32 %v7227, %v6823
  %v7265 = vmul.f32 %v7229, %v6824
  %v7266 = vmul.f32 %v7231, %v6825
  %v7267 = vmul.f32 %v7233, %v6826
  %v7268 = vmul.f32 %v7235, %v6827
  %v7269 = vmul.f32 %v7237, %v6828
  %v7270 = vmul.f32 %v7207, %v7254
  %v7271 = vmul.f32 %v7209, %v7255
  %v7272 = vmul.f32 %v7211, %v7256
  %v7273 = vmul.f32 %v7213, %v7257
  %v7274 = vmul.f32 %v7215, %v7258
  %v7275 = vmul.f32 %v7217, %v7259
  %v7276 = vmul.f32 %v7219, %v7260
  %v7277 = vmul.f32 %v7221, %v7261
  %v7278 = vadd.f32 %v7262, %v7270
  %v7279 = vadd.f32 %v7263, %v7271
  %v7280 = vadd.f32 %v7264, %v7272
  %v7281 = vadd.f32 %v7265, %v7273
  %v7282 = vadd.f32 %v7266, %v7274
  %v7283 = vadd.f32 %v7267, %v7275
  %v7284 = vadd.f32 %v7268, %v7276
  %v7285 = vadd.f32 %v7269, %v7277
  %v7286 = vtanh.pop %v7278
  %v7287 = vtanh.pop %v7279
  %v7288 = vtanh.pop %v7280
  %v7289 = vtanh.pop %v7281
  %v7290 = vtanh.pop %v7282
  %v7291 = vtanh.pop %v7283
  %v7292 = vtanh.pop %v7284
  %v7293 = vtanh.pop %v7285
  %v7294 = vmul.f32 %v7239, %v7286
  %v7295 = vmul.f32 %v7241, %v7287
  %v7296 = vmul.f32 %v7243, %v7288
  %v7297 = vmul.f32 %v7245, %v7289
  %v7298 = vmul.f32 %v7247, %v7290
  %v7299 = vmul.f32 %v7249, %v7291
  %v7300 = vmul.f32 %v7251, %v7292
  %v7301 = vmul.f32 %v7253, %v7293
  %7302 = vst [vmem:[#allocation2 + $0x38] sm:$0xff] %v7294
  %7303 = vst [vmem:[#allocation2 + $0x78] sm:$0xff] %v7295
  %7304 = vst [vmem:[#allocation2 + $0xb8] sm:$0xff] %v7296
  %7305 = vst [vmem:[#allocation2 + $0xf8] sm:$0xff] %v7297
  %7306 = vst [vmem:[#allocation2 + $0x138] sm:$0xff] %v7298
  %7307 = vst [vmem:[#allocation2 + $0x178] sm:$0xff] %v7299
  %7308 = vst [vmem:[#allocation2 + $0x1b8] sm:$0xff] %v7300
  %7309 = vst [vmem:[#allocation2 + $0x1f8] sm:$0xff] %v7301
  %v7310 = vld [vmem:[%s7] sm:$0xff]
  %v7311 = vld [vmem:[%s7 + $0x8] sm:$0xff]
  %v7312 = vld [vmem:[#allocation2] sm:$0xff]
  %v7313 = vld [vmem:[#allocation2 + $0x8] sm:$0xff]
  %v7314 = vld [vmem:[#allocation2 + $0x10] sm:$0xff]
  %v7315 = vld [vmem:[#allocation2 + $0x18] sm:$0xff]
  %v7316 = vld [vmem:[#allocation2 + $0x20] sm:$0xff]
  %v7317 = vld [vmem:[#allocation2 + $0x28] sm:$0xff]
  %v7318 = vld [vmem:[#allocation2 + $0x30] sm:$0xff]
  %v7319 = vld [vmem:[#allocation2 + $0x38] sm:$0xff]
  %v7320 = vld [vmem:[#allocation2 + $0x40] sm:$0xff]
  %v7321 = vld [vmem:[#allocation2 + $0x48] sm:$0xff]
  %v7322 = vld [vmem:[#allocation2 + $0x50] sm:$0xff]
  %v7323 = vld [vmem:[#allocation2 + $0x58] sm:$0xff]
  %v7324 = vld [vmem:[#allocation2 + $0x60] sm:$0xff]
  %v7325 = vld [vmem:[#allocation2 + $0x68] sm:$0xff]
  %v7326 = vld [vmem:[#allocation2 + $0x70] sm:$0xff]
  %v7327 = vld [vmem:[#allocation2 + $0x78] sm:$0xff]
  %v7328 = vld [vmem:[#allocation2 + $0x80] sm:$0xff]
  %v7329 = vld [vmem:[#allocation2 + $0x88] sm:$0xff]
  %v7330 = vld [vmem:[#allocation2 + $0x90] sm:$0xff]
  %v7331 = vld [vmem:[#allocation2 + $0x98] sm:$0xff]
  %v7332 = vld [vmem:[#allocation2 + $0xa0] sm:$0xff]
  %v7333 = vld [vmem:[#allocation2 + $0xa8] sm:$0xff]
  %v7334 = vld [vmem:[#allocation2 + $0xb0] sm:$0xff]
  %v7335 = vld [vmem:[#allocation2 + $0xb8] sm:$0xff]
  %v7336 = vld [vmem:[#allocation2 + $0xc0] sm:$0xff]
  %v7337 = vld [vmem:[#allocation2 + $0xc8] sm:$0xff]
  %v7338 = vld [vmem:[#allocation2 + $0xd0] sm:$0xff]
  %v7339 = vld [vmem:[#allocation2 + $0xd8] sm:$0xff]
  %v7340 = vld [vmem:[#allocation2 + $0xe0] sm:$0xff]
  %v7341 = vld [vmem:[#allocation2 + $0xe8] sm:$0xff]
  %v7342 = vld [vmem:[#allocation2 + $0xf0] sm:$0xff]
  %v7343 = vld [vmem:[#allocation2 + $0xf8] sm:$0xff]
  %v7344 = vld [vmem:[#allocation2 + $0x100] sm:$0xff]
  %v7345 = vld [vmem:[#allocation2 + $0x108] sm:$0xff]
  %v7346 = vld [vmem:[#allocation2 + $0x110] sm:$0xff]
  %v7347 = vld [vmem:[#allocation2 + $0x118] sm:$0xff]
  %v7348 = vld [vmem:[#allocation2 + $0x120] sm:$0xff]
  %v7349 = vld [vmem:[#allocation2 + $0x128] sm:$0xff]
  %v7350 = vld [vmem:[#allocation2 + $0x130] sm:$0xff]
  %v7351 = vld [vmem:[#allocation2 + $0x138] sm:$0xff]
  %v7352 = vld [vmem:[#allocation2 + $0x140] sm:$0xff]
  %v7353 = vld [vmem:[#allocation2 + $0x148] sm:$0xff]
  %v7354 = vld [vmem:[#allocation2 + $0x150] sm:$0xff]
  %v7355 = vld [vmem:[#allocation2 + $0x158] sm:$0xff]
  %v7356 = vld [vmem:[#allocation2 + $0x160] sm:$0xff]
  %v7357 = vld [vmem:[#allocation2 + $0x168] sm:$0xff]
  %v7358 = vld [vmem:[#allocation2 + $0x170] sm:$0xff]
  %v7359 = vld [vmem:[#allocation2 + $0x178] sm:$0xff]
  %v7360 = vld [vmem:[#allocation2 + $0x180] sm:$0xff]
  %v7361 = vld [vmem:[#allocation2 + $0x188] sm:$0xff]
  %v7362 = vld [vmem:[#allocation2 + $0x190] sm:$0xff]
  %v7363 = vld [vmem:[#allocation2 + $0x198] sm:$0xff]
  %v7364 = vld [vmem:[#allocation2 + $0x1a0] sm:$0xff]
  %v7365 = vld [vmem:[#allocation2 + $0x1a8] sm:$0xff]
  %v7366 = vld [vmem:[#allocation2 + $0x1b0] sm:$0xff]
  %v7367 = vld [vmem:[#allocation2 + $0x1b8] sm:$0xff]
  %v7368 = vld [vmem:[#allocation2 + $0x1c0] sm:$0xff]
  %v7369 = vld [vmem:[#allocation2 + $0x1c8] sm:$0xff]
  %v7370 = vld [vmem:[#allocation2 + $0x1d0] sm:$0xff]
  %v7371 = vld [vmem:[#allocation2 + $0x1d8] sm:$0xff]
  %v7372 = vld [vmem:[#allocation2 + $0x1e0] sm:$0xff]
  %v7373 = vld [vmem:[#allocation2 + $0x1e8] sm:$0xff]
  %v7374 = vld [vmem:[#allocation2 + $0x1f0] sm:$0xff]
  %v7375 = vld [vmem:[#allocation2 + $0x1f8] sm:$0xff]
  %v7376 = vld [vmem:[%s8] sm:$0xff]
  %v7377 = vld [vmem:[%s8 + $0x8] sm:$0xff]
  %7379 = vset.pattern.permute.xlu0 0
  %7380 = vperm.xlu0 %7379, %v7376
  %v7381 = vpop.permute.xlu0 %7380
  %7384 = vset.pattern.permute.xlu0 0
  %7385 = vperm.xlu0 %7384, %v7377
  %v7386 = vpop.permute.xlu0 %7385
  %v7389 = vsel %vm3557, %v7310, 0
  %v7392 = vsel %vm3557, %v7311, 0
  %7394 = vmatprep.subr.mxu0 %v7313
  %7395 = vmatpush1.msra.mxu0 %v7312
  %7396 = vmatprep.subr.mxu0 %v7321
  %7397 = vmatpush1.msra.mxu0 %v7320
  %7398 = vmatprep.subr.mxu0 %v7329
  %7399 = vmatpush1.msra.mxu0 %v7328
  %7400 = vmatprep.subr.mxu0 %v7337
  %7401 = vmatpush1.msra.mxu0 %v7336
  %7402 = vmatprep.subr.mxu0 %v7345
  %7403 = vmatpush1.msra.mxu0 %v7344
  %7404 = vmatprep.subr.mxu0 %v7353
  %7405 = vmatpush1.msra.mxu0 %v7352
  %7406 = vmatprep.subr.mxu0 %v7361
  %7407 = vmatpush1.msra.mxu0 %v7360
  %7408 = vmatprep.subr.mxu0 %v7369
  %7409 = vmatpush1.msra.mxu0 %v7368
  %7410 = vmatprep.subr.mxu0 0.0
  %7411 = vmatpush1.msra.mxu0 0.0
  %7412 = vmatprep.subr.mxu0 0.0
  %7413 = vmatpush1.msra.mxu0 0.0
  %7414 = vmatprep.subr.mxu0 0.0
  %7415 = vmatpush1.msra.mxu0 0.0
  %7416 = vmatprep.subr.mxu0 0.0
  %7417 = vmatpush1.msra.mxu0 0.0
  %7418 = vmatprep.subr.mxu0 0.0
  %7419 = vmatpush1.msra.mxu0 0.0
  %7420 = vmatprep.subr.mxu0 0.0
  %7421 = vmatpush1.msra.mxu0 0.0
  %7422 = vmatprep.subr.mxu0 0.0
  %7423 = vmatpush1.msra.mxu0 0.0
  %7424 = vmatprep.subr.mxu0 0.0
  %7425 = vmatpush1.msra.mxu0 0.0
  %7426 = vmatprep.subr.mxu0 0.0
  %7427 = vmatpush1.msra.mxu0 0.0
  %7428 = vmatprep.subr.mxu0 0.0
  %7429 = vmatpush1.msra.mxu0 0.0
  %7430 = vmatprep.subr.mxu0 0.0
  %7431 = vmatpush1.msra.mxu0 0.0
  %7432 = vmatprep.subr.mxu0 0.0
  %7433 = vmatpush1.msra.mxu0 0.0
  %7434 = vmatprep.subr.mxu0 0.0
  %7435 = vmatpush1.msra.mxu0 0.0
  %7436 = vmatprep.subr.mxu0 0.0
  %7437 = vmatpush1.msra.mxu0 0.0
  %7438 = vmatprep.subr.mxu0 0.0
  %7439 = vmatpush1.msra.mxu0 0.0
  %7440 = vmatprep.subr.mxu0 0.0
  %7441 = vmatpush1.msra.mxu0 0.0
  %7442 = vmatprep.subr.mxu0 0.0
  %7443 = vmatpush1.msra.mxu0 0.0
  %7444 = vmatprep.subr.mxu0 0.0
  %7445 = vmatpush1.msra.mxu0 0.0
  %7446 = vmatprep.subr.mxu0 0.0
  %7447 = vmatpush1.msra.mxu0 0.0
  %7448 = vmatprep.subr.mxu0 0.0
  %7449 = vmatpush1.msra.mxu0 0.0
  %7450 = vmatprep.subr.mxu0 0.0
  %7451 = vmatpush1.msra.mxu0 0.0
  %7452 = vmatprep.subr.mxu0 0.0
  %7453 = vmatpush1.msra.mxu0 0.0
  %7454 = vmatprep.subr.mxu0 0.0
  %7455 = vmatpush1.msra.mxu0 0.0
  %7456 = vmatprep.subr.mxu0 0.0
  %7457 = vmatpush1.msra.mxu0 0.0
  %7458 = vmatprep.mubr.f32.mxu0 0.0
  %7459 = vmatmul.mubr.f32.gmra.mrb[0].mxu0 %v7389
  %v7460 = vpop.f32.mrb[0].mxu0
  %v7461 = vadd.f32 %v7381, %v7460
  %v7462 = vpop.f32.mrb[0].mxu0
  %v7463 = vadd.f32 %v7381, %v7462
  %7464 = vmatprep.mubr.f32.mxu0 0.0
  %7465 = vmatmul.mubr.f32.gmra.mrb[0].mxu0 %v7392
  %v7466 = vpop.f32.mrb[0].mxu0
  %v7467 = vadd.f32 %v7386, %v7466
  %v7468 = vpop.f32.mrb[0].mxu0
  %v7469 = vadd.f32 %v7386, %v7468
  %7470 = vdwg.mxu0
  %7471 = vmatprep.subr.mxu0 %v7315
  %7472 = vmatpush1.msra.mxu0 %v7314
  %7473 = vmatprep.subr.mxu0 %v7323
  %7474 = vmatpush1.msra.mxu0 %v7322
  %7475 = vmatprep.subr.mxu0 %v7331
  %7476 = vmatpush1.msra.mxu0 %v7330
  %7477 = vmatprep.subr.mxu0 %v7339
  %7478 = vmatpush1.msra.mxu0 %v7338
  %7479 = vmatprep.subr.mxu0 %v7347
  %7480 = vmatpush1.msra.mxu0 %v7346
  %7481 = vmatprep.subr.mxu0 %v7355
  %7482 = vmatpush1.msra.mxu0 %v7354
  %7483 = vmatprep.subr.mxu0 %v7363
  %7484 = vmatpush1.msra.mxu0 %v7362
  %7485 = vmatprep.subr.mxu0 %v7371
  %7486 = vmatpush1.msra.mxu0 %v7370
  %7487 = vmatprep.subr.mxu0 0.0
  %7488 = vmatpush1.msra.mxu0 0.0
  %7489 = vmatprep.subr.mxu0 0.0
  %7490 = vmatpush1.msra.mxu0 0.0
  %7491 = vmatprep.subr.mxu0 0.0
  %7492 = vmatpush1.msra.mxu0 0.0
  %7493 = vmatprep.subr.mxu0 0.0
  %7494 = vmatpush1.msra.mxu0 0.0
  %7495 = vmatprep.subr.mxu0 0.0
  %7496 = vmatpush1.msra.mxu0 0.0
  %7497 = vmatprep.subr.mxu0 0.0
  %7498 = vmatpush1.msra.mxu0 0.0
  %7499 = vmatprep.subr.mxu0 0.0
  %7500 = vmatpush1.msra.mxu0 0.0
  %7501 = vmatprep.subr.mxu0 0.0
  %7502 = vmatpush1.msra.mxu0 0.0
  %7503 = vmatprep.subr.mxu0 0.0
  %7504 = vmatpush1.msra.mxu0 0.0
  %7505 = vmatprep.subr.mxu0 0.0
  %7506 = vmatpush1.msra.mxu0 0.0
  %7507 = vmatprep.subr.mxu0 0.0
  %7508 = vmatpush1.msra.mxu0 0.0
  %7509 = vmatprep.subr.mxu0 0.0
  %7510 = vmatpush1.msra.mxu0 0.0
  %7511 = vmatprep.subr.mxu0 0.0
  %7512 = vmatpush1.msra.mxu0 0.0
  %7513 = vmatprep.subr.mxu0 0.0
  %7514 = vmatpush1.msra.mxu0 0.0
  %7515 = vmatprep.subr.mxu0 0.0
  %7516 = vmatpush1.msra.mxu0 0.0
  %7517 = vmatprep.subr.mxu0 0.0
  %7518 = vmatpush1.msra.mxu0 0.0
  %7519 = vmatprep.subr.mxu0 0.0
  %7520 = vmatpush1.msra.mxu0 0.0
  %7521 = vmatprep.subr.mxu0 0.0
  %7522 = vmatpush1.msra.mxu0 0.0
  %7523 = vmatprep.subr.mxu0 0.0
  %7524 = vmatpush1.msra.mxu0 0.0
  %7525 = vmatprep.subr.mxu0 0.0
  %7526 = vmatpush1.msra.mxu0 0.0
  %7527 = vmatprep.subr.mxu0 0.0
  %7528 = vmatpush1.msra.mxu0 0.0
  %7529 = vmatprep.subr.mxu0 0.0
  %7530 = vmatpush1.msra.mxu0 0.0
  %7531 = vmatprep.subr.mxu0 0.0
  %7532 = vmatpush1.msra.mxu0 0.0
  %7533 = vmatprep.subr.mxu0 0.0
  %7534 = vmatpush1.msra.mxu0 0.0
  %7535 = vmatprep.mubr.f32.mxu0 0.0
  %7536 = vmatmul.mubr.f32.gmra.mrb[0].mxu0 %v7389
  %v7537 = vpop.f32.mrb[0].mxu0
  %v7538 = vadd.f32 %v7381, %v7537
  %v7539 = vpop.f32.mrb[0].mxu0
  %v7540 = vadd.f32 %v7381, %v7539
  %7541 = vmatprep.mubr.f32.mxu0 0.0
  %7542 = vmatmul.mubr.f32.gmra.mrb[0].mxu0 %v7392
  %v7543 = vpop.f32.mrb[0].mxu0
  %v7544 = vadd.f32 %v7386, %v7543
  %v7545 = vpop.f32.mrb[0].mxu0
  %v7546 = vadd.f32 %v7386, %v7545
  %7547 = vdwg.mxu0
  %7548 = vmatprep.subr.mxu0 %v7317
  %7549 = vmatpush1.msra.mxu0 %v7316
  %7550 = vmatprep.subr.mxu0 %v7325
  %7551 = vmatpush1.msra.mxu0 %v7324
  %7552 = vmatprep.subr.mxu0 %v7333
  %7553 = vmatpush1.msra.mxu0 %v7332
  %7554 = vmatprep.subr.mxu0 %v7341
  %7555 = vmatpush1.msra.mxu0 %v7340
  %7556 = vmatprep.subr.mxu0 %v7349
  %7557 = vmatpush1.msra.mxu0 %v7348
  %7558 = vmatprep.subr.mxu0 %v7357
  %7559 = vmatpush1.msra.mxu0 %v7356
  %7560 = vmatprep.subr.mxu0 %v7365
  %7561 = vmatpush1.msra.mxu0 %v7364
  %7562 = vmatprep.subr.mxu0 %v7373
  %7563 = vmatpush1.msra.mxu0 %v7372
  %7564 = vmatprep.subr.mxu0 0.0
  %7565 = vmatpush1.msra.mxu0 0.0
  %7566 = vmatprep.subr.mxu0 0.0
  %7567 = vmatpush1.msra.mxu0 0.0
  %7568 = vmatprep.subr.mxu0 0.0
  %7569 = vmatpush1.msra.mxu0 0.0
  %7570 = vmatprep.subr.mxu0 0.0
  %7571 = vmatpush1.msra.mxu0 0.0
  %7572 = vmatprep.subr.mxu0 0.0
  %7573 = vmatpush1.msra.mxu0 0.0
  %7574 = vmatprep.subr.mxu0 0.0
  %7575 = vmatpush1.msra.mxu0 0.0
  %7576 = vmatprep.subr.mxu0 0.0
  %7577 = vmatpush1.msra.mxu0 0.0
  %7578 = vmatprep.subr.mxu0 0.0
  %7579 = vmatpush1.msra.mxu0 0.0
  %7580 = vmatprep.subr.mxu0 0.0
  %7581 = vmatpush1.msra.mxu0 0.0
  %7582 = vmatprep.subr.mxu0 0.0
  %7583 = vmatpush1.msra.mxu0 0.0
  %7584 = vmatprep.subr.mxu0 0.0
  %7585 = vmatpush1.msra.mxu0 0.0
  %7586 = vmatprep.subr.mxu0 0.0
  %7587 = vmatpush1.msra.mxu0 0.0
  %7588 = vmatprep.subr.mxu0 0.0
  %7589 = vmatpush1.msra.mxu0 0.0
  %7590 = vmatprep.subr.mxu0 0.0
  %7591 = vmatpush1.msra.mxu0 0.0
  %7592 = vmatprep.subr.mxu0 0.0
  %7593 = vmatpush1.msra.mxu0 0.0
  %7594 = vmatprep.subr.mxu0 0.0
  %7595 = vmatpush1.msra.mxu0 0.0
  %7596 = vmatprep.subr.mxu0 0.0
  %7597 = vmatpush1.msra.mxu0 0.0
  %7598 = vmatprep.subr.mxu0 0.0
  %7599 = vmatpush1.msra.mxu0 0.0
  %7600 = vmatprep.subr.mxu0 0.0
  %7601 = vmatpush1.msra.mxu0 0.0
  %7602 = vmatprep.subr.mxu0 0.0
  %7603 = vmatpush1.msra.mxu0 0.0
  %7604 = vmatprep.subr.mxu0 0.0
  %7605 = vmatpush1.msra.mxu0 0.0
  %7606 = vmatprep.subr.mxu0 0.0
  %7607 = vmatpush1.msra.mxu0 0.0
  %7608 = vmatprep.subr.mxu0 0.0
  %7609 = vmatpush1.msra.mxu0 0.0
  %7610 = vmatprep.subr.mxu0 0.0
  %7611 = vmatpush1.msra.mxu0 0.0
  %7612 = vmatprep.mubr.f32.mxu0 0.0
  %7613 = vmatmul.mubr.f32.gmra.mrb[0].mxu0 %v7389
  %v7614 = vpop.f32.mrb[0].mxu0
  %v7615 = vadd.f32 %v7381, %v7614
  %v7616 = vpop.f32.mrb[0].mxu0
  %v7617 = vadd.f32 %v7381, %v7616
  %7618 = vmatprep.mubr.f32.mxu0 0.0
  %7619 = vmatmul.mubr.f32.gmra.mrb[0].mxu0 %v7392
  %v7620 = vpop.f32.mrb[0].mxu0
  %v7621 = vadd.f32 %v7386, %v7620
  %v7622 = vpop.f32.mrb[0].mxu0
  %v7623 = vadd.f32 %v7386, %v7622
  %7624 = vdwg.mxu0
  %7625 = vmatprep.subr.mxu0 %v7319
  %7626 = vmatpush1.msra.mxu0 %v7318
  %7627 = vmatprep.subr.mxu0 %v7327
  %7628 = vmatpush1.msra.mxu0 %v7326
  %7629 = vmatprep.subr.mxu0 %v7335
  %7630 = vmatpush1.msra.mxu0 %v7334
  %7631 = vmatprep.subr.mxu0 %v7343
  %7632 = vmatpush1.msra.mxu0 %v7342
  %7633 = vmatprep.subr.mxu0 %v7351
  %7634 = vmatpush1.msra.mxu0 %v7350
  %7635 = vmatprep.subr.mxu0 %v7359
  %7636 = vmatpush1.msra.mxu0 %v7358
  %7637 = vmatprep.subr.mxu0 %v7367
  %7638 = vmatpush1.msra.mxu0 %v7366
  %7639 = vmatprep.subr.mxu0 %v7375
  %7640 = vmatpush1.msra.mxu0 %v7374
  %7641 = vmatprep.subr.mxu0 0.0
  %7642 = vmatpush1.msra.mxu0 0.0
  %7643 = vmatprep.subr.mxu0 0.0
  %7644 = vmatpush1.msra.mxu0 0.0
  %7645 = vmatprep.subr.mxu0 0.0
  %7646 = vmatpush1.msra.mxu0 0.0
  %7647 = vmatprep.subr.mxu0 0.0
  %7648 = vmatpush1.msra.mxu0 0.0
  %7649 = vmatprep.subr.mxu0 0.0
  %7650 = vmatpush1.msra.mxu0 0.0
  %7651 = vmatprep.subr.mxu0 0.0
  %7652 = vmatpush1.msra.mxu0 0.0
  %7653 = vmatprep.subr.mxu0 0.0
  %7654 = vmatpush1.msra.mxu0 0.0
  %7655 = vmatprep.subr.mxu0 0.0
  %7656 = vmatpush1.msra.mxu0 0.0
  %7657 = vmatprep.subr.mxu0 0.0
  %7658 = vmatpush1.msra.mxu0 0.0
  %7659 = vmatprep.subr.mxu0 0.0
  %7660 = vmatpush1.msra.mxu0 0.0
  %7661 = vmatprep.subr.mxu0 0.0
  %7662 = vmatpush1.msra.mxu0 0.0
  %7663 = vmatprep.subr.mxu0 0.0
  %7664 = vmatpush1.msra.mxu0 0.0
  %7665 = vmatprep.subr.mxu0 0.0
  %7666 = vmatpush1.msra.mxu0 0.0
  %7667 = vmatprep.subr.mxu0 0.0
  %7668 = vmatpush1.msra.mxu0 0.0
  %7669 = vmatprep.subr.mxu0 0.0
  %7670 = vmatpush1.msra.mxu0 0.0
  %7671 = vmatprep.subr.mxu0 0.0
  %7672 = vmatpush1.msra.mxu0 0.0
  %7673 = vmatprep.subr.mxu0 0.0
  %7674 = vmatpush1.msra.mxu0 0.0
  %7675 = vmatprep.subr.mxu0 0.0
  %7676 = vmatpush1.msra.mxu0 0.0
  %7677 = vmatprep.subr.mxu0 0.0
  %7678 = vmatpush1.msra.mxu0 0.0
  %7679 = vmatprep.subr.mxu0 0.0
  %7680 = vmatpush1.msra.mxu0 0.0
  %7681 = vmatprep.subr.mxu0 0.0
  %7682 = vmatpush1.msra.mxu0 0.0
  %7683 = vmatprep.subr.mxu0 0.0
  %7684 = vmatpush1.msra.mxu0 0.0
  %7685 = vmatprep.subr.mxu0 0.0
  %7686 = vmatpush1.msra.mxu0 0.0
  %7687 = vmatprep.subr.mxu0 0.0
  %7688 = vmatpush1.msra.mxu0 0.0
  %7689 = vmatprep.mubr.f32.mxu0 0.0
  %7690 = vmatmul.mubr.f32.gmra.mrb[0].mxu0 %v7389
  %v7691 = vpop.f32.mrb[0].mxu0
  %v7692 = vadd.f32 %v7381, %v7691
  %v7693 = vpop.f32.mrb[0].mxu0
  %v7694 = vadd.f32 %v7381, %v7693
  %7695 = vmatprep.mubr.f32.mxu0 0.0
  %7696 = vmatmul.mubr.f32.gmra.mrb[0].mxu0 %v7392
  %v7697 = vpop.f32.mrb[0].mxu0
  %v7698 = vadd.f32 %v7386, %v7697
  %v7699 = vpop.f32.mrb[0].mxu0
  %v7700 = vadd.f32 %v7386, %v7699
  %7701 = vdwg.mxu0
  %7702 = vst [vmem:[%s10] sm:$0xff] %v7461
  %7703 = vst [vmem:[%s10 + $0x8] sm:$0xff] %v7463
  %7704 = vst [vmem:[%s10 + $0x10] sm:$0xff] %v7538
  %7705 = vst [vmem:[%s10 + $0x18] sm:$0xff] %v7540
  %7706 = vst [vmem:[%s10 + $0x20] sm:$0xff] %v7615
  %7707 = vst [vmem:[%s10 + $0x28] sm:$0xff] %v7617
  %7708 = vst [vmem:[%s10 + $0x30] sm:$0xff] %v7692
  %7709 = vst [vmem:[%s10 + $0x38] sm:$0xff] %v7694
  %7710 = vst [vmem:[%s10 + $0x40] sm:$0xff] %v7467
  %7711 = vst [vmem:[%s10 + $0x48] sm:$0xff] %v7469
  %7712 = vst [vmem:[%s10 + $0x50] sm:$0xff] %v7544
  %7713 = vst [vmem:[%s10 + $0x58] sm:$0xff] %v7546
  %7714 = vst [vmem:[%s10 + $0x60] sm:$0xff] %v7621
  %7715 = vst [vmem:[%s10 + $0x68] sm:$0xff] %v7623
  %7716 = vst [vmem:[%s10 + $0x70] sm:$0xff] %v7698
  %7717 = vst [vmem:[%s10 + $0x78] sm:$0xff] %v7700
  // Predicated region
  $region38: #{lstm_ae_forward.1} parent=0 // pred_check
    _
  $region39: #{lstm_ae_forward.1} parent=0 // pred_check_branch
    %7719 = sbr.rel (0) target = $region41
  $region40: #{lstm_ae_forward.1} parent=0 // pred_region
    _
  $region41: #{lstm_ae_forward.1} parent=0 // pred_fallthru
    _
  // Predicated region
  $region42: #{lstm_ae_forward.1} parent=0 // pred_check
    _
  $region43: #{lstm_ae_forward.1} parent=0 // pred_check_branch
    %7721 = sbr.rel (0) target = $region45
  $region44: #{lstm_ae_forward.1} parent=0 // pred_region
    _
  $region45: #{lstm_ae_forward.1} parent=0 // pred_fallthru
    _
  // Predicated region
  $region46: #{lstm_ae_forward.1} parent=0 // pred_check
    _
  $region47: #{lstm_ae_forward.1} parent=0 // pred_check_branch
    %7723 = sbr.rel (0) target = $region49
  $region48: #{lstm_ae_forward.1} parent=0 // pred_region
    _
  $region49: #{lstm_ae_forward.1} parent=0 // pred_fallthru
    _
  // Predicated region
  $region50: #{lstm_ae_forward.1} parent=0 // pred_check
    _
  $region51: #{lstm_ae_forward.1} parent=0 // pred_check_branch
    %7725 = sbr.rel (0) target = $region53
  $region52: #{lstm_ae_forward.1} parent=0 // pred_region
    _
  $region53: #{lstm_ae_forward.1} parent=0 // pred_fallthru
    _

</llo_original>
